<compile_context>
chip_gen: v7x
topology: tpu7x:2x2x1
jax: 0.10.0
libtpu: 0.0.40
codegen_flags: <defaults>
</compile_context>

<pallas_src>
import jax
import jax.numpy as jnp
from jax import lax
from jax.experimental import pallas as pl
from jax.experimental.pallas import tpu as pltpu

_EPS = 1e-5  # PyTorch BatchNorm2d default eps


# ----------------------------------------------------------------------------
# Host-side operator construction
# ----------------------------------------------------------------------------
def _up_matrix(n_out, n_in):
    """(n_out, n_in) interpolation matrix for x2 bilinear upsampling
    (nn.Upsample(scale_factor=2, mode='bilinear'), align_corners=False)."""
    o = jnp.arange(n_out, dtype=jnp.float32)
    src = (o + 0.5) * (float(n_in) / float(n_out)) - 0.5
    i0 = jnp.floor(src)
    f = src - i0
    i0c = jnp.clip(i0, 0, n_in - 1).astype(jnp.int32)
    i1c = jnp.clip(i0 + 1.0, 0, n_in - 1).astype(jnp.int32)
    rows = jnp.arange(n_out)
    u = jnp.zeros((n_out, n_in), jnp.float32)
    u = u.at[rows, i0c].add(1.0 - f)
    u = u.at[rows, i1c].add(f)
    return u


def _fold_bn(bn):
    g, b, m, v = bn
    s = g / jnp.sqrt(v + _EPS)
    return s, b - m * s


def _shift_eye(n, d):
    """M[i, j] = 1 iff i == j + d  (input index = output index + offset)."""
    i = jnp.arange(n)
    return (i[:, None] == (i[None, :] + d)).astype(jnp.float32)


def _conv3x3_slab_operator(w_scaled, H, W):
    """Dense slab-space operator for a 3x3, padding=1, 2->2 conv (BN scale folded).

    Returns G of shape (2, H*W, 2*H*W): for input channel ci, G[ci] maps the
    flattened (H*W,) input plane to the concatenation [out_ch0 | out_ch1]."""
    taps = [[jnp.kron(_shift_eye(H, ky - 1), _shift_eye(W, kx - 1))
             for kx in range(3)] for ky in range(3)]
    per_ci = []
    for ci in range(2):
        per_o = []
        for o in range(2):
            g = jnp.zeros((H * W, H * W), jnp.float32)
            for ky in range(3):
                for kx in range(3):
                    g = g + w_scaled[o, ci, ky, kx] * taps[ky][kx]
            per_o.append(g)
        per_ci.append(jnp.concatenate(per_o, axis=1))     # (HW, 2*HW)
    return jnp.stack(per_ci, axis=0)                      # (2, HW, 2*HW)


# ----------------------------------------------------------------------------
# Pallas implementation
# ----------------------------------------------------------------------------
def iea_forward(x1, x2, P):
    """x1: (B, 32, H, W); x2: (B, 64, H/2, W/2). Returns (edge (B,2,2H,2W), out (B,32,2H,2W))."""
    B, C1, H, W = x1.shape
    _, C2, H2, W2 = x2.shape
    assert C1 == 32 and C2 == 64 and H == 2 * H2 and W == 2 * W2
    HO, WO = 2 * H, 2 * W
    HW, H2W2, HOWO = H * W, H2 * W2, HO * WO
    f32 = jnp.float32

    # ---- fold BatchNorms (inference-mode running stats) into weights / biases ----
    s1a, b1a = _fold_bn(P['bn1a']); s1b, b1b = _fold_bn(P['bn1b'])
    s2a, b2a = _fold_bn(P['bn2a']); s2b, b2b = _fold_bn(P['bn2b'])
    sea, bea = _fold_bn(P['bnea']); seb, beb = _fold_bn(P['bneb'])
    soa, boa = _fold_bn(P['bnoa']); sob, bob = _fold_bn(P['bnob'])

    w1a_s = jnp.asarray(P['w1a'], f32) * s1a[:, None]          # (2, 32)
    w2a_s = jnp.asarray(P['w2a'], f32) * s2a[:, None]          # (2, 64)
    wea_s = jnp.asarray(P['wea'], f32) * sea[:, None]          # (2, 4)
    web_s = jnp.asarray(P['web'], f32) * seb[:, None]          # (2, 2)
    woa_s = jnp.asarray(P['woa'], f32) * soa[:, None]          # (32, 4)
    wob_s = jnp.asarray(P['wob'], f32) * sob[:, None]          # (32, 32)
    g1 = _conv3x3_slab_operator(jnp.asarray(P['w1b'], f32) * s1b[:, None, None, None], H, W)
    g2 = _conv3x3_slab_operator(jnp.asarray(P['w2b'], f32) * s2b[:, None, None, None], H, W)

    b1a_c, b1b_c = b1a[:, None], b1b[:, None]
    b2a_c, b2b_c = b2a[:, None], b2b[:, None]
    bea_c, beb_c = bea[:, None], beb[:, None]
    boa_c, bob_c = boa[:, None], bob[:, None]

    # Bilinear x2 upsampling as right-multiplication slab operators (all channels batched).
    ust = jnp.kron(_up_matrix(H, H2), _up_matrix(W, W2)).T     # (H2*W2, H*W)
    ubt = jnp.kron(_up_matrix(HO, H), _up_matrix(WO, W)).T     # (H*W, HO*WO)

    # Lane-dense slabs in HBM.
    x1r = jnp.asarray(x1, f32).reshape(B, 32, HW)
    x2r = jnp.asarray(x2, f32).reshape(B, 64, H2W2)

    def kernel(x1_ref, x2_ref,
               w1a_ref, b1a_ref, g1_ref, b1b_ref,
               w2a_ref, b2a_ref, ust_ref, g2_ref, b2b_ref,
               wea_ref, bea_ref, web_ref, beb_ref,
               woa_ref, boa_ref, wob_ref, bob_ref, ubt_ref,
               edge_ref, out_ref,
               t_ref, ic_ref):

        def mm(a, b):
            # f32 matmul via bf16 hi/lo 3-pass split (f32 accumulate) so accuracy
            # does not depend on the backend's default MXU matmul precision.
            a_hi = a.astype(jnp.bfloat16).astype(f32)
            a_lo = a - a_hi
            b_hi = b.astype(jnp.bfloat16).astype(f32)
            b_lo = b - b_hi
            d = lambda u, v: jnp.dot(u, v, preferred_element_type=f32)
            return d(a_hi, b_hi) + d(a_lo, b_hi) + d(a_hi, b_lo)

        def conv3x3_into(g_ref, bias_ref, rows):
            # t_ref (2, HW) holds the conv input planes; G[ci] maps plane ci to
            # the concatenated [out0 | out1] flattened planes.
            contrib = (mm(t_ref[0:1, :], g_ref[0])
                       + mm(t_ref[1:2, :], g_ref[1]))                    # (1, 2*HW)
            ic_ref[rows:rows + 1, :] = jnp.maximum(contrib[:, :HW] + bias_ref[0:1, :], 0.0)
            ic_ref[rows + 1:rows + 2, :] = jnp.maximum(contrib[:, HW:] + bias_ref[1:2, :], 0.0)

        # ---------------- input_conv_1: 1x1(32->2)+BN+ReLU, 3x3(2->2)+BN+ReLU ---
        t_ref[...] = jnp.maximum(mm(w1a_ref[...], x1_ref[0]) + b1a_ref[...], 0.0)
        conv3x3_into(g1_ref, b1b_ref, 0)

        # ---------------- input_conv_2 ------------------------------------------
        # 1x1 conv (64->2) + folded BN commute exactly with the bilinear upsample
        # (interpolation rows sum to 1), so only 2 channels are interpolated.
        # ReLU and the 3x3 conv stay after the upsample, as in the PyTorch graph.
        low = mm(w2a_ref[...], x2_ref[0]) + b2a_ref[...]                   # (2, H2*W2)
        t_ref[...] = jnp.maximum(mm(low, ust_ref[...]), 0.0)               # (2, H*W)
        conv3x3_into(g2_ref, b2b_ref, 2)

        ic = ic_ref[...]                 # (4, HW)  == torch.cat along channels
        ubt_v = ubt_ref[...]

        # ---------------- output_edge_conv --------------------------------------
        m = jnp.maximum(mm(wea_ref[...], ic) + bea_ref[...], 0.0)          # (2, HW)
        llow = mm(web_ref[...], m) + beb_ref[...]                          # (2, HW): 1x1+BN commuted before upsample
        logits = mm(llow, ubt_v)                                           # (2, HO*WO)
        mx = jnp.max(logits, axis=0, keepdims=True)
        e = jnp.exp(logits - mx)
        inv = pl.reciprocal(jnp.sum(e, axis=0, keepdims=True), approx=True)
        edge_ref[0] = (e * inv).astype(edge_ref.dtype)

        # ---------------- output_conv -------------------------------------------
        z = jnp.maximum(mm(woa_ref[...], ic) + boa_ref[...], 0.0)          # (32, HW)
        ylow = mm(wob_ref[...], z) + bob_ref[...]                          # (32, HW): 1x1+BN commuted before upsample
        out_ref[0] = jnp.maximum(mm(ylow, ubt_v), 0.0).astype(out_ref.dtype)

    def _const(arr):
        nd = arr.ndim
        return pl.BlockSpec(arr.shape, lambda b, _n=nd: (0,) * _n)

    in_specs = [
        pl.BlockSpec((1, 32, HW), lambda b: (b, 0, 0)),
        pl.BlockSpec((1, 64, H2W2), lambda b: (b, 0, 0)),
        _const(w1a_s), _const(b1a_c), _const(g1), _const(b1b_c),
        _const(w2a_s), _const(b2a_c), _const(ust), _const(g2), _const(b2b_c),
        _const(wea_s), _const(bea_c), _const(web_s), _const(beb_c),
        _const(woa_s), _const(boa_c), _const(wob_s), _const(bob_c), _const(ubt),
    ]
    out_specs = [
        pl.BlockSpec((1, 2, HOWO), lambda b: (b, 0, 0)),
        pl.BlockSpec((1, 32, HOWO), lambda b: (b, 0, 0)),
    ]

    # Advisory cost estimate.
    def _mmf(m, k, n):
        return 2 * m * k * n
    per_b = (_mmf(2, 32, HW) + 2 * _mmf(1, HW, 2 * HW)                       # input_conv_1
             + _mmf(2, 64, H2W2) + _mmf(2, H2W2, HW) + 2 * _mmf(1, HW, 2 * HW)  # input_conv_2
             + _mmf(2, 4, HW) + _mmf(2, 2, HW) + _mmf(2, HW, HOWO)           # edge head
             + _mmf(32, 4, HW) + _mmf(32, 32, HW) + _mmf(32, HW, HOWO))      # main head
    const_bytes = 4 * int(g1.size + g2.size + ust.size + ubt.size
                          + w1a_s.size + w2a_s.size + wea_s.size + web_s.size
                          + woa_s.size + wob_s.size + 76)
    cost = pl.CostEstimate(
        flops=int(3 * B * per_b),                       # 3-pass f32 emulation
        transcendentals=int(B * 2 * HOWO),
        bytes_accessed=int(4 * B * (32 * HW + 64 * H2W2 + 34 * HOWO) + const_bytes))

    grid_spec = pltpu.PrefetchScalarGridSpec(
        num_scalar_prefetch=0,
        grid=(B,),
        in_specs=in_specs,
        out_specs=out_specs,
        scratch_shapes=[
            pltpu.VMEM((2, HW), f32),    # conv input planes (t1 / t2, reused)
            pltpu.VMEM((4, HW), f32),    # concatenated intermediate ic
        ],
    )

    edge, out = pl.pallas_call(
        kernel,
        out_shape=(jax.ShapeDtypeStruct((B, 2, HOWO), f32),
                   jax.ShapeDtypeStruct((B, 32, HOWO), f32)),
        grid_spec=grid_spec,
        compiler_params=pltpu.CompilerParams(
            dimension_semantics=("parallel",),
            vmem_limit_bytes=32 * 1024 * 1024),
        cost_estimate=cost,
    )(x1r, x2r,
      w1a_s, b1a_c, g1, b1b_c,
      w2a_s, b2a_c, ust, g2, b2b_c,
      wea_s, bea_c, web_s, beb_c,
      woa_s, boa_c, wob_s, bob_c, ubt)

    return edge.reshape(B, 2, HO, WO), out.reshape(B, 32, HO, WO)


# ----------------------------------------------------------------------------
# Pure-JAX reference (follows the PyTorch op order exactly, inference-mode BN)
# ----------------------------------------------------------------------------
def _bn_ref(x, bn):
    g, b, m, v = bn
    inv = g / jnp.sqrt(v + _EPS)
    return (x - m[None, :, None, None]) * inv[None, :, None, None] + b[None, :, None, None]


def _conv1x1_ref(x, w):
    return jnp.einsum('bchw,oc->bohw', x, w, precision=lax.Precision.HIGHEST)


def _conv3x3_ref(x, w):
    return lax.conv_general_dilated(
        x, w, window_strides=(1, 1), padding=((1, 1), (1, 1)),
        dimension_numbers=('NCHW', 'OIHW', 'NCHW'),
        precision=lax.Precision.HIGHEST)


def _up2_ref(x):
    """Bilinear x2 upsample, align_corners=False (gather formulation)."""
    _, _, H, W = x.shape

    def coords(n):
        o = jnp.arange(2 * n, dtype=jnp.float32)
        src = jnp.maximum((o + 0.5) * 0.5 - 0.5, 0.0)
        i0 = jnp.floor(src).astype(jnp.int32)
        i1 = jnp.minimum(i0 + 1, n - 1)
        f = src - i0.astype(jnp.float32)
        return i0, i1, f

    h0, h1, fh = coords(H)
    w0, w1, fw = coords(W)
    xh = (x[:, :, h0, :] * (1.0 - fh)[None, None, :, None]
          + x[:, :, h1, :] * fh[None, None, :, None])
    return (xh[:, :, :, w0] * (1.0 - fw)[None, None, None, :]
            + xh[:, :, :, w1] * fw[None, None, None, :])


def iea_ref(x1, x2, P):
    a = jnp.maximum(_bn_ref(_conv1x1_ref(x1, P['w1a']), P['bn1a']), 0.0)
    a = jnp.maximum(_bn_ref(_conv3x3_ref(a, P['w1b']), P['bn1b']), 0.0)

    b = _up2_ref(x2)
    b = jnp.maximum(_bn_ref(_conv1x1_ref(b, P['w2a']), P['bn2a']), 0.0)
    b = jnp.maximum(_bn_ref(_conv3x3_ref(b, P['w2b']), P['bn2b']), 0.0)

    ic = jnp.concatenate([a, b], axis=1)

    e = jnp.maximum(_bn_ref(_conv1x1_ref(ic, P['wea']), P['bnea']), 0.0)
    e = _up2_ref(e)
    e = _bn_ref(_conv1x1_ref(e, P['web']), P['bneb'])
    e = jax.nn.softmax(e, axis=1)

    m = jnp.maximum(_bn_ref(_conv1x1_ref(ic, P['woa']), P['bnoa']), 0.0)
    m = _up2_ref(m)
    m = jnp.maximum(_bn_ref(_conv1x1_ref(m, P['wob']), P['bnob']), 0.0)
    return e, m


# ----------------------------------------------------------------------------
# Deterministic synthetic parameters
# ----------------------------------------------------------------------------
def init_params(key):
    ks = jax.random.split(key, 16)

    def w(k, shape, fan_in):
        return jax.random.normal(k, shape, jnp.float32) / jnp.sqrt(float(fan_in))

    def bn(k, c):
        k1, k2, k3, k4 = jax.random.split(k, 4)
        return (1.0 + 0.1 * jax.random.normal(k1, (c,), jnp.float32),   # gamma
                0.1 * jax.random.normal(k2, (c,), jnp.float32),         # beta
                0.1 * jax.random.normal(k3, (c,), jnp.float32),         # running_mean
                0.5 + jax.random.uniform(k4, (c,), jnp.float32))        # running_var

    return {
        'w1a': w(ks[0], (2, 32), 32),       'bn1a': bn(ks[1], 2),
        'w1b': w(ks[2], (2, 2, 3, 3), 18),  'bn1b': bn(ks[3], 2),
        'w2a': w(ks[4], (2, 64), 64),       'bn2a': bn(ks[5], 2),
        'w2b': w(ks[6], (2, 2, 3, 3), 18),  'bn2b': bn(ks[7], 2),
        'wea': w(ks[8], (2, 4), 4),         'bnea': bn(ks[9], 2),
        'web': w(ks[10], (2, 2), 2),        'bneb': bn(ks[11], 2),
        'woa': w(ks[12], (32, 4), 4),       'bnoa': bn(ks[13], 32),
        'wob': w(ks[14], (32, 32), 32),     'bnob': bn(ks[15], 32),
    }


if __name__ == "__main__":
    B, H, W = 2, 16, 16
    key = jax.random.PRNGKey(0)
    kx1, kx2, kp = jax.random.split(key, 3)
    x1 = jax.random.normal(kx1, (B, 32, H, W), jnp.float32)
    x2 = jax.random.normal(kx2, (B, 64, H // 2, W // 2), jnp.float32)
    P = init_params(kp)

    edge_out, main_out = iea_forward(x1, x2, P)
    edge_out, main_out = jax.block_until_ready((edge_out, main_out))

    edge_ref, main_ref = iea_ref(x1, x2, P)

    assert edge_out.shape == (B, 2, 2 * H, 2 * W)
    assert main_out.shape == (B, 32, 2 * H, 2 * W)
    # Tolerance covers the approximate-reciprocal softmax and summation-order
    # differences of the slab-operator formulation.
    assert jnp.allclose(edge_out, edge_ref, atol=2e-2, rtol=2e-2), "edge output mismatch"
    assert jnp.allclose(main_out, main_ref, atol=2e-2, rtol=2e-2), "main output mismatch"
    print("KERNEL_OK")
</pallas_src>

<mosaic_0001>
module attributes {stable_mosaic.version = 11 : i64} {
  func.func @kernel(%arg0: i32, %arg1: memref<1x32x256xf32, #tpu.memory_space<vmem>>, %arg2: memref<1x64x64xf32, #tpu.memory_space<vmem>>, %arg3: memref<2x32xf32, #tpu.memory_space<vmem>>, %arg4: memref<2x1xf32, #tpu.memory_space<vmem>>, %arg5: memref<2x256x512xf32, #tpu.memory_space<vmem>>, %arg6: memref<2x1xf32, #tpu.memory_space<vmem>>, %arg7: memref<2x64xf32, #tpu.memory_space<vmem>>, %arg8: memref<2x1xf32, #tpu.memory_space<vmem>>, %arg9: memref<64x256xf32, #tpu.memory_space<vmem>>, %arg10: memref<2x256x512xf32, #tpu.memory_space<vmem>>, %arg11: memref<2x1xf32, #tpu.memory_space<vmem>>, %arg12: memref<2x4xf32, #tpu.memory_space<vmem>>, %arg13: memref<2x1xf32, #tpu.memory_space<vmem>>, %arg14: memref<2x2xf32, #tpu.memory_space<vmem>>, %arg15: memref<2x1xf32, #tpu.memory_space<vmem>>, %arg16: memref<32x4xf32, #tpu.memory_space<vmem>>, %arg17: memref<32x1xf32, #tpu.memory_space<vmem>>, %arg18: memref<32x32xf32, #tpu.memory_space<vmem>>, %arg19: memref<32x1xf32, #tpu.memory_space<vmem>>, %arg20: memref<256x1024xf32, #tpu.memory_space<vmem>>, %arg21: memref<1x2x1024xf32, #tpu.memory_space<vmem>>, %arg22: memref<1x32x1024xf32, #tpu.memory_space<vmem>>, %arg23: memref<2x256xf32, #tpu.memory_space<vmem>>, %arg24: memref<4x256xf32, #tpu.memory_space<vmem>>) attributes {dimension_semantics = [#tpu.dimension_semantics<parallel>], iteration_bounds = array<i64: 2>, scalar_prefetch = 0 : i64, scratch_operands = 2 : i64, tpu.core_type = #tpu.core_type<tc>, window_params = [{transform_indices = @transform_0, window_bounds = array<i64: 1, 32, 256>}, {transform_indices = @transform_1, window_bounds = array<i64: 1, 64, 64>}, {pipeline_mode = #tpu.pipeline_mode<synchronous>, transform_indices = @transform_2, window_bounds = array<i64: 2, 32>}, {pipeline_mode = #tpu.pipeline_mode<synchronous>, transform_indices = @transform_3, window_bounds = array<i64: 2, 1>}, {pipeline_mode = #tpu.pipeline_mode<synchronous>, transform_indices = @transform_4, window_bounds = array<i64: 2, 256, 512>}, {pipeline_mode = #tpu.pipeline_mode<synchronous>, transform_indices = @transform_5, window_bounds = array<i64: 2, 1>}, {pipeline_mode = #tpu.pipeline_mode<synchronous>, transform_indices = @transform_6, window_bounds = array<i64: 2, 64>}, {pipeline_mode = #tpu.pipeline_mode<synchronous>, transform_indices = @transform_7, window_bounds = array<i64: 2, 1>}, {pipeline_mode = #tpu.pipeline_mode<synchronous>, transform_indices = @transform_8, window_bounds = array<i64: 64, 256>}, {pipeline_mode = #tpu.pipeline_mode<synchronous>, transform_indices = @transform_9, window_bounds = array<i64: 2, 256, 512>}, {pipeline_mode = #tpu.pipeline_mode<synchronous>, transform_indices = @transform_10, window_bounds = array<i64: 2, 1>}, {pipeline_mode = #tpu.pipeline_mode<synchronous>, transform_indices = @transform_11, window_bounds = array<i64: 2, 4>}, {pipeline_mode = #tpu.pipeline_mode<synchronous>, transform_indices = @transform_12, window_bounds = array<i64: 2, 1>}, {pipeline_mode = #tpu.pipeline_mode<synchronous>, transform_indices = @transform_13, window_bounds = array<i64: 2, 2>}, {pipeline_mode = #tpu.pipeline_mode<synchronous>, transform_indices = @transform_14, window_bounds = array<i64: 2, 1>}, {pipeline_mode = #tpu.pipeline_mode<synchronous>, transform_indices = @transform_15, window_bounds = array<i64: 32, 4>}, {pipeline_mode = #tpu.pipeline_mode<synchronous>, transform_indices = @transform_16, window_bounds = array<i64: 32, 1>}, {pipeline_mode = #tpu.pipeline_mode<synchronous>, transform_indices = @transform_17, window_bounds = array<i64: 32, 32>}, {pipeline_mode = #tpu.pipeline_mode<synchronous>, transform_indices = @transform_18, window_bounds = array<i64: 32, 1>}, {pipeline_mode = #tpu.pipeline_mode<synchronous>, transform_indices = @transform_19, window_bounds = array<i64: 256, 1024>}, {transform_indices = @transform_20, window_bounds = array<i64: 1, 2, 1024>}, {transform_indices = @transform_21, window_bounds = array<i64: 1, 32, 1024>}]} {
    %c0 = arith.constant 0 : index
    %c0_0 = arith.constant 0 : index
    %0 = vector.load %arg3[%c0, %c0_0] : memref<2x32xf32, #tpu.memory_space<vmem>>, vector<2x32xf32>
    %c0_1 = arith.constant 0 : index
    %c0_2 = arith.constant 0 : index
    %c0_3 = arith.constant 0 : index
    %1 = vector.load %arg1[%c0_1, %c0_2, %c0_3] : memref<1x32x256xf32, #tpu.memory_space<vmem>>, vector<1x32x256xf32>
    %2 = vector.shape_cast %1 : vector<1x32x256xf32> to vector<32x256xf32>
    %3 = arith.truncf %0 : vector<2x32xf32> to vector<2x32xbf16>
    %4 = arith.extf %3 : vector<2x32xbf16> to vector<2x32xf32>
    %5 = arith.subf %0, %4 : vector<2x32xf32>
    %6 = arith.truncf %2 : vector<32x256xf32> to vector<32x256xbf16>
    %7 = arith.extf %6 : vector<32x256xbf16> to vector<32x256xf32>
    %8 = arith.subf %2, %7 : vector<32x256xf32>
    %cst = arith.constant dense<0.000000e+00> : vector<2x256xf32>
    %9 = tpu.matmul %4, %7, %cst {dimension_numbers = #tpu.dot_dimension_numbers<[1], [0], [0], [1], [0, 0, 1, 1], [], []>} : vector<2x32xf32>, vector<32x256xf32>, vector<2x256xf32> -> vector<2x256xf32>
    %cst_4 = arith.constant dense<0.000000e+00> : vector<2x256xf32>
    %10 = tpu.matmul %5, %7, %cst_4 {dimension_numbers = #tpu.dot_dimension_numbers<[1], [0], [0], [1], [0, 0, 1, 1], [], []>} : vector<2x32xf32>, vector<32x256xf32>, vector<2x256xf32> -> vector<2x256xf32>
    %11 = arith.addf %9, %10 : vector<2x256xf32>
    %cst_5 = arith.constant dense<0.000000e+00> : vector<2x256xf32>
    %12 = tpu.matmul %4, %8, %cst_5 {dimension_numbers = #tpu.dot_dimension_numbers<[1], [0], [0], [1], [0, 0, 1, 1], [], []>} : vector<2x32xf32>, vector<32x256xf32>, vector<2x256xf32> -> vector<2x256xf32>
    %13 = arith.addf %11, %12 : vector<2x256xf32>
    %c0_6 = arith.constant 0 : index
    %c0_7 = arith.constant 0 : index
    %14 = vector.load %arg4[%c0_6, %c0_7] : memref<2x1xf32, #tpu.memory_space<vmem>>, vector<2x1xf32>
    %15 = vector.broadcast %14 : vector<2x1xf32> to vector<2x256xf32>
    %16 = arith.addf %13, %15 : vector<2x256xf32>
    %cst_8 = arith.constant 0.000000e+00 : f32
    %17 = vector.broadcast %cst_8 : f32 to vector<2x256xf32>
    %18 = arith.maximumf %16, %17 : vector<2x256xf32>
    %c0_9 = arith.constant 0 : index
    %c0_10 = arith.constant 0 : index
    %19 = vector.load %arg23[%c0_9, %c0_10] : memref<2x256xf32, #tpu.memory_space<vmem>>, vector<2x256xf32>
    tpu.vector_store %arg23[%c0_9, %c0_10], %18 {strides = array<i32>} : memref<2x256xf32, #tpu.memory_space<vmem>>, vector<2x256xf32>,
    %c0_11 = arith.constant 0 : index
    %c0_12 = arith.constant 0 : index
    %20 = vector.load %arg23[%c0_11, %c0_12] : memref<2x256xf32, #tpu.memory_space<vmem>>, vector<1x256xf32>
    %c0_13 = arith.constant 0 : index
    %c0_14 = arith.constant 0 : index
    %c0_15 = arith.constant 0 : index
    %21 = vector.load %arg5[%c0_13, %c0_14, %c0_15] : memref<2x256x512xf32, #tpu.memory_space<vmem>>, vector<1x256x512xf32>
    %22 = vector.shape_cast %21 : vector<1x256x512xf32> to vector<256x512xf32>
    %23 = arith.truncf %20 : vector<1x256xf32> to vector<1x256xbf16>
    %24 = arith.extf %23 : vector<1x256xbf16> to vector<1x256xf32>
    %25 = arith.subf %20, %24 : vector<1x256xf32>
    %26 = arith.truncf %22 : vector<256x512xf32> to vector<256x512xbf16>
    %27 = arith.extf %26 : vector<256x512xbf16> to vector<256x512xf32>
    %28 = arith.subf %22, %27 : vector<256x512xf32>
    %cst_16 = arith.constant dense<0.000000e+00> : vector<1x512xf32>
    %29 = tpu.matmul %24, %27, %cst_16 {dimension_numbers = #tpu.dot_dimension_numbers<[1], [0], [0], [1], [0, 0, 1, 1], [], []>} : vector<1x256xf32>, vector<256x512xf32>, vector<1x512xf32> -> vector<1x512xf32>
    %cst_17 = arith.constant dense<0.000000e+00> : vector<1x512xf32>
    %30 = tpu.matmul %25, %27, %cst_17 {dimension_numbers = #tpu.dot_dimension_numbers<[1], [0], [0], [1], [0, 0, 1, 1], [], []>} : vector<1x256xf32>, vector<256x512xf32>, vector<1x512xf32> -> vector<1x512xf32>
    %31 = arith.addf %29, %30 : vector<1x512xf32>
    %cst_18 = arith.constant dense<0.000000e+00> : vector<1x512xf32>
    %32 = tpu.matmul %24, %28, %cst_18 {dimension_numbers = #tpu.dot_dimension_numbers<[1], [0], [0], [1], [0, 0, 1, 1], [], []>} : vector<1x256xf32>, vector<256x512xf32>, vector<1x512xf32> -> vector<1x512xf32>
    %33 = arith.addf %31, %32 : vector<1x512xf32>
    %c1 = arith.constant 1 : index
    %c0_19 = arith.constant 0 : index
    %34 = vector.load %arg23[%c1, %c0_19] : memref<2x256xf32, #tpu.memory_space<vmem>>, vector<1x256xf32>
    %c1_20 = arith.constant 1 : index
    %c0_21 = arith.constant 0 : index
    %c0_22 = arith.constant 0 : index
    %35 = vector.load %arg5[%c1_20, %c0_21, %c0_22] : memref<2x256x512xf32, #tpu.memory_space<vmem>>, vector<1x256x512xf32>
    %36 = vector.shape_cast %35 : vector<1x256x512xf32> to vector<256x512xf32>
    %37 = arith.truncf %34 : vector<1x256xf32> to vector<1x256xbf16>
    %38 = arith.extf %37 : vector<1x256xbf16> to vector<1x256xf32>
    %39 = arith.subf %34, %38 : vector<1x256xf32>
    %40 = arith.truncf %36 : vector<256x512xf32> to vector<256x512xbf16>
    %41 = arith.extf %40 : vector<256x512xbf16> to vector<256x512xf32>
    %42 = arith.subf %36, %41 : vector<256x512xf32>
    %cst_23 = arith.constant dense<0.000000e+00> : vector<1x512xf32>
    %43 = tpu.matmul %38, %41, %cst_23 {dimension_numbers = #tpu.dot_dimension_numbers<[1], [0], [0], [1], [0, 0, 1, 1], [], []>} : vector<1x256xf32>, vector<256x512xf32>, vector<1x512xf32> -> vector<1x512xf32>
    %cst_24 = arith.constant dense<0.000000e+00> : vector<1x512xf32>
    %44 = tpu.matmul %39, %41, %cst_24 {dimension_numbers = #tpu.dot_dimension_numbers<[1], [0], [0], [1], [0, 0, 1, 1], [], []>} : vector<1x256xf32>, vector<256x512xf32>, vector<1x512xf32> -> vector<1x512xf32>
    %45 = arith.addf %43, %44 : vector<1x512xf32>
    %cst_25 = arith.constant dense<0.000000e+00> : vector<1x512xf32>
    %46 = tpu.matmul %38, %42, %cst_25 {dimension_numbers = #tpu.dot_dimension_numbers<[1], [0], [0], [1], [0, 0, 1, 1], [], []>} : vector<1x256xf32>, vector<256x512xf32>, vector<1x512xf32> -> vector<1x512xf32>
    %47 = arith.addf %45, %46 : vector<1x512xf32>
    %48 = arith.addf %33, %47 : vector<1x512xf32>
    %49 = vector.extract_strided_slice %48 {offsets = [0, 0], sizes = [1, 256], strides = [1, 1]} : vector<1x512xf32> to vector<1x256xf32>
    %c0_26 = arith.constant 0 : index
    %c0_27 = arith.constant 0 : index
    %50 = vector.load %arg6[%c0_26, %c0_27] : memref<2x1xf32, #tpu.memory_space<vmem>>, vector<1x1xf32>
    %51 = vector.broadcast %50 : vector<1x1xf32> to vector<1x256xf32>
    %52 = arith.addf %49, %51 : vector<1x256xf32>
    %cst_28 = arith.constant 0.000000e+00 : f32
    %53 = vector.broadcast %cst_28 : f32 to vector<1x256xf32>
    %54 = arith.maximumf %52, %53 : vector<1x256xf32>
    %c0_29 = arith.constant 0 : index
    %c0_30 = arith.constant 0 : index
    %55 = vector.load %arg24[%c0_29, %c0_30] : memref<4x256xf32, #tpu.memory_space<vmem>>, vector<1x256xf32>
    tpu.vector_store %arg24[%c0_29, %c0_30], %54 {strides = array<i32>} : memref<4x256xf32, #tpu.memory_space<vmem>>, vector<1x256xf32>,
    %56 = vector.extract_strided_slice %48 {offsets = [0, 256], sizes = [1, 256], strides = [1, 1]} : vector<1x512xf32> to vector<1x256xf32>
    %c1_31 = arith.constant 1 : index
    %c0_32 = arith.constant 0 : index
    %57 = vector.load %arg6[%c1_31, %c0_32] : memref<2x1xf32, #tpu.memory_space<vmem>>, vector<1x1xf32>
    %58 = vector.broadcast %57 : vector<1x1xf32> to vector<1x256xf32>
    %59 = arith.addf %56, %58 : vector<1x256xf32>
    %cst_33 = arith.constant 0.000000e+00 : f32
    %60 = vector.broadcast %cst_33 : f32 to vector<1x256xf32>
    %61 = arith.maximumf %59, %60 : vector<1x256xf32>
    %c1_34 = arith.constant 1 : index
    %c0_35 = arith.constant 0 : index
    %62 = vector.load %arg24[%c1_34, %c0_35] : memref<4x256xf32, #tpu.memory_space<vmem>>, vector<1x256xf32>
    tpu.vector_store %arg24[%c1_34, %c0_35], %61 {strides = array<i32>} : memref<4x256xf32, #tpu.memory_space<vmem>>, vector<1x256xf32>,
    %c0_36 = arith.constant 0 : index
    %c0_37 = arith.constant 0 : index
    %63 = vector.load %arg7[%c0_36, %c0_37] : memref<2x64xf32, #tpu.memory_space<vmem>>, vector<2x64xf32>
    %c0_38 = arith.constant 0 : index
    %c0_39 = arith.constant 0 : index
    %c0_40 = arith.constant 0 : index
    %64 = vector.load %arg2[%c0_38, %c0_39, %c0_40] : memref<1x64x64xf32, #tpu.memory_space<vmem>>, vector<1x64x64xf32>
    %65 = vector.shape_cast %64 : vector<1x64x64xf32> to vector<64x64xf32>
    %66 = arith.truncf %63 : vector<2x64xf32> to vector<2x64xbf16>
    %67 = arith.extf %66 : vector<2x64xbf16> to vector<2x64xf32>
    %68 = arith.subf %63, %67 : vector<2x64xf32>
    %69 = arith.truncf %65 : vector<64x64xf32> to vector<64x64xbf16>
    %70 = arith.extf %69 : vector<64x64xbf16> to vector<64x64xf32>
    %71 = arith.subf %65, %70 : vector<64x64xf32>
    %cst_41 = arith.constant dense<0.000000e+00> : vector<2x64xf32>
    %72 = tpu.matmul %67, %70, %cst_41 {dimension_numbers = #tpu.dot_dimension_numbers<[1], [0], [0], [1], [0, 0, 1, 1], [], []>} : vector<2x64xf32>, vector<64x64xf32>, vector<2x64xf32> -> vector<2x64xf32>
    %cst_42 = arith.constant dense<0.000000e+00> : vector<2x64xf32>
    %73 = tpu.matmul %68, %70, %cst_42 {dimension_numbers = #tpu.dot_dimension_numbers<[1], [0], [0], [1], [0, 0, 1, 1], [], []>} : vector<2x64xf32>, vector<64x64xf32>, vector<2x64xf32> -> vector<2x64xf32>
    %74 = arith.addf %72, %73 : vector<2x64xf32>
    %cst_43 = arith.constant dense<0.000000e+00> : vector<2x64xf32>
    %75 = tpu.matmul %67, %71, %cst_43 {dimension_numbers = #tpu.dot_dimension_numbers<[1], [0], [0], [1], [0, 0, 1, 1], [], []>} : vector<2x64xf32>, vector<64x64xf32>, vector<2x64xf32> -> vector<2x64xf32>
    %76 = arith.addf %74, %75 : vector<2x64xf32>
    %c0_44 = arith.constant 0 : index
    %c0_45 = arith.constant 0 : index
    %77 = vector.load %arg8[%c0_44, %c0_45] : memref<2x1xf32, #tpu.memory_space<vmem>>, vector<2x1xf32>
    %78 = vector.broadcast %77 : vector<2x1xf32> to vector<2x64xf32>
    %79 = arith.addf %76, %78 : vector<2x64xf32>
    %c0_46 = arith.constant 0 : index
    %c0_47 = arith.constant 0 : index
    %80 = vector.load %arg9[%c0_46, %c0_47] : memref<64x256xf32, #tpu.memory_space<vmem>>, vector<64x256xf32>
    %81 = arith.truncf %79 : vector<2x64xf32> to vector<2x64xbf16>
    %82 = arith.extf %81 : vector<2x64xbf16> to vector<2x64xf32>
    %83 = arith.subf %79, %82 : vector<2x64xf32>
    %84 = arith.truncf %80 : vector<64x256xf32> to vector<64x256xbf16>
    %85 = arith.extf %84 : vector<64x256xbf16> to vector<64x256xf32>
    %86 = arith.subf %80, %85 : vector<64x256xf32>
    %cst_48 = arith.constant dense<0.000000e+00> : vector<2x256xf32>
    %87 = tpu.matmul %82, %85, %cst_48 {dimension_numbers = #tpu.dot_dimension_numbers<[1], [0], [0], [1], [0, 0, 1, 1], [], []>} : vector<2x64xf32>, vector<64x256xf32>, vector<2x256xf32> -> vector<2x256xf32>
    %cst_49 = arith.constant dense<0.000000e+00> : vector<2x256xf32>
    %88 = tpu.matmul %83, %85, %cst_49 {dimension_numbers = #tpu.dot_dimension_numbers<[1], [0], [0], [1], [0, 0, 1, 1], [], []>} : vector<2x64xf32>, vector<64x256xf32>, vector<2x256xf32> -> vector<2x256xf32>
    %89 = arith.addf %87, %88 : vector<2x256xf32>
    %cst_50 = arith.constant dense<0.000000e+00> : vector<2x256xf32>
    %90 = tpu.matmul %82, %86, %cst_50 {dimension_numbers = #tpu.dot_dimension_numbers<[1], [0], [0], [1], [0, 0, 1, 1], [], []>} : vector<2x64xf32>, vector<64x256xf32>, vector<2x256xf32> -> vector<2x256xf32>
    %91 = arith.addf %89, %90 : vector<2x256xf32>
    %cst_51 = arith.constant 0.000000e+00 : f32
    %92 = vector.broadcast %cst_51 : f32 to vector<2x256xf32>
    %93 = arith.maximumf %91, %92 : vector<2x256xf32>
    %c0_52 = arith.constant 0 : index
    %c0_53 = arith.constant 0 : index
    %94 = vector.load %arg23[%c0_52, %c0_53] : memref<2x256xf32, #tpu.memory_space<vmem>>, vector<2x256xf32>
    tpu.vector_store %arg23[%c0_52, %c0_53], %93 {strides = array<i32>} : memref<2x256xf32, #tpu.memory_space<vmem>>, vector<2x256xf32>,
    %c0_54 = arith.constant 0 : index
    %c0_55 = arith.constant 0 : index
    %95 = vector.load %arg23[%c0_54, %c0_55] : memref<2x256xf32, #tpu.memory_space<vmem>>, vector<1x256xf32>
    %c0_56 = arith.constant 0 : index
    %c0_57 = arith.constant 0 : index
    %c0_58 = arith.constant 0 : index
    %96 = vector.load %arg10[%c0_56, %c0_57, %c0_58] : memref<2x256x512xf32, #tpu.memory_space<vmem>>, vector<1x256x512xf32>
    %97 = vector.shape_cast %96 : vector<1x256x512xf32> to vector<256x512xf32>
    %98 = arith.truncf %95 : vector<1x256xf32> to vector<1x256xbf16>
    %99 = arith.extf %98 : vector<1x256xbf16> to vector<1x256xf32>
    %100 = arith.subf %95, %99 : vector<1x256xf32>
    %101 = arith.truncf %97 : vector<256x512xf32> to vector<256x512xbf16>
    %102 = arith.extf %101 : vector<256x512xbf16> to vector<256x512xf32>
    %103 = arith.subf %97, %102 : vector<256x512xf32>
    %cst_59 = arith.constant dense<0.000000e+00> : vector<1x512xf32>
    %104 = tpu.matmul %99, %102, %cst_59 {dimension_numbers = #tpu.dot_dimension_numbers<[1], [0], [0], [1], [0, 0, 1, 1], [], []>} : vector<1x256xf32>, vector<256x512xf32>, vector<1x512xf32> -> vector<1x512xf32>
    %cst_60 = arith.constant dense<0.000000e+00> : vector<1x512xf32>
    %105 = tpu.matmul %100, %102, %cst_60 {dimension_numbers = #tpu.dot_dimension_numbers<[1], [0], [0], [1], [0, 0, 1, 1], [], []>} : vector<1x256xf32>, vector<256x512xf32>, vector<1x512xf32> -> vector<1x512xf32>
    %106 = arith.addf %104, %105 : vector<1x512xf32>
    %cst_61 = arith.constant dense<0.000000e+00> : vector<1x512xf32>
    %107 = tpu.matmul %99, %103, %cst_61 {dimension_numbers = #tpu.dot_dimension_numbers<[1], [0], [0], [1], [0, 0, 1, 1], [], []>} : vector<1x256xf32>, vector<256x512xf32>, vector<1x512xf32> -> vector<1x512xf32>
    %108 = arith.addf %106, %107 : vector<1x512xf32>
    %c1_62 = arith.constant 1 : index
    %c0_63 = arith.constant 0 : index
    %109 = vector.load %arg23[%c1_62, %c0_63] : memref<2x256xf32, #tpu.memory_space<vmem>>, vector<1x256xf32>
    %c1_64 = arith.constant 1 : index
    %c0_65 = arith.constant 0 : index
    %c0_66 = arith.constant 0 : index
    %110 = vector.load %arg10[%c1_64, %c0_65, %c0_66] : memref<2x256x512xf32, #tpu.memory_space<vmem>>, vector<1x256x512xf32>
    %111 = vector.shape_cast %110 : vector<1x256x512xf32> to vector<256x512xf32>
    %112 = arith.truncf %109 : vector<1x256xf32> to vector<1x256xbf16>
    %113 = arith.extf %112 : vector<1x256xbf16> to vector<1x256xf32>
    %114 = arith.subf %109, %113 : vector<1x256xf32>
    %115 = arith.truncf %111 : vector<256x512xf32> to vector<256x512xbf16>
    %116 = arith.extf %115 : vector<256x512xbf16> to vector<256x512xf32>
    %117 = arith.subf %111, %116 : vector<256x512xf32>
    %cst_67 = arith.constant dense<0.000000e+00> : vector<1x512xf32>
    %118 = tpu.matmul %113, %116, %cst_67 {dimension_numbers = #tpu.dot_dimension_numbers<[1], [0], [0], [1], [0, 0, 1, 1], [], []>} : vector<1x256xf32>, vector<256x512xf32>, vector<1x512xf32> -> vector<1x512xf32>
    %cst_68 = arith.constant dense<0.000000e+00> : vector<1x512xf32>
    %119 = tpu.matmul %114, %116, %cst_68 {dimension_numbers = #tpu.dot_dimension_numbers<[1], [0], [0], [1], [0, 0, 1, 1], [], []>} : vector<1x256xf32>, vector<256x512xf32>, vector<1x512xf32> -> vector<1x512xf32>
    %120 = arith.addf %118, %119 : vector<1x512xf32>
    %cst_69 = arith.constant dense<0.000000e+00> : vector<1x512xf32>
    %121 = tpu.matmul %113, %117, %cst_69 {dimension_numbers = #tpu.dot_dimension_numbers<[1], [0], [0], [1], [0, 0, 1, 1], [], []>} : vector<1x256xf32>, vector<256x512xf32>, vector<1x512xf32> -> vector<1x512xf32>
    %122 = arith.addf %120, %121 : vector<1x512xf32>
    %123 = arith.addf %108, %122 : vector<1x512xf32>
    %124 = vector.extract_strided_slice %123 {offsets = [0, 0], sizes = [1, 256], strides = [1, 1]} : vector<1x512xf32> to vector<1x256xf32>
    %c0_70 = arith.constant 0 : index
    %c0_71 = arith.constant 0 : index
    %125 = vector.load %arg11[%c0_70, %c0_71] : memref<2x1xf32, #tpu.memory_space<vmem>>, vector<1x1xf32>
    %126 = vector.broadcast %125 : vector<1x1xf32> to vector<1x256xf32>
    %127 = arith.addf %124, %126 : vector<1x256xf32>
    %cst_72 = arith.constant 0.000000e+00 : f32
    %128 = vector.broadcast %cst_72 : f32 to vector<1x256xf32>
    %129 = arith.maximumf %127, %128 : vector<1x256xf32>
    %c2 = arith.constant 2 : index
    %c0_73 = arith.constant 0 : index
    %130 = vector.load %arg24[%c2, %c0_73] : memref<4x256xf32, #tpu.memory_space<vmem>>, vector<1x256xf32>
    tpu.vector_store %arg24[%c2, %c0_73], %129 {strides = array<i32>} : memref<4x256xf32, #tpu.memory_space<vmem>>, vector<1x256xf32>,
    %131 = vector.extract_strided_slice %123 {offsets = [0, 256], sizes = [1, 256], strides = [1, 1]} : vector<1x512xf32> to vector<1x256xf32>
    %c1_74 = arith.constant 1 : index
    %c0_75 = arith.constant 0 : index
    %132 = vector.load %arg11[%c1_74, %c0_75] : memref<2x1xf32, #tpu.memory_space<vmem>>, vector<1x1xf32>
    %133 = vector.broadcast %132 : vector<1x1xf32> to vector<1x256xf32>
    %134 = arith.addf %131, %133 : vector<1x256xf32>
    %cst_76 = arith.constant 0.000000e+00 : f32
    %135 = vector.broadcast %cst_76 : f32 to vector<1x256xf32>
    %136 = arith.maximumf %134, %135 : vector<1x256xf32>
    %c3 = arith.constant 3 : index
    %c0_77 = arith.constant 0 : index
    %137 = vector.load %arg24[%c3, %c0_77] : memref<4x256xf32, #tpu.memory_space<vmem>>, vector<1x256xf32>
    tpu.vector_store %arg24[%c3, %c0_77], %136 {strides = array<i32>} : memref<4x256xf32, #tpu.memory_space<vmem>>, vector<1x256xf32>,
    %c0_78 = arith.constant 0 : index
    %c0_79 = arith.constant 0 : index
    %138 = vector.load %arg24[%c0_78, %c0_79] : memref<4x256xf32, #tpu.memory_space<vmem>>, vector<4x256xf32>
    %c0_80 = arith.constant 0 : index
    %c0_81 = arith.constant 0 : index
    %139 = vector.load %arg20[%c0_80, %c0_81] : memref<256x1024xf32, #tpu.memory_space<vmem>>, vector<256x1024xf32>
    %c0_82 = arith.constant 0 : index
    %c0_83 = arith.constant 0 : index
    %140 = vector.load %arg12[%c0_82, %c0_83] : memref<2x4xf32, #tpu.memory_space<vmem>>, vector<2x4xf32>
    %141 = arith.truncf %140 : vector<2x4xf32> to vector<2x4xbf16>
    %142 = arith.extf %141 : vector<2x4xbf16> to vector<2x4xf32>
    %143 = arith.subf %140, %142 : vector<2x4xf32>
    %144 = arith.truncf %138 : vector<4x256xf32> to vector<4x256xbf16>
    %145 = arith.extf %144 : vector<4x256xbf16> to vector<4x256xf32>
    %146 = arith.subf %138, %145 : vector<4x256xf32>
    %cst_84 = arith.constant dense<0.000000e+00> : vector<2x256xf32>
    %147 = tpu.matmul %142, %145, %cst_84 {dimension_numbers = #tpu.dot_dimension_numbers<[1], [0], [0], [1], [0, 0, 1, 1], [], []>} : vector<2x4xf32>, vector<4x256xf32>, vector<2x256xf32> -> vector<2x256xf32>
    %cst_85 = arith.constant dense<0.000000e+00> : vector<2x256xf32>
    %148 = tpu.matmul %143, %145, %cst_85 {dimension_numbers = #tpu.dot_dimension_numbers<[1], [0], [0], [1], [0, 0, 1, 1], [], []>} : vector<2x4xf32>, vector<4x256xf32>, vector<2x256xf32> -> vector<2x256xf32>
    %149 = arith.addf %147, %148 : vector<2x256xf32>
    %cst_86 = arith.constant dense<0.000000e+00> : vector<2x256xf32>
    %150 = tpu.matmul %142, %146, %cst_86 {dimension_numbers = #tpu.dot_dimension_numbers<[1], [0], [0], [1], [0, 0, 1, 1], [], []>} : vector<2x4xf32>, vector<4x256xf32>, vector<2x256xf32> -> vector<2x256xf32>
    %151 = arith.addf %149, %150 : vector<2x256xf32>
    %c0_87 = arith.constant 0 : index
    %c0_88 = arith.constant 0 : index
    %152 = vector.load %arg13[%c0_87, %c0_88] : memref<2x1xf32, #tpu.memory_space<vmem>>, vector<2x1xf32>
    %153 = vector.broadcast %152 : vector<2x1xf32> to vector<2x256xf32>
    %154 = arith.addf %151, %153 : vector<2x256xf32>
    %cst_89 = arith.constant 0.000000e+00 : f32
    %155 = vector.broadcast %cst_89 : f32 to vector<2x256xf32>
    %156 = arith.maximumf %154, %155 : vector<2x256xf32>
    %c0_90 = arith.constant 0 : index
    %c0_91 = arith.constant 0 : index
    %157 = vector.load %arg14[%c0_90, %c0_91] : memref<2x2xf32, #tpu.memory_space<vmem>>, vector<2x2xf32>
    %158 = arith.truncf %157 : vector<2x2xf32> to vector<2x2xbf16>
    %159 = arith.extf %158 : vector<2x2xbf16> to vector<2x2xf32>
    %160 = arith.subf %157, %159 : vector<2x2xf32>
    %161 = arith.truncf %156 : vector<2x256xf32> to vector<2x256xbf16>
    %162 = arith.extf %161 : vector<2x256xbf16> to vector<2x256xf32>
    %163 = arith.subf %156, %162 : vector<2x256xf32>
    %cst_92 = arith.constant dense<0.000000e+00> : vector<2x256xf32>
    %164 = tpu.matmul %159, %162, %cst_92 {dimension_numbers = #tpu.dot_dimension_numbers<[1], [0], [0], [1], [0, 0, 1, 1], [], []>} : vector<2x2xf32>, vector<2x256xf32>, vector<2x256xf32> -> vector<2x256xf32>
    %cst_93 = arith.constant dense<0.000000e+00> : vector<2x256xf32>
    %165 = tpu.matmul %160, %162, %cst_93 {dimension_numbers = #tpu.dot_dimension_numbers<[1], [0], [0], [1], [0, 0, 1, 1], [], []>} : vector<2x2xf32>, vector<2x256xf32>, vector<2x256xf32> -> vector<2x256xf32>
    %166 = arith.addf %164, %165 : vector<2x256xf32>
    %cst_94 = arith.constant dense<0.000000e+00> : vector<2x256xf32>
    %167 = tpu.matmul %159, %163, %cst_94 {dimension_numbers = #tpu.dot_dimension_numbers<[1], [0], [0], [1], [0, 0, 1, 1], [], []>} : vector<2x2xf32>, vector<2x256xf32>, vector<2x256xf32> -> vector<2x256xf32>
    %168 = arith.addf %166, %167 : vector<2x256xf32>
    %c0_95 = arith.constant 0 : index
    %c0_96 = arith.constant 0 : index
    %169 = vector.load %arg15[%c0_95, %c0_96] : memref<2x1xf32, #tpu.memory_space<vmem>>, vector<2x1xf32>
    %170 = vector.broadcast %169 : vector<2x1xf32> to vector<2x256xf32>
    %171 = arith.addf %168, %170 : vector<2x256xf32>
    %172 = arith.truncf %171 : vector<2x256xf32> to vector<2x256xbf16>
    %173 = arith.extf %172 : vector<2x256xbf16> to vector<2x256xf32>
    %174 = arith.subf %171, %173 : vector<2x256xf32>
    %175 = arith.truncf %139 : vector<256x1024xf32> to vector<256x1024xbf16>
    %176 = arith.extf %175 : vector<256x1024xbf16> to vector<256x1024xf32>
    %177 = arith.subf %139, %176 : vector<256x1024xf32>
    %cst_97 = arith.constant dense<0.000000e+00> : vector<2x1024xf32>
    %178 = tpu.matmul %173, %176, %cst_97 {dimension_numbers = #tpu.dot_dimension_numbers<[1], [0], [0], [1], [0, 0, 1, 1], [], []>} : vector<2x256xf32>, vector<256x1024xf32>, vector<2x1024xf32> -> vector<2x1024xf32>
    %cst_98 = arith.constant dense<0.000000e+00> : vector<2x1024xf32>
    %179 = tpu.matmul %174, %176, %cst_98 {dimension_numbers = #tpu.dot_dimension_numbers<[1], [0], [0], [1], [0, 0, 1, 1], [], []>} : vector<2x256xf32>, vector<256x1024xf32>, vector<2x1024xf32> -> vector<2x1024xf32>
    %180 = arith.addf %178, %179 : vector<2x1024xf32>
    %cst_99 = arith.constant dense<0.000000e+00> : vector<2x1024xf32>
    %181 = tpu.matmul %173, %177, %cst_99 {dimension_numbers = #tpu.dot_dimension_numbers<[1], [0], [0], [1], [0, 0, 1, 1], [], []>} : vector<2x256xf32>, vector<256x1024xf32>, vector<2x1024xf32> -> vector<2x1024xf32>
    %182 = arith.addf %180, %181 : vector<2x1024xf32>
    %cst_100 = arith.constant dense<0xFF800000> : vector<1024xf32>
    %183 = vector.multi_reduction <maximumf>, %182, %cst_100 [0] : vector<2x1024xf32> to vector<1024xf32>
    %184 = vector.shape_cast %183 : vector<1024xf32> to vector<1x1024xf32>
    %185 = vector.broadcast %184 : vector<1x1024xf32> to vector<2x1024xf32>
    %186 = arith.subf %182, %185 : vector<2x1024xf32>
    %187 = math.exp %186 : vector<2x1024xf32>
    %cst_101 = arith.constant dense<0.000000e+00> : vector<1024xf32>
    %188 = vector.multi_reduction <add>, %187, %cst_101 [0] : vector<2x1024xf32> to vector<1024xf32>
    %189 = vector.shape_cast %188 : vector<1024xf32> to vector<1x1024xf32>
    %190 = tpu.reciprocal %189 {approx = true} : vector<1x1024xf32> -> vector<1x1024xf32>
    %191 = vector.broadcast %190 : vector<1x1024xf32> to vector<2x1024xf32>
    %192 = arith.mulf %187, %191 : vector<2x1024xf32>
    %c0_102 = arith.constant 0 : index
    %c0_103 = arith.constant 0 : index
    %c0_104 = arith.constant 0 : index
    %193 = vector.load %arg21[%c0_102, %c0_103, %c0_104] : memref<1x2x1024xf32, #tpu.memory_space<vmem>>, vector<1x2x1024xf32>
    %194 = vector.shape_cast %193 : vector<1x2x1024xf32> to vector<2x1024xf32>
    %195 = vector.shape_cast %192 : vector<2x1024xf32> to vector<1x2x1024xf32>
    tpu.vector_store %arg21[%c0_102, %c0_103, %c0_104], %195 {strides = array<i32>} : memref<1x2x1024xf32, #tpu.memory_space<vmem>>, vector<1x2x1024xf32>,
    %c0_105 = arith.constant 0 : index
    %c0_106 = arith.constant 0 : index
    %196 = vector.load %arg16[%c0_105, %c0_106] : memref<32x4xf32, #tpu.memory_space<vmem>>, vector<32x4xf32>
    %197 = arith.truncf %196 : vector<32x4xf32> to vector<32x4xbf16>
    %198 = arith.extf %197 : vector<32x4xbf16> to vector<32x4xf32>
    %199 = arith.subf %196, %198 : vector<32x4xf32>
    %200 = arith.truncf %138 : vector<4x256xf32> to vector<4x256xbf16>
    %201 = arith.extf %200 : vector<4x256xbf16> to vector<4x256xf32>
    %202 = arith.subf %138, %201 : vector<4x256xf32>
    %cst_107 = arith.constant dense<0.000000e+00> : vector<32x256xf32>
    %203 = tpu.matmul %198, %201, %cst_107 {dimension_numbers = #tpu.dot_dimension_numbers<[1], [0], [0], [1], [0, 0, 1, 1], [], []>} : vector<32x4xf32>, vector<4x256xf32>, vector<32x256xf32> -> vector<32x256xf32>
    %cst_108 = arith.constant dense<0.000000e+00> : vector<32x256xf32>
    %204 = tpu.matmul %199, %201, %cst_108 {dimension_numbers = #tpu.dot_dimension_numbers<[1], [0], [0], [1], [0, 0, 1, 1], [], []>} : vector<32x4xf32>, vector<4x256xf32>, vector<32x256xf32> -> vector<32x256xf32>
    %205 = arith.addf %203, %204 : vector<32x256xf32>
    %cst_109 = arith.constant dense<0.000000e+00> : vector<32x256xf32>
    %206 = tpu.matmul %198, %202, %cst_109 {dimension_numbers = #tpu.dot_dimension_numbers<[1], [0], [0], [1], [0, 0, 1, 1], [], []>} : vector<32x4xf32>, vector<4x256xf32>, vector<32x256xf32> -> vector<32x256xf32>
    %207 = arith.addf %205, %206 : vector<32x256xf32>
    %c0_110 = arith.constant 0 : index
    %c0_111 = arith.constant 0 : index
    %208 = vector.load %arg17[%c0_110, %c0_111] : memref<32x1xf32, #tpu.memory_space<vmem>>, vector<32x1xf32>
    %209 = vector.broadcast %208 : vector<32x1xf32> to vector<32x256xf32>
    %210 = arith.addf %207, %209 : vector<32x256xf32>
    %cst_112 = arith.constant 0.000000e+00 : f32
    %211 = vector.broadcast %cst_112 : f32 to vector<32x256xf32>
    %212 = arith.maximumf %210, %211 : vector<32x256xf32>
    %c0_113 = arith.constant 0 : index
    %c0_114 = arith.constant 0 : index
    %213 = vector.load %arg18[%c0_113, %c0_114] : memref<32x32xf32, #tpu.memory_space<vmem>>, vector<32x32xf32>
    %214 = arith.truncf %213 : vector<32x32xf32> to vector<32x32xbf16>
    %215 = arith.extf %214 : vector<32x32xbf16> to vector<32x32xf32>
    %216 = arith.subf %213, %215 : vector<32x32xf32>
    %217 = arith.truncf %212 : vector<32x256xf32> to vector<32x256xbf16>
    %218 = arith.extf %217 : vector<32x256xbf16> to vector<32x256xf32>
    %219 = arith.subf %212, %218 : vector<32x256xf32>
    %cst_115 = arith.constant dense<0.000000e+00> : vector<32x256xf32>
    %220 = tpu.matmul %215, %218, %cst_115 {dimension_numbers = #tpu.dot_dimension_numbers<[1], [0], [0], [1], [0, 0, 1, 1], [], []>} : vector<32x32xf32>, vector<32x256xf32>, vector<32x256xf32> -> vector<32x256xf32>
    %cst_116 = arith.constant dense<0.000000e+00> : vector<32x256xf32>
    %221 = tpu.matmul %216, %218, %cst_116 {dimension_numbers = #tpu.dot_dimension_numbers<[1], [0], [0], [1], [0, 0, 1, 1], [], []>} : vector<32x32xf32>, vector<32x256xf32>, vector<32x256xf32> -> vector<32x256xf32>
    %222 = arith.addf %220, %221 : vector<32x256xf32>
    %cst_117 = arith.constant dense<0.000000e+00> : vector<32x256xf32>
    %223 = tpu.matmul %215, %219, %cst_117 {dimension_numbers = #tpu.dot_dimension_numbers<[1], [0], [0], [1], [0, 0, 1, 1], [], []>} : vector<32x32xf32>, vector<32x256xf32>, vector<32x256xf32> -> vector<32x256xf32>
    %224 = arith.addf %222, %223 : vector<32x256xf32>
    %c0_118 = arith.constant 0 : index
    %c0_119 = arith.constant 0 : index
    %225 = vector.load %arg19[%c0_118, %c0_119] : memref<32x1xf32, #tpu.memory_space<vmem>>, vector<32x1xf32>
    %226 = vector.broadcast %225 : vector<32x1xf32> to vector<32x256xf32>
    %227 = arith.addf %224, %226 : vector<32x256xf32>
    %228 = arith.truncf %227 : vector<32x256xf32> to vector<32x256xbf16>
    %229 = arith.extf %228 : vector<32x256xbf16> to vector<32x256xf32>
    %230 = arith.subf %227, %229 : vector<32x256xf32>
    %231 = arith.truncf %139 : vector<256x1024xf32> to vector<256x1024xbf16>
    %232 = arith.extf %231 : vector<256x1024xbf16> to vector<256x1024xf32>
    %233 = arith.subf %139, %232 : vector<256x1024xf32>
    %cst_120 = arith.constant dense<0.000000e+00> : vector<32x1024xf32>
    %234 = tpu.matmul %229, %232, %cst_120 {dimension_numbers = #tpu.dot_dimension_numbers<[1], [0], [0], [1], [0, 0, 1, 1], [], []>} : vector<32x256xf32>, vector<256x1024xf32>, vector<32x1024xf32> -> vector<32x1024xf32>
    %cst_121 = arith.constant dense<0.000000e+00> : vector<32x1024xf32>
    %235 = tpu.matmul %230, %232, %cst_121 {dimension_numbers = #tpu.dot_dimension_numbers<[1], [0], [0], [1], [0, 0, 1, 1], [], []>} : vector<32x256xf32>, vector<256x1024xf32>, vector<32x1024xf32> -> vector<32x1024xf32>
    %236 = arith.addf %234, %235 : vector<32x1024xf32>
    %cst_122 = arith.constant dense<0.000000e+00> : vector<32x1024xf32>
    %237 = tpu.matmul %229, %233, %cst_122 {dimension_numbers = #tpu.dot_dimension_numbers<[1], [0], [0], [1], [0, 0, 1, 1], [], []>} : vector<32x256xf32>, vector<256x1024xf32>, vector<32x1024xf32> -> vector<32x1024xf32>
    %238 = arith.addf %236, %237 : vector<32x1024xf32>
    %cst_123 = arith.constant 0.000000e+00 : f32
    %239 = vector.broadcast %cst_123 : f32 to vector<32x1024xf32>
    %240 = arith.maximumf %238, %239 : vector<32x1024xf32>
    %c0_124 = arith.constant 0 : index
    %c0_125 = arith.constant 0 : index
    %c0_126 = arith.constant 0 : index
    %241 = vector.load %arg22[%c0_124, %c0_125, %c0_126] : memref<1x32x1024xf32, #tpu.memory_space<vmem>>, vector<1x32x1024xf32>
    %242 = vector.shape_cast %241 : vector<1x32x1024xf32> to vector<32x1024xf32>
    %243 = vector.shape_cast %240 : vector<32x1024xf32> to vector<1x32x1024xf32>
    tpu.vector_store %arg22[%c0_124, %c0_125, %c0_126], %243 {strides = array<i32>} : memref<1x32x1024xf32, #tpu.memory_space<vmem>>, vector<1x32x1024xf32>,
    return
  }
  func.func @transform_0(%arg0: i32) -> (i32, i32, i32) {
    %c0_i32 = arith.constant 0 : i32
    %c0_i32_0 = arith.constant 0 : i32
    %c0_i32_1 = arith.constant 0 : i32
    return %arg0, %c0_i32, %c0_i32_0 : i32, i32, i32
  }
  func.func @transform_1(%arg0: i32) -> (i32, i32, i32) {
    %c0_i32 = arith.constant 0 : i32
    %c0_i32_0 = arith.constant 0 : i32
    %c0_i32_1 = arith.constant 0 : i32
    return %arg0, %c0_i32, %c0_i32_0 : i32, i32, i32
  }
  func.func @transform_2(%arg0: i32) -> (i32, i32) {
    %c0_i32 = arith.constant 0 : i32
    %c0_i32_0 = arith.constant 0 : i32
    %c0_i32_1 = arith.constant 0 : i32
    return %c0_i32, %c0_i32_0 : i32, i32
  }
  func.func @transform_3(%arg0: i32) -> (i32, i32) {
    %c0_i32 = arith.constant 0 : i32
    %c0_i32_0 = arith.constant 0 : i32
    %c0_i32_1 = arith.constant 0 : i32
    return %c0_i32, %c0_i32_0 : i32, i32
  }
  func.func @transform_4(%arg0: i32) -> (i32, i32, i32) {
    %c0_i32 = arith.constant 0 : i32
    %c0_i32_0 = arith.constant 0 : i32
    %c0_i32_1 = arith.constant 0 : i32
    %c0_i32_2 = arith.constant 0 : i32
    return %c0_i32, %c0_i32_0, %c0_i32_1 : i32, i32, i32
  }
  func.func @transform_5(%arg0: i32) -> (i32, i32) {
    %c0_i32 = arith.constant 0 : i32
    %c0_i32_0 = arith.constant 0 : i32
    %c0_i32_1 = arith.constant 0 : i32
    return %c0_i32, %c0_i32_0 : i32, i32
  }
  func.func @transform_6(%arg0: i32) -> (i32, i32) {
    %c0_i32 = arith.constant 0 : i32
    %c0_i32_0 = arith.constant 0 : i32
    %c0_i32_1 = arith.constant 0 : i32
    return %c0_i32, %c0_i32_0 : i32, i32
  }
  func.func @transform_7(%arg0: i32) -> (i32, i32) {
    %c0_i32 = arith.constant 0 : i32
    %c0_i32_0 = arith.constant 0 : i32
    %c0_i32_1 = arith.constant 0 : i32
    return %c0_i32, %c0_i32_0 : i32, i32
  }
  func.func @transform_8(%arg0: i32) -> (i32, i32) {
    %c0_i32 = arith.constant 0 : i32
    %c0_i32_0 = arith.constant 0 : i32
    %c0_i32_1 = arith.constant 0 : i32
    return %c0_i32, %c0_i32_0 : i32, i32
  }
  func.func @transform_9(%arg0: i32) -> (i32, i32, i32) {
    %c0_i32 = arith.constant 0 : i32
    %c0_i32_0 = arith.constant 0 : i32
    %c0_i32_1 = arith.constant 0 : i32
    %c0_i32_2 = arith.constant 0 : i32
    return %c0_i32, %c0_i32_0, %c0_i32_1 : i32, i32, i32
  }
  func.func @transform_10(%arg0: i32) -> (i32, i32) {
    %c0_i32 = arith.constant 0 : i32
    %c0_i32_0 = arith.constant 0 : i32
    %c0_i32_1 = arith.constant 0 : i32
    return %c0_i32, %c0_i32_0 : i32, i32
  }
  func.func @transform_11(%arg0: i32) -> (i32, i32) {
    %c0_i32 = arith.constant 0 : i32
    %c0_i32_0 = arith.constant 0 : i32
    %c0_i32_1 = arith.constant 0 : i32
    return %c0_i32, %c0_i32_0 : i32, i32
  }
  func.func @transform_12(%arg0: i32) -> (i32, i32) {
    %c0_i32 = arith.constant 0 : i32
    %c0_i32_0 = arith.constant 0 : i32
    %c0_i32_1 = arith.constant 0 : i32
    return %c0_i32, %c0_i32_0 : i32, i32
  }
  func.func @transform_13(%arg0: i32) -> (i32, i32) {
    %c0_i32 = arith.constant 0 : i32
    %c0_i32_0 = arith.constant 0 : i32
    %c0_i32_1 = arith.constant 0 : i32
    return %c0_i32, %c0_i32_0 : i32, i32
  }
  func.func @transform_14(%arg0: i32) -> (i32, i32) {
    %c0_i32 = arith.constant 0 : i32
    %c0_i32_0 = arith.constant 0 : i32
    %c0_i32_1 = arith.constant 0 : i32
    return %c0_i32, %c0_i32_0 : i32, i32
  }
  func.func @transform_15(%arg0: i32) -> (i32, i32) {
    %c0_i32 = arith.constant 0 : i32
    %c0_i32_0 = arith.constant 0 : i32
    %c0_i32_1 = arith.constant 0 : i32
    return %c0_i32, %c0_i32_0 : i32, i32
  }
  func.func @transform_16(%arg0: i32) -> (i32, i32) {
    %c0_i32 = arith.constant 0 : i32
    %c0_i32_0 = arith.constant 0 : i32
    %c0_i32_1 = arith.constant 0 : i32
    return %c0_i32, %c0_i32_0 : i32, i32
  }
  func.func @transform_17(%arg0: i32) -> (i32, i32) {
    %c0_i32 = arith.constant 0 : i32
    %c0_i32_0 = arith.constant 0 : i32
    %c0_i32_1 = arith.constant 0 : i32
    return %c0_i32, %c0_i32_0 : i32, i32
  }
  func.func @transform_18(%arg0: i32) -> (i32, i32) {
    %c0_i32 = arith.constant 0 : i32
    %c0_i32_0 = arith.constant 0 : i32
    %c0_i32_1 = arith.constant 0 : i32
    return %c0_i32, %c0_i32_0 : i32, i32
  }
  func.func @transform_19(%arg0: i32) -> (i32, i32) {
    %c0_i32 = arith.constant 0 : i32
    %c0_i32_0 = arith.constant 0 : i32
    %c0_i32_1 = arith.constant 0 : i32
    return %c0_i32, %c0_i32_0 : i32, i32
  }
  func.func @transform_20(%arg0: i32) -> (i32, i32, i32) {
    %c0_i32 = arith.constant 0 : i32
    %c0_i32_0 = arith.constant 0 : i32
    %c0_i32_1 = arith.constant 0 : i32
    return %arg0, %c0_i32, %c0_i32_0 : i32, i32, i32
  }
  func.func @transform_21(%arg0: i32) -> (i32, i32, i32) {
    %c0_i32 = arith.constant 0 : i32
    %c0_i32_0 = arith.constant 0 : i32
    %c0_i32_1 = arith.constant 0 : i32
    return %arg0, %c0_i32, %c0_i32_0 : i32, i32, i32
  }
}

</mosaic_0001>

<llo_original>
// kernel: tpu_custom_call.1
$region0: #{tpu_custom_call.1}
  #allocation0 [shape = 'u32[]', space=smem, size = 0x4, offset = 0x4, fixed_abs, tag = 'smem constant byte address 0x4 - core index']
  #allocation1 [shape = 'u32[144,128]{1,0:T(1,128)}', space=vmem, size = 0x12000, scoped, tag = 'internal scratch']
  #allocation2 [shape = 'f32[2,256]{1,0:T(2,128)}', space=vmem, size = 0x800, scoped, tag = 'scratch operand']
  #allocation3 [shape = 'f32[4,256]{1,0:T(4,128)}', space=vmem, size = 0x1000, scoped, tag = 'scratch operand']
  %s0 = inlined_call_operand.hbm [shape: f32[2,32,256], index: 0, kind: input, shape index: {}]
  %s1 = inlined_call_operand.vmem [shape: f32[2,64,64], index: 1, kind: input, shape index: {}]
  %s2 = inlined_call_operand.vmem [shape: f32[2,32], index: 2, kind: input, shape index: {}]
  %s3 = inlined_call_operand.vmem [shape: f32[2,1], index: 3, kind: input, shape index: {}]
  %s4 = inlined_call_operand.hbm [shape: f32[2,256,512], index: 4, kind: input, shape index: {}]
  %s5 = inlined_call_operand.vmem [shape: f32[2,1], index: 5, kind: input, shape index: {}]
  %s6 = inlined_call_operand.hbm [shape: f32[2,64], index: 6, kind: input, shape index: {}]
  %s7 = inlined_call_operand.vmem [shape: f32[2,1], index: 7, kind: input, shape index: {}]
  %s8 = inlined_call_operand.hbm [shape: f32[64,256], index: 8, kind: input, shape index: {}]
  %s9 = inlined_call_operand.hbm [shape: f32[2,256,512], index: 9, kind: input, shape index: {}]
  %s10 = inlined_call_operand.vmem [shape: f32[2,1], index: 10, kind: input, shape index: {}]
  %s11 = inlined_call_operand.hbm [shape: f32[2,4], index: 11, kind: input, shape index: {}]
  %s12 = inlined_call_operand.vmem [shape: f32[2,1], index: 12, kind: input, shape index: {}]
  %s13 = inlined_call_operand.vmem [shape: f32[2,2], index: 13, kind: input, shape index: {}]
  %s14 = inlined_call_operand.vmem [shape: f32[2,1], index: 14, kind: input, shape index: {}]
  %s15 = inlined_call_operand.vmem [shape: f32[32,4], index: 15, kind: input, shape index: {}]
  %s16 = inlined_call_operand.vmem [shape: f32[32,1], index: 16, kind: input, shape index: {}]
  %s17 = inlined_call_operand.vmem [shape: f32[32,32], index: 17, kind: input, shape index: {}]
  %s18 = inlined_call_operand.vmem [shape: f32[32,1], index: 18, kind: input, shape index: {}]
  %s19 = inlined_call_operand.hbm [shape: f32[256,1024], index: 19, kind: input, shape index: {}]
  %s20 = inlined_call_operand.hbm [shape: f32[2,2,1024], index: 20, kind: output, shape index: {0}]
  %s21 = inlined_call_operand.hbm [shape: f32[2,32,1024], index: 21, kind: output, shape index: {1}]
  %22 = xla_tuple %s20, %s21
  %s23 = sld [smem:[#allocation0]]
  $region149: #{tpu_custom_call.1} parent=0
    _
  %s25 = ssub.s32 1, %s23
  %s26 = scalar_select 0, %s25, %s23
  $region1: #{tpu_custom_call.1} parent=0
    #allocation4 [shape = 'u8[65536]{0}', space=vmem, size = 0x10000, scoped, tag = 'input window, operand 0']
    #allocation5 [shape = 's32[2]{0}', space=sflag, size = 0x8, scoped, tag = 'scoped memory for tpu_custom_call.1']
    #allocation6 [shape = 's32[2]{0}', space=sflag, size = 0x8, scoped, tag = 'scoped memory for tpu_custom_call.1']
    #allocation7 [shape = 'u8[1048576]{0}', space=vmem, size = 0x100000, scoped, tag = 'input window, operand 4, single buffered']
    #allocation8 [shape = 's32[1]{0}', space=sflag, size = 0x4, scoped, tag = 'scoped memory for tpu_custom_call.1']
    #allocation9 [shape = 'u8[1024]{0}', space=vmem, size = 0x400, scoped, tag = 'input window, operand 6, single buffered']
    #allocation10 [shape = 'u8[65536]{0}', space=vmem, size = 0x10000, scoped, tag = 'input window, operand 8, single buffered']
    #allocation11 [shape = 's32[1]{0}', space=sflag, size = 0x4, scoped, tag = 'scoped memory for tpu_custom_call.1']
    #allocation12 [shape = 'u8[1048576]{0}', space=vmem, size = 0x100000, scoped, tag = 'input window, operand 9, single buffered']
    #allocation13 [shape = 'u8[1024]{0}', space=vmem, size = 0x400, scoped, tag = 'input window, operand 11, single buffered']
    #allocation14 [shape = 's32[1]{0}', space=sflag, size = 0x4, scoped, tag = 'scoped memory for tpu_custom_call.1']
    #allocation15 [shape = 'u8[1048576]{0}', space=vmem, size = 0x100000, scoped, tag = 'input window, operand 19, single buffered']
    #allocation16 [shape = 'u8[16384]{0}', space=vmem, size = 0x4000, scoped, tag = 'output window, operand 0']
    #allocation17 [shape = 'u8[262144]{0}', space=vmem, size = 0x40000, scoped, tag = 'output window, operand 1']
    #allocation18 [shape = 's32[2]{0}', space=sflag, size = 0x8, scoped, tag = 'scoped memory for tpu_custom_call.1']
    %27 = vsyncpa [#allocation5], 0
    %s28 = scalar_lea.sflag [#allocation5], 1
    %29 = vsyncpa %s28, 0
    %30 = vsyncpa [#allocation8], 0
    %31 = vsyncpa [#allocation11], 0
    %32 = vsyncpa [#allocation14], 0
    %33 = vsyncpa [#allocation6], 0
    %s34 = scalar_lea.sflag [#allocation6], 1
    %35 = vsyncpa %s34, 0
    %36 = vsyncpa [#allocation18], 0
    %s37 = scalar_lea.sflag [#allocation18], 1
    %38 = vsyncpa %s37, 0
    loop: start=0, step=1, limit=4
    $region2: #{tpu_custom_call.1} parent=1 // loop_pre_header
      _
    $region3: #{tpu_custom_call.1} parent=1 // loop_header
      %s40 = sphi 0, %s44
      %p41 = scmp.ge.s32.totalorder %s40, 4
      %s50 = sphi 0, %s52
      %s53 = sphi 0, %s50
      %s54 = sphi 0, %s53
      %s70 = sphi 0, %s54
      %s76 = sphi 0, %s78
      %s79 = sphi 0, %s76
      %s80 = sphi 0, %s79
      %s96 = sphi 0, %s80
      %s100 = sphi 0, %s100
      %s102 = sphi 0, %s100
      %s103 = sphi 0, %s102
      %s117 = sphi 0, %s103
      %s121 = sphi 0, %s121
      %s123 = sphi 0, %s121
      %s124 = sphi 0, %s123
      %s138 = sphi 0, %s124
      %s142 = sphi 0, %s142
      %s144 = sphi 0, %s142
      %s145 = sphi 0, %s144
      %s159 = sphi 0, %s145
      %s163 = sphi 0, %s163
      %s165 = sphi 0, %s163
      %s166 = sphi 0, %s165
      %s180 = sphi 0, %s166
      %s184 = sphi 0, %s184
      %s186 = sphi 0, %s184
      %s187 = sphi 0, %s186
      %s201 = sphi 0, %s187
      %s205 = sphi 0, %s205
      %s207 = sphi 0, %s205
      %s208 = sphi 0, %s207
      %s222 = sphi 0, %s208
      %s226 = sphi 0, %s226
      %s228 = sphi 0, %s226
      %s229 = sphi 0, %s228
      %s243 = sphi 0, %s229
      %s247 = sphi 0, %s247
      %s249 = sphi 0, %s247
      %s250 = sphi 0, %s249
      %s264 = sphi 0, %s250
      %s268 = sphi 0, %s268
      %s270 = sphi 0, %s268
      %s271 = sphi 0, %s270
      %s285 = sphi 0, %s271
      %s289 = sphi 0, %s289
      %s291 = sphi 0, %s289
      %s292 = sphi 0, %s291
      %s306 = sphi 0, %s292
      %s310 = sphi 0, %s310
      %s312 = sphi 0, %s310
      %s313 = sphi 0, %s312
      %s327 = sphi 0, %s313
      %s331 = sphi 0, %s331
      %s333 = sphi 0, %s331
      %s334 = sphi 0, %s333
      %s348 = sphi 0, %s334
      %s352 = sphi 0, %s352
      %s354 = sphi 0, %s352
      %s355 = sphi 0, %s354
      %s369 = sphi 0, %s355
      %s373 = sphi 0, %s373
      %s375 = sphi 0, %s373
      %s376 = sphi 0, %s375
      %s390 = sphi 0, %s376
      %s394 = sphi 0, %s394
      %s396 = sphi 0, %s394
      %s397 = sphi 0, %s396
      %s411 = sphi 0, %s397
      %s415 = sphi 0, %s415
      %s417 = sphi 0, %s415
      %s418 = sphi 0, %s417
      %s432 = sphi 0, %s418
      %s436 = sphi 0, %s436
      %s438 = sphi 0, %s436
      %s439 = sphi 0, %s438
      %s453 = sphi 0, %s439
      %s457 = sphi 0, %s457
      %s459 = sphi 0, %s457
      %s460 = sphi 0, %s459
      %s474 = sphi 0, %s460
      %s480 = sphi 0, %s482
      %s483 = sphi 0, %s480
      %s484 = sphi 0, %s483
      %s500 = sphi 0, %s484
      %s506 = sphi 0, %s508
      %s509 = sphi 0, %s506
      %s510 = sphi 0, %s509
      %s526 = sphi 0, %s510
    $region4: #{tpu_custom_call.1} parent=1 // loop_header_branch
      %43 = sbr.rel (%p41) target = $region8
    $region5: #{tpu_custom_call.1} parent=1 // loop_body
      %s45 = ssub.s32 %s40, 1
      %s46 = ssub.s32 %s40, 2
      %s47 = sadd.s32 %s40, 1
      %s48 = ssub.s32 %s40, %s47
      %p49 = scmp.eq.s32.totalorder %s48, 0
      %s51 = sadd.s32 %s50, 1
      %s52 = scalar_select %p49, %s50, %s51
      %p55 = pneg %p49
      %p56 = scmp.eq.s32.totalorder %s40, 1
      %p57 = por %p55, %p56
      %p58 = scmp.ne.s32.totalorder %s50, %s53
      %p59 = scmp.eq.s32.totalorder %s40, 0
      %p60 = por %p58, %p59
      %p61 = scmp.ne.s32.totalorder %s50, %s53
      %p62 = scmp.eq.s32.totalorder %s45, 1
      %p63 = por %p61, %p62
      %p64 = scmp.ne.s32.totalorder %s53, %s54
      %p65 = scmp.eq.s32.totalorder %s45, 0
      %p66 = por %p64, %p65
      %p67 = scmp.ne.s32.totalorder %s53, %s54
      %p68 = scmp.eq.s32.totalorder %s46, 1
      %p69 = por %p67, %p68
      %p71 = scmp.ne.s32.totalorder %s54, %s70
      %p72 = scmp.eq.s32.totalorder %s46, 0
      %p73 = por %p71, %p72
      %s74 = ssub.s32 %s40, %s47
      %p75 = scmp.eq.s32.totalorder %s74, 0
      %s77 = sadd.s32 %s76, 1
      %s78 = scalar_select %p75, %s76, %s77
      %p81 = pneg %p75
      %p82 = scmp.eq.s32.totalorder %s40, 1
      %p83 = por %p81, %p82
      %p84 = scmp.ne.s32.totalorder %s76, %s79
      %p85 = scmp.eq.s32.totalorder %s40, 0
      %p86 = por %p84, %p85
      %p87 = scmp.ne.s32.totalorder %s76, %s79
      %p88 = scmp.eq.s32.totalorder %s45, 1
      %p89 = por %p87, %p88
      %p90 = scmp.ne.s32.totalorder %s79, %s80
      %p91 = scmp.eq.s32.totalorder %s45, 0
      %p92 = por %p90, %p91
      %p93 = scmp.ne.s32.totalorder %s79, %s80
      %p94 = scmp.eq.s32.totalorder %s46, 1
      %p95 = por %p93, %p94
      %p97 = scmp.ne.s32.totalorder %s80, %s96
      %p98 = scmp.eq.s32.totalorder %s46, 0
      %p99 = por %p97, %p98
      %s101 = sadd.s32 %s100, 1
      %p104 = scmp.eq.s32.totalorder %s40, 1
      %p105 = scmp.ne.s32.totalorder %s100, %s102
      %p106 = scmp.eq.s32.totalorder %s40, 0
      %p107 = por %p105, %p106
      %p108 = scmp.ne.s32.totalorder %s100, %s102
      %p109 = scmp.eq.s32.totalorder %s45, 1
      %p110 = por %p108, %p109
      %p111 = scmp.ne.s32.totalorder %s102, %s103
      %p112 = scmp.eq.s32.totalorder %s45, 0
      %p113 = por %p111, %p112
      %p114 = scmp.ne.s32.totalorder %s102, %s103
      %p115 = scmp.eq.s32.totalorder %s46, 1
      %p116 = por %p114, %p115
      %p118 = scmp.ne.s32.totalorder %s103, %s117
      %p119 = scmp.eq.s32.totalorder %s46, 0
      %p120 = por %p118, %p119
      %s122 = sadd.s32 %s121, 1
      %p125 = scmp.eq.s32.totalorder %s40, 1
      %p126 = scmp.ne.s32.totalorder %s121, %s123
      %p127 = scmp.eq.s32.totalorder %s40, 0
      %p128 = por %p126, %p127
      %p129 = scmp.ne.s32.totalorder %s121, %s123
      %p130 = scmp.eq.s32.totalorder %s45, 1
      %p131 = por %p129, %p130
      %p132 = scmp.ne.s32.totalorder %s123, %s124
      %p133 = scmp.eq.s32.totalorder %s45, 0
      %p134 = por %p132, %p133
      %p135 = scmp.ne.s32.totalorder %s123, %s124
      %p136 = scmp.eq.s32.totalorder %s46, 1
      %p137 = por %p135, %p136
      %p139 = scmp.ne.s32.totalorder %s124, %s138
      %p140 = scmp.eq.s32.totalorder %s46, 0
      %p141 = por %p139, %p140
      %s143 = sadd.s32 %s142, 1
      %p146 = scmp.eq.s32.totalorder %s40, 1
      %p147 = scmp.ne.s32.totalorder %s142, %s144
      %p148 = scmp.eq.s32.totalorder %s40, 0
      %p149 = por %p147, %p148
      %p150 = scmp.ne.s32.totalorder %s142, %s144
      %p151 = scmp.eq.s32.totalorder %s45, 1
      %p152 = por %p150, %p151
      %p153 = scmp.ne.s32.totalorder %s144, %s145
      %p154 = scmp.eq.s32.totalorder %s45, 0
      %p155 = por %p153, %p154
      %p156 = scmp.ne.s32.totalorder %s144, %s145
      %p157 = scmp.eq.s32.totalorder %s46, 1
      %p158 = por %p156, %p157
      %p160 = scmp.ne.s32.totalorder %s145, %s159
      %p161 = scmp.eq.s32.totalorder %s46, 0
      %p162 = por %p160, %p161
      %s164 = sadd.s32 %s163, 1
      %p167 = scmp.eq.s32.totalorder %s40, 1
      %p168 = scmp.ne.s32.totalorder %s163, %s165
      %p169 = scmp.eq.s32.totalorder %s40, 0
      %p170 = por %p168, %p169
      %p171 = scmp.ne.s32.totalorder %s163, %s165
      %p172 = scmp.eq.s32.totalorder %s45, 1
      %p173 = por %p171, %p172
      %p174 = scmp.ne.s32.totalorder %s165, %s166
      %p175 = scmp.eq.s32.totalorder %s45, 0
      %p176 = por %p174, %p175
      %p177 = scmp.ne.s32.totalorder %s165, %s166
      %p178 = scmp.eq.s32.totalorder %s46, 1
      %p179 = por %p177, %p178
      %p181 = scmp.ne.s32.totalorder %s166, %s180
      %p182 = scmp.eq.s32.totalorder %s46, 0
      %p183 = por %p181, %p182
      %s185 = sadd.s32 %s184, 1
      %p188 = scmp.eq.s32.totalorder %s40, 1
      %p189 = scmp.ne.s32.totalorder %s184, %s186
      %p190 = scmp.eq.s32.totalorder %s40, 0
      %p191 = por %p189, %p190
      %p192 = scmp.ne.s32.totalorder %s184, %s186
      %p193 = scmp.eq.s32.totalorder %s45, 1
      %p194 = por %p192, %p193
      %p195 = scmp.ne.s32.totalorder %s186, %s187
      %p196 = scmp.eq.s32.totalorder %s45, 0
      %p197 = por %p195, %p196
      %p198 = scmp.ne.s32.totalorder %s186, %s187
      %p199 = scmp.eq.s32.totalorder %s46, 1
      %p200 = por %p198, %p199
      %p202 = scmp.ne.s32.totalorder %s187, %s201
      %p203 = scmp.eq.s32.totalorder %s46, 0
      %p204 = por %p202, %p203
      %s206 = sadd.s32 %s205, 1
      %p209 = scmp.eq.s32.totalorder %s40, 1
      %p210 = scmp.ne.s32.totalorder %s205, %s207
      %p211 = scmp.eq.s32.totalorder %s40, 0
      %p212 = por %p210, %p211
      %p213 = scmp.ne.s32.totalorder %s205, %s207
      %p214 = scmp.eq.s32.totalorder %s45, 1
      %p215 = por %p213, %p214
      %p216 = scmp.ne.s32.totalorder %s207, %s208
      %p217 = scmp.eq.s32.totalorder %s45, 0
      %p218 = por %p216, %p217
      %p219 = scmp.ne.s32.totalorder %s207, %s208
      %p220 = scmp.eq.s32.totalorder %s46, 1
      %p221 = por %p219, %p220
      %p223 = scmp.ne.s32.totalorder %s208, %s222
      %p224 = scmp.eq.s32.totalorder %s46, 0
      %p225 = por %p223, %p224
      %s227 = sadd.s32 %s226, 1
      %p230 = scmp.eq.s32.totalorder %s40, 1
      %p231 = scmp.ne.s32.totalorder %s226, %s228
      %p232 = scmp.eq.s32.totalorder %s40, 0
      %p233 = por %p231, %p232
      %p234 = scmp.ne.s32.totalorder %s226, %s228
      %p235 = scmp.eq.s32.totalorder %s45, 1
      %p236 = por %p234, %p235
      %p237 = scmp.ne.s32.totalorder %s228, %s229
      %p238 = scmp.eq.s32.totalorder %s45, 0
      %p239 = por %p237, %p238
      %p240 = scmp.ne.s32.totalorder %s228, %s229
      %p241 = scmp.eq.s32.totalorder %s46, 1
      %p242 = por %p240, %p241
      %p244 = scmp.ne.s32.totalorder %s229, %s243
      %p245 = scmp.eq.s32.totalorder %s46, 0
      %p246 = por %p244, %p245
      %s248 = sadd.s32 %s247, 1
      %p251 = scmp.eq.s32.totalorder %s40, 1
      %p252 = scmp.ne.s32.totalorder %s247, %s249
      %p253 = scmp.eq.s32.totalorder %s40, 0
      %p254 = por %p252, %p253
      %p255 = scmp.ne.s32.totalorder %s247, %s249
      %p256 = scmp.eq.s32.totalorder %s45, 1
      %p257 = por %p255, %p256
      %p258 = scmp.ne.s32.totalorder %s249, %s250
      %p259 = scmp.eq.s32.totalorder %s45, 0
      %p260 = por %p258, %p259
      %p261 = scmp.ne.s32.totalorder %s249, %s250
      %p262 = scmp.eq.s32.totalorder %s46, 1
      %p263 = por %p261, %p262
      %p265 = scmp.ne.s32.totalorder %s250, %s264
      %p266 = scmp.eq.s32.totalorder %s46, 0
      %p267 = por %p265, %p266
      %s269 = sadd.s32 %s268, 1
      %p272 = scmp.eq.s32.totalorder %s40, 1
      %p273 = scmp.ne.s32.totalorder %s268, %s270
      %p274 = scmp.eq.s32.totalorder %s40, 0
      %p275 = por %p273, %p274
      %p276 = scmp.ne.s32.totalorder %s268, %s270
      %p277 = scmp.eq.s32.totalorder %s45, 1
      %p278 = por %p276, %p277
      %p279 = scmp.ne.s32.totalorder %s270, %s271
      %p280 = scmp.eq.s32.totalorder %s45, 0
      %p281 = por %p279, %p280
      %p282 = scmp.ne.s32.totalorder %s270, %s271
      %p283 = scmp.eq.s32.totalorder %s46, 1
      %p284 = por %p282, %p283
      %p286 = scmp.ne.s32.totalorder %s271, %s285
      %p287 = scmp.eq.s32.totalorder %s46, 0
      %p288 = por %p286, %p287
      %s290 = sadd.s32 %s289, 1
      %p293 = scmp.eq.s32.totalorder %s40, 1
      %p294 = scmp.ne.s32.totalorder %s289, %s291
      %p295 = scmp.eq.s32.totalorder %s40, 0
      %p296 = por %p294, %p295
      %p297 = scmp.ne.s32.totalorder %s289, %s291
      %p298 = scmp.eq.s32.totalorder %s45, 1
      %p299 = por %p297, %p298
      %p300 = scmp.ne.s32.totalorder %s291, %s292
      %p301 = scmp.eq.s32.totalorder %s45, 0
      %p302 = por %p300, %p301
      %p303 = scmp.ne.s32.totalorder %s291, %s292
      %p304 = scmp.eq.s32.totalorder %s46, 1
      %p305 = por %p303, %p304
      %p307 = scmp.ne.s32.totalorder %s292, %s306
      %p308 = scmp.eq.s32.totalorder %s46, 0
      %p309 = por %p307, %p308
      %s311 = sadd.s32 %s310, 1
      %p314 = scmp.eq.s32.totalorder %s40, 1
      %p315 = scmp.ne.s32.totalorder %s310, %s312
      %p316 = scmp.eq.s32.totalorder %s40, 0
      %p317 = por %p315, %p316
      %p318 = scmp.ne.s32.totalorder %s310, %s312
      %p319 = scmp.eq.s32.totalorder %s45, 1
      %p320 = por %p318, %p319
      %p321 = scmp.ne.s32.totalorder %s312, %s313
      %p322 = scmp.eq.s32.totalorder %s45, 0
      %p323 = por %p321, %p322
      %p324 = scmp.ne.s32.totalorder %s312, %s313
      %p325 = scmp.eq.s32.totalorder %s46, 1
      %p326 = por %p324, %p325
      %p328 = scmp.ne.s32.totalorder %s313, %s327
      %p329 = scmp.eq.s32.totalorder %s46, 0
      %p330 = por %p328, %p329
      %s332 = sadd.s32 %s331, 1
      %p335 = scmp.eq.s32.totalorder %s40, 1
      %p336 = scmp.ne.s32.totalorder %s331, %s333
      %p337 = scmp.eq.s32.totalorder %s40, 0
      %p338 = por %p336, %p337
      %p339 = scmp.ne.s32.totalorder %s331, %s333
      %p340 = scmp.eq.s32.totalorder %s45, 1
      %p341 = por %p339, %p340
      %p342 = scmp.ne.s32.totalorder %s333, %s334
      %p343 = scmp.eq.s32.totalorder %s45, 0
      %p344 = por %p342, %p343
      %p345 = scmp.ne.s32.totalorder %s333, %s334
      %p346 = scmp.eq.s32.totalorder %s46, 1
      %p347 = por %p345, %p346
      %p349 = scmp.ne.s32.totalorder %s334, %s348
      %p350 = scmp.eq.s32.totalorder %s46, 0
      %p351 = por %p349, %p350
      %s353 = sadd.s32 %s352, 1
      %p356 = scmp.eq.s32.totalorder %s40, 1
      %p357 = scmp.ne.s32.totalorder %s352, %s354
      %p358 = scmp.eq.s32.totalorder %s40, 0
      %p359 = por %p357, %p358
      %p360 = scmp.ne.s32.totalorder %s352, %s354
      %p361 = scmp.eq.s32.totalorder %s45, 1
      %p362 = por %p360, %p361
      %p363 = scmp.ne.s32.totalorder %s354, %s355
      %p364 = scmp.eq.s32.totalorder %s45, 0
      %p365 = por %p363, %p364
      %p366 = scmp.ne.s32.totalorder %s354, %s355
      %p367 = scmp.eq.s32.totalorder %s46, 1
      %p368 = por %p366, %p367
      %p370 = scmp.ne.s32.totalorder %s355, %s369
      %p371 = scmp.eq.s32.totalorder %s46, 0
      %p372 = por %p370, %p371
      %s374 = sadd.s32 %s373, 1
      %p377 = scmp.eq.s32.totalorder %s40, 1
      %p378 = scmp.ne.s32.totalorder %s373, %s375
      %p379 = scmp.eq.s32.totalorder %s40, 0
      %p380 = por %p378, %p379
      %p381 = scmp.ne.s32.totalorder %s373, %s375
      %p382 = scmp.eq.s32.totalorder %s45, 1
      %p383 = por %p381, %p382
      %p384 = scmp.ne.s32.totalorder %s375, %s376
      %p385 = scmp.eq.s32.totalorder %s45, 0
      %p386 = por %p384, %p385
      %p387 = scmp.ne.s32.totalorder %s375, %s376
      %p388 = scmp.eq.s32.totalorder %s46, 1
      %p389 = por %p387, %p388
      %p391 = scmp.ne.s32.totalorder %s376, %s390
      %p392 = scmp.eq.s32.totalorder %s46, 0
      %p393 = por %p391, %p392
      %s395 = sadd.s32 %s394, 1
      %p398 = scmp.eq.s32.totalorder %s40, 1
      %p399 = scmp.ne.s32.totalorder %s394, %s396
      %p400 = scmp.eq.s32.totalorder %s40, 0
      %p401 = por %p399, %p400
      %p402 = scmp.ne.s32.totalorder %s394, %s396
      %p403 = scmp.eq.s32.totalorder %s45, 1
      %p404 = por %p402, %p403
      %p405 = scmp.ne.s32.totalorder %s396, %s397
      %p406 = scmp.eq.s32.totalorder %s45, 0
      %p407 = por %p405, %p406
      %p408 = scmp.ne.s32.totalorder %s396, %s397
      %p409 = scmp.eq.s32.totalorder %s46, 1
      %p410 = por %p408, %p409
      %p412 = scmp.ne.s32.totalorder %s397, %s411
      %p413 = scmp.eq.s32.totalorder %s46, 0
      %p414 = por %p412, %p413
      %s416 = sadd.s32 %s415, 1
      %p419 = scmp.eq.s32.totalorder %s40, 1
      %p420 = scmp.ne.s32.totalorder %s415, %s417
      %p421 = scmp.eq.s32.totalorder %s40, 0
      %p422 = por %p420, %p421
      %p423 = scmp.ne.s32.totalorder %s415, %s417
      %p424 = scmp.eq.s32.totalorder %s45, 1
      %p425 = por %p423, %p424
      %p426 = scmp.ne.s32.totalorder %s417, %s418
      %p427 = scmp.eq.s32.totalorder %s45, 0
      %p428 = por %p426, %p427
      %p429 = scmp.ne.s32.totalorder %s417, %s418
      %p430 = scmp.eq.s32.totalorder %s46, 1
      %p431 = por %p429, %p430
      %p433 = scmp.ne.s32.totalorder %s418, %s432
      %p434 = scmp.eq.s32.totalorder %s46, 0
      %p435 = por %p433, %p434
      %s437 = sadd.s32 %s436, 1
      %p440 = scmp.eq.s32.totalorder %s40, 1
      %p441 = scmp.ne.s32.totalorder %s436, %s438
      %p442 = scmp.eq.s32.totalorder %s40, 0
      %p443 = por %p441, %p442
      %p444 = scmp.ne.s32.totalorder %s436, %s438
      %p445 = scmp.eq.s32.totalorder %s45, 1
      %p446 = por %p444, %p445
      %p447 = scmp.ne.s32.totalorder %s438, %s439
      %p448 = scmp.eq.s32.totalorder %s45, 0
      %p449 = por %p447, %p448
      %p450 = scmp.ne.s32.totalorder %s438, %s439
      %p451 = scmp.eq.s32.totalorder %s46, 1
      %p452 = por %p450, %p451
      %p454 = scmp.ne.s32.totalorder %s439, %s453
      %p455 = scmp.eq.s32.totalorder %s46, 0
      %p456 = por %p454, %p455
      %s458 = sadd.s32 %s457, 1
      %p461 = scmp.eq.s32.totalorder %s40, 1
      %p462 = scmp.ne.s32.totalorder %s457, %s459
      %p463 = scmp.eq.s32.totalorder %s40, 0
      %p464 = por %p462, %p463
      %p465 = scmp.ne.s32.totalorder %s457, %s459
      %p466 = scmp.eq.s32.totalorder %s45, 1
      %p467 = por %p465, %p466
      %p468 = scmp.ne.s32.totalorder %s459, %s460
      %p469 = scmp.eq.s32.totalorder %s45, 0
      %p470 = por %p468, %p469
      %p471 = scmp.ne.s32.totalorder %s459, %s460
      %p472 = scmp.eq.s32.totalorder %s46, 1
      %p473 = por %p471, %p472
      %p475 = scmp.ne.s32.totalorder %s460, %s474
      %p476 = scmp.eq.s32.totalorder %s46, 0
      %p477 = por %p475, %p476
      %s478 = ssub.s32 %s40, %s47
      %p479 = scmp.eq.s32.totalorder %s478, 0
      %s481 = sadd.s32 %s480, 1
      %s482 = scalar_select %p479, %s480, %s481
      %p485 = pneg %p479
      %p486 = scmp.eq.s32.totalorder %s40, 1
      %p487 = por %p485, %p486
      %p488 = scmp.ne.s32.totalorder %s480, %s483
      %p489 = scmp.eq.s32.totalorder %s40, 0
      %p490 = por %p488, %p489
      %p491 = scmp.ne.s32.totalorder %s480, %s483
      %p492 = scmp.eq.s32.totalorder %s45, 1
      %p493 = por %p491, %p492
      %p494 = scmp.ne.s32.totalorder %s483, %s484
      %p495 = scmp.eq.s32.totalorder %s45, 0
      %p496 = por %p494, %p495
      %p497 = scmp.ne.s32.totalorder %s483, %s484
      %p498 = scmp.eq.s32.totalorder %s46, 1
      %p499 = por %p497, %p498
      %p501 = scmp.ne.s32.totalorder %s484, %s500
      %p502 = scmp.eq.s32.totalorder %s46, 0
      %p503 = por %p501, %p502
      %s504 = ssub.s32 %s40, %s47
      %p505 = scmp.eq.s32.totalorder %s504, 0
      %s507 = sadd.s32 %s506, 1
      %s508 = scalar_select %p505, %s506, %s507
      %p511 = pneg %p505
      %p512 = scmp.eq.s32.totalorder %s40, 1
      %p513 = por %p511, %p512
      %p514 = scmp.ne.s32.totalorder %s506, %s509
      %p515 = scmp.eq.s32.totalorder %s40, 0
      %p516 = por %p514, %p515
      %p517 = scmp.ne.s32.totalorder %s506, %s509
      %p518 = scmp.eq.s32.totalorder %s45, 1
      %p519 = por %p517, %p518
      %p520 = scmp.ne.s32.totalorder %s509, %s510
      %p521 = scmp.eq.s32.totalorder %s45, 0
      %p522 = por %p520, %p521
      %p523 = scmp.ne.s32.totalorder %s509, %s510
      %p524 = scmp.eq.s32.totalorder %s46, 1
      %p525 = por %p523, %p524
      %p527 = scmp.ne.s32.totalorder %s510, %s526
      %p528 = scmp.eq.s32.totalorder %s46, 0
      %p529 = por %p527, %p528
      %p530 = scmp.le.s32.totalorder 1, %s40
      %p531 = scmp.lt.s32.totalorder %s40, 3
      %p532 = pnand %p530, %p531
      %p533 = pneg %p532
      // Predicated region
      $region9: #{tpu_custom_call.1} parent=5 // pred_check
        _
      $region10: #{tpu_custom_call.1} parent=5 // pred_check_branch
        %535 = sbr.rel (%p532) target = $region12
      $region11: #{tpu_custom_call.1} parent=5 // pred_region
        %s536 = ssub.s32 %s40, 1
        // Predicated region
        $region13: #{tpu_custom_call.1} parent=11 // pred_check
          %p537 = pneg %p113
        $region14: #{tpu_custom_call.1} parent=11 // pred_check_branch
          %539 = sbr.rel (%p537) target = $region16
        $region15: #{tpu_custom_call.1} parent=11 // pred_region
          _
        $region16: #{tpu_custom_call.1} parent=11 // pred_fallthru
          _
        // Predicated region
        $region17: #{tpu_custom_call.1} parent=11 // pred_check
          %p540 = pneg %p134
        $region18: #{tpu_custom_call.1} parent=11 // pred_check_branch
          %542 = sbr.rel (%p540) target = $region20
        $region19: #{tpu_custom_call.1} parent=11 // pred_region
          _
        $region20: #{tpu_custom_call.1} parent=11 // pred_fallthru
          _
        // Predicated region
        $region21: #{tpu_custom_call.1} parent=11 // pred_check
          %p543 = pneg %p155
        $region22: #{tpu_custom_call.1} parent=11 // pred_check_branch
          %545 = sbr.rel (%p543) target = $region24
        $region23: #{tpu_custom_call.1} parent=11 // pred_region
          %s547 = ssub.s32 32768, 32768
          %548 = vsyncadd [#allocation8], %s547
          %s549 = sshll.u32 [#allocation7], 4
          %s550 = int_to_ptr.vmem [resolvable:$true] %s549
          %555 = dma.hbm_to_vmem [thread:$0]  %s4, 32768, %s550, [#allocation8], 512, 512, 32
        $region24: #{tpu_custom_call.1} parent=11 // pred_fallthru
          _
        // Predicated region
        $region25: #{tpu_custom_call.1} parent=11 // pred_check
          %p556 = pneg %p176
        $region26: #{tpu_custom_call.1} parent=11 // pred_check_branch
          %558 = sbr.rel (%p556) target = $region28
        $region27: #{tpu_custom_call.1} parent=11 // pred_region
          _
        $region28: #{tpu_custom_call.1} parent=11 // pred_fallthru
          _
        // Predicated region
        $region29: #{tpu_custom_call.1} parent=11 // pred_check
          %p559 = pneg %p197
        $region30: #{tpu_custom_call.1} parent=11 // pred_check_branch
          %561 = sbr.rel (%p559) target = $region32
        $region31: #{tpu_custom_call.1} parent=11 // pred_region
          %s563 = ssub.s32 32, 32
          %564 = vsyncadd [#allocation8], %s563
          %s566 = sshll.u32 [#allocation9], 4
          %s567 = int_to_ptr.vmem [resolvable:$true] %s566
          %569 = dma.hbm_to_vmem [thread:$0]  %s6, 32, %s567, [#allocation8]
        $region32: #{tpu_custom_call.1} parent=11 // pred_fallthru
          _
        // Predicated region
        $region33: #{tpu_custom_call.1} parent=11 // pred_check
          %p570 = pneg %p218
        $region34: #{tpu_custom_call.1} parent=11 // pred_check_branch
          %572 = sbr.rel (%p570) target = $region36
        $region35: #{tpu_custom_call.1} parent=11 // pred_region
          _
        $region36: #{tpu_custom_call.1} parent=11 // pred_fallthru
          _
        // Predicated region
        $region37: #{tpu_custom_call.1} parent=11 // pred_check
          %p573 = pneg %p239
        $region38: #{tpu_custom_call.1} parent=11 // pred_check_branch
          %575 = sbr.rel (%p573) target = $region40
        $region39: #{tpu_custom_call.1} parent=11 // pred_region
          %s577 = ssub.s32 2048, 2048
          %578 = vsyncadd [#allocation11], %s577
          %s579 = sshll.u32 [#allocation10], 4
          %s580 = int_to_ptr.vmem [resolvable:$true] %s579
          %585 = dma.hbm_to_vmem [thread:$0]  %s8, 2048, %s580, [#allocation11], 256, 256, 16
        $region40: #{tpu_custom_call.1} parent=11 // pred_fallthru
          _
        // Predicated region
        $region41: #{tpu_custom_call.1} parent=11 // pred_check
          %p586 = pneg %p260
        $region42: #{tpu_custom_call.1} parent=11 // pred_check_branch
          %588 = sbr.rel (%p586) target = $region44
        $region43: #{tpu_custom_call.1} parent=11 // pred_region
          %s590 = ssub.s32 32768, 32768
          %591 = vsyncadd [#allocation11], %s590
          %s592 = sshll.u32 [#allocation12], 4
          %s593 = int_to_ptr.vmem [resolvable:$true] %s592
          %598 = dma.hbm_to_vmem [thread:$0]  %s9, 32768, %s593, [#allocation11], 512, 512, 32
        $region44: #{tpu_custom_call.1} parent=11 // pred_fallthru
          _
        // Predicated region
        $region45: #{tpu_custom_call.1} parent=11 // pred_check
          %p599 = pneg %p281
        $region46: #{tpu_custom_call.1} parent=11 // pred_check_branch
          %601 = sbr.rel (%p599) target = $region48
        $region47: #{tpu_custom_call.1} parent=11 // pred_region
          _
        $region48: #{tpu_custom_call.1} parent=11 // pred_fallthru
          _
        // Predicated region
        $region49: #{tpu_custom_call.1} parent=11 // pred_check
          %p602 = pneg %p302
        $region50: #{tpu_custom_call.1} parent=11 // pred_check_branch
          %604 = sbr.rel (%p602) target = $region52
        $region51: #{tpu_custom_call.1} parent=11 // pred_region
          %s606 = ssub.s32 32, 32
          %607 = vsyncadd [#allocation14], %s606
          %s609 = sshll.u32 [#allocation13], 4
          %s610 = int_to_ptr.vmem [resolvable:$true] %s609
          %612 = dma.hbm_to_vmem [thread:$0]  %s11, 32, %s610, [#allocation14]
        $region52: #{tpu_custom_call.1} parent=11 // pred_fallthru
          _
        // Predicated region
        $region53: #{tpu_custom_call.1} parent=11 // pred_check
          %p613 = pneg %p323
        $region54: #{tpu_custom_call.1} parent=11 // pred_check_branch
          %615 = sbr.rel (%p613) target = $region56
        $region55: #{tpu_custom_call.1} parent=11 // pred_region
          _
        $region56: #{tpu_custom_call.1} parent=11 // pred_fallthru
          _
        // Predicated region
        $region57: #{tpu_custom_call.1} parent=11 // pred_check
          %p616 = pneg %p344
        $region58: #{tpu_custom_call.1} parent=11 // pred_check_branch
          %618 = sbr.rel (%p616) target = $region60
        $region59: #{tpu_custom_call.1} parent=11 // pred_region
          _
        $region60: #{tpu_custom_call.1} parent=11 // pred_fallthru
          _
        // Predicated region
        $region61: #{tpu_custom_call.1} parent=11 // pred_check
          %p619 = pneg %p365
        $region62: #{tpu_custom_call.1} parent=11 // pred_check_branch
          %621 = sbr.rel (%p619) target = $region64
        $region63: #{tpu_custom_call.1} parent=11 // pred_region
          _
        $region64: #{tpu_custom_call.1} parent=11 // pred_fallthru
          _
        // Predicated region
        $region65: #{tpu_custom_call.1} parent=11 // pred_check
          %p622 = pneg %p386
        $region66: #{tpu_custom_call.1} parent=11 // pred_check_branch
          %624 = sbr.rel (%p622) target = $region68
        $region67: #{tpu_custom_call.1} parent=11 // pred_region
          _
        $region68: #{tpu_custom_call.1} parent=11 // pred_fallthru
          _
        // Predicated region
        $region69: #{tpu_custom_call.1} parent=11 // pred_check
          %p625 = pneg %p407
        $region70: #{tpu_custom_call.1} parent=11 // pred_check_branch
          %627 = sbr.rel (%p625) target = $region72
        $region71: #{tpu_custom_call.1} parent=11 // pred_region
          _
        $region72: #{tpu_custom_call.1} parent=11 // pred_fallthru
          _
        // Predicated region
        $region73: #{tpu_custom_call.1} parent=11 // pred_check
          %p628 = pneg %p428
        $region74: #{tpu_custom_call.1} parent=11 // pred_check_branch
          %630 = sbr.rel (%p628) target = $region76
        $region75: #{tpu_custom_call.1} parent=11 // pred_region
          _
        $region76: #{tpu_custom_call.1} parent=11 // pred_fallthru
          _
        // Predicated region
        $region77: #{tpu_custom_call.1} parent=11 // pred_check
          %p631 = pneg %p449
        $region78: #{tpu_custom_call.1} parent=11 // pred_check_branch
          %633 = sbr.rel (%p631) target = $region80
        $region79: #{tpu_custom_call.1} parent=11 // pred_region
          _
        $region80: #{tpu_custom_call.1} parent=11 // pred_fallthru
          _
        // Predicated region
        $region81: #{tpu_custom_call.1} parent=11 // pred_check
          %p634 = pneg %p470
        $region82: #{tpu_custom_call.1} parent=11 // pred_check_branch
          %636 = sbr.rel (%p634) target = $region84
        $region83: #{tpu_custom_call.1} parent=11 // pred_region
          %s638 = ssub.s32 32768, 32768
          %639 = vsyncadd [#allocation14], %s638
          %s640 = sshll.u32 [#allocation15], 4
          %s641 = int_to_ptr.vmem [resolvable:$true] %s640
          %646 = dma.hbm_to_vmem [thread:$0]  %s19, 32768, %s641, [#allocation14], 1024, 1024, 64
        $region84: #{tpu_custom_call.1} parent=11 // pred_fallthru
          _
      $region12: #{tpu_custom_call.1} parent=5 // pred_fallthru
        _
      %p647 = scmp.lt.s32.totalorder %s40, 2
      // Predicated region
      $region85: #{tpu_custom_call.1} parent=5 // pred_check
        %p648 = pneg %p647
      $region86: #{tpu_custom_call.1} parent=5 // pred_check_branch
        %650 = sbr.rel (%p648) target = $region88
      $region87: #{tpu_custom_call.1} parent=5 // pred_region
        // Predicated region
        $region89: #{tpu_custom_call.1} parent=87 // pred_check
          %p651 = pneg %p60
        $region90: #{tpu_custom_call.1} parent=87 // pred_check_branch
          %653 = sbr.rel (%p651) target = $region92
        $region91: #{tpu_custom_call.1} parent=87 // pred_region
          %s654 = sand.u32 %s50, 1
          %s655 = scalar_lea.sflag [#allocation5], %s654
          %s656 = sand.u32 %s50, 1
          %s657 = smul.addr %s656, 64
          %s658 = scalar_lea.vmem [#allocation4], %s657
          %s660 = ssub.s32 1024, 1024
          %661 = vsyncadd %s655, %s660
          %s662 = smul.addr %s40, 8
          %s663 = smul.addr %s662, 128
          %s664 = scalar_lea.hbm %s0, %s663
          %s665 = sshll.u32 %s658, 4
          %s666 = int_to_ptr.vmem [resolvable:$true] %s665
          %671 = dma.hbm_to_vmem [thread:$0]  %s664, 1024, %s666, %s655, 256, 256, 16
        $region92: #{tpu_custom_call.1} parent=87 // pred_fallthru
          _
        // Predicated region
        $region93: #{tpu_custom_call.1} parent=87 // pred_check
          %p672 = pneg %p86
        $region94: #{tpu_custom_call.1} parent=87 // pred_check_branch
          %674 = sbr.rel (%p672) target = $region96
        $region95: #{tpu_custom_call.1} parent=87 // pred_region
          %p675 = scmp.lt.s32.totalorder %s40, 1
          %s676 = scalar_select %p675, %s40, 1
          %s677 = smul.addr %s676, 8
          %s678 = smul.addr %s677, 8
          %s679 = scalar_lea.vmem %s1, %s678
        $region96: #{tpu_custom_call.1} parent=87 // pred_fallthru
          _
      $region88: #{tpu_custom_call.1} parent=5 // pred_fallthru
        _
      %p680 = scmp.le.s32.totalorder 1, %s40
      %p681 = scmp.lt.s32.totalorder %s40, 3
      %p682 = pnand %p680, %p681
      %p683 = pneg %p682
      // Predicated region
      $region97: #{tpu_custom_call.1} parent=5 // pred_check
        _
      $region98: #{tpu_custom_call.1} parent=5 // pred_check_branch
        %685 = sbr.rel (%p682) target = $region100
      $region99: #{tpu_custom_call.1} parent=5 // pred_region
        %s686 = ssub.s32 %s40, 1
        %s687 = sand.u32 %s53, 1
        %s688 = scalar_lea.sflag [#allocation5], %s687
        %s689 = sand.u32 %s53, 1
        %s690 = smul.addr %s689, 64
        %s691 = scalar_lea.vmem [#allocation4], %s690
        // Predicated region
        $region101: #{tpu_custom_call.1} parent=99 // pred_check
          %p692 = pneg %p66
        $region102: #{tpu_custom_call.1} parent=99 // pred_check_branch
          %694 = sbr.rel (%p692) target = $region104
        $region103: #{tpu_custom_call.1} parent=99 // pred_region
          %695 = dma.done %s688, 1024
        $region104: #{tpu_custom_call.1} parent=99 // pred_fallthru
          _
        // Predicated region
        $region105: #{tpu_custom_call.1} parent=99 // pred_check
          %p696 = pneg %p155
        $region106: #{tpu_custom_call.1} parent=99 // pred_check_branch
          %698 = sbr.rel (%p696) target = $region108
        $region107: #{tpu_custom_call.1} parent=99 // pred_region
          %699 = dma.done [#allocation8], 32768
        $region108: #{tpu_custom_call.1} parent=99 // pred_fallthru
          _
        // Predicated region
        $region109: #{tpu_custom_call.1} parent=99 // pred_check
          %p700 = pneg %p197
        $region110: #{tpu_custom_call.1} parent=99 // pred_check_branch
          %702 = sbr.rel (%p700) target = $region112
        $region111: #{tpu_custom_call.1} parent=99 // pred_region
          %703 = dma.done [#allocation8], 32
        $region112: #{tpu_custom_call.1} parent=99 // pred_fallthru
          _
        // Predicated region
        $region113: #{tpu_custom_call.1} parent=99 // pred_check
          %p704 = pneg %p239
        $region114: #{tpu_custom_call.1} parent=99 // pred_check_branch
          %706 = sbr.rel (%p704) target = $region116
        $region115: #{tpu_custom_call.1} parent=99 // pred_region
          %707 = dma.done [#allocation11], 2048
        $region116: #{tpu_custom_call.1} parent=99 // pred_fallthru
          _
        // Predicated region
        $region117: #{tpu_custom_call.1} parent=99 // pred_check
          %p708 = pneg %p260
        $region118: #{tpu_custom_call.1} parent=99 // pred_check_branch
          %710 = sbr.rel (%p708) target = $region120
        $region119: #{tpu_custom_call.1} parent=99 // pred_region
          %711 = dma.done [#allocation11], 32768
        $region120: #{tpu_custom_call.1} parent=99 // pred_fallthru
          _
        // Predicated region
        $region121: #{tpu_custom_call.1} parent=99 // pred_check
          %p712 = pneg %p302
        $region122: #{tpu_custom_call.1} parent=99 // pred_check_branch
          %714 = sbr.rel (%p712) target = $region124
        $region123: #{tpu_custom_call.1} parent=99 // pred_region
          %715 = dma.done [#allocation14], 32
        $region124: #{tpu_custom_call.1} parent=99 // pred_fallthru
          _
        // Predicated region
        $region125: #{tpu_custom_call.1} parent=99 // pred_check
          %p716 = pneg %p470
        $region126: #{tpu_custom_call.1} parent=99 // pred_check_branch
          %718 = sbr.rel (%p716) target = $region128
        $region127: #{tpu_custom_call.1} parent=99 // pred_region
          %719 = dma.done [#allocation14], 32768
        $region128: #{tpu_custom_call.1} parent=99 // pred_fallthru
          _
        %s720 = sand.u32 %s53, 1
        %s721 = scalar_lea.sflag [#allocation5], %s720
        %s722 = sand.u32 %s53, 1
        %s723 = smul.addr %s722, 64
        %s724 = scalar_lea.vmem [#allocation4], %s723
        %p725 = pneg %p66
        %p726 = pneg %p63
        %p727 = scmp.lt.s32.totalorder %s45, 1
        %s728 = scalar_select %p727, %s45, 1
        %s729 = smul.addr %s728, 8
        %s730 = smul.addr %s729, 8
        %s731 = scalar_lea.vmem %s1, %s730
        %p732 = pneg %p92
        %p733 = pneg %p89
        %p734 = pneg %p113
        %p735 = pneg %p110
        %p736 = pneg %p134
        %p737 = pneg %p131
        %p738 = pneg %p155
        %p739 = pneg %p152
        %p740 = pneg %p176
        %p741 = pneg %p173
        %p742 = pneg %p197
        %p743 = pneg %p194
        %p744 = pneg %p218
        %p745 = pneg %p215
        %p746 = pneg %p239
        %p747 = pneg %p236
        %p748 = pneg %p260
        %p749 = pneg %p257
        %p750 = pneg %p281
        %p751 = pneg %p278
        %p752 = pneg %p302
        %p753 = pneg %p299
        %p754 = pneg %p323
        %p755 = pneg %p320
        %p756 = pneg %p344
        %p757 = pneg %p341
        %p758 = pneg %p365
        %p759 = pneg %p362
        %p760 = pneg %p386
        %p761 = pneg %p383
        %p762 = pneg %p407
        %p763 = pneg %p404
        %p764 = pneg %p428
        %p765 = pneg %p425
        %p766 = pneg %p449
        %p767 = pneg %p446
        %p768 = pneg %p470
        %p769 = pneg %p467
        %p770 = pneg %p496
        %p771 = pneg %p493
        %s772 = sand.u32 %s483, 1
        %s773 = scalar_lea.sflag [#allocation6], %s772
        %s774 = sand.u32 %s483, 1
        %s775 = smul.addr %s774, 16
        %s776 = scalar_lea.vmem [#allocation16], %s775
        %p777 = pneg %p522
        %p778 = pneg %p519
        %s779 = sand.u32 %s509, 1
        %s780 = scalar_lea.sflag [#allocation18], %s779
        %s781 = sand.u32 %s509, 1
        %s782 = smul.addr %s781, 256
        %s783 = scalar_lea.vmem [#allocation17], %s782
        %p784 = scmp.lt.s32.totalorder %s45, 1
        %s785 = scalar_select %p784, %s45, 1
        %s786 = smul.addr %s785, 8
        %s787 = smul.addr %s786, 8
        %s788 = scalar_lea.vmem %s1, %s787
        %v789 = vld [vmem:[%s2] sm:$0x3]
        %v790 = vld [vmem:[%s691] sm:$0xff]
        %v791 = vld [vmem:[%s691 + $0x8] sm:$0xff]
        %v792 = vld [vmem:[%s691 + $0x10] sm:$0xff]
        %v793 = vld [vmem:[%s691 + $0x18] sm:$0xff]
        %v794 = vld [vmem:[%s691 + $0x20] sm:$0xff]
        %v795 = vld [vmem:[%s691 + $0x28] sm:$0xff]
        %v796 = vld [vmem:[%s691 + $0x30] sm:$0xff]
        %v797 = vld [vmem:[%s691 + $0x38] sm:$0xff]
        %v798 = vpack.c.bf16 %v789, %v789
        %v799 = vunpack.c.l.bf16 %v798
        %v800 = vsub.f32 %v789, %v799
        %v801 = vpack.c.bf16 %v792, %v790
        %v802 = vpack.c.bf16 %v793, %v791
        %v803 = vpack.c.bf16 %v796, %v794
        %v804 = vpack.c.bf16 %v797, %v795
        %v805 = vunpack.c.l.bf16 %v801
        %v806 = vunpack.c.l.bf16 %v802
        %v807 = vunpack.c.h.bf16 %v801
        %v808 = vunpack.c.h.bf16 %v802
        %v809 = vunpack.c.l.bf16 %v803
        %v810 = vunpack.c.l.bf16 %v804
        %v811 = vunpack.c.h.bf16 %v803
        %v812 = vunpack.c.h.bf16 %v804
        %v813 = vsub.f32 %v790, %v805
        %v814 = vsub.f32 %v791, %v806
        %v815 = vsub.f32 %v792, %v807
        %v816 = vsub.f32 %v793, %v808
        %v817 = vsub.f32 %v794, %v809
        %v818 = vsub.f32 %v795, %v810
        %v819 = vsub.f32 %v796, %v811
        %v820 = vsub.f32 %v797, %v812
        %vm821 = vcmask 261120
        %v823 = vsel %vm821, %v800, 0
        %825 = vmatprep.subr.mxu0 %v806
        %826 = vmatpush1.msra.mxu0 %v805
        %827 = vmatprep.subr.mxu0 %v808
        %828 = vmatpush1.msra.mxu0 %v807
        %829 = vmatprep.subr.mxu0 %v810
        %830 = vmatpush1.msra.mxu0 %v809
        %831 = vmatprep.subr.mxu0 %v812
        %832 = vmatpush1.msra.mxu0 %v811
        %833 = vmatprep.subr.mxu0 0.0
        %834 = vmatpush1.msra.mxu0 0.0
        %835 = vmatprep.subr.mxu0 0.0
        %836 = vmatpush1.msra.mxu0 0.0
        %837 = vmatprep.subr.mxu0 0.0
        %838 = vmatpush1.msra.mxu0 0.0
        %839 = vmatprep.subr.mxu0 0.0
        %840 = vmatpush1.msra.mxu0 0.0
        %841 = vmatprep.subr.mxu0 0.0
        %842 = vmatpush1.msra.mxu0 0.0
        %843 = vmatprep.subr.mxu0 0.0
        %844 = vmatpush1.msra.mxu0 0.0
        %845 = vmatprep.subr.mxu0 0.0
        %846 = vmatpush1.msra.mxu0 0.0
        %847 = vmatprep.subr.mxu0 0.0
        %848 = vmatpush1.msra.mxu0 0.0
        %849 = vmatprep.subr.mxu0 0.0
        %850 = vmatpush1.msra.mxu0 0.0
        %851 = vmatprep.subr.mxu0 0.0
        %852 = vmatpush1.msra.mxu0 0.0
        %853 = vmatprep.subr.mxu0 0.0
        %854 = vmatpush1.msra.mxu0 0.0
        %855 = vmatprep.subr.mxu0 0.0
        %856 = vmatpush1.msra.mxu0 0.0
        %857 = vmatprep.subr.mxu0 0.0
        %858 = vmatpush1.msra.mxu0 0.0
        %859 = vmatprep.subr.mxu0 0.0
        %860 = vmatpush1.msra.mxu0 0.0
        %861 = vmatprep.subr.mxu0 0.0
        %862 = vmatpush1.msra.mxu0 0.0
        %863 = vmatprep.subr.mxu0 0.0
        %864 = vmatpush1.msra.mxu0 0.0
        %865 = vmatprep.subr.mxu0 0.0
        %866 = vmatpush1.msra.mxu0 0.0
        %867 = vmatprep.subr.mxu0 0.0
        %868 = vmatpush1.msra.mxu0 0.0
        %869 = vmatprep.subr.mxu0 0.0
        %870 = vmatpush1.msra.mxu0 0.0
        %871 = vmatprep.subr.mxu0 0.0
        %872 = vmatpush1.msra.mxu0 0.0
        %873 = vmatprep.subr.mxu0 0.0
        %874 = vmatpush1.msra.mxu0 0.0
        %875 = vmatprep.subr.mxu0 0.0
        %876 = vmatpush1.msra.mxu0 0.0
        %877 = vmatprep.subr.mxu0 0.0
        %878 = vmatpush1.msra.mxu0 0.0
        %879 = vmatprep.subr.mxu0 0.0
        %880 = vmatpush1.msra.mxu0 0.0
        %881 = vmatprep.subr.mxu0 0.0
        %882 = vmatpush1.msra.mxu0 0.0
        %883 = vmatprep.subr.mxu0 0.0
        %884 = vmatpush1.msra.mxu0 0.0
        %885 = vmatprep.subr.mxu0 0.0
        %886 = vmatpush1.msra.mxu0 0.0
        %887 = vmatprep.subr.mxu0 0.0
        %888 = vmatpush1.msra.mxu0 0.0
        %889 = vmatprep.mubr.f32.mxu0 0.0
        %890 = vmatmul.mubr.f32.gmra.mrb[0].mxu0 %v823
        %v891 = vpop.f32.mrb[0].mxu0
        %v892 = vadd.f32 0.0, %v891
        %v893 = vpop.f32.mrb[0].mxu0
        %v894 = vadd.f32 0.0, %v893
        %895 = vdwg.mxu0
        %v897 = vsel %vm821, %v799, 0
        %899 = vmatprep.subr.mxu0 %v806
        %900 = vmatpush1.msra.mxu0 %v805
        %901 = vmatprep.subr.mxu0 %v808
        %902 = vmatpush1.msra.mxu0 %v807
        %903 = vmatprep.subr.mxu0 %v810
        %904 = vmatpush1.msra.mxu0 %v809
        %905 = vmatprep.subr.mxu0 %v812
        %906 = vmatpush1.msra.mxu0 %v811
        %907 = vmatprep.subr.mxu0 0.0
        %908 = vmatpush1.msra.mxu0 0.0
        %909 = vmatprep.subr.mxu0 0.0
        %910 = vmatpush1.msra.mxu0 0.0
        %911 = vmatprep.subr.mxu0 0.0
        %912 = vmatpush1.msra.mxu0 0.0
        %913 = vmatprep.subr.mxu0 0.0
        %914 = vmatpush1.msra.mxu0 0.0
        %915 = vmatprep.subr.mxu0 0.0
        %916 = vmatpush1.msra.mxu0 0.0
        %917 = vmatprep.subr.mxu0 0.0
        %918 = vmatpush1.msra.mxu0 0.0
        %919 = vmatprep.subr.mxu0 0.0
        %920 = vmatpush1.msra.mxu0 0.0
        %921 = vmatprep.subr.mxu0 0.0
        %922 = vmatpush1.msra.mxu0 0.0
        %923 = vmatprep.subr.mxu0 0.0
        %924 = vmatpush1.msra.mxu0 0.0
        %925 = vmatprep.subr.mxu0 0.0
        %926 = vmatpush1.msra.mxu0 0.0
        %927 = vmatprep.subr.mxu0 0.0
        %928 = vmatpush1.msra.mxu0 0.0
        %929 = vmatprep.subr.mxu0 0.0
        %930 = vmatpush1.msra.mxu0 0.0
        %931 = vmatprep.subr.mxu0 0.0
        %932 = vmatpush1.msra.mxu0 0.0
        %933 = vmatprep.subr.mxu0 0.0
        %934 = vmatpush1.msra.mxu0 0.0
        %935 = vmatprep.subr.mxu0 0.0
        %936 = vmatpush1.msra.mxu0 0.0
        %937 = vmatprep.subr.mxu0 0.0
        %938 = vmatpush1.msra.mxu0 0.0
        %939 = vmatprep.subr.mxu0 0.0
        %940 = vmatpush1.msra.mxu0 0.0
        %941 = vmatprep.subr.mxu0 0.0
        %942 = vmatpush1.msra.mxu0 0.0
        %943 = vmatprep.subr.mxu0 0.0
        %944 = vmatpush1.msra.mxu0 0.0
        %945 = vmatprep.subr.mxu0 0.0
        %946 = vmatpush1.msra.mxu0 0.0
        %947 = vmatprep.subr.mxu0 0.0
        %948 = vmatpush1.msra.mxu0 0.0
        %949 = vmatprep.subr.mxu0 0.0
        %950 = vmatpush1.msra.mxu0 0.0
        %951 = vmatprep.subr.mxu0 0.0
        %952 = vmatpush1.msra.mxu0 0.0
        %953 = vmatprep.subr.mxu0 0.0
        %954 = vmatpush1.msra.mxu0 0.0
        %955 = vmatprep.subr.mxu0 0.0
        %956 = vmatpush1.msra.mxu0 0.0
        %957 = vmatprep.subr.mxu0 0.0
        %958 = vmatpush1.msra.mxu0 0.0
        %959 = vmatprep.subr.mxu0 0.0
        %960 = vmatpush1.msra.mxu0 0.0
        %961 = vmatprep.subr.mxu0 0.0
        %962 = vmatpush1.msra.mxu0 0.0
        %963 = vmatprep.mubr.f32.mxu0 0.0
        %964 = vmatmul.mubr.f32.gmra.mrb[0].mxu0 %v897
        %v965 = vpop.f32.mrb[0].mxu0
        %v966 = vadd.f32 %v892, %v965
        %v967 = vpop.f32.mrb[0].mxu0
        %v968 = vadd.f32 %v894, %v967
        %969 = vdwg.mxu0
        %970 = vmatprep.subr.mxu0 %v814
        %971 = vmatpush1.msra.mxu0 %v813
        %972 = vmatprep.subr.mxu0 %v816
        %973 = vmatpush1.msra.mxu0 %v815
        %974 = vmatprep.subr.mxu0 %v818
        %975 = vmatpush1.msra.mxu0 %v817
        %976 = vmatprep.subr.mxu0 %v820
        %977 = vmatpush1.msra.mxu0 %v819
        %978 = vmatprep.subr.mxu0 0.0
        %979 = vmatpush1.msra.mxu0 0.0
        %980 = vmatprep.subr.mxu0 0.0
        %981 = vmatpush1.msra.mxu0 0.0
        %982 = vmatprep.subr.mxu0 0.0
        %983 = vmatpush1.msra.mxu0 0.0
        %984 = vmatprep.subr.mxu0 0.0
        %985 = vmatpush1.msra.mxu0 0.0
        %986 = vmatprep.subr.mxu0 0.0
        %987 = vmatpush1.msra.mxu0 0.0
        %988 = vmatprep.subr.mxu0 0.0
        %989 = vmatpush1.msra.mxu0 0.0
        %990 = vmatprep.subr.mxu0 0.0
        %991 = vmatpush1.msra.mxu0 0.0
        %992 = vmatprep.subr.mxu0 0.0
        %993 = vmatpush1.msra.mxu0 0.0
        %994 = vmatprep.subr.mxu0 0.0
        %995 = vmatpush1.msra.mxu0 0.0
        %996 = vmatprep.subr.mxu0 0.0
        %997 = vmatpush1.msra.mxu0 0.0
        %998 = vmatprep.subr.mxu0 0.0
        %999 = vmatpush1.msra.mxu0 0.0
        %1000 = vmatprep.subr.mxu0 0.0
        %1001 = vmatpush1.msra.mxu0 0.0
        %1002 = vmatprep.subr.mxu0 0.0
        %1003 = vmatpush1.msra.mxu0 0.0
        %1004 = vmatprep.subr.mxu0 0.0
        %1005 = vmatpush1.msra.mxu0 0.0
        %1006 = vmatprep.subr.mxu0 0.0
        %1007 = vmatpush1.msra.mxu0 0.0
        %1008 = vmatprep.subr.mxu0 0.0
        %1009 = vmatpush1.msra.mxu0 0.0
        %1010 = vmatprep.subr.mxu0 0.0
        %1011 = vmatpush1.msra.mxu0 0.0
        %1012 = vmatprep.subr.mxu0 0.0
        %1013 = vmatpush1.msra.mxu0 0.0
        %1014 = vmatprep.subr.mxu0 0.0
        %1015 = vmatpush1.msra.mxu0 0.0
        %1016 = vmatprep.subr.mxu0 0.0
        %1017 = vmatpush1.msra.mxu0 0.0
        %1018 = vmatprep.subr.mxu0 0.0
        %1019 = vmatpush1.msra.mxu0 0.0
        %1020 = vmatprep.subr.mxu0 0.0
        %1021 = vmatpush1.msra.mxu0 0.0
        %1022 = vmatprep.subr.mxu0 0.0
        %1023 = vmatpush1.msra.mxu0 0.0
        %1024 = vmatprep.subr.mxu0 0.0
        %1025 = vmatpush1.msra.mxu0 0.0
        %1026 = vmatprep.subr.mxu0 0.0
        %1027 = vmatpush1.msra.mxu0 0.0
        %1028 = vmatprep.subr.mxu0 0.0
        %1029 = vmatpush1.msra.mxu0 0.0
        %1030 = vmatprep.subr.mxu0 0.0
        %1031 = vmatpush1.msra.mxu0 0.0
        %1032 = vmatprep.subr.mxu0 0.0
        %1033 = vmatpush1.msra.mxu0 0.0
        %1034 = vmatprep.mubr.f32.mxu0 0.0
        %1035 = vmatmul.mubr.f32.gmra.mrb[0].mxu0 %v897
        %v1036 = vpop.f32.mrb[0].mxu0
        %v1037 = vadd.f32 0.0, %v1036
        %v1038 = vpop.f32.mrb[0].mxu0
        %v1039 = vadd.f32 0.0, %v1038
        %1040 = vdwg.mxu0
        %v1041 = vadd.f32 %v966, %v1037
        %v1042 = vadd.f32 %v968, %v1039
        %v1043 = vld [vmem:[%s3] sm:$0x3]
        %1045 = vset.pattern.permute.xlu0 0
        %1046 = vperm.xlu0 %1045, %v1043
        %v1047 = vpop.permute.xlu0 %1046
        %v1049 = vadd.f32 %v1041, %v1047
        %v1050 = vadd.f32 %v1042, %v1047
        %v1051 = vmax.f32 %v1049, 0.0
        %v1052 = vmax.f32 %v1050, 0.0
        %v1055 = vcombine.low %v1051, %v1052
        %v1057 = vunpack.c.l.s4 1983009808
        %v1058 = vunpack.c.0.s8 %v1057
        %v1059 = vlaneseq
        %v1060 = vshrl.u32 %v1059, 7
        %v1061 = vsub.s32 %v1058, %v1060
        %v1062 = vrot.slane %v1055, %v1061
        %1064 = vst [vmem:[#allocation2] sm:$0xf] %v1062
        %v1065 = vld [vmem:[#allocation2] ss:$2 sm:$0x3]
        %v1066 = vld [vmem:[#allocation7] sm:$0xff]
        %v1067 = vld [vmem:[#allocation7 + $0x8] sm:$0xff]
        %v1068 = vld [vmem:[#allocation7 + $0x10] sm:$0xff]
        %v1069 = vld [vmem:[#allocation7 + $0x18] sm:$0xff]
        %v1070 = vld [vmem:[#allocation7 + $0x20] sm:$0xff]
        %v1071 = vld [vmem:[#allocation7 + $0x28] sm:$0xff]
        %v1072 = vld [vmem:[#allocation7 + $0x30] sm:$0xff]
        %v1073 = vld [vmem:[#allocation7 + $0x38] sm:$0xff]
        %v1074 = vld [vmem:[#allocation7 + $0x40] sm:$0xff]
        %v1075 = vld [vmem:[#allocation7 + $0x48] sm:$0xff]
        %v1076 = vld [vmem:[#allocation7 + $0x50] sm:$0xff]
        %v1077 = vld [vmem:[#allocation7 + $0x58] sm:$0xff]
        %v1078 = vld [vmem:[#allocation7 + $0x60] sm:$0xff]
        %v1079 = vld [vmem:[#allocation7 + $0x68] sm:$0xff]
        %v1080 = vld [vmem:[#allocation7 + $0x70] sm:$0xff]
        %v1081 = vld [vmem:[#allocation7 + $0x78] sm:$0xff]
        %v1082 = vld [vmem:[#allocation7 + $0x80] sm:$0xff]
        %v1083 = vld [vmem:[#allocation7 + $0x88] sm:$0xff]
        %v1084 = vld [vmem:[#allocation7 + $0x90] sm:$0xff]
        %v1085 = vld [vmem:[#allocation7 + $0x98] sm:$0xff]
        %v1086 = vld [vmem:[#allocation7 + $0xa0] sm:$0xff]
        %v1087 = vld [vmem:[#allocation7 + $0xa8] sm:$0xff]
        %v1088 = vld [vmem:[#allocation7 + $0xb0] sm:$0xff]
        %v1089 = vld [vmem:[#allocation7 + $0xb8] sm:$0xff]
        %v1090 = vld [vmem:[#allocation7 + $0xc0] sm:$0xff]
        %v1091 = vld [vmem:[#allocation7 + $0xc8] sm:$0xff]
        %v1092 = vld [vmem:[#allocation7 + $0xd0] sm:$0xff]
        %v1093 = vld [vmem:[#allocation7 + $0xd8] sm:$0xff]
        %v1094 = vld [vmem:[#allocation7 + $0xe0] sm:$0xff]
        %v1095 = vld [vmem:[#allocation7 + $0xe8] sm:$0xff]
        %v1096 = vld [vmem:[#allocation7 + $0xf0] sm:$0xff]
        %v1097 = vld [vmem:[#allocation7 + $0xf8] sm:$0xff]
        %v1098 = vld [vmem:[#allocation7 + $0x100] sm:$0xff]
        %v1099 = vld [vmem:[#allocation7 + $0x108] sm:$0xff]
        %v1100 = vld [vmem:[#allocation7 + $0x110] sm:$0xff]
        %v1101 = vld [vmem:[#allocation7 + $0x118] sm:$0xff]
        %v1102 = vld [vmem:[#allocation7 + $0x120] sm:$0xff]
        %v1103 = vld [vmem:[#allocation7 + $0x128] sm:$0xff]
        %v1104 = vld [vmem:[#allocation7 + $0x130] sm:$0xff]
        %v1105 = vld [vmem:[#allocation7 + $0x138] sm:$0xff]
        %v1106 = vld [vmem:[#allocation7 + $0x140] sm:$0xff]
        %v1107 = vld [vmem:[#allocation7 + $0x148] sm:$0xff]
        %v1108 = vld [vmem:[#allocation7 + $0x150] sm:$0xff]
        %v1109 = vld [vmem:[#allocation7 + $0x158] sm:$0xff]
        %v1110 = vld [vmem:[#allocation7 + $0x160] sm:$0xff]
        %v1111 = vld [vmem:[#allocation7 + $0x168] sm:$0xff]
        %v1112 = vld [vmem:[#allocation7 + $0x170] sm:$0xff]
        %v1113 = vld [vmem:[#allocation7 + $0x178] sm:$0xff]
        %v1114 = vld [vmem:[#allocation7 + $0x180] sm:$0xff]
        %v1115 = vld [vmem:[#allocation7 + $0x188] sm:$0xff]
        %v1116 = vld [vmem:[#allocation7 + $0x190] sm:$0xff]
        %v1117 = vld [vmem:[#allocation7 + $0x198] sm:$0xff]
        %v1118 = vld [vmem:[#allocation7 + $0x1a0] sm:$0xff]
        %v1119 = vld [vmem:[#allocation7 + $0x1a8] sm:$0xff]
        %v1120 = vld [vmem:[#allocation7 + $0x1b0] sm:$0xff]
        %v1121 = vld [vmem:[#allocation7 + $0x1b8] sm:$0xff]
        %v1122 = vld [vmem:[#allocation7 + $0x1c0] sm:$0xff]
        %v1123 = vld [vmem:[#allocation7 + $0x1c8] sm:$0xff]
        %v1124 = vld [vmem:[#allocation7 + $0x1d0] sm:$0xff]
        %v1125 = vld [vmem:[#allocation7 + $0x1d8] sm:$0xff]
        %v1126 = vld [vmem:[#allocation7 + $0x1e0] sm:$0xff]
        %v1127 = vld [vmem:[#allocation7 + $0x1e8] sm:$0xff]
        %v1128 = vld [vmem:[#allocation7 + $0x1f0] sm:$0xff]
        %v1129 = vld [vmem:[#allocation7 + $0x1f8] sm:$0xff]
        %v1130 = vld [vmem:[#allocation7 + $0x200] sm:$0xff]
        %v1131 = vld [vmem:[#allocation7 + $0x208] sm:$0xff]
        %v1132 = vld [vmem:[#allocation7 + $0x210] sm:$0xff]
        %v1133 = vld [vmem:[#allocation7 + $0x218] sm:$0xff]
        %v1134 = vld [vmem:[#allocation7 + $0x220] sm:$0xff]
        %v1135 = vld [vmem:[#allocation7 + $0x228] sm:$0xff]
        %v1136 = vld [vmem:[#allocation7 + $0x230] sm:$0xff]
        %v1137 = vld [vmem:[#allocation7 + $0x238] sm:$0xff]
        %v1138 = vld [vmem:[#allocation7 + $0x240] sm:$0xff]
        %v1139 = vld [vmem:[#allocation7 + $0x248] sm:$0xff]
        %v1140 = vld [vmem:[#allocation7 + $0x250] sm:$0xff]
        %v1141 = vld [vmem:[#allocation7 + $0x258] sm:$0xff]
        %v1142 = vld [vmem:[#allocation7 + $0x260] sm:$0xff]
        %v1143 = vld [vmem:[#allocation7 + $0x268] sm:$0xff]
        %v1144 = vld [vmem:[#allocation7 + $0x270] sm:$0xff]
        %v1145 = vld [vmem:[#allocation7 + $0x278] sm:$0xff]
        %v1146 = vld [vmem:[#allocation7 + $0x280] sm:$0xff]
        %v1147 = vld [vmem:[#allocation7 + $0x288] sm:$0xff]
        %v1148 = vld [vmem:[#allocation7 + $0x290] sm:$0xff]
        %v1149 = vld [vmem:[#allocation7 + $0x298] sm:$0xff]
        %v1150 = vld [vmem:[#allocation7 + $0x2a0] sm:$0xff]
        %v1151 = vld [vmem:[#allocation7 + $0x2a8] sm:$0xff]
        %v1152 = vld [vmem:[#allocation7 + $0x2b0] sm:$0xff]
        %v1153 = vld [vmem:[#allocation7 + $0x2b8] sm:$0xff]
        %v1154 = vld [vmem:[#allocation7 + $0x2c0] sm:$0xff]
        %v1155 = vld [vmem:[#allocation7 + $0x2c8] sm:$0xff]
        %v1156 = vld [vmem:[#allocation7 + $0x2d0] sm:$0xff]
        %v1157 = vld [vmem:[#allocation7 + $0x2d8] sm:$0xff]
        %v1158 = vld [vmem:[#allocation7 + $0x2e0] sm:$0xff]
        %v1159 = vld [vmem:[#allocation7 + $0x2e8] sm:$0xff]
        %v1160 = vld [vmem:[#allocation7 + $0x2f0] sm:$0xff]
        %v1161 = vld [vmem:[#allocation7 + $0x2f8] sm:$0xff]
        %v1162 = vld [vmem:[#allocation7 + $0x300] sm:$0xff]
        %v1163 = vld [vmem:[#allocation7 + $0x308] sm:$0xff]
        %v1164 = vld [vmem:[#allocation7 + $0x310] sm:$0xff]
        %v1165 = vld [vmem:[#allocation7 + $0x318] sm:$0xff]
        %v1166 = vld [vmem:[#allocation7 + $0x320] sm:$0xff]
        %v1167 = vld [vmem:[#allocation7 + $0x328] sm:$0xff]
        %v1168 = vld [vmem:[#allocation7 + $0x330] sm:$0xff]
        %v1169 = vld [vmem:[#allocation7 + $0x338] sm:$0xff]
        %v1170 = vld [vmem:[#allocation7 + $0x340] sm:$0xff]
        %v1171 = vld [vmem:[#allocation7 + $0x348] sm:$0xff]
        %v1172 = vld [vmem:[#allocation7 + $0x350] sm:$0xff]
        %v1173 = vld [vmem:[#allocation7 + $0x358] sm:$0xff]
        %v1174 = vld [vmem:[#allocation7 + $0x360] sm:$0xff]
        %v1175 = vld [vmem:[#allocation7 + $0x368] sm:$0xff]
        %v1176 = vld [vmem:[#allocation7 + $0x370] sm:$0xff]
        %v1177 = vld [vmem:[#allocation7 + $0x378] sm:$0xff]
        %v1178 = vld [vmem:[#allocation7 + $0x380] sm:$0xff]
        %v1179 = vld [vmem:[#allocation7 + $0x388] sm:$0xff]
        %v1180 = vld [vmem:[#allocation7 + $0x390] sm:$0xff]
        %v1181 = vld [vmem:[#allocation7 + $0x398] sm:$0xff]
        %v1182 = vld [vmem:[#allocation7 + $0x3a0] sm:$0xff]
        %v1183 = vld [vmem:[#allocation7 + $0x3a8] sm:$0xff]
        %v1184 = vld [vmem:[#allocation7 + $0x3b0] sm:$0xff]
        %v1185 = vld [vmem:[#allocation7 + $0x3b8] sm:$0xff]
        %v1186 = vld [vmem:[#allocation7 + $0x3c0] sm:$0xff]
        %v1187 = vld [vmem:[#allocation7 + $0x3c8] sm:$0xff]
        %v1188 = vld [vmem:[#allocation7 + $0x3d0] sm:$0xff]
        %v1189 = vld [vmem:[#allocation7 + $0x3d8] sm:$0xff]
        %v1190 = vld [vmem:[#allocation7 + $0x3e0] sm:$0xff]
        %v1191 = vld [vmem:[#allocation7 + $0x3e8] sm:$0xff]
        %v1192 = vld [vmem:[#allocation7 + $0x3f0] sm:$0xff]
        %v1193 = vld [vmem:[#allocation7 + $0x3f8] sm:$0xff]
        %v1195 = vlaneseq
        %v1196 = vshrl.u32 %v1195, 7
        %v1197 = vsub.s32 0, %v1196
        %v1198 = vrot.slane %v1065, %v1197
        %v1199 = vlaneseq
        %v1200 = vshrl.u32 %v1199, 7
        %v1201 = vsub.s32 1, %v1200
        %v1202 = vrot.slane %v1065, %v1201
        %v1205 = vpack.c.bf16 %v1198, %v1198
        %v1206 = vpack.c.bf16 %v1202, %v1202
        %v1207 = vunpack.c.l.bf16 %v1205
        %v1208 = vunpack.c.l.bf16 %v1206
        %v1211 = vcombine.low %v1207, %v1208
        %v1213 = vunpack.c.l.s4 1966171168
        %v1214 = vunpack.c.0.s8 %v1213
        %v1215 = vlaneseq
        %v1216 = vshrl.u32 %v1215, 7
        %v1217 = vsub.s32 %v1214, %v1216
        %v1218 = vrot.slane %v1211, %v1217
        %v1220 = vunpack.c.l.s4 1966171168
        %v1221 = vunpack.c.0.s8 %v1220
        %v1222 = vlaneseq
        %v1223 = vshrl.u32 %v1222, 7
        %v1224 = vsub.s32 %v1221, %v1223
        %v1225 = vrot.slane %v1218, %v1224
        %v1227 = vsub.f32 %v1065, %v1225
        %v1228 = vpack.c.bf16 %v1070, %v1066
        %v1229 = vpack.c.bf16 %v1071, %v1067
        %v1230 = vpack.c.bf16 %v1072, %v1068
        %v1231 = vpack.c.bf16 %v1073, %v1069
        %v1232 = vpack.c.bf16 %v1078, %v1074
        %v1233 = vpack.c.bf16 %v1079, %v1075
        %v1234 = vpack.c.bf16 %v1080, %v1076
        %v1235 = vpack.c.bf16 %v1081, %v1077
        %v1236 = vpack.c.bf16 %v1086, %v1082
        %v1237 = vpack.c.bf16 %v1087, %v1083
        %v1238 = vpack.c.bf16 %v1088, %v1084
        %v1239 = vpack.c.bf16 %v1089, %v1085
        %v1240 = vpack.c.bf16 %v1094, %v1090
        %v1241 = vpack.c.bf16 %v1095, %v1091
        %v1242 = vpack.c.bf16 %v1096, %v1092
        %v1243 = vpack.c.bf16 %v1097, %v1093
        %v1244 = vpack.c.bf16 %v1102, %v1098
        %v1245 = vpack.c.bf16 %v1103, %v1099
        %v1246 = vpack.c.bf16 %v1104, %v1100
        %v1247 = vpack.c.bf16 %v1105, %v1101
        %v1248 = vpack.c.bf16 %v1110, %v1106
        %v1249 = vpack.c.bf16 %v1111, %v1107
        %v1250 = vpack.c.bf16 %v1112, %v1108
        %v1251 = vpack.c.bf16 %v1113, %v1109
        %v1252 = vpack.c.bf16 %v1118, %v1114
        %v1253 = vpack.c.bf16 %v1119, %v1115
        %v1254 = vpack.c.bf16 %v1120, %v1116
        %v1255 = vpack.c.bf16 %v1121, %v1117
        %v1256 = vpack.c.bf16 %v1126, %v1122
        %v1257 = vpack.c.bf16 %v1127, %v1123
        %v1258 = vpack.c.bf16 %v1128, %v1124
        %v1259 = vpack.c.bf16 %v1129, %v1125
        %v1260 = vpack.c.bf16 %v1134, %v1130
        %v1261 = vpack.c.bf16 %v1135, %v1131
        %v1262 = vpack.c.bf16 %v1136, %v1132
        %v1263 = vpack.c.bf16 %v1137, %v1133
        %v1264 = vpack.c.bf16 %v1142, %v1138
        %v1265 = vpack.c.bf16 %v1143, %v1139
        %v1266 = vpack.c.bf16 %v1144, %v1140
        %v1267 = vpack.c.bf16 %v1145, %v1141
        %v1268 = vpack.c.bf16 %v1150, %v1146
        %v1269 = vpack.c.bf16 %v1151, %v1147
        %v1270 = vpack.c.bf16 %v1152, %v1148
        %v1271 = vpack.c.bf16 %v1153, %v1149
        %v1272 = vpack.c.bf16 %v1158, %v1154
        %v1273 = vpack.c.bf16 %v1159, %v1155
        %v1274 = vpack.c.bf16 %v1160, %v1156
        %v1275 = vpack.c.bf16 %v1161, %v1157
        %v1276 = vpack.c.bf16 %v1166, %v1162
        %v1277 = vpack.c.bf16 %v1167, %v1163
        %v1278 = vpack.c.bf16 %v1168, %v1164
        %v1279 = vpack.c.bf16 %v1169, %v1165
        %v1280 = vpack.c.bf16 %v1174, %v1170
        %v1281 = vpack.c.bf16 %v1175, %v1171
        %v1282 = vpack.c.bf16 %v1176, %v1172
        %v1283 = vpack.c.bf16 %v1177, %v1173
        %v1284 = vpack.c.bf16 %v1182, %v1178
        %v1285 = vpack.c.bf16 %v1183, %v1179
        %v1286 = vpack.c.bf16 %v1184, %v1180
        %v1287 = vpack.c.bf16 %v1185, %v1181
        %v1288 = vpack.c.bf16 %v1190, %v1186
        %v1289 = vpack.c.bf16 %v1191, %v1187
        %v1290 = vpack.c.bf16 %v1192, %v1188
        %v1291 = vpack.c.bf16 %v1193, %v1189
        %v1292 = vunpack.c.l.bf16 %v1228
        %v1293 = vunpack.c.l.bf16 %v1229
        %v1294 = vunpack.c.l.bf16 %v1230
        %v1295 = vunpack.c.l.bf16 %v1231
        %v1296 = vunpack.c.h.bf16 %v1228
        %v1297 = vunpack.c.h.bf16 %v1229
        %v1298 = vunpack.c.h.bf16 %v1230
        %v1299 = vunpack.c.h.bf16 %v1231
        %v1300 = vunpack.c.l.bf16 %v1232
        %v1301 = vunpack.c.l.bf16 %v1233
        %v1302 = vunpack.c.l.bf16 %v1234
        %v1303 = vunpack.c.l.bf16 %v1235
        %v1304 = vunpack.c.h.bf16 %v1232
        %v1305 = vunpack.c.h.bf16 %v1233
        %v1306 = vunpack.c.h.bf16 %v1234
        %v1307 = vunpack.c.h.bf16 %v1235
        %v1308 = vunpack.c.l.bf16 %v1236
        %v1309 = vunpack.c.l.bf16 %v1237
        %v1310 = vunpack.c.l.bf16 %v1238
        %v1311 = vunpack.c.l.bf16 %v1239
        %v1312 = vunpack.c.h.bf16 %v1236
        %v1313 = vunpack.c.h.bf16 %v1237
        %v1314 = vunpack.c.h.bf16 %v1238
        %v1315 = vunpack.c.h.bf16 %v1239
        %v1316 = vunpack.c.l.bf16 %v1240
        %v1317 = vunpack.c.l.bf16 %v1241
        %v1318 = vunpack.c.l.bf16 %v1242
        %v1319 = vunpack.c.l.bf16 %v1243
        %v1320 = vunpack.c.h.bf16 %v1240
        %v1321 = vunpack.c.h.bf16 %v1241
        %v1322 = vunpack.c.h.bf16 %v1242
        %v1323 = vunpack.c.h.bf16 %v1243
        %v1324 = vunpack.c.l.bf16 %v1244
        %v1325 = vunpack.c.l.bf16 %v1245
        %v1326 = vunpack.c.l.bf16 %v1246
        %v1327 = vunpack.c.l.bf16 %v1247
        %v1328 = vunpack.c.h.bf16 %v1244
        %v1329 = vunpack.c.h.bf16 %v1245
        %v1330 = vunpack.c.h.bf16 %v1246
        %v1331 = vunpack.c.h.bf16 %v1247
        %v1332 = vunpack.c.l.bf16 %v1248
        %v1333 = vunpack.c.l.bf16 %v1249
        %v1334 = vunpack.c.l.bf16 %v1250
        %v1335 = vunpack.c.l.bf16 %v1251
        %v1336 = vunpack.c.h.bf16 %v1248
        %v1337 = vunpack.c.h.bf16 %v1249
        %v1338 = vunpack.c.h.bf16 %v1250
        %v1339 = vunpack.c.h.bf16 %v1251
        %v1340 = vunpack.c.l.bf16 %v1252
        %v1341 = vunpack.c.l.bf16 %v1253
        %v1342 = vunpack.c.l.bf16 %v1254
        %v1343 = vunpack.c.l.bf16 %v1255
        %v1344 = vunpack.c.h.bf16 %v1252
        %v1345 = vunpack.c.h.bf16 %v1253
        %v1346 = vunpack.c.h.bf16 %v1254
        %v1347 = vunpack.c.h.bf16 %v1255
        %v1348 = vunpack.c.l.bf16 %v1256
        %v1349 = vunpack.c.l.bf16 %v1257
        %v1350 = vunpack.c.l.bf16 %v1258
        %v1351 = vunpack.c.l.bf16 %v1259
        %v1352 = vunpack.c.h.bf16 %v1256
        %v1353 = vunpack.c.h.bf16 %v1257
        %v1354 = vunpack.c.h.bf16 %v1258
        %v1355 = vunpack.c.h.bf16 %v1259
        %v1356 = vunpack.c.l.bf16 %v1260
        %v1357 = vunpack.c.l.bf16 %v1261
        %v1358 = vunpack.c.l.bf16 %v1262
        %v1359 = vunpack.c.l.bf16 %v1263
        %v1360 = vunpack.c.h.bf16 %v1260
        %v1361 = vunpack.c.h.bf16 %v1261
        %v1362 = vunpack.c.h.bf16 %v1262
        %v1363 = vunpack.c.h.bf16 %v1263
        %v1364 = vunpack.c.l.bf16 %v1264
        %v1365 = vunpack.c.l.bf16 %v1265
        %v1366 = vunpack.c.l.bf16 %v1266
        %v1367 = vunpack.c.l.bf16 %v1267
        %v1368 = vunpack.c.h.bf16 %v1264
        %v1369 = vunpack.c.h.bf16 %v1265
        %v1370 = vunpack.c.h.bf16 %v1266
        %v1371 = vunpack.c.h.bf16 %v1267
        %v1372 = vunpack.c.l.bf16 %v1268
        %v1373 = vunpack.c.l.bf16 %v1269
        %v1374 = vunpack.c.l.bf16 %v1270
        %v1375 = vunpack.c.l.bf16 %v1271
        %v1376 = vunpack.c.h.bf16 %v1268
        %v1377 = vunpack.c.h.bf16 %v1269
        %v1378 = vunpack.c.h.bf16 %v1270
        %v1379 = vunpack.c.h.bf16 %v1271
        %v1380 = vunpack.c.l.bf16 %v1272
        %v1381 = vunpack.c.l.bf16 %v1273
        %v1382 = vunpack.c.l.bf16 %v1274
        %v1383 = vunpack.c.l.bf16 %v1275
        %v1384 = vunpack.c.h.bf16 %v1272
        %v1385 = vunpack.c.h.bf16 %v1273
        %v1386 = vunpack.c.h.bf16 %v1274
        %v1387 = vunpack.c.h.bf16 %v1275
        %v1388 = vunpack.c.l.bf16 %v1276
        %v1389 = vunpack.c.l.bf16 %v1277
        %v1390 = vunpack.c.l.bf16 %v1278
        %v1391 = vunpack.c.l.bf16 %v1279
        %v1392 = vunpack.c.h.bf16 %v1276
        %v1393 = vunpack.c.h.bf16 %v1277
        %v1394 = vunpack.c.h.bf16 %v1278
        %v1395 = vunpack.c.h.bf16 %v1279
        %v1396 = vunpack.c.l.bf16 %v1280
        %v1397 = vunpack.c.l.bf16 %v1281
        %v1398 = vunpack.c.l.bf16 %v1282
        %v1399 = vunpack.c.l.bf16 %v1283
        %v1400 = vunpack.c.h.bf16 %v1280
        %v1401 = vunpack.c.h.bf16 %v1281
        %v1402 = vunpack.c.h.bf16 %v1282
        %v1403 = vunpack.c.h.bf16 %v1283
        %v1404 = vunpack.c.l.bf16 %v1284
        %v1405 = vunpack.c.l.bf16 %v1285
        %v1406 = vunpack.c.l.bf16 %v1286
        %v1407 = vunpack.c.l.bf16 %v1287
        %v1408 = vunpack.c.h.bf16 %v1284
        %v1409 = vunpack.c.h.bf16 %v1285
        %v1410 = vunpack.c.h.bf16 %v1286
        %v1411 = vunpack.c.h.bf16 %v1287
        %v1412 = vunpack.c.l.bf16 %v1288
        %v1413 = vunpack.c.l.bf16 %v1289
        %v1414 = vunpack.c.l.bf16 %v1290
        %v1415 = vunpack.c.l.bf16 %v1291
        %v1416 = vunpack.c.h.bf16 %v1288
        %v1417 = vunpack.c.h.bf16 %v1289
        %v1418 = vunpack.c.h.bf16 %v1290
        %v1419 = vunpack.c.h.bf16 %v1291
        %v1420 = vsub.f32 %v1066, %v1292
        %v1421 = vsub.f32 %v1067, %v1293
        %v1422 = vsub.f32 %v1068, %v1294
        %v1423 = vsub.f32 %v1069, %v1295
        %v1424 = vsub.f32 %v1070, %v1296
        %v1425 = vsub.f32 %v1071, %v1297
        %v1426 = vsub.f32 %v1072, %v1298
        %v1427 = vsub.f32 %v1073, %v1299
        %v1428 = vsub.f32 %v1074, %v1300
        %v1429 = vsub.f32 %v1075, %v1301
        %v1430 = vsub.f32 %v1076, %v1302
        %v1431 = vsub.f32 %v1077, %v1303
        %v1432 = vsub.f32 %v1078, %v1304
        %v1433 = vsub.f32 %v1079, %v1305
        %v1434 = vsub.f32 %v1080, %v1306
        %v1435 = vsub.f32 %v1081, %v1307
        %v1436 = vsub.f32 %v1082, %v1308
        %v1437 = vsub.f32 %v1083, %v1309
        %v1438 = vsub.f32 %v1084, %v1310
        %v1439 = vsub.f32 %v1085, %v1311
        %v1440 = vsub.f32 %v1086, %v1312
        %v1441 = vsub.f32 %v1087, %v1313
        %v1442 = vsub.f32 %v1088, %v1314
        %v1443 = vsub.f32 %v1089, %v1315
        %v1444 = vsub.f32 %v1090, %v1316
        %v1445 = vsub.f32 %v1091, %v1317
        %v1446 = vsub.f32 %v1092, %v1318
        %v1447 = vsub.f32 %v1093, %v1319
        %v1448 = vsub.f32 %v1094, %v1320
        %v1449 = vsub.f32 %v1095, %v1321
        %v1450 = vsub.f32 %v1096, %v1322
        %v1451 = vsub.f32 %v1097, %v1323
        %v1452 = vsub.f32 %v1098, %v1324
        %v1453 = vsub.f32 %v1099, %v1325
        %v1454 = vsub.f32 %v1100, %v1326
        %v1455 = vsub.f32 %v1101, %v1327
        %v1456 = vsub.f32 %v1102, %v1328
        %v1457 = vsub.f32 %v1103, %v1329
        %v1458 = vsub.f32 %v1104, %v1330
        %v1459 = vsub.f32 %v1105, %v1331
        %v1460 = vsub.f32 %v1106, %v1332
        %v1461 = vsub.f32 %v1107, %v1333
        %v1462 = vsub.f32 %v1108, %v1334
        %v1463 = vsub.f32 %v1109, %v1335
        %v1464 = vsub.f32 %v1110, %v1336
        %v1465 = vsub.f32 %v1111, %v1337
        %v1466 = vsub.f32 %v1112, %v1338
        %v1467 = vsub.f32 %v1113, %v1339
        %v1468 = vsub.f32 %v1114, %v1340
        %v1469 = vsub.f32 %v1115, %v1341
        %v1470 = vsub.f32 %v1116, %v1342
        %v1471 = vsub.f32 %v1117, %v1343
        %v1472 = vsub.f32 %v1118, %v1344
        %v1473 = vsub.f32 %v1119, %v1345
        %v1474 = vsub.f32 %v1120, %v1346
        %v1475 = vsub.f32 %v1121, %v1347
        %v1476 = vsub.f32 %v1122, %v1348
        %v1477 = vsub.f32 %v1123, %v1349
        %v1478 = vsub.f32 %v1124, %v1350
        %v1479 = vsub.f32 %v1125, %v1351
        %v1480 = vsub.f32 %v1126, %v1352
        %v1481 = vsub.f32 %v1127, %v1353
        %v1482 = vsub.f32 %v1128, %v1354
        %v1483 = vsub.f32 %v1129, %v1355
        %v1484 = vsub.f32 %v1130, %v1356
        %v1485 = vsub.f32 %v1131, %v1357
        %v1486 = vsub.f32 %v1132, %v1358
        %v1487 = vsub.f32 %v1133, %v1359
        %v1488 = vsub.f32 %v1134, %v1360
        %v1489 = vsub.f32 %v1135, %v1361
        %v1490 = vsub.f32 %v1136, %v1362
        %v1491 = vsub.f32 %v1137, %v1363
        %v1492 = vsub.f32 %v1138, %v1364
        %v1493 = vsub.f32 %v1139, %v1365
        %v1494 = vsub.f32 %v1140, %v1366
        %v1495 = vsub.f32 %v1141, %v1367
        %v1496 = vsub.f32 %v1142, %v1368
        %v1497 = vsub.f32 %v1143, %v1369
        %v1498 = vsub.f32 %v1144, %v1370
        %v1499 = vsub.f32 %v1145, %v1371
        %v1500 = vsub.f32 %v1146, %v1372
        %v1501 = vsub.f32 %v1147, %v1373
        %v1502 = vsub.f32 %v1148, %v1374
        %v1503 = vsub.f32 %v1149, %v1375
        %v1504 = vsub.f32 %v1150, %v1376
        %v1505 = vsub.f32 %v1151, %v1377
        %v1506 = vsub.f32 %v1152, %v1378
        %v1507 = vsub.f32 %v1153, %v1379
        %v1508 = vsub.f32 %v1154, %v1380
        %v1509 = vsub.f32 %v1155, %v1381
        %v1510 = vsub.f32 %v1156, %v1382
        %v1511 = vsub.f32 %v1157, %v1383
        %v1512 = vsub.f32 %v1158, %v1384
        %v1513 = vsub.f32 %v1159, %v1385
        %v1514 = vsub.f32 %v1160, %v1386
        %v1515 = vsub.f32 %v1161, %v1387
        %v1516 = vsub.f32 %v1162, %v1388
        %v1517 = vsub.f32 %v1163, %v1389
        %v1518 = vsub.f32 %v1164, %v1390
        %v1519 = vsub.f32 %v1165, %v1391
        %v1520 = vsub.f32 %v1166, %v1392
        %v1521 = vsub.f32 %v1167, %v1393
        %v1522 = vsub.f32 %v1168, %v1394
        %v1523 = vsub.f32 %v1169, %v1395
        %v1524 = vsub.f32 %v1170, %v1396
        %v1525 = vsub.f32 %v1171, %v1397
        %v1526 = vsub.f32 %v1172, %v1398
        %v1527 = vsub.f32 %v1173, %v1399
        %v1528 = vsub.f32 %v1174, %v1400
        %v1529 = vsub.f32 %v1175, %v1401
        %v1530 = vsub.f32 %v1176, %v1402
        %v1531 = vsub.f32 %v1177, %v1403
        %v1532 = vsub.f32 %v1178, %v1404
        %v1533 = vsub.f32 %v1179, %v1405
        %v1534 = vsub.f32 %v1180, %v1406
        %v1535 = vsub.f32 %v1181, %v1407
        %v1536 = vsub.f32 %v1182, %v1408
        %v1537 = vsub.f32 %v1183, %v1409
        %v1538 = vsub.f32 %v1184, %v1410
        %v1539 = vsub.f32 %v1185, %v1411
        %v1540 = vsub.f32 %v1186, %v1412
        %v1541 = vsub.f32 %v1187, %v1413
        %v1542 = vsub.f32 %v1188, %v1414
        %v1543 = vsub.f32 %v1189, %v1415
        %v1544 = vsub.f32 %v1190, %v1416
        %v1545 = vsub.f32 %v1191, %v1417
        %v1546 = vsub.f32 %v1192, %v1418
        %v1547 = vsub.f32 %v1193, %v1419
        %v1549 = vlaneseq
        %v1550 = vshrl.u32 %v1549, 7
        %v1551 = vsub.s32 0, %v1550
        %v1552 = vrot.slane %v1227, %v1551
        %v1553 = vlaneseq
        %v1554 = vshrl.u32 %v1553, 7
        %v1555 = vsub.s32 1, %v1554
        %v1556 = vrot.slane %v1227, %v1555
        %1559 = vmatprep.subr.mxu0 %v1293
        %1560 = vmatpush1.msra.mxu0 %v1292
        %1561 = vmatprep.subr.mxu0 %v1297
        %1562 = vmatpush1.msra.mxu0 %v1296
        %1563 = vmatprep.subr.mxu0 %v1301
        %1564 = vmatpush1.msra.mxu0 %v1300
        %1565 = vmatprep.subr.mxu0 %v1305
        %1566 = vmatpush1.msra.mxu0 %v1304
        %1567 = vmatprep.subr.mxu0 %v1309
        %1568 = vmatpush1.msra.mxu0 %v1308
        %1569 = vmatprep.subr.mxu0 %v1313
        %1570 = vmatpush1.msra.mxu0 %v1312
        %1571 = vmatprep.subr.mxu0 %v1317
        %1572 = vmatpush1.msra.mxu0 %v1316
        %1573 = vmatprep.subr.mxu0 %v1321
        %1574 = vmatpush1.msra.mxu0 %v1320
        %1575 = vmatprep.subr.mxu0 %v1325
        %1576 = vmatpush1.msra.mxu0 %v1324
        %1577 = vmatprep.subr.mxu0 %v1329
        %1578 = vmatpush1.msra.mxu0 %v1328
        %1579 = vmatprep.subr.mxu0 %v1333
        %1580 = vmatpush1.msra.mxu0 %v1332
        %1581 = vmatprep.subr.mxu0 %v1337
        %1582 = vmatpush1.msra.mxu0 %v1336
        %1583 = vmatprep.subr.mxu0 %v1341
        %1584 = vmatpush1.msra.mxu0 %v1340
        %1585 = vmatprep.subr.mxu0 %v1345
        %1586 = vmatpush1.msra.mxu0 %v1344
        %1587 = vmatprep.subr.mxu0 %v1349
        %1588 = vmatpush1.msra.mxu0 %v1348
        %1589 = vmatprep.subr.mxu0 %v1353
        %1590 = vmatpush1.msra.mxu0 %v1352
        %1591 = vmatprep.subr.mxu0 %v1357
        %1592 = vmatpush1.msra.mxu0 %v1356
        %1593 = vmatprep.subr.mxu0 %v1361
        %1594 = vmatpush1.msra.mxu0 %v1360
        %1595 = vmatprep.subr.mxu0 %v1365
        %1596 = vmatpush1.msra.mxu0 %v1364
        %1597 = vmatprep.subr.mxu0 %v1369
        %1598 = vmatpush1.msra.mxu0 %v1368
        %1599 = vmatprep.subr.mxu0 %v1373
        %1600 = vmatpush1.msra.mxu0 %v1372
        %1601 = vmatprep.subr.mxu0 %v1377
        %1602 = vmatpush1.msra.mxu0 %v1376
        %1603 = vmatprep.subr.mxu0 %v1381
        %1604 = vmatpush1.msra.mxu0 %v1380
        %1605 = vmatprep.subr.mxu0 %v1385
        %1606 = vmatpush1.msra.mxu0 %v1384
        %1607 = vmatprep.subr.mxu0 %v1389
        %1608 = vmatpush1.msra.mxu0 %v1388
        %1609 = vmatprep.subr.mxu0 %v1393
        %1610 = vmatpush1.msra.mxu0 %v1392
        %1611 = vmatprep.subr.mxu0 %v1397
        %1612 = vmatpush1.msra.mxu0 %v1396
        %1613 = vmatprep.subr.mxu0 %v1401
        %1614 = vmatpush1.msra.mxu0 %v1400
        %1615 = vmatprep.subr.mxu0 %v1405
        %1616 = vmatpush1.msra.mxu0 %v1404
        %1617 = vmatprep.subr.mxu0 %v1409
        %1618 = vmatpush1.msra.mxu0 %v1408
        %1619 = vmatprep.subr.mxu0 %v1413
        %1620 = vmatpush1.msra.mxu0 %v1412
        %1621 = vmatprep.subr.mxu0 %v1417
        %1622 = vmatpush1.msra.mxu0 %v1416
        %1623 = vmatprep.mubr.f32.mxu0 %v1556
        %1624 = vmatmul.mubr.f32.gmra.mrb[0].mxu0 %v1552
        %v1625 = vpop.f32.mrb[0].mxu0
        %v1626 = vadd.f32 0.0, %v1625
        %v1627 = vpop.f32.mrb[0].mxu0
        %v1628 = vadd.f32 0.0, %v1627
        %1629 = vdwg.mxu0
        %1630 = vmatprep.subr.mxu0 %v1295
        %1631 = vmatpush1.msra.mxu0 %v1294
        %1632 = vmatprep.subr.mxu0 %v1299
        %1633 = vmatpush1.msra.mxu0 %v1298
        %1634 = vmatprep.subr.mxu0 %v1303
        %1635 = vmatpush1.msra.mxu0 %v1302
        %1636 = vmatprep.subr.mxu0 %v1307
        %1637 = vmatpush1.msra.mxu0 %v1306
        %1638 = vmatprep.subr.mxu0 %v1311
        %1639 = vmatpush1.msra.mxu0 %v1310
        %1640 = vmatprep.subr.mxu0 %v1315
        %1641 = vmatpush1.msra.mxu0 %v1314
        %1642 = vmatprep.subr.mxu0 %v1319
        %1643 = vmatpush1.msra.mxu0 %v1318
        %1644 = vmatprep.subr.mxu0 %v1323
        %1645 = vmatpush1.msra.mxu0 %v1322
        %1646 = vmatprep.subr.mxu0 %v1327
        %1647 = vmatpush1.msra.mxu0 %v1326
        %1648 = vmatprep.subr.mxu0 %v1331
        %1649 = vmatpush1.msra.mxu0 %v1330
        %1650 = vmatprep.subr.mxu0 %v1335
        %1651 = vmatpush1.msra.mxu0 %v1334
        %1652 = vmatprep.subr.mxu0 %v1339
        %1653 = vmatpush1.msra.mxu0 %v1338
        %1654 = vmatprep.subr.mxu0 %v1343
        %1655 = vmatpush1.msra.mxu0 %v1342
        %1656 = vmatprep.subr.mxu0 %v1347
        %1657 = vmatpush1.msra.mxu0 %v1346
        %1658 = vmatprep.subr.mxu0 %v1351
        %1659 = vmatpush1.msra.mxu0 %v1350
        %1660 = vmatprep.subr.mxu0 %v1355
        %1661 = vmatpush1.msra.mxu0 %v1354
        %1662 = vmatprep.subr.mxu0 %v1359
        %1663 = vmatpush1.msra.mxu0 %v1358
        %1664 = vmatprep.subr.mxu0 %v1363
        %1665 = vmatpush1.msra.mxu0 %v1362
        %1666 = vmatprep.subr.mxu0 %v1367
        %1667 = vmatpush1.msra.mxu0 %v1366
        %1668 = vmatprep.subr.mxu0 %v1371
        %1669 = vmatpush1.msra.mxu0 %v1370
        %1670 = vmatprep.subr.mxu0 %v1375
        %1671 = vmatpush1.msra.mxu0 %v1374
        %1672 = vmatprep.subr.mxu0 %v1379
        %1673 = vmatpush1.msra.mxu0 %v1378
        %1674 = vmatprep.subr.mxu0 %v1383
        %1675 = vmatpush1.msra.mxu0 %v1382
        %1676 = vmatprep.subr.mxu0 %v1387
        %1677 = vmatpush1.msra.mxu0 %v1386
        %1678 = vmatprep.subr.mxu0 %v1391
        %1679 = vmatpush1.msra.mxu0 %v1390
        %1680 = vmatprep.subr.mxu0 %v1395
        %1681 = vmatpush1.msra.mxu0 %v1394
        %1682 = vmatprep.subr.mxu0 %v1399
        %1683 = vmatpush1.msra.mxu0 %v1398
        %1684 = vmatprep.subr.mxu0 %v1403
        %1685 = vmatpush1.msra.mxu0 %v1402
        %1686 = vmatprep.subr.mxu0 %v1407
        %1687 = vmatpush1.msra.mxu0 %v1406
        %1688 = vmatprep.subr.mxu0 %v1411
        %1689 = vmatpush1.msra.mxu0 %v1410
        %1690 = vmatprep.subr.mxu0 %v1415
        %1691 = vmatpush1.msra.mxu0 %v1414
        %1692 = vmatprep.subr.mxu0 %v1419
        %1693 = vmatpush1.msra.mxu0 %v1418
        %1694 = vmatprep.mubr.f32.mxu0 %v1556
        %1695 = vmatmul.mubr.f32.gmra.mrb[0].mxu0 %v1552
        %v1696 = vpop.f32.mrb[0].mxu0
        %v1697 = vadd.f32 0.0, %v1696
        %v1698 = vpop.f32.mrb[0].mxu0
        %v1699 = vadd.f32 0.0, %v1698
        %1700 = vdwg.mxu0
        %1701 = vmatprep.subr.mxu0 %v1293
        %1702 = vmatpush1.msra.mxu0 %v1292
        %1703 = vmatprep.subr.mxu0 %v1297
        %1704 = vmatpush1.msra.mxu0 %v1296
        %1705 = vmatprep.subr.mxu0 %v1301
        %1706 = vmatpush1.msra.mxu0 %v1300
        %1707 = vmatprep.subr.mxu0 %v1305
        %1708 = vmatpush1.msra.mxu0 %v1304
        %1709 = vmatprep.subr.mxu0 %v1309
        %1710 = vmatpush1.msra.mxu0 %v1308
        %1711 = vmatprep.subr.mxu0 %v1313
        %1712 = vmatpush1.msra.mxu0 %v1312
        %1713 = vmatprep.subr.mxu0 %v1317
        %1714 = vmatpush1.msra.mxu0 %v1316
        %1715 = vmatprep.subr.mxu0 %v1321
        %1716 = vmatpush1.msra.mxu0 %v1320
        %1717 = vmatprep.subr.mxu0 %v1325
        %1718 = vmatpush1.msra.mxu0 %v1324
        %1719 = vmatprep.subr.mxu0 %v1329
        %1720 = vmatpush1.msra.mxu0 %v1328
        %1721 = vmatprep.subr.mxu0 %v1333
        %1722 = vmatpush1.msra.mxu0 %v1332
        %1723 = vmatprep.subr.mxu0 %v1337
        %1724 = vmatpush1.msra.mxu0 %v1336
        %1725 = vmatprep.subr.mxu0 %v1341
        %1726 = vmatpush1.msra.mxu0 %v1340
        %1727 = vmatprep.subr.mxu0 %v1345
        %1728 = vmatpush1.msra.mxu0 %v1344
        %1729 = vmatprep.subr.mxu0 %v1349
        %1730 = vmatpush1.msra.mxu0 %v1348
        %1731 = vmatprep.subr.mxu0 %v1353
        %1732 = vmatpush1.msra.mxu0 %v1352
        %1733 = vmatprep.subr.mxu0 %v1357
        %1734 = vmatpush1.msra.mxu0 %v1356
        %1735 = vmatprep.subr.mxu0 %v1361
        %1736 = vmatpush1.msra.mxu0 %v1360
        %1737 = vmatprep.subr.mxu0 %v1365
        %1738 = vmatpush1.msra.mxu0 %v1364
        %1739 = vmatprep.subr.mxu0 %v1369
        %1740 = vmatpush1.msra.mxu0 %v1368
        %1741 = vmatprep.subr.mxu0 %v1373
        %1742 = vmatpush1.msra.mxu0 %v1372
        %1743 = vmatprep.subr.mxu0 %v1377
        %1744 = vmatpush1.msra.mxu0 %v1376
        %1745 = vmatprep.subr.mxu0 %v1381
        %1746 = vmatpush1.msra.mxu0 %v1380
        %1747 = vmatprep.subr.mxu0 %v1385
        %1748 = vmatpush1.msra.mxu0 %v1384
        %1749 = vmatprep.subr.mxu0 %v1389
        %1750 = vmatpush1.msra.mxu0 %v1388
        %1751 = vmatprep.subr.mxu0 %v1393
        %1752 = vmatpush1.msra.mxu0 %v1392
        %1753 = vmatprep.subr.mxu0 %v1397
        %1754 = vmatpush1.msra.mxu0 %v1396
        %1755 = vmatprep.subr.mxu0 %v1401
        %1756 = vmatpush1.msra.mxu0 %v1400
        %1757 = vmatprep.subr.mxu0 %v1405
        %1758 = vmatpush1.msra.mxu0 %v1404
        %1759 = vmatprep.subr.mxu0 %v1409
        %1760 = vmatpush1.msra.mxu0 %v1408
        %1761 = vmatprep.subr.mxu0 %v1413
        %1762 = vmatpush1.msra.mxu0 %v1412
        %1763 = vmatprep.subr.mxu0 %v1417
        %1764 = vmatpush1.msra.mxu0 %v1416
        %1765 = vmatprep.mubr.f32.mxu0 %v1208
        %1766 = vmatmul.mubr.f32.gmra.mrb[0].mxu0 %v1207
        %v1767 = vpop.f32.mrb[0].mxu0
        %v1768 = vadd.f32 %v1626, %v1767
        %v1769 = vpop.f32.mrb[0].mxu0
        %v1770 = vadd.f32 %v1628, %v1769
        %1771 = vdwg.mxu0
        %1772 = vmatprep.subr.mxu0 %v1295
        %1773 = vmatpush1.msra.mxu0 %v1294
        %1774 = vmatprep.subr.mxu0 %v1299
        %1775 = vmatpush1.msra.mxu0 %v1298
        %1776 = vmatprep.subr.mxu0 %v1303
        %1777 = vmatpush1.msra.mxu0 %v1302
        %1778 = vmatprep.subr.mxu0 %v1307
        %1779 = vmatpush1.msra.mxu0 %v1306
        %1780 = vmatprep.subr.mxu0 %v1311
        %1781 = vmatpush1.msra.mxu0 %v1310
        %1782 = vmatprep.subr.mxu0 %v1315
        %1783 = vmatpush1.msra.mxu0 %v1314
        %1784 = vmatprep.subr.mxu0 %v1319
        %1785 = vmatpush1.msra.mxu0 %v1318
        %1786 = vmatprep.subr.mxu0 %v1323
        %1787 = vmatpush1.msra.mxu0 %v1322
        %1788 = vmatprep.subr.mxu0 %v1327
        %1789 = vmatpush1.msra.mxu0 %v1326
        %1790 = vmatprep.subr.mxu0 %v1331
        %1791 = vmatpush1.msra.mxu0 %v1330
        %1792 = vmatprep.subr.mxu0 %v1335
        %1793 = vmatpush1.msra.mxu0 %v1334
        %1794 = vmatprep.subr.mxu0 %v1339
        %1795 = vmatpush1.msra.mxu0 %v1338
        %1796 = vmatprep.subr.mxu0 %v1343
        %1797 = vmatpush1.msra.mxu0 %v1342
        %1798 = vmatprep.subr.mxu0 %v1347
        %1799 = vmatpush1.msra.mxu0 %v1346
        %1800 = vmatprep.subr.mxu0 %v1351
        %1801 = vmatpush1.msra.mxu0 %v1350
        %1802 = vmatprep.subr.mxu0 %v1355
        %1803 = vmatpush1.msra.mxu0 %v1354
        %1804 = vmatprep.subr.mxu0 %v1359
        %1805 = vmatpush1.msra.mxu0 %v1358
        %1806 = vmatprep.subr.mxu0 %v1363
        %1807 = vmatpush1.msra.mxu0 %v1362
        %1808 = vmatprep.subr.mxu0 %v1367
        %1809 = vmatpush1.msra.mxu0 %v1366
        %1810 = vmatprep.subr.mxu0 %v1371
        %1811 = vmatpush1.msra.mxu0 %v1370
        %1812 = vmatprep.subr.mxu0 %v1375
        %1813 = vmatpush1.msra.mxu0 %v1374
        %1814 = vmatprep.subr.mxu0 %v1379
        %1815 = vmatpush1.msra.mxu0 %v1378
        %1816 = vmatprep.subr.mxu0 %v1383
        %1817 = vmatpush1.msra.mxu0 %v1382
        %1818 = vmatprep.subr.mxu0 %v1387
        %1819 = vmatpush1.msra.mxu0 %v1386
        %1820 = vmatprep.subr.mxu0 %v1391
        %1821 = vmatpush1.msra.mxu0 %v1390
        %1822 = vmatprep.subr.mxu0 %v1395
        %1823 = vmatpush1.msra.mxu0 %v1394
        %1824 = vmatprep.subr.mxu0 %v1399
        %1825 = vmatpush1.msra.mxu0 %v1398
        %1826 = vmatprep.subr.mxu0 %v1403
        %1827 = vmatpush1.msra.mxu0 %v1402
        %1828 = vmatprep.subr.mxu0 %v1407
        %1829 = vmatpush1.msra.mxu0 %v1406
        %1830 = vmatprep.subr.mxu0 %v1411
        %1831 = vmatpush1.msra.mxu0 %v1410
        %1832 = vmatprep.subr.mxu0 %v1415
        %1833 = vmatpush1.msra.mxu0 %v1414
        %1834 = vmatprep.subr.mxu0 %v1419
        %1835 = vmatpush1.msra.mxu0 %v1418
        %1836 = vmatprep.mubr.f32.mxu0 %v1208
        %1837 = vmatmul.mubr.f32.gmra.mrb[0].mxu0 %v1207
        %v1838 = vpop.f32.mrb[0].mxu0
        %v1839 = vadd.f32 %v1697, %v1838
        %v1840 = vpop.f32.mrb[0].mxu0
        %v1841 = vadd.f32 %v1699, %v1840
        %1842 = vdwg.mxu0
        %1843 = vmatprep.subr.mxu0 %v1421
        %1844 = vmatpush1.msra.mxu0 %v1420
        %1845 = vmatprep.subr.mxu0 %v1425
        %1846 = vmatpush1.msra.mxu0 %v1424
        %1847 = vmatprep.subr.mxu0 %v1429
        %1848 = vmatpush1.msra.mxu0 %v1428
        %1849 = vmatprep.subr.mxu0 %v1433
        %1850 = vmatpush1.msra.mxu0 %v1432
        %1851 = vmatprep.subr.mxu0 %v1437
        %1852 = vmatpush1.msra.mxu0 %v1436
        %1853 = vmatprep.subr.mxu0 %v1441
        %1854 = vmatpush1.msra.mxu0 %v1440
        %1855 = vmatprep.subr.mxu0 %v1445
        %1856 = vmatpush1.msra.mxu0 %v1444
        %1857 = vmatprep.subr.mxu0 %v1449
        %1858 = vmatpush1.msra.mxu0 %v1448
        %1859 = vmatprep.subr.mxu0 %v1453
        %1860 = vmatpush1.msra.mxu0 %v1452
        %1861 = vmatprep.subr.mxu0 %v1457
        %1862 = vmatpush1.msra.mxu0 %v1456
        %1863 = vmatprep.subr.mxu0 %v1461
        %1864 = vmatpush1.msra.mxu0 %v1460
        %1865 = vmatprep.subr.mxu0 %v1465
        %1866 = vmatpush1.msra.mxu0 %v1464
        %1867 = vmatprep.subr.mxu0 %v1469
        %1868 = vmatpush1.msra.mxu0 %v1468
        %1869 = vmatprep.subr.mxu0 %v1473
        %1870 = vmatpush1.msra.mxu0 %v1472
        %1871 = vmatprep.subr.mxu0 %v1477
        %1872 = vmatpush1.msra.mxu0 %v1476
        %1873 = vmatprep.subr.mxu0 %v1481
        %1874 = vmatpush1.msra.mxu0 %v1480
        %1875 = vmatprep.subr.mxu0 %v1485
        %1876 = vmatpush1.msra.mxu0 %v1484
        %1877 = vmatprep.subr.mxu0 %v1489
        %1878 = vmatpush1.msra.mxu0 %v1488
        %1879 = vmatprep.subr.mxu0 %v1493
        %1880 = vmatpush1.msra.mxu0 %v1492
        %1881 = vmatprep.subr.mxu0 %v1497
        %1882 = vmatpush1.msra.mxu0 %v1496
        %1883 = vmatprep.subr.mxu0 %v1501
        %1884 = vmatpush1.msra.mxu0 %v1500
        %1885 = vmatprep.subr.mxu0 %v1505
        %1886 = vmatpush1.msra.mxu0 %v1504
        %1887 = vmatprep.subr.mxu0 %v1509
        %1888 = vmatpush1.msra.mxu0 %v1508
        %1889 = vmatprep.subr.mxu0 %v1513
        %1890 = vmatpush1.msra.mxu0 %v1512
        %1891 = vmatprep.subr.mxu0 %v1517
        %1892 = vmatpush1.msra.mxu0 %v1516
        %1893 = vmatprep.subr.mxu0 %v1521
        %1894 = vmatpush1.msra.mxu0 %v1520
        %1895 = vmatprep.subr.mxu0 %v1525
        %1896 = vmatpush1.msra.mxu0 %v1524
        %1897 = vmatprep.subr.mxu0 %v1529
        %1898 = vmatpush1.msra.mxu0 %v1528
        %1899 = vmatprep.subr.mxu0 %v1533
        %1900 = vmatpush1.msra.mxu0 %v1532
        %1901 = vmatprep.subr.mxu0 %v1537
        %1902 = vmatpush1.msra.mxu0 %v1536
        %1903 = vmatprep.subr.mxu0 %v1541
        %1904 = vmatpush1.msra.mxu0 %v1540
        %1905 = vmatprep.subr.mxu0 %v1545
        %1906 = vmatpush1.msra.mxu0 %v1544
        %1907 = vmatprep.mubr.f32.mxu0 %v1208
        %1908 = vmatmul.mubr.f32.gmra.mrb[0].mxu0 %v1207
        %v1909 = vpop.f32.mrb[0].mxu0
        %v1910 = vadd.f32 0.0, %v1909
        %v1911 = vpop.f32.mrb[0].mxu0
        %v1912 = vadd.f32 0.0, %v1911
        %1913 = vdwg.mxu0
        %1914 = vmatprep.subr.mxu0 %v1423
        %1915 = vmatpush1.msra.mxu0 %v1422
        %1916 = vmatprep.subr.mxu0 %v1427
        %1917 = vmatpush1.msra.mxu0 %v1426
        %1918 = vmatprep.subr.mxu0 %v1431
        %1919 = vmatpush1.msra.mxu0 %v1430
        %1920 = vmatprep.subr.mxu0 %v1435
        %1921 = vmatpush1.msra.mxu0 %v1434
        %1922 = vmatprep.subr.mxu0 %v1439
        %1923 = vmatpush1.msra.mxu0 %v1438
        %1924 = vmatprep.subr.mxu0 %v1443
        %1925 = vmatpush1.msra.mxu0 %v1442
        %1926 = vmatprep.subr.mxu0 %v1447
        %1927 = vmatpush1.msra.mxu0 %v1446
        %1928 = vmatprep.subr.mxu0 %v1451
        %1929 = vmatpush1.msra.mxu0 %v1450
        %1930 = vmatprep.subr.mxu0 %v1455
        %1931 = vmatpush1.msra.mxu0 %v1454
        %1932 = vmatprep.subr.mxu0 %v1459
        %1933 = vmatpush1.msra.mxu0 %v1458
        %1934 = vmatprep.subr.mxu0 %v1463
        %1935 = vmatpush1.msra.mxu0 %v1462
        %1936 = vmatprep.subr.mxu0 %v1467
        %1937 = vmatpush1.msra.mxu0 %v1466
        %1938 = vmatprep.subr.mxu0 %v1471
        %1939 = vmatpush1.msra.mxu0 %v1470
        %1940 = vmatprep.subr.mxu0 %v1475
        %1941 = vmatpush1.msra.mxu0 %v1474
        %1942 = vmatprep.subr.mxu0 %v1479
        %1943 = vmatpush1.msra.mxu0 %v1478
        %1944 = vmatprep.subr.mxu0 %v1483
        %1945 = vmatpush1.msra.mxu0 %v1482
        %1946 = vmatprep.subr.mxu0 %v1487
        %1947 = vmatpush1.msra.mxu0 %v1486
        %1948 = vmatprep.subr.mxu0 %v1491
        %1949 = vmatpush1.msra.mxu0 %v1490
        %1950 = vmatprep.subr.mxu0 %v1495
        %1951 = vmatpush1.msra.mxu0 %v1494
        %1952 = vmatprep.subr.mxu0 %v1499
        %1953 = vmatpush1.msra.mxu0 %v1498
        %1954 = vmatprep.subr.mxu0 %v1503
        %1955 = vmatpush1.msra.mxu0 %v1502
        %1956 = vmatprep.subr.mxu0 %v1507
        %1957 = vmatpush1.msra.mxu0 %v1506
        %1958 = vmatprep.subr.mxu0 %v1511
        %1959 = vmatpush1.msra.mxu0 %v1510
        %1960 = vmatprep.subr.mxu0 %v1515
        %1961 = vmatpush1.msra.mxu0 %v1514
        %1962 = vmatprep.subr.mxu0 %v1519
        %1963 = vmatpush1.msra.mxu0 %v1518
        %1964 = vmatprep.subr.mxu0 %v1523
        %1965 = vmatpush1.msra.mxu0 %v1522
        %1966 = vmatprep.subr.mxu0 %v1527
        %1967 = vmatpush1.msra.mxu0 %v1526
        %1968 = vmatprep.subr.mxu0 %v1531
        %1969 = vmatpush1.msra.mxu0 %v1530
        %1970 = vmatprep.subr.mxu0 %v1535
        %1971 = vmatpush1.msra.mxu0 %v1534
        %1972 = vmatprep.subr.mxu0 %v1539
        %1973 = vmatpush1.msra.mxu0 %v1538
        %1974 = vmatprep.subr.mxu0 %v1543
        %1975 = vmatpush1.msra.mxu0 %v1542
        %1976 = vmatprep.subr.mxu0 %v1547
        %1977 = vmatpush1.msra.mxu0 %v1546
        %1978 = vmatprep.mubr.f32.mxu0 %v1208
        %1979 = vmatmul.mubr.f32.gmra.mrb[0].mxu0 %v1207
        %v1980 = vpop.f32.mrb[0].mxu0
        %v1981 = vadd.f32 0.0, %v1980
        %v1982 = vpop.f32.mrb[0].mxu0
        %v1983 = vadd.f32 0.0, %v1982
        %1984 = vdwg.mxu0
        %v1985 = vadd.f32 %v1768, %v1910
        %v1986 = vadd.f32 %v1770, %v1912
        %v1987 = vadd.f32 %v1839, %v1981
        %v1988 = vadd.f32 %v1841, %v1983
        %s1989 = scalar_lea.vmem [#allocation2], 1
        %v1990 = vld [vmem:[%s1989] ss:$2 sm:$0x3]
        %s1991 = scalar_lea.vmem [#allocation7], 1024
        %v1992 = vld [vmem:[%s1991] sm:$0xff]
        %v1993 = vld [vmem:[%s1991 + $0x8] sm:$0xff]
        %v1994 = vld [vmem:[%s1991 + $0x10] sm:$0xff]
        %v1995 = vld [vmem:[%s1991 + $0x18] sm:$0xff]
        %v1996 = vld [vmem:[%s1991 + $0x20] sm:$0xff]
        %v1997 = vld [vmem:[%s1991 + $0x28] sm:$0xff]
        %v1998 = vld [vmem:[%s1991 + $0x30] sm:$0xff]
        %v1999 = vld [vmem:[%s1991 + $0x38] sm:$0xff]
        %v2000 = vld [vmem:[%s1991 + $0x40] sm:$0xff]
        %v2001 = vld [vmem:[%s1991 + $0x48] sm:$0xff]
        %v2002 = vld [vmem:[%s1991 + $0x50] sm:$0xff]
        %v2003 = vld [vmem:[%s1991 + $0x58] sm:$0xff]
        %v2004 = vld [vmem:[%s1991 + $0x60] sm:$0xff]
        %v2005 = vld [vmem:[%s1991 + $0x68] sm:$0xff]
        %v2006 = vld [vmem:[%s1991 + $0x70] sm:$0xff]
        %v2007 = vld [vmem:[%s1991 + $0x78] sm:$0xff]
        %v2008 = vld [vmem:[%s1991 + $0x80] sm:$0xff]
        %v2009 = vld [vmem:[%s1991 + $0x88] sm:$0xff]
        %v2010 = vld [vmem:[%s1991 + $0x90] sm:$0xff]
        %v2011 = vld [vmem:[%s1991 + $0x98] sm:$0xff]
        %v2012 = vld [vmem:[%s1991 + $0xa0] sm:$0xff]
        %v2013 = vld [vmem:[%s1991 + $0xa8] sm:$0xff]
        %v2014 = vld [vmem:[%s1991 + $0xb0] sm:$0xff]
        %v2015 = vld [vmem:[%s1991 + $0xb8] sm:$0xff]
        %v2016 = vld [vmem:[%s1991 + $0xc0] sm:$0xff]
        %v2017 = vld [vmem:[%s1991 + $0xc8] sm:$0xff]
        %v2018 = vld [vmem:[%s1991 + $0xd0] sm:$0xff]
        %v2019 = vld [vmem:[%s1991 + $0xd8] sm:$0xff]
        %v2020 = vld [vmem:[%s1991 + $0xe0] sm:$0xff]
        %v2021 = vld [vmem:[%s1991 + $0xe8] sm:$0xff]
        %v2022 = vld [vmem:[%s1991 + $0xf0] sm:$0xff]
        %v2023 = vld [vmem:[%s1991 + $0xf8] sm:$0xff]
        %v2024 = vld [vmem:[%s1991 + $0x100] sm:$0xff]
        %v2025 = vld [vmem:[%s1991 + $0x108] sm:$0xff]
        %v2026 = vld [vmem:[%s1991 + $0x110] sm:$0xff]
        %v2027 = vld [vmem:[%s1991 + $0x118] sm:$0xff]
        %v2028 = vld [vmem:[%s1991 + $0x120] sm:$0xff]
        %v2029 = vld [vmem:[%s1991 + $0x128] sm:$0xff]
        %v2030 = vld [vmem:[%s1991 + $0x130] sm:$0xff]
        %v2031 = vld [vmem:[%s1991 + $0x138] sm:$0xff]
        %v2032 = vld [vmem:[%s1991 + $0x140] sm:$0xff]
        %v2033 = vld [vmem:[%s1991 + $0x148] sm:$0xff]
        %v2034 = vld [vmem:[%s1991 + $0x150] sm:$0xff]
        %v2035 = vld [vmem:[%s1991 + $0x158] sm:$0xff]
        %v2036 = vld [vmem:[%s1991 + $0x160] sm:$0xff]
        %v2037 = vld [vmem:[%s1991 + $0x168] sm:$0xff]
        %v2038 = vld [vmem:[%s1991 + $0x170] sm:$0xff]
        %v2039 = vld [vmem:[%s1991 + $0x178] sm:$0xff]
        %v2040 = vld [vmem:[%s1991 + $0x180] sm:$0xff]
        %v2041 = vld [vmem:[%s1991 + $0x188] sm:$0xff]
        %v2042 = vld [vmem:[%s1991 + $0x190] sm:$0xff]
        %v2043 = vld [vmem:[%s1991 + $0x198] sm:$0xff]
        %v2044 = vld [vmem:[%s1991 + $0x1a0] sm:$0xff]
        %v2045 = vld [vmem:[%s1991 + $0x1a8] sm:$0xff]
        %v2046 = vld [vmem:[%s1991 + $0x1b0] sm:$0xff]
        %v2047 = vld [vmem:[%s1991 + $0x1b8] sm:$0xff]
        %v2048 = vld [vmem:[%s1991 + $0x1c0] sm:$0xff]
        %v2049 = vld [vmem:[%s1991 + $0x1c8] sm:$0xff]
        %v2050 = vld [vmem:[%s1991 + $0x1d0] sm:$0xff]
        %v2051 = vld [vmem:[%s1991 + $0x1d8] sm:$0xff]
        %v2052 = vld [vmem:[%s1991 + $0x1e0] sm:$0xff]
        %v2053 = vld [vmem:[%s1991 + $0x1e8] sm:$0xff]
        %v2054 = vld [vmem:[%s1991 + $0x1f0] sm:$0xff]
        %v2055 = vld [vmem:[%s1991 + $0x1f8] sm:$0xff]
        %v2056 = vld [vmem:[%s1991 + $0x200] sm:$0xff]
        %v2057 = vld [vmem:[%s1991 + $0x208] sm:$0xff]
        %v2058 = vld [vmem:[%s1991 + $0x210] sm:$0xff]
        %v2059 = vld [vmem:[%s1991 + $0x218] sm:$0xff]
        %v2060 = vld [vmem:[%s1991 + $0x220] sm:$0xff]
        %v2061 = vld [vmem:[%s1991 + $0x228] sm:$0xff]
        %v2062 = vld [vmem:[%s1991 + $0x230] sm:$0xff]
        %v2063 = vld [vmem:[%s1991 + $0x238] sm:$0xff]
        %v2064 = vld [vmem:[%s1991 + $0x240] sm:$0xff]
        %v2065 = vld [vmem:[%s1991 + $0x248] sm:$0xff]
        %v2066 = vld [vmem:[%s1991 + $0x250] sm:$0xff]
        %v2067 = vld [vmem:[%s1991 + $0x258] sm:$0xff]
        %v2068 = vld [vmem:[%s1991 + $0x260] sm:$0xff]
        %v2069 = vld [vmem:[%s1991 + $0x268] sm:$0xff]
        %v2070 = vld [vmem:[%s1991 + $0x270] sm:$0xff]
        %v2071 = vld [vmem:[%s1991 + $0x278] sm:$0xff]
        %v2072 = vld [vmem:[%s1991 + $0x280] sm:$0xff]
        %v2073 = vld [vmem:[%s1991 + $0x288] sm:$0xff]
        %v2074 = vld [vmem:[%s1991 + $0x290] sm:$0xff]
        %v2075 = vld [vmem:[%s1991 + $0x298] sm:$0xff]
        %v2076 = vld [vmem:[%s1991 + $0x2a0] sm:$0xff]
        %v2077 = vld [vmem:[%s1991 + $0x2a8] sm:$0xff]
        %v2078 = vld [vmem:[%s1991 + $0x2b0] sm:$0xff]
        %v2079 = vld [vmem:[%s1991 + $0x2b8] sm:$0xff]
        %v2080 = vld [vmem:[%s1991 + $0x2c0] sm:$0xff]
        %v2081 = vld [vmem:[%s1991 + $0x2c8] sm:$0xff]
        %v2082 = vld [vmem:[%s1991 + $0x2d0] sm:$0xff]
        %v2083 = vld [vmem:[%s1991 + $0x2d8] sm:$0xff]
        %v2084 = vld [vmem:[%s1991 + $0x2e0] sm:$0xff]
        %v2085 = vld [vmem:[%s1991 + $0x2e8] sm:$0xff]
        %v2086 = vld [vmem:[%s1991 + $0x2f0] sm:$0xff]
        %v2087 = vld [vmem:[%s1991 + $0x2f8] sm:$0xff]
        %v2088 = vld [vmem:[%s1991 + $0x300] sm:$0xff]
        %v2089 = vld [vmem:[%s1991 + $0x308] sm:$0xff]
        %v2090 = vld [vmem:[%s1991 + $0x310] sm:$0xff]
        %v2091 = vld [vmem:[%s1991 + $0x318] sm:$0xff]
        %v2092 = vld [vmem:[%s1991 + $0x320] sm:$0xff]
        %v2093 = vld [vmem:[%s1991 + $0x328] sm:$0xff]
        %v2094 = vld [vmem:[%s1991 + $0x330] sm:$0xff]
        %v2095 = vld [vmem:[%s1991 + $0x338] sm:$0xff]
        %v2096 = vld [vmem:[%s1991 + $0x340] sm:$0xff]
        %v2097 = vld [vmem:[%s1991 + $0x348] sm:$0xff]
        %v2098 = vld [vmem:[%s1991 + $0x350] sm:$0xff]
        %v2099 = vld [vmem:[%s1991 + $0x358] sm:$0xff]
        %v2100 = vld [vmem:[%s1991 + $0x360] sm:$0xff]
        %v2101 = vld [vmem:[%s1991 + $0x368] sm:$0xff]
        %v2102 = vld [vmem:[%s1991 + $0x370] sm:$0xff]
        %v2103 = vld [vmem:[%s1991 + $0x378] sm:$0xff]
        %v2104 = vld [vmem:[%s1991 + $0x380] sm:$0xff]
        %v2105 = vld [vmem:[%s1991 + $0x388] sm:$0xff]
        %v2106 = vld [vmem:[%s1991 + $0x390] sm:$0xff]
        %v2107 = vld [vmem:[%s1991 + $0x398] sm:$0xff]
        %v2108 = vld [vmem:[%s1991 + $0x3a0] sm:$0xff]
        %v2109 = vld [vmem:[%s1991 + $0x3a8] sm:$0xff]
        %v2110 = vld [vmem:[%s1991 + $0x3b0] sm:$0xff]
        %v2111 = vld [vmem:[%s1991 + $0x3b8] sm:$0xff]
        %v2112 = vld [vmem:[%s1991 + $0x3c0] sm:$0xff]
        %v2113 = vld [vmem:[%s1991 + $0x3c8] sm:$0xff]
        %v2114 = vld [vmem:[%s1991 + $0x3d0] sm:$0xff]
        %v2115 = vld [vmem:[%s1991 + $0x3d8] sm:$0xff]
        %v2116 = vld [vmem:[%s1991 + $0x3e0] sm:$0xff]
        %v2117 = vld [vmem:[%s1991 + $0x3e8] sm:$0xff]
        %v2118 = vld [vmem:[%s1991 + $0x3f0] sm:$0xff]
        %v2119 = vld [vmem:[%s1991 + $0x3f8] sm:$0xff]
        %v2121 = vlaneseq
        %v2122 = vshrl.u32 %v2121, 7
        %v2123 = vsub.s32 0, %v2122
        %v2124 = vrot.slane %v1990, %v2123
        %v2125 = vlaneseq
        %v2126 = vshrl.u32 %v2125, 7
        %v2127 = vsub.s32 1, %v2126
        %v2128 = vrot.slane %v1990, %v2127
        %v2131 = vpack.c.bf16 %v2124, %v2124
        %v2132 = vpack.c.bf16 %v2128, %v2128
        %v2133 = vunpack.c.l.bf16 %v2131
        %v2134 = vunpack.c.l.bf16 %v2132
        %v2137 = vcombine.low %v2133, %v2134
        %v2139 = vunpack.c.l.s4 1966171168
        %v2140 = vunpack.c.0.s8 %v2139
        %v2141 = vlaneseq
        %v2142 = vshrl.u32 %v2141, 7
        %v2143 = vsub.s32 %v2140, %v2142
        %v2144 = vrot.slane %v2137, %v2143
        %v2146 = vunpack.c.l.s4 1966171168
        %v2147 = vunpack.c.0.s8 %v2146
        %v2148 = vlaneseq
        %v2149 = vshrl.u32 %v2148, 7
        %v2150 = vsub.s32 %v2147, %v2149
        %v2151 = vrot.slane %v2144, %v2150
        %v2153 = vsub.f32 %v1990, %v2151
        %v2154 = vpack.c.bf16 %v1996, %v1992
        %v2155 = vpack.c.bf16 %v1997, %v1993
        %v2156 = vpack.c.bf16 %v1998, %v1994
        %v2157 = vpack.c.bf16 %v1999, %v1995
        %v2158 = vpack.c.bf16 %v2004, %v2000
        %v2159 = vpack.c.bf16 %v2005, %v2001
        %v2160 = vpack.c.bf16 %v2006, %v2002
        %v2161 = vpack.c.bf16 %v2007, %v2003
        %v2162 = vpack.c.bf16 %v2012, %v2008
        %v2163 = vpack.c.bf16 %v2013, %v2009
        %v2164 = vpack.c.bf16 %v2014, %v2010
        %v2165 = vpack.c.bf16 %v2015, %v2011
        %v2166 = vpack.c.bf16 %v2020, %v2016
        %v2167 = vpack.c.bf16 %v2021, %v2017
        %v2168 = vpack.c.bf16 %v2022, %v2018
        %v2169 = vpack.c.bf16 %v2023, %v2019
        %v2170 = vpack.c.bf16 %v2028, %v2024
        %v2171 = vpack.c.bf16 %v2029, %v2025
        %v2172 = vpack.c.bf16 %v2030, %v2026
        %v2173 = vpack.c.bf16 %v2031, %v2027
        %v2174 = vpack.c.bf16 %v2036, %v2032
        %v2175 = vpack.c.bf16 %v2037, %v2033
        %v2176 = vpack.c.bf16 %v2038, %v2034
        %v2177 = vpack.c.bf16 %v2039, %v2035
        %v2178 = vpack.c.bf16 %v2044, %v2040
        %v2179 = vpack.c.bf16 %v2045, %v2041
        %v2180 = vpack.c.bf16 %v2046, %v2042
        %v2181 = vpack.c.bf16 %v2047, %v2043
        %v2182 = vpack.c.bf16 %v2052, %v2048
        %v2183 = vpack.c.bf16 %v2053, %v2049
        %v2184 = vpack.c.bf16 %v2054, %v2050
        %v2185 = vpack.c.bf16 %v2055, %v2051
        %v2186 = vpack.c.bf16 %v2060, %v2056
        %v2187 = vpack.c.bf16 %v2061, %v2057
        %v2188 = vpack.c.bf16 %v2062, %v2058
        %v2189 = vpack.c.bf16 %v2063, %v2059
        %v2190 = vpack.c.bf16 %v2068, %v2064
        %v2191 = vpack.c.bf16 %v2069, %v2065
        %v2192 = vpack.c.bf16 %v2070, %v2066
        %v2193 = vpack.c.bf16 %v2071, %v2067
        %v2194 = vpack.c.bf16 %v2076, %v2072
        %v2195 = vpack.c.bf16 %v2077, %v2073
        %v2196 = vpack.c.bf16 %v2078, %v2074
        %v2197 = vpack.c.bf16 %v2079, %v2075
        %v2198 = vpack.c.bf16 %v2084, %v2080
        %v2199 = vpack.c.bf16 %v2085, %v2081
        %v2200 = vpack.c.bf16 %v2086, %v2082
        %v2201 = vpack.c.bf16 %v2087, %v2083
        %v2202 = vpack.c.bf16 %v2092, %v2088
        %v2203 = vpack.c.bf16 %v2093, %v2089
        %v2204 = vpack.c.bf16 %v2094, %v2090
        %v2205 = vpack.c.bf16 %v2095, %v2091
        %v2206 = vpack.c.bf16 %v2100, %v2096
        %v2207 = vpack.c.bf16 %v2101, %v2097
        %v2208 = vpack.c.bf16 %v2102, %v2098
        %v2209 = vpack.c.bf16 %v2103, %v2099
        %v2210 = vpack.c.bf16 %v2108, %v2104
        %v2211 = vpack.c.bf16 %v2109, %v2105
        %v2212 = vpack.c.bf16 %v2110, %v2106
        %v2213 = vpack.c.bf16 %v2111, %v2107
        %v2214 = vpack.c.bf16 %v2116, %v2112
        %v2215 = vpack.c.bf16 %v2117, %v2113
        %v2216 = vpack.c.bf16 %v2118, %v2114
        %v2217 = vpack.c.bf16 %v2119, %v2115
        %v2218 = vunpack.c.l.bf16 %v2154
        %v2219 = vunpack.c.l.bf16 %v2155
        %v2220 = vunpack.c.l.bf16 %v2156
        %v2221 = vunpack.c.l.bf16 %v2157
        %v2222 = vunpack.c.h.bf16 %v2154
        %v2223 = vunpack.c.h.bf16 %v2155
        %v2224 = vunpack.c.h.bf16 %v2156
        %v2225 = vunpack.c.h.bf16 %v2157
        %v2226 = vunpack.c.l.bf16 %v2158
        %v2227 = vunpack.c.l.bf16 %v2159
        %v2228 = vunpack.c.l.bf16 %v2160
        %v2229 = vunpack.c.l.bf16 %v2161
        %v2230 = vunpack.c.h.bf16 %v2158
        %v2231 = vunpack.c.h.bf16 %v2159
        %v2232 = vunpack.c.h.bf16 %v2160
        %v2233 = vunpack.c.h.bf16 %v2161
        %v2234 = vunpack.c.l.bf16 %v2162
        %v2235 = vunpack.c.l.bf16 %v2163
        %v2236 = vunpack.c.l.bf16 %v2164
        %v2237 = vunpack.c.l.bf16 %v2165
        %v2238 = vunpack.c.h.bf16 %v2162
        %v2239 = vunpack.c.h.bf16 %v2163
        %v2240 = vunpack.c.h.bf16 %v2164
        %v2241 = vunpack.c.h.bf16 %v2165
        %v2242 = vunpack.c.l.bf16 %v2166
        %v2243 = vunpack.c.l.bf16 %v2167
        %v2244 = vunpack.c.l.bf16 %v2168
        %v2245 = vunpack.c.l.bf16 %v2169
        %v2246 = vunpack.c.h.bf16 %v2166
        %v2247 = vunpack.c.h.bf16 %v2167
        %v2248 = vunpack.c.h.bf16 %v2168
        %v2249 = vunpack.c.h.bf16 %v2169
        %v2250 = vunpack.c.l.bf16 %v2170
        %v2251 = vunpack.c.l.bf16 %v2171
        %v2252 = vunpack.c.l.bf16 %v2172
        %v2253 = vunpack.c.l.bf16 %v2173
        %v2254 = vunpack.c.h.bf16 %v2170
        %v2255 = vunpack.c.h.bf16 %v2171
        %v2256 = vunpack.c.h.bf16 %v2172
        %v2257 = vunpack.c.h.bf16 %v2173
        %v2258 = vunpack.c.l.bf16 %v2174
        %v2259 = vunpack.c.l.bf16 %v2175
        %v2260 = vunpack.c.l.bf16 %v2176
        %v2261 = vunpack.c.l.bf16 %v2177
        %v2262 = vunpack.c.h.bf16 %v2174
        %v2263 = vunpack.c.h.bf16 %v2175
        %v2264 = vunpack.c.h.bf16 %v2176
        %v2265 = vunpack.c.h.bf16 %v2177
        %v2266 = vunpack.c.l.bf16 %v2178
        %v2267 = vunpack.c.l.bf16 %v2179
        %v2268 = vunpack.c.l.bf16 %v2180
        %v2269 = vunpack.c.l.bf16 %v2181
        %v2270 = vunpack.c.h.bf16 %v2178
        %v2271 = vunpack.c.h.bf16 %v2179
        %v2272 = vunpack.c.h.bf16 %v2180
        %v2273 = vunpack.c.h.bf16 %v2181
        %v2274 = vunpack.c.l.bf16 %v2182
        %v2275 = vunpack.c.l.bf16 %v2183
        %v2276 = vunpack.c.l.bf16 %v2184
        %v2277 = vunpack.c.l.bf16 %v2185
        %v2278 = vunpack.c.h.bf16 %v2182
        %v2279 = vunpack.c.h.bf16 %v2183
        %v2280 = vunpack.c.h.bf16 %v2184
        %v2281 = vunpack.c.h.bf16 %v2185
        %v2282 = vunpack.c.l.bf16 %v2186
        %v2283 = vunpack.c.l.bf16 %v2187
        %v2284 = vunpack.c.l.bf16 %v2188
        %v2285 = vunpack.c.l.bf16 %v2189
        %v2286 = vunpack.c.h.bf16 %v2186
        %v2287 = vunpack.c.h.bf16 %v2187
        %v2288 = vunpack.c.h.bf16 %v2188
        %v2289 = vunpack.c.h.bf16 %v2189
        %v2290 = vunpack.c.l.bf16 %v2190
        %v2291 = vunpack.c.l.bf16 %v2191
        %v2292 = vunpack.c.l.bf16 %v2192
        %v2293 = vunpack.c.l.bf16 %v2193
        %v2294 = vunpack.c.h.bf16 %v2190
        %v2295 = vunpack.c.h.bf16 %v2191
        %v2296 = vunpack.c.h.bf16 %v2192
        %v2297 = vunpack.c.h.bf16 %v2193
        %v2298 = vunpack.c.l.bf16 %v2194
        %v2299 = vunpack.c.l.bf16 %v2195
        %v2300 = vunpack.c.l.bf16 %v2196
        %v2301 = vunpack.c.l.bf16 %v2197
        %v2302 = vunpack.c.h.bf16 %v2194
        %v2303 = vunpack.c.h.bf16 %v2195
        %v2304 = vunpack.c.h.bf16 %v2196
        %v2305 = vunpack.c.h.bf16 %v2197
        %v2306 = vunpack.c.l.bf16 %v2198
        %v2307 = vunpack.c.l.bf16 %v2199
        %v2308 = vunpack.c.l.bf16 %v2200
        %v2309 = vunpack.c.l.bf16 %v2201
        %v2310 = vunpack.c.h.bf16 %v2198
        %v2311 = vunpack.c.h.bf16 %v2199
        %v2312 = vunpack.c.h.bf16 %v2200
        %v2313 = vunpack.c.h.bf16 %v2201
        %v2314 = vunpack.c.l.bf16 %v2202
        %v2315 = vunpack.c.l.bf16 %v2203
        %v2316 = vunpack.c.l.bf16 %v2204
        %v2317 = vunpack.c.l.bf16 %v2205
        %v2318 = vunpack.c.h.bf16 %v2202
        %v2319 = vunpack.c.h.bf16 %v2203
        %v2320 = vunpack.c.h.bf16 %v2204
        %v2321 = vunpack.c.h.bf16 %v2205
        %v2322 = vunpack.c.l.bf16 %v2206
        %v2323 = vunpack.c.l.bf16 %v2207
        %v2324 = vunpack.c.l.bf16 %v2208
        %v2325 = vunpack.c.l.bf16 %v2209
        %v2326 = vunpack.c.h.bf16 %v2206
        %v2327 = vunpack.c.h.bf16 %v2207
        %v2328 = vunpack.c.h.bf16 %v2208
        %v2329 = vunpack.c.h.bf16 %v2209
        %v2330 = vunpack.c.l.bf16 %v2210
        %v2331 = vunpack.c.l.bf16 %v2211
        %v2332 = vunpack.c.l.bf16 %v2212
        %v2333 = vunpack.c.l.bf16 %v2213
        %v2334 = vunpack.c.h.bf16 %v2210
        %v2335 = vunpack.c.h.bf16 %v2211
        %v2336 = vunpack.c.h.bf16 %v2212
        %v2337 = vunpack.c.h.bf16 %v2213
        %v2338 = vunpack.c.l.bf16 %v2214
        %v2339 = vunpack.c.l.bf16 %v2215
        %v2340 = vunpack.c.l.bf16 %v2216
        %v2341 = vunpack.c.l.bf16 %v2217
        %v2342 = vunpack.c.h.bf16 %v2214
        %v2343 = vunpack.c.h.bf16 %v2215
        %v2344 = vunpack.c.h.bf16 %v2216
        %v2345 = vunpack.c.h.bf16 %v2217
        %v2346 = vsub.f32 %v1992, %v2218
        %v2347 = vsub.f32 %v1993, %v2219
        %v2348 = vsub.f32 %v1994, %v2220
        %v2349 = vsub.f32 %v1995, %v2221
        %v2350 = vsub.f32 %v1996, %v2222
        %v2351 = vsub.f32 %v1997, %v2223
        %v2352 = vsub.f32 %v1998, %v2224
        %v2353 = vsub.f32 %v1999, %v2225
        %v2354 = vsub.f32 %v2000, %v2226
        %v2355 = vsub.f32 %v2001, %v2227
        %v2356 = vsub.f32 %v2002, %v2228
        %v2357 = vsub.f32 %v2003, %v2229
        %v2358 = vsub.f32 %v2004, %v2230
        %v2359 = vsub.f32 %v2005, %v2231
        %v2360 = vsub.f32 %v2006, %v2232
        %v2361 = vsub.f32 %v2007, %v2233
        %v2362 = vsub.f32 %v2008, %v2234
        %v2363 = vsub.f32 %v2009, %v2235
        %v2364 = vsub.f32 %v2010, %v2236
        %v2365 = vsub.f32 %v2011, %v2237
        %v2366 = vsub.f32 %v2012, %v2238
        %v2367 = vsub.f32 %v2013, %v2239
        %v2368 = vsub.f32 %v2014, %v2240
        %v2369 = vsub.f32 %v2015, %v2241
        %v2370 = vsub.f32 %v2016, %v2242
        %v2371 = vsub.f32 %v2017, %v2243
        %v2372 = vsub.f32 %v2018, %v2244
        %v2373 = vsub.f32 %v2019, %v2245
        %v2374 = vsub.f32 %v2020, %v2246
        %v2375 = vsub.f32 %v2021, %v2247
        %v2376 = vsub.f32 %v2022, %v2248
        %v2377 = vsub.f32 %v2023, %v2249
        %v2378 = vsub.f32 %v2024, %v2250
        %v2379 = vsub.f32 %v2025, %v2251
        %v2380 = vsub.f32 %v2026, %v2252
        %v2381 = vsub.f32 %v2027, %v2253
        %v2382 = vsub.f32 %v2028, %v2254
        %v2383 = vsub.f32 %v2029, %v2255
        %v2384 = vsub.f32 %v2030, %v2256
        %v2385 = vsub.f32 %v2031, %v2257
        %v2386 = vsub.f32 %v2032, %v2258
        %v2387 = vsub.f32 %v2033, %v2259
        %v2388 = vsub.f32 %v2034, %v2260
        %v2389 = vsub.f32 %v2035, %v2261
        %v2390 = vsub.f32 %v2036, %v2262
        %v2391 = vsub.f32 %v2037, %v2263
        %v2392 = vsub.f32 %v2038, %v2264
        %v2393 = vsub.f32 %v2039, %v2265
        %v2394 = vsub.f32 %v2040, %v2266
        %v2395 = vsub.f32 %v2041, %v2267
        %v2396 = vsub.f32 %v2042, %v2268
        %v2397 = vsub.f32 %v2043, %v2269
        %v2398 = vsub.f32 %v2044, %v2270
        %v2399 = vsub.f32 %v2045, %v2271
        %v2400 = vsub.f32 %v2046, %v2272
        %v2401 = vsub.f32 %v2047, %v2273
        %v2402 = vsub.f32 %v2048, %v2274
        %v2403 = vsub.f32 %v2049, %v2275
        %v2404 = vsub.f32 %v2050, %v2276
        %v2405 = vsub.f32 %v2051, %v2277
        %v2406 = vsub.f32 %v2052, %v2278
        %v2407 = vsub.f32 %v2053, %v2279
        %v2408 = vsub.f32 %v2054, %v2280
        %v2409 = vsub.f32 %v2055, %v2281
        %v2410 = vsub.f32 %v2056, %v2282
        %v2411 = vsub.f32 %v2057, %v2283
        %v2412 = vsub.f32 %v2058, %v2284
        %v2413 = vsub.f32 %v2059, %v2285
        %v2414 = vsub.f32 %v2060, %v2286
        %v2415 = vsub.f32 %v2061, %v2287
        %v2416 = vsub.f32 %v2062, %v2288
        %v2417 = vsub.f32 %v2063, %v2289
        %v2418 = vsub.f32 %v2064, %v2290
        %v2419 = vsub.f32 %v2065, %v2291
        %v2420 = vsub.f32 %v2066, %v2292
        %v2421 = vsub.f32 %v2067, %v2293
        %v2422 = vsub.f32 %v2068, %v2294
        %v2423 = vsub.f32 %v2069, %v2295
        %v2424 = vsub.f32 %v2070, %v2296
        %v2425 = vsub.f32 %v2071, %v2297
        %v2426 = vsub.f32 %v2072, %v2298
        %v2427 = vsub.f32 %v2073, %v2299
        %v2428 = vsub.f32 %v2074, %v2300
        %v2429 = vsub.f32 %v2075, %v2301
        %v2430 = vsub.f32 %v2076, %v2302
        %v2431 = vsub.f32 %v2077, %v2303
        %v2432 = vsub.f32 %v2078, %v2304
        %v2433 = vsub.f32 %v2079, %v2305
        %v2434 = vsub.f32 %v2080, %v2306
        %v2435 = vsub.f32 %v2081, %v2307
        %v2436 = vsub.f32 %v2082, %v2308
        %v2437 = vsub.f32 %v2083, %v2309
        %v2438 = vsub.f32 %v2084, %v2310
        %v2439 = vsub.f32 %v2085, %v2311
        %v2440 = vsub.f32 %v2086, %v2312
        %v2441 = vsub.f32 %v2087, %v2313
        %v2442 = vsub.f32 %v2088, %v2314
        %v2443 = vsub.f32 %v2089, %v2315
        %v2444 = vsub.f32 %v2090, %v2316
        %v2445 = vsub.f32 %v2091, %v2317
        %v2446 = vsub.f32 %v2092, %v2318
        %v2447 = vsub.f32 %v2093, %v2319
        %v2448 = vsub.f32 %v2094, %v2320
        %v2449 = vsub.f32 %v2095, %v2321
        %v2450 = vsub.f32 %v2096, %v2322
        %v2451 = vsub.f32 %v2097, %v2323
        %v2452 = vsub.f32 %v2098, %v2324
        %v2453 = vsub.f32 %v2099, %v2325
        %v2454 = vsub.f32 %v2100, %v2326
        %v2455 = vsub.f32 %v2101, %v2327
        %v2456 = vsub.f32 %v2102, %v2328
        %v2457 = vsub.f32 %v2103, %v2329
        %v2458 = vsub.f32 %v2104, %v2330
        %v2459 = vsub.f32 %v2105, %v2331
        %v2460 = vsub.f32 %v2106, %v2332
        %v2461 = vsub.f32 %v2107, %v2333
        %v2462 = vsub.f32 %v2108, %v2334
        %v2463 = vsub.f32 %v2109, %v2335
        %v2464 = vsub.f32 %v2110, %v2336
        %v2465 = vsub.f32 %v2111, %v2337
        %v2466 = vsub.f32 %v2112, %v2338
        %v2467 = vsub.f32 %v2113, %v2339
        %v2468 = vsub.f32 %v2114, %v2340
        %v2469 = vsub.f32 %v2115, %v2341
        %v2470 = vsub.f32 %v2116, %v2342
        %v2471 = vsub.f32 %v2117, %v2343
        %v2472 = vsub.f32 %v2118, %v2344
        %v2473 = vsub.f32 %v2119, %v2345
        %v2475 = vlaneseq
        %v2476 = vshrl.u32 %v2475, 7
        %v2477 = vsub.s32 0, %v2476
        %v2478 = vrot.slane %v2153, %v2477
        %v2479 = vlaneseq
        %v2480 = vshrl.u32 %v2479, 7
        %v2481 = vsub.s32 1, %v2480
        %v2482 = vrot.slane %v2153, %v2481
        %2485 = vmatprep.subr.mxu0 %v2219
        %2486 = vmatpush1.msra.mxu0 %v2218
        %2487 = vmatprep.subr.mxu0 %v2223
        %2488 = vmatpush1.msra.mxu0 %v2222
        %2489 = vmatprep.subr.mxu0 %v2227
        %2490 = vmatpush1.msra.mxu0 %v2226
        %2491 = vmatprep.subr.mxu0 %v2231
        %2492 = vmatpush1.msra.mxu0 %v2230
        %2493 = vmatprep.subr.mxu0 %v2235
        %2494 = vmatpush1.msra.mxu0 %v2234
        %2495 = vmatprep.subr.mxu0 %v2239
        %2496 = vmatpush1.msra.mxu0 %v2238
        %2497 = vmatprep.subr.mxu0 %v2243
        %2498 = vmatpush1.msra.mxu0 %v2242
        %2499 = vmatprep.subr.mxu0 %v2247
        %2500 = vmatpush1.msra.mxu0 %v2246
        %2501 = vmatprep.subr.mxu0 %v2251
        %2502 = vmatpush1.msra.mxu0 %v2250
        %2503 = vmatprep.subr.mxu0 %v2255
        %2504 = vmatpush1.msra.mxu0 %v2254
        %2505 = vmatprep.subr.mxu0 %v2259
        %2506 = vmatpush1.msra.mxu0 %v2258
        %2507 = vmatprep.subr.mxu0 %v2263
        %2508 = vmatpush1.msra.mxu0 %v2262
        %2509 = vmatprep.subr.mxu0 %v2267
        %2510 = vmatpush1.msra.mxu0 %v2266
        %2511 = vmatprep.subr.mxu0 %v2271
        %2512 = vmatpush1.msra.mxu0 %v2270
        %2513 = vmatprep.subr.mxu0 %v2275
        %2514 = vmatpush1.msra.mxu0 %v2274
        %2515 = vmatprep.subr.mxu0 %v2279
        %2516 = vmatpush1.msra.mxu0 %v2278
        %2517 = vmatprep.subr.mxu0 %v2283
        %2518 = vmatpush1.msra.mxu0 %v2282
        %2519 = vmatprep.subr.mxu0 %v2287
        %2520 = vmatpush1.msra.mxu0 %v2286
        %2521 = vmatprep.subr.mxu0 %v2291
        %2522 = vmatpush1.msra.mxu0 %v2290
        %2523 = vmatprep.subr.mxu0 %v2295
        %2524 = vmatpush1.msra.mxu0 %v2294
        %2525 = vmatprep.subr.mxu0 %v2299
        %2526 = vmatpush1.msra.mxu0 %v2298
        %2527 = vmatprep.subr.mxu0 %v2303
        %2528 = vmatpush1.msra.mxu0 %v2302
        %2529 = vmatprep.subr.mxu0 %v2307
        %2530 = vmatpush1.msra.mxu0 %v2306
        %2531 = vmatprep.subr.mxu0 %v2311
        %2532 = vmatpush1.msra.mxu0 %v2310
        %2533 = vmatprep.subr.mxu0 %v2315
        %2534 = vmatpush1.msra.mxu0 %v2314
        %2535 = vmatprep.subr.mxu0 %v2319
        %2536 = vmatpush1.msra.mxu0 %v2318
        %2537 = vmatprep.subr.mxu0 %v2323
        %2538 = vmatpush1.msra.mxu0 %v2322
        %2539 = vmatprep.subr.mxu0 %v2327
        %2540 = vmatpush1.msra.mxu0 %v2326
        %2541 = vmatprep.subr.mxu0 %v2331
        %2542 = vmatpush1.msra.mxu0 %v2330
        %2543 = vmatprep.subr.mxu0 %v2335
        %2544 = vmatpush1.msra.mxu0 %v2334
        %2545 = vmatprep.subr.mxu0 %v2339
        %2546 = vmatpush1.msra.mxu0 %v2338
        %2547 = vmatprep.subr.mxu0 %v2343
        %2548 = vmatpush1.msra.mxu0 %v2342
        %2549 = vmatprep.mubr.f32.mxu0 %v2482
        %2550 = vmatmul.mubr.f32.gmra.mrb[0].mxu0 %v2478
        %v2551 = vpop.f32.mrb[0].mxu0
        %v2552 = vadd.f32 0.0, %v2551
        %v2553 = vpop.f32.mrb[0].mxu0
        %v2554 = vadd.f32 0.0, %v2553
        %2555 = vdwg.mxu0
        %2556 = vmatprep.subr.mxu0 %v2221
        %2557 = vmatpush1.msra.mxu0 %v2220
        %2558 = vmatprep.subr.mxu0 %v2225
        %2559 = vmatpush1.msra.mxu0 %v2224
        %2560 = vmatprep.subr.mxu0 %v2229
        %2561 = vmatpush1.msra.mxu0 %v2228
        %2562 = vmatprep.subr.mxu0 %v2233
        %2563 = vmatpush1.msra.mxu0 %v2232
        %2564 = vmatprep.subr.mxu0 %v2237
        %2565 = vmatpush1.msra.mxu0 %v2236
        %2566 = vmatprep.subr.mxu0 %v2241
        %2567 = vmatpush1.msra.mxu0 %v2240
        %2568 = vmatprep.subr.mxu0 %v2245
        %2569 = vmatpush1.msra.mxu0 %v2244
        %2570 = vmatprep.subr.mxu0 %v2249
        %2571 = vmatpush1.msra.mxu0 %v2248
        %2572 = vmatprep.subr.mxu0 %v2253
        %2573 = vmatpush1.msra.mxu0 %v2252
        %2574 = vmatprep.subr.mxu0 %v2257
        %2575 = vmatpush1.msra.mxu0 %v2256
        %2576 = vmatprep.subr.mxu0 %v2261
        %2577 = vmatpush1.msra.mxu0 %v2260
        %2578 = vmatprep.subr.mxu0 %v2265
        %2579 = vmatpush1.msra.mxu0 %v2264
        %2580 = vmatprep.subr.mxu0 %v2269
        %2581 = vmatpush1.msra.mxu0 %v2268
        %2582 = vmatprep.subr.mxu0 %v2273
        %2583 = vmatpush1.msra.mxu0 %v2272
        %2584 = vmatprep.subr.mxu0 %v2277
        %2585 = vmatpush1.msra.mxu0 %v2276
        %2586 = vmatprep.subr.mxu0 %v2281
        %2587 = vmatpush1.msra.mxu0 %v2280
        %2588 = vmatprep.subr.mxu0 %v2285
        %2589 = vmatpush1.msra.mxu0 %v2284
        %2590 = vmatprep.subr.mxu0 %v2289
        %2591 = vmatpush1.msra.mxu0 %v2288
        %2592 = vmatprep.subr.mxu0 %v2293
        %2593 = vmatpush1.msra.mxu0 %v2292
        %2594 = vmatprep.subr.mxu0 %v2297
        %2595 = vmatpush1.msra.mxu0 %v2296
        %2596 = vmatprep.subr.mxu0 %v2301
        %2597 = vmatpush1.msra.mxu0 %v2300
        %2598 = vmatprep.subr.mxu0 %v2305
        %2599 = vmatpush1.msra.mxu0 %v2304
        %2600 = vmatprep.subr.mxu0 %v2309
        %2601 = vmatpush1.msra.mxu0 %v2308
        %2602 = vmatprep.subr.mxu0 %v2313
        %2603 = vmatpush1.msra.mxu0 %v2312
        %2604 = vmatprep.subr.mxu0 %v2317
        %2605 = vmatpush1.msra.mxu0 %v2316
        %2606 = vmatprep.subr.mxu0 %v2321
        %2607 = vmatpush1.msra.mxu0 %v2320
        %2608 = vmatprep.subr.mxu0 %v2325
        %2609 = vmatpush1.msra.mxu0 %v2324
        %2610 = vmatprep.subr.mxu0 %v2329
        %2611 = vmatpush1.msra.mxu0 %v2328
        %2612 = vmatprep.subr.mxu0 %v2333
        %2613 = vmatpush1.msra.mxu0 %v2332
        %2614 = vmatprep.subr.mxu0 %v2337
        %2615 = vmatpush1.msra.mxu0 %v2336
        %2616 = vmatprep.subr.mxu0 %v2341
        %2617 = vmatpush1.msra.mxu0 %v2340
        %2618 = vmatprep.subr.mxu0 %v2345
        %2619 = vmatpush1.msra.mxu0 %v2344
        %2620 = vmatprep.mubr.f32.mxu0 %v2482
        %2621 = vmatmul.mubr.f32.gmra.mrb[0].mxu0 %v2478
        %v2622 = vpop.f32.mrb[0].mxu0
        %v2623 = vadd.f32 0.0, %v2622
        %v2624 = vpop.f32.mrb[0].mxu0
        %v2625 = vadd.f32 0.0, %v2624
        %2626 = vdwg.mxu0
        %2627 = vmatprep.subr.mxu0 %v2219
        %2628 = vmatpush1.msra.mxu0 %v2218
        %2629 = vmatprep.subr.mxu0 %v2223
        %2630 = vmatpush1.msra.mxu0 %v2222
        %2631 = vmatprep.subr.mxu0 %v2227
        %2632 = vmatpush1.msra.mxu0 %v2226
        %2633 = vmatprep.subr.mxu0 %v2231
        %2634 = vmatpush1.msra.mxu0 %v2230
        %2635 = vmatprep.subr.mxu0 %v2235
        %2636 = vmatpush1.msra.mxu0 %v2234
        %2637 = vmatprep.subr.mxu0 %v2239
        %2638 = vmatpush1.msra.mxu0 %v2238
        %2639 = vmatprep.subr.mxu0 %v2243
        %2640 = vmatpush1.msra.mxu0 %v2242
        %2641 = vmatprep.subr.mxu0 %v2247
        %2642 = vmatpush1.msra.mxu0 %v2246
        %2643 = vmatprep.subr.mxu0 %v2251
        %2644 = vmatpush1.msra.mxu0 %v2250
        %2645 = vmatprep.subr.mxu0 %v2255
        %2646 = vmatpush1.msra.mxu0 %v2254
        %2647 = vmatprep.subr.mxu0 %v2259
        %2648 = vmatpush1.msra.mxu0 %v2258
        %2649 = vmatprep.subr.mxu0 %v2263
        %2650 = vmatpush1.msra.mxu0 %v2262
        %2651 = vmatprep.subr.mxu0 %v2267
        %2652 = vmatpush1.msra.mxu0 %v2266
        %2653 = vmatprep.subr.mxu0 %v2271
        %2654 = vmatpush1.msra.mxu0 %v2270
        %2655 = vmatprep.subr.mxu0 %v2275
        %2656 = vmatpush1.msra.mxu0 %v2274
        %2657 = vmatprep.subr.mxu0 %v2279
        %2658 = vmatpush1.msra.mxu0 %v2278
        %2659 = vmatprep.subr.mxu0 %v2283
        %2660 = vmatpush1.msra.mxu0 %v2282
        %2661 = vmatprep.subr.mxu0 %v2287
        %2662 = vmatpush1.msra.mxu0 %v2286
        %2663 = vmatprep.subr.mxu0 %v2291
        %2664 = vmatpush1.msra.mxu0 %v2290
        %2665 = vmatprep.subr.mxu0 %v2295
        %2666 = vmatpush1.msra.mxu0 %v2294
        %2667 = vmatprep.subr.mxu0 %v2299
        %2668 = vmatpush1.msra.mxu0 %v2298
        %2669 = vmatprep.subr.mxu0 %v2303
        %2670 = vmatpush1.msra.mxu0 %v2302
        %2671 = vmatprep.subr.mxu0 %v2307
        %2672 = vmatpush1.msra.mxu0 %v2306
        %2673 = vmatprep.subr.mxu0 %v2311
        %2674 = vmatpush1.msra.mxu0 %v2310
        %2675 = vmatprep.subr.mxu0 %v2315
        %2676 = vmatpush1.msra.mxu0 %v2314
        %2677 = vmatprep.subr.mxu0 %v2319
        %2678 = vmatpush1.msra.mxu0 %v2318
        %2679 = vmatprep.subr.mxu0 %v2323
        %2680 = vmatpush1.msra.mxu0 %v2322
        %2681 = vmatprep.subr.mxu0 %v2327
        %2682 = vmatpush1.msra.mxu0 %v2326
        %2683 = vmatprep.subr.mxu0 %v2331
        %2684 = vmatpush1.msra.mxu0 %v2330
        %2685 = vmatprep.subr.mxu0 %v2335
        %2686 = vmatpush1.msra.mxu0 %v2334
        %2687 = vmatprep.subr.mxu0 %v2339
        %2688 = vmatpush1.msra.mxu0 %v2338
        %2689 = vmatprep.subr.mxu0 %v2343
        %2690 = vmatpush1.msra.mxu0 %v2342
        %2691 = vmatprep.mubr.f32.mxu0 %v2134
        %2692 = vmatmul.mubr.f32.gmra.mrb[0].mxu0 %v2133
        %v2693 = vpop.f32.mrb[0].mxu0
        %v2694 = vadd.f32 %v2552, %v2693
        %v2695 = vpop.f32.mrb[0].mxu0
        %v2696 = vadd.f32 %v2554, %v2695
        %2697 = vdwg.mxu0
        %2698 = vmatprep.subr.mxu0 %v2221
        %2699 = vmatpush1.msra.mxu0 %v2220
        %2700 = vmatprep.subr.mxu0 %v2225
        %2701 = vmatpush1.msra.mxu0 %v2224
        %2702 = vmatprep.subr.mxu0 %v2229
        %2703 = vmatpush1.msra.mxu0 %v2228
        %2704 = vmatprep.subr.mxu0 %v2233
        %2705 = vmatpush1.msra.mxu0 %v2232
        %2706 = vmatprep.subr.mxu0 %v2237
        %2707 = vmatpush1.msra.mxu0 %v2236
        %2708 = vmatprep.subr.mxu0 %v2241
        %2709 = vmatpush1.msra.mxu0 %v2240
        %2710 = vmatprep.subr.mxu0 %v2245
        %2711 = vmatpush1.msra.mxu0 %v2244
        %2712 = vmatprep.subr.mxu0 %v2249
        %2713 = vmatpush1.msra.mxu0 %v2248
        %2714 = vmatprep.subr.mxu0 %v2253
        %2715 = vmatpush1.msra.mxu0 %v2252
        %2716 = vmatprep.subr.mxu0 %v2257
        %2717 = vmatpush1.msra.mxu0 %v2256
        %2718 = vmatprep.subr.mxu0 %v2261
        %2719 = vmatpush1.msra.mxu0 %v2260
        %2720 = vmatprep.subr.mxu0 %v2265
        %2721 = vmatpush1.msra.mxu0 %v2264
        %2722 = vmatprep.subr.mxu0 %v2269
        %2723 = vmatpush1.msra.mxu0 %v2268
        %2724 = vmatprep.subr.mxu0 %v2273
        %2725 = vmatpush1.msra.mxu0 %v2272
        %2726 = vmatprep.subr.mxu0 %v2277
        %2727 = vmatpush1.msra.mxu0 %v2276
        %2728 = vmatprep.subr.mxu0 %v2281
        %2729 = vmatpush1.msra.mxu0 %v2280
        %2730 = vmatprep.subr.mxu0 %v2285
        %2731 = vmatpush1.msra.mxu0 %v2284
        %2732 = vmatprep.subr.mxu0 %v2289
        %2733 = vmatpush1.msra.mxu0 %v2288
        %2734 = vmatprep.subr.mxu0 %v2293
        %2735 = vmatpush1.msra.mxu0 %v2292
        %2736 = vmatprep.subr.mxu0 %v2297
        %2737 = vmatpush1.msra.mxu0 %v2296
        %2738 = vmatprep.subr.mxu0 %v2301
        %2739 = vmatpush1.msra.mxu0 %v2300
        %2740 = vmatprep.subr.mxu0 %v2305
        %2741 = vmatpush1.msra.mxu0 %v2304
        %2742 = vmatprep.subr.mxu0 %v2309
        %2743 = vmatpush1.msra.mxu0 %v2308
        %2744 = vmatprep.subr.mxu0 %v2313
        %2745 = vmatpush1.msra.mxu0 %v2312
        %2746 = vmatprep.subr.mxu0 %v2317
        %2747 = vmatpush1.msra.mxu0 %v2316
        %2748 = vmatprep.subr.mxu0 %v2321
        %2749 = vmatpush1.msra.mxu0 %v2320
        %2750 = vmatprep.subr.mxu0 %v2325
        %2751 = vmatpush1.msra.mxu0 %v2324
        %2752 = vmatprep.subr.mxu0 %v2329
        %2753 = vmatpush1.msra.mxu0 %v2328
        %2754 = vmatprep.subr.mxu0 %v2333
        %2755 = vmatpush1.msra.mxu0 %v2332
        %2756 = vmatprep.subr.mxu0 %v2337
        %2757 = vmatpush1.msra.mxu0 %v2336
        %2758 = vmatprep.subr.mxu0 %v2341
        %2759 = vmatpush1.msra.mxu0 %v2340
        %2760 = vmatprep.subr.mxu0 %v2345
        %2761 = vmatpush1.msra.mxu0 %v2344
        %2762 = vmatprep.mubr.f32.mxu0 %v2134
        %2763 = vmatmul.mubr.f32.gmra.mrb[0].mxu0 %v2133
        %v2764 = vpop.f32.mrb[0].mxu0
        %v2765 = vadd.f32 %v2623, %v2764
        %v2766 = vpop.f32.mrb[0].mxu0
        %v2767 = vadd.f32 %v2625, %v2766
        %2768 = vdwg.mxu0
        %2769 = vmatprep.subr.mxu0 %v2347
        %2770 = vmatpush1.msra.mxu0 %v2346
        %2771 = vmatprep.subr.mxu0 %v2351
        %2772 = vmatpush1.msra.mxu0 %v2350
        %2773 = vmatprep.subr.mxu0 %v2355
        %2774 = vmatpush1.msra.mxu0 %v2354
        %2775 = vmatprep.subr.mxu0 %v2359
        %2776 = vmatpush1.msra.mxu0 %v2358
        %2777 = vmatprep.subr.mxu0 %v2363
        %2778 = vmatpush1.msra.mxu0 %v2362
        %2779 = vmatprep.subr.mxu0 %v2367
        %2780 = vmatpush1.msra.mxu0 %v2366
        %2781 = vmatprep.subr.mxu0 %v2371
        %2782 = vmatpush1.msra.mxu0 %v2370
        %2783 = vmatprep.subr.mxu0 %v2375
        %2784 = vmatpush1.msra.mxu0 %v2374
        %2785 = vmatprep.subr.mxu0 %v2379
        %2786 = vmatpush1.msra.mxu0 %v2378
        %2787 = vmatprep.subr.mxu0 %v2383
        %2788 = vmatpush1.msra.mxu0 %v2382
        %2789 = vmatprep.subr.mxu0 %v2387
        %2790 = vmatpush1.msra.mxu0 %v2386
        %2791 = vmatprep.subr.mxu0 %v2391
        %2792 = vmatpush1.msra.mxu0 %v2390
        %2793 = vmatprep.subr.mxu0 %v2395
        %2794 = vmatpush1.msra.mxu0 %v2394
        %2795 = vmatprep.subr.mxu0 %v2399
        %2796 = vmatpush1.msra.mxu0 %v2398
        %2797 = vmatprep.subr.mxu0 %v2403
        %2798 = vmatpush1.msra.mxu0 %v2402
        %2799 = vmatprep.subr.mxu0 %v2407
        %2800 = vmatpush1.msra.mxu0 %v2406
        %2801 = vmatprep.subr.mxu0 %v2411
        %2802 = vmatpush1.msra.mxu0 %v2410
        %2803 = vmatprep.subr.mxu0 %v2415
        %2804 = vmatpush1.msra.mxu0 %v2414
        %2805 = vmatprep.subr.mxu0 %v2419
        %2806 = vmatpush1.msra.mxu0 %v2418
        %2807 = vmatprep.subr.mxu0 %v2423
        %2808 = vmatpush1.msra.mxu0 %v2422
        %2809 = vmatprep.subr.mxu0 %v2427
        %2810 = vmatpush1.msra.mxu0 %v2426
        %2811 = vmatprep.subr.mxu0 %v2431
        %2812 = vmatpush1.msra.mxu0 %v2430
        %2813 = vmatprep.subr.mxu0 %v2435
        %2814 = vmatpush1.msra.mxu0 %v2434
        %2815 = vmatprep.subr.mxu0 %v2439
        %2816 = vmatpush1.msra.mxu0 %v2438
        %2817 = vmatprep.subr.mxu0 %v2443
        %2818 = vmatpush1.msra.mxu0 %v2442
        %2819 = vmatprep.subr.mxu0 %v2447
        %2820 = vmatpush1.msra.mxu0 %v2446
        %2821 = vmatprep.subr.mxu0 %v2451
        %2822 = vmatpush1.msra.mxu0 %v2450
        %2823 = vmatprep.subr.mxu0 %v2455
        %2824 = vmatpush1.msra.mxu0 %v2454
        %2825 = vmatprep.subr.mxu0 %v2459
        %2826 = vmatpush1.msra.mxu0 %v2458
        %2827 = vmatprep.subr.mxu0 %v2463
        %2828 = vmatpush1.msra.mxu0 %v2462
        %2829 = vmatprep.subr.mxu0 %v2467
        %2830 = vmatpush1.msra.mxu0 %v2466
        %2831 = vmatprep.subr.mxu0 %v2471
        %2832 = vmatpush1.msra.mxu0 %v2470
        %2833 = vmatprep.mubr.f32.mxu0 %v2134
        %2834 = vmatmul.mubr.f32.gmra.mrb[0].mxu0 %v2133
        %v2835 = vpop.f32.mrb[0].mxu0
        %v2836 = vadd.f32 0.0, %v2835
        %v2837 = vpop.f32.mrb[0].mxu0
        %v2838 = vadd.f32 0.0, %v2837
        %2839 = vdwg.mxu0
        %2840 = vmatprep.subr.mxu0 %v2349
        %2841 = vmatpush1.msra.mxu0 %v2348
        %2842 = vmatprep.subr.mxu0 %v2353
        %2843 = vmatpush1.msra.mxu0 %v2352
        %2844 = vmatprep.subr.mxu0 %v2357
        %2845 = vmatpush1.msra.mxu0 %v2356
        %2846 = vmatprep.subr.mxu0 %v2361
        %2847 = vmatpush1.msra.mxu0 %v2360
        %2848 = vmatprep.subr.mxu0 %v2365
        %2849 = vmatpush1.msra.mxu0 %v2364
        %2850 = vmatprep.subr.mxu0 %v2369
        %2851 = vmatpush1.msra.mxu0 %v2368
        %2852 = vmatprep.subr.mxu0 %v2373
        %2853 = vmatpush1.msra.mxu0 %v2372
        %2854 = vmatprep.subr.mxu0 %v2377
        %2855 = vmatpush1.msra.mxu0 %v2376
        %2856 = vmatprep.subr.mxu0 %v2381
        %2857 = vmatpush1.msra.mxu0 %v2380
        %2858 = vmatprep.subr.mxu0 %v2385
        %2859 = vmatpush1.msra.mxu0 %v2384
        %2860 = vmatprep.subr.mxu0 %v2389
        %2861 = vmatpush1.msra.mxu0 %v2388
        %2862 = vmatprep.subr.mxu0 %v2393
        %2863 = vmatpush1.msra.mxu0 %v2392
        %2864 = vmatprep.subr.mxu0 %v2397
        %2865 = vmatpush1.msra.mxu0 %v2396
        %2866 = vmatprep.subr.mxu0 %v2401
        %2867 = vmatpush1.msra.mxu0 %v2400
        %2868 = vmatprep.subr.mxu0 %v2405
        %2869 = vmatpush1.msra.mxu0 %v2404
        %2870 = vmatprep.subr.mxu0 %v2409
        %2871 = vmatpush1.msra.mxu0 %v2408
        %2872 = vmatprep.subr.mxu0 %v2413
        %2873 = vmatpush1.msra.mxu0 %v2412
        %2874 = vmatprep.subr.mxu0 %v2417
        %2875 = vmatpush1.msra.mxu0 %v2416
        %2876 = vmatprep.subr.mxu0 %v2421
        %2877 = vmatpush1.msra.mxu0 %v2420
        %2878 = vmatprep.subr.mxu0 %v2425
        %2879 = vmatpush1.msra.mxu0 %v2424
        %2880 = vmatprep.subr.mxu0 %v2429
        %2881 = vmatpush1.msra.mxu0 %v2428
        %2882 = vmatprep.subr.mxu0 %v2433
        %2883 = vmatpush1.msra.mxu0 %v2432
        %2884 = vmatprep.subr.mxu0 %v2437
        %2885 = vmatpush1.msra.mxu0 %v2436
        %2886 = vmatprep.subr.mxu0 %v2441
        %2887 = vmatpush1.msra.mxu0 %v2440
        %2888 = vmatprep.subr.mxu0 %v2445
        %2889 = vmatpush1.msra.mxu0 %v2444
        %2890 = vmatprep.subr.mxu0 %v2449
        %2891 = vmatpush1.msra.mxu0 %v2448
        %2892 = vmatprep.subr.mxu0 %v2453
        %2893 = vmatpush1.msra.mxu0 %v2452
        %2894 = vmatprep.subr.mxu0 %v2457
        %2895 = vmatpush1.msra.mxu0 %v2456
        %2896 = vmatprep.subr.mxu0 %v2461
        %2897 = vmatpush1.msra.mxu0 %v2460
        %2898 = vmatprep.subr.mxu0 %v2465
        %2899 = vmatpush1.msra.mxu0 %v2464
        %2900 = vmatprep.subr.mxu0 %v2469
        %2901 = vmatpush1.msra.mxu0 %v2468
        %2902 = vmatprep.subr.mxu0 %v2473
        %2903 = vmatpush1.msra.mxu0 %v2472
        %2904 = vmatprep.mubr.f32.mxu0 %v2134
        %2905 = vmatmul.mubr.f32.gmra.mrb[0].mxu0 %v2133
        %v2906 = vpop.f32.mrb[0].mxu0
        %v2907 = vadd.f32 0.0, %v2906
        %v2908 = vpop.f32.mrb[0].mxu0
        %v2909 = vadd.f32 0.0, %v2908
        %2910 = vdwg.mxu0
        %v2911 = vadd.f32 %v2694, %v2836
        %v2912 = vadd.f32 %v2696, %v2838
        %v2913 = vadd.f32 %v2765, %v2907
        %v2914 = vadd.f32 %v2767, %v2909
        %v2915 = vadd.f32 %v1985, %v2911
        %v2916 = vadd.f32 %v1986, %v2912
        %v2917 = vadd.f32 %v1987, %v2913
        %v2918 = vadd.f32 %v1988, %v2914
        %v2919 = vld [vmem:[%s5] sm:$0x1]
        %2921 = vset.pattern.permute.xlu0 0
        %2922 = vperm.xlu0 %2921, %v2919
        %v2923 = vpop.permute.xlu0 %2922
        %v2925 = vadd.f32 %v2915, %v2923
        %v2926 = vadd.f32 %v2916, %v2923
        %v2927 = vmax.f32 %v2925, 0.0
        %v2928 = vmax.f32 %v2926, 0.0
        %v2931 = vcombine.low %v2927, %v2928
        %v2933 = vunpack.c.l.s4 1966171168
        %v2934 = vunpack.c.0.s8 %v2933
        %v2935 = vlaneseq
        %v2936 = vshrl.u32 %v2935, 7
        %v2937 = vsub.s32 %v2934, %v2936
        %v2938 = vrot.slane %v2931, %v2937
        %v2940 = vunpack.c.l.s4 1966171168
        %v2941 = vunpack.c.0.s8 %v2940
        %v2942 = vlaneseq
        %v2943 = vshrl.u32 %v2942, 7
        %v2944 = vsub.s32 %v2941, %v2943
        %v2945 = vrot.slane %v2938, %v2944
        %v2947 = vlaneseq
        %vm2948 = vcmp.ge.s32.totalorder %v2947, 0
        %vm2949 = vcmp.lt.s32.totalorder %v2947, 256
        %vm2950 = vmand %vm2948, %vm2949
        %2951 = vst.msk [vmem:[#allocation3] ss:$4 sm:$0x3] %vm2950, %v2945
        %v2952 = vld [vmem:[%s5 + $0x1] sm:$0x1]
        %2954 = vset.pattern.permute.xlu0 0
        %2955 = vperm.xlu0 %2954, %v2952
        %v2956 = vpop.permute.xlu0 %2955
        %v2958 = vadd.f32 %v2917, %v2956
        %v2959 = vadd.f32 %v2918, %v2956
        %v2960 = vmax.f32 %v2958, 0.0
        %v2961 = vmax.f32 %v2959, 0.0
        %v2964 = vcombine.low %v2960, %v2961
        %v2966 = vunpack.c.l.s4 1966171168
        %v2967 = vunpack.c.0.s8 %v2966
        %v2968 = vlaneseq
        %v2969 = vshrl.u32 %v2968, 7
        %v2970 = vsub.s32 %v2967, %v2969
        %v2971 = vrot.slane %v2964, %v2970
        %v2973 = vunpack.c.l.s4 1966171168
        %v2974 = vunpack.c.0.s8 %v2973
        %v2975 = vlaneseq
        %v2976 = vshrl.u32 %v2975, 7
        %v2977 = vsub.s32 %v2974, %v2976
        %v2978 = vrot.slane %v2971, %v2977
        %s2980 = scalar_lea.vmem [#allocation3], 1
        %2981 = vst.msk [vmem:[%s2980] ss:$4 sm:$0x3] %vm2950, %v2978
        %v2982 = vld [vmem:[#allocation9] sm:$0x3]
        %v2983 = vld [vmem:[%s788] sm:$0xff]
        %v2984 = vld [vmem:[%s788 + $0x8] sm:$0xff]
        %v2985 = vld [vmem:[%s788 + $0x10] sm:$0xff]
        %v2986 = vld [vmem:[%s788 + $0x18] sm:$0xff]
        %v2987 = vld [vmem:[%s788 + $0x20] sm:$0xff]
        %v2988 = vld [vmem:[%s788 + $0x28] sm:$0xff]
        %v2989 = vld [vmem:[%s788 + $0x30] sm:$0xff]
        %v2990 = vld [vmem:[%s788 + $0x38] sm:$0xff]
        %v2991 = vpack.c.bf16 %v2982, %v2982
        %v2992 = vunpack.c.l.bf16 %v2991
        %v2993 = vsub.f32 %v2982, %v2992
        %v2994 = vpack.c.bf16 %v2984, %v2983
        %v2995 = vpack.c.bf16 %v2986, %v2985
        %v2996 = vpack.c.bf16 %v2988, %v2987
        %v2997 = vpack.c.bf16 %v2990, %v2989
        %v2998 = vunpack.c.l.bf16 %v2994
        %v2999 = vunpack.c.h.bf16 %v2994
        %v3000 = vunpack.c.l.bf16 %v2995
        %v3001 = vunpack.c.h.bf16 %v2995
        %v3002 = vunpack.c.l.bf16 %v2996
        %v3003 = vunpack.c.h.bf16 %v2996
        %v3004 = vunpack.c.l.bf16 %v2997
        %v3005 = vunpack.c.h.bf16 %v2997
        %v3006 = vsub.f32 %v2983, %v2998
        %v3007 = vsub.f32 %v2984, %v2999
        %v3008 = vsub.f32 %v2985, %v3000
        %v3009 = vsub.f32 %v2986, %v3001
        %v3010 = vsub.f32 %v2987, %v3002
        %v3011 = vsub.f32 %v2988, %v3003
        %v3012 = vsub.f32 %v2989, %v3004
        %v3013 = vsub.f32 %v2990, %v3005
        %vm3014 = vcmask 523264
        %v3016 = vsel %vm3014, %v2993, 0
        %3018 = vmatprep.subr.mxu0 0.0
        %3019 = vmatpush1.msra.mxu0 %v2998
        %3020 = vmatprep.subr.mxu0 0.0
        %3021 = vmatpush1.msra.mxu0 %v2999
        %3022 = vmatprep.subr.mxu0 0.0
        %3023 = vmatpush1.msra.mxu0 %v3000
        %3024 = vmatprep.subr.mxu0 0.0
        %3025 = vmatpush1.msra.mxu0 %v3001
        %3026 = vmatprep.subr.mxu0 0.0
        %3027 = vmatpush1.msra.mxu0 %v3002
        %3028 = vmatprep.subr.mxu0 0.0
        %3029 = vmatpush1.msra.mxu0 %v3003
        %3030 = vmatprep.subr.mxu0 0.0
        %3031 = vmatpush1.msra.mxu0 %v3004
        %3032 = vmatprep.subr.mxu0 0.0
        %3033 = vmatpush1.msra.mxu0 %v3005
        %3034 = vmatprep.subr.mxu0 0.0
        %3035 = vmatpush1.msra.mxu0 0.0
        %3036 = vmatprep.subr.mxu0 0.0
        %3037 = vmatpush1.msra.mxu0 0.0
        %3038 = vmatprep.subr.mxu0 0.0
        %3039 = vmatpush1.msra.mxu0 0.0
        %3040 = vmatprep.subr.mxu0 0.0
        %3041 = vmatpush1.msra.mxu0 0.0
        %3042 = vmatprep.subr.mxu0 0.0
        %3043 = vmatpush1.msra.mxu0 0.0
        %3044 = vmatprep.subr.mxu0 0.0
        %3045 = vmatpush1.msra.mxu0 0.0
        %3046 = vmatprep.subr.mxu0 0.0
        %3047 = vmatpush1.msra.mxu0 0.0
        %3048 = vmatprep.subr.mxu0 0.0
        %3049 = vmatpush1.msra.mxu0 0.0
        %3050 = vmatprep.subr.mxu0 0.0
        %3051 = vmatpush1.msra.mxu0 0.0
        %3052 = vmatprep.subr.mxu0 0.0
        %3053 = vmatpush1.msra.mxu0 0.0
        %3054 = vmatprep.subr.mxu0 0.0
        %3055 = vmatpush1.msra.mxu0 0.0
        %3056 = vmatprep.subr.mxu0 0.0
        %3057 = vmatpush1.msra.mxu0 0.0
        %3058 = vmatprep.subr.mxu0 0.0
        %3059 = vmatpush1.msra.mxu0 0.0
        %3060 = vmatprep.subr.mxu0 0.0
        %3061 = vmatpush1.msra.mxu0 0.0
        %3062 = vmatprep.subr.mxu0 0.0
        %3063 = vmatpush1.msra.mxu0 0.0
        %3064 = vmatprep.subr.mxu0 0.0
        %3065 = vmatpush1.msra.mxu0 0.0
        %3066 = vmatprep.subr.mxu0 0.0
        %3067 = vmatpush1.msra.mxu0 0.0
        %3068 = vmatprep.subr.mxu0 0.0
        %3069 = vmatpush1.msra.mxu0 0.0
        %3070 = vmatprep.subr.mxu0 0.0
        %3071 = vmatpush1.msra.mxu0 0.0
        %3072 = vmatprep.subr.mxu0 0.0
        %3073 = vmatpush1.msra.mxu0 0.0
        %3074 = vmatprep.subr.mxu0 0.0
        %3075 = vmatpush1.msra.mxu0 0.0
        %3076 = vmatprep.subr.mxu0 0.0
        %3077 = vmatpush1.msra.mxu0 0.0
        %3078 = vmatprep.subr.mxu0 0.0
        %3079 = vmatpush1.msra.mxu0 0.0
        %3080 = vmatprep.subr.mxu0 0.0
        %3081 = vmatpush1.msra.mxu0 0.0
        %3082 = vmatprep.mubr.f32.mxu0 0.0
        %3083 = vmatmul.mubr.f32.gmra.mrb[0].mxu0 %v3016
        %v3084 = vpop.f32.mrb[0].mxu0
        %v3085 = vadd.f32 0.0, %v3084
        %v3086 = vpop.f32.mrb[0].mxu0
        %3087 = vdwg.mxu0
        %v3089 = vsel %vm3014, %v2992, 0
        %3091 = vmatprep.subr.mxu0 0.0
        %3092 = vmatpush1.msra.mxu0 %v2998
        %3093 = vmatprep.subr.mxu0 0.0
        %3094 = vmatpush1.msra.mxu0 %v2999
        %3095 = vmatprep.subr.mxu0 0.0
        %3096 = vmatpush1.msra.mxu0 %v3000
        %3097 = vmatprep.subr.mxu0 0.0
        %3098 = vmatpush1.msra.mxu0 %v3001
        %3099 = vmatprep.subr.mxu0 0.0
        %3100 = vmatpush1.msra.mxu0 %v3002
        %3101 = vmatprep.subr.mxu0 0.0
        %3102 = vmatpush1.msra.mxu0 %v3003
        %3103 = vmatprep.subr.mxu0 0.0
        %3104 = vmatpush1.msra.mxu0 %v3004
        %3105 = vmatprep.subr.mxu0 0.0
        %3106 = vmatpush1.msra.mxu0 %v3005
        %3107 = vmatprep.subr.mxu0 0.0
        %3108 = vmatpush1.msra.mxu0 0.0
        %3109 = vmatprep.subr.mxu0 0.0
        %3110 = vmatpush1.msra.mxu0 0.0
        %3111 = vmatprep.subr.mxu0 0.0
        %3112 = vmatpush1.msra.mxu0 0.0
        %3113 = vmatprep.subr.mxu0 0.0
        %3114 = vmatpush1.msra.mxu0 0.0
        %3115 = vmatprep.subr.mxu0 0.0
        %3116 = vmatpush1.msra.mxu0 0.0
        %3117 = vmatprep.subr.mxu0 0.0
        %3118 = vmatpush1.msra.mxu0 0.0
        %3119 = vmatprep.subr.mxu0 0.0
        %3120 = vmatpush1.msra.mxu0 0.0
        %3121 = vmatprep.subr.mxu0 0.0
        %3122 = vmatpush1.msra.mxu0 0.0
        %3123 = vmatprep.subr.mxu0 0.0
        %3124 = vmatpush1.msra.mxu0 0.0
        %3125 = vmatprep.subr.mxu0 0.0
        %3126 = vmatpush1.msra.mxu0 0.0
        %3127 = vmatprep.subr.mxu0 0.0
        %3128 = vmatpush1.msra.mxu0 0.0
        %3129 = vmatprep.subr.mxu0 0.0
        %3130 = vmatpush1.msra.mxu0 0.0
        %3131 = vmatprep.subr.mxu0 0.0
        %3132 = vmatpush1.msra.mxu0 0.0
        %3133 = vmatprep.subr.mxu0 0.0
        %3134 = vmatpush1.msra.mxu0 0.0
        %3135 = vmatprep.subr.mxu0 0.0
        %3136 = vmatpush1.msra.mxu0 0.0
        %3137 = vmatprep.subr.mxu0 0.0
        %3138 = vmatpush1.msra.mxu0 0.0
        %3139 = vmatprep.subr.mxu0 0.0
        %3140 = vmatpush1.msra.mxu0 0.0
        %3141 = vmatprep.subr.mxu0 0.0
        %3142 = vmatpush1.msra.mxu0 0.0
        %3143 = vmatprep.subr.mxu0 0.0
        %3144 = vmatpush1.msra.mxu0 0.0
        %3145 = vmatprep.subr.mxu0 0.0
        %3146 = vmatpush1.msra.mxu0 0.0
        %3147 = vmatprep.subr.mxu0 0.0
        %3148 = vmatpush1.msra.mxu0 0.0
        %3149 = vmatprep.subr.mxu0 0.0
        %3150 = vmatpush1.msra.mxu0 0.0
        %3151 = vmatprep.subr.mxu0 0.0
        %3152 = vmatpush1.msra.mxu0 0.0
        %3153 = vmatprep.subr.mxu0 0.0
        %3154 = vmatpush1.msra.mxu0 0.0
        %3155 = vmatprep.mubr.f32.mxu0 0.0
        %3156 = vmatmul.mubr.f32.gmra.mrb[0].mxu0 %v3089
        %v3157 = vpop.f32.mrb[0].mxu0
        %v3158 = vadd.f32 %v3085, %v3157
        %v3159 = vpop.f32.mrb[0].mxu0
        %3160 = vdwg.mxu0
        %3161 = vmatprep.subr.mxu0 0.0
        %3162 = vmatpush1.msra.mxu0 %v3006
        %3163 = vmatprep.subr.mxu0 0.0
        %3164 = vmatpush1.msra.mxu0 %v3007
        %3165 = vmatprep.subr.mxu0 0.0
        %3166 = vmatpush1.msra.mxu0 %v3008
        %3167 = vmatprep.subr.mxu0 0.0
        %3168 = vmatpush1.msra.mxu0 %v3009
        %3169 = vmatprep.subr.mxu0 0.0
        %3170 = vmatpush1.msra.mxu0 %v3010
        %3171 = vmatprep.subr.mxu0 0.0
        %3172 = vmatpush1.msra.mxu0 %v3011
        %3173 = vmatprep.subr.mxu0 0.0
        %3174 = vmatpush1.msra.mxu0 %v3012
        %3175 = vmatprep.subr.mxu0 0.0
        %3176 = vmatpush1.msra.mxu0 %v3013
        %3177 = vmatprep.subr.mxu0 0.0
        %3178 = vmatpush1.msra.mxu0 0.0
        %3179 = vmatprep.subr.mxu0 0.0
        %3180 = vmatpush1.msra.mxu0 0.0
        %3181 = vmatprep.subr.mxu0 0.0
        %3182 = vmatpush1.msra.mxu0 0.0
        %3183 = vmatprep.subr.mxu0 0.0
        %3184 = vmatpush1.msra.mxu0 0.0
        %3185 = vmatprep.subr.mxu0 0.0
        %3186 = vmatpush1.msra.mxu0 0.0
        %3187 = vmatprep.subr.mxu0 0.0
        %3188 = vmatpush1.msra.mxu0 0.0
        %3189 = vmatprep.subr.mxu0 0.0
        %3190 = vmatpush1.msra.mxu0 0.0
        %3191 = vmatprep.subr.mxu0 0.0
        %3192 = vmatpush1.msra.mxu0 0.0
        %3193 = vmatprep.subr.mxu0 0.0
        %3194 = vmatpush1.msra.mxu0 0.0
        %3195 = vmatprep.subr.mxu0 0.0
        %3196 = vmatpush1.msra.mxu0 0.0
        %3197 = vmatprep.subr.mxu0 0.0
        %3198 = vmatpush1.msra.mxu0 0.0
        %3199 = vmatprep.subr.mxu0 0.0
        %3200 = vmatpush1.msra.mxu0 0.0
        %3201 = vmatprep.subr.mxu0 0.0
        %3202 = vmatpush1.msra.mxu0 0.0
        %3203 = vmatprep.subr.mxu0 0.0
        %3204 = vmatpush1.msra.mxu0 0.0
        %3205 = vmatprep.subr.mxu0 0.0
        %3206 = vmatpush1.msra.mxu0 0.0
        %3207 = vmatprep.subr.mxu0 0.0
        %3208 = vmatpush1.msra.mxu0 0.0
        %3209 = vmatprep.subr.mxu0 0.0
        %3210 = vmatpush1.msra.mxu0 0.0
        %3211 = vmatprep.subr.mxu0 0.0
        %3212 = vmatpush1.msra.mxu0 0.0
        %3213 = vmatprep.subr.mxu0 0.0
        %3214 = vmatpush1.msra.mxu0 0.0
        %3215 = vmatprep.subr.mxu0 0.0
        %3216 = vmatpush1.msra.mxu0 0.0
        %3217 = vmatprep.subr.mxu0 0.0
        %3218 = vmatpush1.msra.mxu0 0.0
        %3219 = vmatprep.subr.mxu0 0.0
        %3220 = vmatpush1.msra.mxu0 0.0
        %3221 = vmatprep.subr.mxu0 0.0
        %3222 = vmatpush1.msra.mxu0 0.0
        %3223 = vmatprep.subr.mxu0 0.0
        %3224 = vmatpush1.msra.mxu0 0.0
        %3225 = vmatprep.mubr.f32.mxu0 0.0
        %3226 = vmatmul.mubr.f32.gmra.mrb[0].mxu0 %v3089
        %v3227 = vpop.f32.mrb[0].mxu0
        %v3228 = vadd.f32 0.0, %v3227
        %v3229 = vpop.f32.mrb[0].mxu0
        %3230 = vdwg.mxu0
        %v3231 = vadd.f32 %v3158, %v3228
        %v3232 = vld [vmem:[%s7] sm:$0x3]
        %3234 = vset.pattern.permute.xlu0 0
        %3235 = vperm.xlu0 %3234, %v3232
        %v3236 = vpop.permute.xlu0 %3235
        %v3238 = vadd.f32 %v3231, %v3236
        %v3239 = vld [vmem:[#allocation10] sm:$0xff]
        %v3240 = vld [vmem:[#allocation10 + $0x8] sm:$0xff]
        %v3241 = vld [vmem:[#allocation10 + $0x10] sm:$0xff]
        %v3242 = vld [vmem:[#allocation10 + $0x18] sm:$0xff]
        %v3243 = vld [vmem:[#allocation10 + $0x20] sm:$0xff]
        %v3244 = vld [vmem:[#allocation10 + $0x28] sm:$0xff]
        %v3245 = vld [vmem:[#allocation10 + $0x30] sm:$0xff]
        %v3246 = vld [vmem:[#allocation10 + $0x38] sm:$0xff]
        %v3247 = vld [vmem:[#allocation10 + $0x40] sm:$0xff]
        %v3248 = vld [vmem:[#allocation10 + $0x48] sm:$0xff]
        %v3249 = vld [vmem:[#allocation10 + $0x50] sm:$0xff]
        %v3250 = vld [vmem:[#allocation10 + $0x58] sm:$0xff]
        %v3251 = vld [vmem:[#allocation10 + $0x60] sm:$0xff]
        %v3252 = vld [vmem:[#allocation10 + $0x68] sm:$0xff]
        %v3253 = vld [vmem:[#allocation10 + $0x70] sm:$0xff]
        %v3254 = vld [vmem:[#allocation10 + $0x78] sm:$0xff]
        %v3255 = vpack.c.bf16 %v3238, %v3238
        %v3256 = vunpack.c.l.bf16 %v3255
        %v3257 = vsub.f32 %v3238, %v3256
        %v3258 = vpack.c.bf16 %v3241, %v3239
        %v3259 = vpack.c.bf16 %v3242, %v3240
        %v3260 = vpack.c.bf16 %v3245, %v3243
        %v3261 = vpack.c.bf16 %v3246, %v3244
        %v3262 = vpack.c.bf16 %v3249, %v3247
        %v3263 = vpack.c.bf16 %v3250, %v3248
        %v3264 = vpack.c.bf16 %v3253, %v3251
        %v3265 = vpack.c.bf16 %v3254, %v3252
        %v3266 = vunpack.c.l.bf16 %v3258
        %v3267 = vunpack.c.l.bf16 %v3259
        %v3268 = vunpack.c.h.bf16 %v3258
        %v3269 = vunpack.c.h.bf16 %v3259
        %v3270 = vunpack.c.l.bf16 %v3260
        %v3271 = vunpack.c.l.bf16 %v3261
        %v3272 = vunpack.c.h.bf16 %v3260
        %v3273 = vunpack.c.h.bf16 %v3261
        %v3274 = vunpack.c.l.bf16 %v3262
        %v3275 = vunpack.c.l.bf16 %v3263
        %v3276 = vunpack.c.h.bf16 %v3262
        %v3277 = vunpack.c.h.bf16 %v3263
        %v3278 = vunpack.c.l.bf16 %v3264
        %v3279 = vunpack.c.l.bf16 %v3265
        %v3280 = vunpack.c.h.bf16 %v3264
        %v3281 = vunpack.c.h.bf16 %v3265
        %v3282 = vsub.f32 %v3239, %v3266
        %v3283 = vsub.f32 %v3240, %v3267
        %v3284 = vsub.f32 %v3241, %v3268
        %v3285 = vsub.f32 %v3242, %v3269
        %v3286 = vsub.f32 %v3243, %v3270
        %v3287 = vsub.f32 %v3244, %v3271
        %v3288 = vsub.f32 %v3245, %v3272
        %v3289 = vsub.f32 %v3246, %v3273
        %v3290 = vsub.f32 %v3247, %v3274
        %v3291 = vsub.f32 %v3248, %v3275
        %v3292 = vsub.f32 %v3249, %v3276
        %v3293 = vsub.f32 %v3250, %v3277
        %v3294 = vsub.f32 %v3251, %v3278
        %v3295 = vsub.f32 %v3252, %v3279
        %v3296 = vsub.f32 %v3253, %v3280
        %v3297 = vsub.f32 %v3254, %v3281
        %v3299 = vsel %vm3014, %v3257, 0
        %3301 = vmatprep.subr.mxu0 %v3267
        %3302 = vmatpush1.msra.mxu0 %v3266
        %3303 = vmatprep.subr.mxu0 %v3269
        %3304 = vmatpush1.msra.mxu0 %v3268
        %3305 = vmatprep.subr.mxu0 %v3271
        %3306 = vmatpush1.msra.mxu0 %v3270
        %3307 = vmatprep.subr.mxu0 %v3273
        %3308 = vmatpush1.msra.mxu0 %v3272
        %3309 = vmatprep.subr.mxu0 %v3275
        %3310 = vmatpush1.msra.mxu0 %v3274
        %3311 = vmatprep.subr.mxu0 %v3277
        %3312 = vmatpush1.msra.mxu0 %v3276
        %3313 = vmatprep.subr.mxu0 %v3279
        %3314 = vmatpush1.msra.mxu0 %v3278
        %3315 = vmatprep.subr.mxu0 %v3281
        %3316 = vmatpush1.msra.mxu0 %v3280
        %3317 = vmatprep.subr.mxu0 0.0
        %3318 = vmatpush1.msra.mxu0 0.0
        %3319 = vmatprep.subr.mxu0 0.0
        %3320 = vmatpush1.msra.mxu0 0.0
        %3321 = vmatprep.subr.mxu0 0.0
        %3322 = vmatpush1.msra.mxu0 0.0
        %3323 = vmatprep.subr.mxu0 0.0
        %3324 = vmatpush1.msra.mxu0 0.0
        %3325 = vmatprep.subr.mxu0 0.0
        %3326 = vmatpush1.msra.mxu0 0.0
        %3327 = vmatprep.subr.mxu0 0.0
        %3328 = vmatpush1.msra.mxu0 0.0
        %3329 = vmatprep.subr.mxu0 0.0
        %3330 = vmatpush1.msra.mxu0 0.0
        %3331 = vmatprep.subr.mxu0 0.0
        %3332 = vmatpush1.msra.mxu0 0.0
        %3333 = vmatprep.subr.mxu0 0.0
        %3334 = vmatpush1.msra.mxu0 0.0
        %3335 = vmatprep.subr.mxu0 0.0
        %3336 = vmatpush1.msra.mxu0 0.0
        %3337 = vmatprep.subr.mxu0 0.0
        %3338 = vmatpush1.msra.mxu0 0.0
        %3339 = vmatprep.subr.mxu0 0.0
        %3340 = vmatpush1.msra.mxu0 0.0
        %3341 = vmatprep.subr.mxu0 0.0
        %3342 = vmatpush1.msra.mxu0 0.0
        %3343 = vmatprep.subr.mxu0 0.0
        %3344 = vmatpush1.msra.mxu0 0.0
        %3345 = vmatprep.subr.mxu0 0.0
        %3346 = vmatpush1.msra.mxu0 0.0
        %3347 = vmatprep.subr.mxu0 0.0
        %3348 = vmatpush1.msra.mxu0 0.0
        %3349 = vmatprep.subr.mxu0 0.0
        %3350 = vmatpush1.msra.mxu0 0.0
        %3351 = vmatprep.subr.mxu0 0.0
        %3352 = vmatpush1.msra.mxu0 0.0
        %3353 = vmatprep.subr.mxu0 0.0
        %3354 = vmatpush1.msra.mxu0 0.0
        %3355 = vmatprep.subr.mxu0 0.0
        %3356 = vmatpush1.msra.mxu0 0.0
        %3357 = vmatprep.subr.mxu0 0.0
        %3358 = vmatpush1.msra.mxu0 0.0
        %3359 = vmatprep.subr.mxu0 0.0
        %3360 = vmatpush1.msra.mxu0 0.0
        %3361 = vmatprep.subr.mxu0 0.0
        %3362 = vmatpush1.msra.mxu0 0.0
        %3363 = vmatprep.subr.mxu0 0.0
        %3364 = vmatpush1.msra.mxu0 0.0
        %3365 = vmatprep.mubr.f32.mxu0 0.0
        %3366 = vmatmul.mubr.f32.gmra.mrb[0].mxu0 %v3299
        %v3367 = vpop.f32.mrb[0].mxu0
        %v3368 = vadd.f32 0.0, %v3367
        %v3369 = vpop.f32.mrb[0].mxu0
        %v3370 = vadd.f32 0.0, %v3369
        %3371 = vdwg.mxu0
        %v3373 = vsel %vm3014, %v3256, 0
        %3375 = vmatprep.subr.mxu0 %v3267
        %3376 = vmatpush1.msra.mxu0 %v3266
        %3377 = vmatprep.subr.mxu0 %v3269
        %3378 = vmatpush1.msra.mxu0 %v3268
        %3379 = vmatprep.subr.mxu0 %v3271
        %3380 = vmatpush1.msra.mxu0 %v3270
        %3381 = vmatprep.subr.mxu0 %v3273
        %3382 = vmatpush1.msra.mxu0 %v3272
        %3383 = vmatprep.subr.mxu0 %v3275
        %3384 = vmatpush1.msra.mxu0 %v3274
        %3385 = vmatprep.subr.mxu0 %v3277
        %3386 = vmatpush1.msra.mxu0 %v3276
        %3387 = vmatprep.subr.mxu0 %v3279
        %3388 = vmatpush1.msra.mxu0 %v3278
        %3389 = vmatprep.subr.mxu0 %v3281
        %3390 = vmatpush1.msra.mxu0 %v3280
        %3391 = vmatprep.subr.mxu0 0.0
        %3392 = vmatpush1.msra.mxu0 0.0
        %3393 = vmatprep.subr.mxu0 0.0
        %3394 = vmatpush1.msra.mxu0 0.0
        %3395 = vmatprep.subr.mxu0 0.0
        %3396 = vmatpush1.msra.mxu0 0.0
        %3397 = vmatprep.subr.mxu0 0.0
        %3398 = vmatpush1.msra.mxu0 0.0
        %3399 = vmatprep.subr.mxu0 0.0
        %3400 = vmatpush1.msra.mxu0 0.0
        %3401 = vmatprep.subr.mxu0 0.0
        %3402 = vmatpush1.msra.mxu0 0.0
        %3403 = vmatprep.subr.mxu0 0.0
        %3404 = vmatpush1.msra.mxu0 0.0
        %3405 = vmatprep.subr.mxu0 0.0
        %3406 = vmatpush1.msra.mxu0 0.0
        %3407 = vmatprep.subr.mxu0 0.0
        %3408 = vmatpush1.msra.mxu0 0.0
        %3409 = vmatprep.subr.mxu0 0.0
        %3410 = vmatpush1.msra.mxu0 0.0
        %3411 = vmatprep.subr.mxu0 0.0
        %3412 = vmatpush1.msra.mxu0 0.0
        %3413 = vmatprep.subr.mxu0 0.0
        %3414 = vmatpush1.msra.mxu0 0.0
        %3415 = vmatprep.subr.mxu0 0.0
        %3416 = vmatpush1.msra.mxu0 0.0
        %3417 = vmatprep.subr.mxu0 0.0
        %3418 = vmatpush1.msra.mxu0 0.0
        %3419 = vmatprep.subr.mxu0 0.0
        %3420 = vmatpush1.msra.mxu0 0.0
        %3421 = vmatprep.subr.mxu0 0.0
        %3422 = vmatpush1.msra.mxu0 0.0
        %3423 = vmatprep.subr.mxu0 0.0
        %3424 = vmatpush1.msra.mxu0 0.0
        %3425 = vmatprep.subr.mxu0 0.0
        %3426 = vmatpush1.msra.mxu0 0.0
        %3427 = vmatprep.subr.mxu0 0.0
        %3428 = vmatpush1.msra.mxu0 0.0
        %3429 = vmatprep.subr.mxu0 0.0
        %3430 = vmatpush1.msra.mxu0 0.0
        %3431 = vmatprep.subr.mxu0 0.0
        %3432 = vmatpush1.msra.mxu0 0.0
        %3433 = vmatprep.subr.mxu0 0.0
        %3434 = vmatpush1.msra.mxu0 0.0
        %3435 = vmatprep.subr.mxu0 0.0
        %3436 = vmatpush1.msra.mxu0 0.0
        %3437 = vmatprep.subr.mxu0 0.0
        %3438 = vmatpush1.msra.mxu0 0.0
        %3439 = vmatprep.mubr.f32.mxu0 0.0
        %3440 = vmatmul.mubr.f32.gmra.mrb[0].mxu0 %v3373
        %v3441 = vpop.f32.mrb[0].mxu0
        %v3442 = vadd.f32 %v3368, %v3441
        %v3443 = vpop.f32.mrb[0].mxu0
        %v3444 = vadd.f32 %v3370, %v3443
        %3445 = vdwg.mxu0
        %3446 = vmatprep.subr.mxu0 %v3283
        %3447 = vmatpush1.msra.mxu0 %v3282
        %3448 = vmatprep.subr.mxu0 %v3285
        %3449 = vmatpush1.msra.mxu0 %v3284
        %3450 = vmatprep.subr.mxu0 %v3287
        %3451 = vmatpush1.msra.mxu0 %v3286
        %3452 = vmatprep.subr.mxu0 %v3289
        %3453 = vmatpush1.msra.mxu0 %v3288
        %3454 = vmatprep.subr.mxu0 %v3291
        %3455 = vmatpush1.msra.mxu0 %v3290
        %3456 = vmatprep.subr.mxu0 %v3293
        %3457 = vmatpush1.msra.mxu0 %v3292
        %3458 = vmatprep.subr.mxu0 %v3295
        %3459 = vmatpush1.msra.mxu0 %v3294
        %3460 = vmatprep.subr.mxu0 %v3297
        %3461 = vmatpush1.msra.mxu0 %v3296
        %3462 = vmatprep.subr.mxu0 0.0
        %3463 = vmatpush1.msra.mxu0 0.0
        %3464 = vmatprep.subr.mxu0 0.0
        %3465 = vmatpush1.msra.mxu0 0.0
        %3466 = vmatprep.subr.mxu0 0.0
        %3467 = vmatpush1.msra.mxu0 0.0
        %3468 = vmatprep.subr.mxu0 0.0
        %3469 = vmatpush1.msra.mxu0 0.0
        %3470 = vmatprep.subr.mxu0 0.0
        %3471 = vmatpush1.msra.mxu0 0.0
        %3472 = vmatprep.subr.mxu0 0.0
        %3473 = vmatpush1.msra.mxu0 0.0
        %3474 = vmatprep.subr.mxu0 0.0
        %3475 = vmatpush1.msra.mxu0 0.0
        %3476 = vmatprep.subr.mxu0 0.0
        %3477 = vmatpush1.msra.mxu0 0.0
        %3478 = vmatprep.subr.mxu0 0.0
        %3479 = vmatpush1.msra.mxu0 0.0
        %3480 = vmatprep.subr.mxu0 0.0
        %3481 = vmatpush1.msra.mxu0 0.0
        %3482 = vmatprep.subr.mxu0 0.0
        %3483 = vmatpush1.msra.mxu0 0.0
        %3484 = vmatprep.subr.mxu0 0.0
        %3485 = vmatpush1.msra.mxu0 0.0
        %3486 = vmatprep.subr.mxu0 0.0
        %3487 = vmatpush1.msra.mxu0 0.0
        %3488 = vmatprep.subr.mxu0 0.0
        %3489 = vmatpush1.msra.mxu0 0.0
        %3490 = vmatprep.subr.mxu0 0.0
        %3491 = vmatpush1.msra.mxu0 0.0
        %3492 = vmatprep.subr.mxu0 0.0
        %3493 = vmatpush1.msra.mxu0 0.0
        %3494 = vmatprep.subr.mxu0 0.0
        %3495 = vmatpush1.msra.mxu0 0.0
        %3496 = vmatprep.subr.mxu0 0.0
        %3497 = vmatpush1.msra.mxu0 0.0
        %3498 = vmatprep.subr.mxu0 0.0
        %3499 = vmatpush1.msra.mxu0 0.0
        %3500 = vmatprep.subr.mxu0 0.0
        %3501 = vmatpush1.msra.mxu0 0.0
        %3502 = vmatprep.subr.mxu0 0.0
        %3503 = vmatpush1.msra.mxu0 0.0
        %3504 = vmatprep.subr.mxu0 0.0
        %3505 = vmatpush1.msra.mxu0 0.0
        %3506 = vmatprep.subr.mxu0 0.0
        %3507 = vmatpush1.msra.mxu0 0.0
        %3508 = vmatprep.subr.mxu0 0.0
        %3509 = vmatpush1.msra.mxu0 0.0
        %3510 = vmatprep.mubr.f32.mxu0 0.0
        %3511 = vmatmul.mubr.f32.gmra.mrb[0].mxu0 %v3373
        %v3512 = vpop.f32.mrb[0].mxu0
        %v3513 = vadd.f32 0.0, %v3512
        %v3514 = vpop.f32.mrb[0].mxu0
        %v3515 = vadd.f32 0.0, %v3514
        %3516 = vdwg.mxu0
        %v3517 = vadd.f32 %v3442, %v3513
        %v3518 = vadd.f32 %v3444, %v3515
        %v3519 = vmax.f32 %v3517, 0.0
        %v3520 = vmax.f32 %v3518, 0.0
        %v3523 = vcombine.low %v3519, %v3520
        %v3525 = vunpack.c.l.s4 1983009808
        %v3526 = vunpack.c.0.s8 %v3525
        %v3527 = vlaneseq
        %v3528 = vshrl.u32 %v3527, 7
        %v3529 = vsub.s32 %v3526, %v3528
        %v3530 = vrot.slane %v3523, %v3529
        %3532 = vst [vmem:[#allocation2] sm:$0xf] %v3530
        %v3533 = vld [vmem:[#allocation2] ss:$2 sm:$0x3]
        %v3534 = vld [vmem:[#allocation12] sm:$0xff]
        %v3535 = vld [vmem:[#allocation12 + $0x8] sm:$0xff]
        %v3536 = vld [vmem:[#allocation12 + $0x10] sm:$0xff]
        %v3537 = vld [vmem:[#allocation12 + $0x18] sm:$0xff]
        %v3538 = vld [vmem:[#allocation12 + $0x20] sm:$0xff]
        %v3539 = vld [vmem:[#allocation12 + $0x28] sm:$0xff]
        %v3540 = vld [vmem:[#allocation12 + $0x30] sm:$0xff]
        %v3541 = vld [vmem:[#allocation12 + $0x38] sm:$0xff]
        %v3542 = vld [vmem:[#allocation12 + $0x40] sm:$0xff]
        %v3543 = vld [vmem:[#allocation12 + $0x48] sm:$0xff]
        %v3544 = vld [vmem:[#allocation12 + $0x50] sm:$0xff]
        %v3545 = vld [vmem:[#allocation12 + $0x58] sm:$0xff]
        %v3546 = vld [vmem:[#allocation12 + $0x60] sm:$0xff]
        %v3547 = vld [vmem:[#allocation12 + $0x68] sm:$0xff]
        %v3548 = vld [vmem:[#allocation12 + $0x70] sm:$0xff]
        %v3549 = vld [vmem:[#allocation12 + $0x78] sm:$0xff]
        %v3550 = vld [vmem:[#allocation12 + $0x80] sm:$0xff]
        %v3551 = vld [vmem:[#allocation12 + $0x88] sm:$0xff]
        %v3552 = vld [vmem:[#allocation12 + $0x90] sm:$0xff]
        %v3553 = vld [vmem:[#allocation12 + $0x98] sm:$0xff]
        %v3554 = vld [vmem:[#allocation12 + $0xa0] sm:$0xff]
        %v3555 = vld [vmem:[#allocation12 + $0xa8] sm:$0xff]
        %v3556 = vld [vmem:[#allocation12 + $0xb0] sm:$0xff]
        %v3557 = vld [vmem:[#allocation12 + $0xb8] sm:$0xff]
        %v3558 = vld [vmem:[#allocation12 + $0xc0] sm:$0xff]
        %v3559 = vld [vmem:[#allocation12 + $0xc8] sm:$0xff]
        %v3560 = vld [vmem:[#allocation12 + $0xd0] sm:$0xff]
        %v3561 = vld [vmem:[#allocation12 + $0xd8] sm:$0xff]
        %v3562 = vld [vmem:[#allocation12 + $0xe0] sm:$0xff]
        %v3563 = vld [vmem:[#allocation12 + $0xe8] sm:$0xff]
        %v3564 = vld [vmem:[#allocation12 + $0xf0] sm:$0xff]
        %v3565 = vld [vmem:[#allocation12 + $0xf8] sm:$0xff]
        %v3566 = vld [vmem:[#allocation12 + $0x100] sm:$0xff]
        %v3567 = vld [vmem:[#allocation12 + $0x108] sm:$0xff]
        %v3568 = vld [vmem:[#allocation12 + $0x110] sm:$0xff]
        %v3569 = vld [vmem:[#allocation12 + $0x118] sm:$0xff]
        %v3570 = vld [vmem:[#allocation12 + $0x120] sm:$0xff]
        %v3571 = vld [vmem:[#allocation12 + $0x128] sm:$0xff]
        %v3572 = vld [vmem:[#allocation12 + $0x130] sm:$0xff]
        %v3573 = vld [vmem:[#allocation12 + $0x138] sm:$0xff]
        %v3574 = vld [vmem:[#allocation12 + $0x140] sm:$0xff]
        %v3575 = vld [vmem:[#allocation12 + $0x148] sm:$0xff]
        %v3576 = vld [vmem:[#allocation12 + $0x150] sm:$0xff]
        %v3577 = vld [vmem:[#allocation12 + $0x158] sm:$0xff]
        %v3578 = vld [vmem:[#allocation12 + $0x160] sm:$0xff]
        %v3579 = vld [vmem:[#allocation12 + $0x168] sm:$0xff]
        %v3580 = vld [vmem:[#allocation12 + $0x170] sm:$0xff]
        %v3581 = vld [vmem:[#allocation12 + $0x178] sm:$0xff]
        %v3582 = vld [vmem:[#allocation12 + $0x180] sm:$0xff]
        %v3583 = vld [vmem:[#allocation12 + $0x188] sm:$0xff]
        %v3584 = vld [vmem:[#allocation12 + $0x190] sm:$0xff]
        %v3585 = vld [vmem:[#allocation12 + $0x198] sm:$0xff]
        %v3586 = vld [vmem:[#allocation12 + $0x1a0] sm:$0xff]
        %v3587 = vld [vmem:[#allocation12 + $0x1a8] sm:$0xff]
        %v3588 = vld [vmem:[#allocation12 + $0x1b0] sm:$0xff]
        %v3589 = vld [vmem:[#allocation12 + $0x1b8] sm:$0xff]
        %v3590 = vld [vmem:[#allocation12 + $0x1c0] sm:$0xff]
        %v3591 = vld [vmem:[#allocation12 + $0x1c8] sm:$0xff]
        %v3592 = vld [vmem:[#allocation12 + $0x1d0] sm:$0xff]
        %v3593 = vld [vmem:[#allocation12 + $0x1d8] sm:$0xff]
        %v3594 = vld [vmem:[#allocation12 + $0x1e0] sm:$0xff]
        %v3595 = vld [vmem:[#allocation12 + $0x1e8] sm:$0xff]
        %v3596 = vld [vmem:[#allocation12 + $0x1f0] sm:$0xff]
        %v3597 = vld [vmem:[#allocation12 + $0x1f8] sm:$0xff]
        %v3598 = vld [vmem:[#allocation12 + $0x200] sm:$0xff]
        %v3599 = vld [vmem:[#allocation12 + $0x208] sm:$0xff]
        %v3600 = vld [vmem:[#allocation12 + $0x210] sm:$0xff]
        %v3601 = vld [vmem:[#allocation12 + $0x218] sm:$0xff]
        %v3602 = vld [vmem:[#allocation12 + $0x220] sm:$0xff]
        %v3603 = vld [vmem:[#allocation12 + $0x228] sm:$0xff]
        %v3604 = vld [vmem:[#allocation12 + $0x230] sm:$0xff]
        %v3605 = vld [vmem:[#allocation12 + $0x238] sm:$0xff]
        %v3606 = vld [vmem:[#allocation12 + $0x240] sm:$0xff]
        %v3607 = vld [vmem:[#allocation12 + $0x248] sm:$0xff]
        %v3608 = vld [vmem:[#allocation12 + $0x250] sm:$0xff]
        %v3609 = vld [vmem:[#allocation12 + $0x258] sm:$0xff]
        %v3610 = vld [vmem:[#allocation12 + $0x260] sm:$0xff]
        %v3611 = vld [vmem:[#allocation12 + $0x268] sm:$0xff]
        %v3612 = vld [vmem:[#allocation12 + $0x270] sm:$0xff]
        %v3613 = vld [vmem:[#allocation12 + $0x278] sm:$0xff]
        %v3614 = vld [vmem:[#allocation12 + $0x280] sm:$0xff]
        %v3615 = vld [vmem:[#allocation12 + $0x288] sm:$0xff]
        %v3616 = vld [vmem:[#allocation12 + $0x290] sm:$0xff]
        %v3617 = vld [vmem:[#allocation12 + $0x298] sm:$0xff]
        %v3618 = vld [vmem:[#allocation12 + $0x2a0] sm:$0xff]
        %v3619 = vld [vmem:[#allocation12 + $0x2a8] sm:$0xff]
        %v3620 = vld [vmem:[#allocation12 + $0x2b0] sm:$0xff]
        %v3621 = vld [vmem:[#allocation12 + $0x2b8] sm:$0xff]
        %v3622 = vld [vmem:[#allocation12 + $0x2c0] sm:$0xff]
        %v3623 = vld [vmem:[#allocation12 + $0x2c8] sm:$0xff]
        %v3624 = vld [vmem:[#allocation12 + $0x2d0] sm:$0xff]
        %v3625 = vld [vmem:[#allocation12 + $0x2d8] sm:$0xff]
        %v3626 = vld [vmem:[#allocation12 + $0x2e0] sm:$0xff]
        %v3627 = vld [vmem:[#allocation12 + $0x2e8] sm:$0xff]
        %v3628 = vld [vmem:[#allocation12 + $0x2f0] sm:$0xff]
        %v3629 = vld [vmem:[#allocation12 + $0x2f8] sm:$0xff]
        %v3630 = vld [vmem:[#allocation12 + $0x300] sm:$0xff]
        %v3631 = vld [vmem:[#allocation12 + $0x308] sm:$0xff]
        %v3632 = vld [vmem:[#allocation12 + $0x310] sm:$0xff]
        %v3633 = vld [vmem:[#allocation12 + $0x318] sm:$0xff]
        %v3634 = vld [vmem:[#allocation12 + $0x320] sm:$0xff]
        %v3635 = vld [vmem:[#allocation12 + $0x328] sm:$0xff]
        %v3636 = vld [vmem:[#allocation12 + $0x330] sm:$0xff]
        %v3637 = vld [vmem:[#allocation12 + $0x338] sm:$0xff]
        %v3638 = vld [vmem:[#allocation12 + $0x340] sm:$0xff]
        %v3639 = vld [vmem:[#allocation12 + $0x348] sm:$0xff]
        %v3640 = vld [vmem:[#allocation12 + $0x350] sm:$0xff]
        %v3641 = vld [vmem:[#allocation12 + $0x358] sm:$0xff]
        %v3642 = vld [vmem:[#allocation12 + $0x360] sm:$0xff]
        %v3643 = vld [vmem:[#allocation12 + $0x368] sm:$0xff]
        %v3644 = vld [vmem:[#allocation12 + $0x370] sm:$0xff]
        %v3645 = vld [vmem:[#allocation12 + $0x378] sm:$0xff]
        %v3646 = vld [vmem:[#allocation12 + $0x380] sm:$0xff]
        %v3647 = vld [vmem:[#allocation12 + $0x388] sm:$0xff]
        %v3648 = vld [vmem:[#allocation12 + $0x390] sm:$0xff]
        %v3649 = vld [vmem:[#allocation12 + $0x398] sm:$0xff]
        %v3650 = vld [vmem:[#allocation12 + $0x3a0] sm:$0xff]
        %v3651 = vld [vmem:[#allocation12 + $0x3a8] sm:$0xff]
        %v3652 = vld [vmem:[#allocation12 + $0x3b0] sm:$0xff]
        %v3653 = vld [vmem:[#allocation12 + $0x3b8] sm:$0xff]
        %v3654 = vld [vmem:[#allocation12 + $0x3c0] sm:$0xff]
        %v3655 = vld [vmem:[#allocation12 + $0x3c8] sm:$0xff]
        %v3656 = vld [vmem:[#allocation12 + $0x3d0] sm:$0xff]
        %v3657 = vld [vmem:[#allocation12 + $0x3d8] sm:$0xff]
        %v3658 = vld [vmem:[#allocation12 + $0x3e0] sm:$0xff]
        %v3659 = vld [vmem:[#allocation12 + $0x3e8] sm:$0xff]
        %v3660 = vld [vmem:[#allocation12 + $0x3f0] sm:$0xff]
        %v3661 = vld [vmem:[#allocation12 + $0x3f8] sm:$0xff]
        %v3663 = vlaneseq
        %v3664 = vshrl.u32 %v3663, 7
        %v3665 = vsub.s32 0, %v3664
        %v3666 = vrot.slane %v3533, %v3665
        %v3667 = vlaneseq
        %v3668 = vshrl.u32 %v3667, 7
        %v3669 = vsub.s32 1, %v3668
        %v3670 = vrot.slane %v3533, %v3669
        %v3673 = vpack.c.bf16 %v3666, %v3666
        %v3674 = vpack.c.bf16 %v3670, %v3670
        %v3675 = vunpack.c.l.bf16 %v3673
        %v3676 = vunpack.c.l.bf16 %v3674
        %v3679 = vcombine.low %v3675, %v3676
        %v3681 = vunpack.c.l.s4 1966171168
        %v3682 = vunpack.c.0.s8 %v3681
        %v3683 = vlaneseq
        %v3684 = vshrl.u32 %v3683, 7
        %v3685 = vsub.s32 %v3682, %v3684
        %v3686 = vrot.slane %v3679, %v3685
        %v3688 = vunpack.c.l.s4 1966171168
        %v3689 = vunpack.c.0.s8 %v3688
        %v3690 = vlaneseq
        %v3691 = vshrl.u32 %v3690, 7
        %v3692 = vsub.s32 %v3689, %v3691
        %v3693 = vrot.slane %v3686, %v3692
        %v3695 = vsub.f32 %v3533, %v3693
        %v3696 = vpack.c.bf16 %v3538, %v3534
        %v3697 = vpack.c.bf16 %v3539, %v3535
        %v3698 = vpack.c.bf16 %v3540, %v3536
        %v3699 = vpack.c.bf16 %v3541, %v3537
        %v3700 = vpack.c.bf16 %v3546, %v3542
        %v3701 = vpack.c.bf16 %v3547, %v3543
        %v3702 = vpack.c.bf16 %v3548, %v3544
        %v3703 = vpack.c.bf16 %v3549, %v3545
        %v3704 = vpack.c.bf16 %v3554, %v3550
        %v3705 = vpack.c.bf16 %v3555, %v3551
        %v3706 = vpack.c.bf16 %v3556, %v3552
        %v3707 = vpack.c.bf16 %v3557, %v3553
        %v3708 = vpack.c.bf16 %v3562, %v3558
        %v3709 = vpack.c.bf16 %v3563, %v3559
        %v3710 = vpack.c.bf16 %v3564, %v3560
        %v3711 = vpack.c.bf16 %v3565, %v3561
        %v3712 = vpack.c.bf16 %v3570, %v3566
        %v3713 = vpack.c.bf16 %v3571, %v3567
        %v3714 = vpack.c.bf16 %v3572, %v3568
        %v3715 = vpack.c.bf16 %v3573, %v3569
        %v3716 = vpack.c.bf16 %v3578, %v3574
        %v3717 = vpack.c.bf16 %v3579, %v3575
        %v3718 = vpack.c.bf16 %v3580, %v3576
        %v3719 = vpack.c.bf16 %v3581, %v3577
        %v3720 = vpack.c.bf16 %v3586, %v3582
        %v3721 = vpack.c.bf16 %v3587, %v3583
        %v3722 = vpack.c.bf16 %v3588, %v3584
        %v3723 = vpack.c.bf16 %v3589, %v3585
        %v3724 = vpack.c.bf16 %v3594, %v3590
        %v3725 = vpack.c.bf16 %v3595, %v3591
        %v3726 = vpack.c.bf16 %v3596, %v3592
        %v3727 = vpack.c.bf16 %v3597, %v3593
        %v3728 = vpack.c.bf16 %v3602, %v3598
        %v3729 = vpack.c.bf16 %v3603, %v3599
        %v3730 = vpack.c.bf16 %v3604, %v3600
        %v3731 = vpack.c.bf16 %v3605, %v3601
        %v3732 = vpack.c.bf16 %v3610, %v3606
        %v3733 = vpack.c.bf16 %v3611, %v3607
        %v3734 = vpack.c.bf16 %v3612, %v3608
        %v3735 = vpack.c.bf16 %v3613, %v3609
        %v3736 = vpack.c.bf16 %v3618, %v3614
        %v3737 = vpack.c.bf16 %v3619, %v3615
        %v3738 = vpack.c.bf16 %v3620, %v3616
        %v3739 = vpack.c.bf16 %v3621, %v3617
        %v3740 = vpack.c.bf16 %v3626, %v3622
        %v3741 = vpack.c.bf16 %v3627, %v3623
        %v3742 = vpack.c.bf16 %v3628, %v3624
        %v3743 = vpack.c.bf16 %v3629, %v3625
        %v3744 = vpack.c.bf16 %v3634, %v3630
        %v3745 = vpack.c.bf16 %v3635, %v3631
        %v3746 = vpack.c.bf16 %v3636, %v3632
        %v3747 = vpack.c.bf16 %v3637, %v3633
        %v3748 = vpack.c.bf16 %v3642, %v3638
        %v3749 = vpack.c.bf16 %v3643, %v3639
        %v3750 = vpack.c.bf16 %v3644, %v3640
        %v3751 = vpack.c.bf16 %v3645, %v3641
        %v3752 = vpack.c.bf16 %v3650, %v3646
        %v3753 = vpack.c.bf16 %v3651, %v3647
        %v3754 = vpack.c.bf16 %v3652, %v3648
        %v3755 = vpack.c.bf16 %v3653, %v3649
        %v3756 = vpack.c.bf16 %v3658, %v3654
        %v3757 = vpack.c.bf16 %v3659, %v3655
        %v3758 = vpack.c.bf16 %v3660, %v3656
        %v3759 = vpack.c.bf16 %v3661, %v3657
        %v3760 = vunpack.c.l.bf16 %v3696
        %v3761 = vunpack.c.l.bf16 %v3697
        %v3762 = vunpack.c.l.bf16 %v3698
        %v3763 = vunpack.c.l.bf16 %v3699
        %v3764 = vunpack.c.h.bf16 %v3696
        %v3765 = vunpack.c.h.bf16 %v3697
        %v3766 = vunpack.c.h.bf16 %v3698
        %v3767 = vunpack.c.h.bf16 %v3699
        %v3768 = vunpack.c.l.bf16 %v3700
        %v3769 = vunpack.c.l.bf16 %v3701
        %v3770 = vunpack.c.l.bf16 %v3702
        %v3771 = vunpack.c.l.bf16 %v3703
        %v3772 = vunpack.c.h.bf16 %v3700
        %v3773 = vunpack.c.h.bf16 %v3701
        %v3774 = vunpack.c.h.bf16 %v3702
        %v3775 = vunpack.c.h.bf16 %v3703
        %v3776 = vunpack.c.l.bf16 %v3704
        %v3777 = vunpack.c.l.bf16 %v3705
        %v3778 = vunpack.c.l.bf16 %v3706
        %v3779 = vunpack.c.l.bf16 %v3707
        %v3780 = vunpack.c.h.bf16 %v3704
        %v3781 = vunpack.c.h.bf16 %v3705
        %v3782 = vunpack.c.h.bf16 %v3706
        %v3783 = vunpack.c.h.bf16 %v3707
        %v3784 = vunpack.c.l.bf16 %v3708
        %v3785 = vunpack.c.l.bf16 %v3709
        %v3786 = vunpack.c.l.bf16 %v3710
        %v3787 = vunpack.c.l.bf16 %v3711
        %v3788 = vunpack.c.h.bf16 %v3708
        %v3789 = vunpack.c.h.bf16 %v3709
        %v3790 = vunpack.c.h.bf16 %v3710
        %v3791 = vunpack.c.h.bf16 %v3711
        %v3792 = vunpack.c.l.bf16 %v3712
        %v3793 = vunpack.c.l.bf16 %v3713
        %v3794 = vunpack.c.l.bf16 %v3714
        %v3795 = vunpack.c.l.bf16 %v3715
        %v3796 = vunpack.c.h.bf16 %v3712
        %v3797 = vunpack.c.h.bf16 %v3713
        %v3798 = vunpack.c.h.bf16 %v3714
        %v3799 = vunpack.c.h.bf16 %v3715
        %v3800 = vunpack.c.l.bf16 %v3716
        %v3801 = vunpack.c.l.bf16 %v3717
        %v3802 = vunpack.c.l.bf16 %v3718
        %v3803 = vunpack.c.l.bf16 %v3719
        %v3804 = vunpack.c.h.bf16 %v3716
        %v3805 = vunpack.c.h.bf16 %v3717
        %v3806 = vunpack.c.h.bf16 %v3718
        %v3807 = vunpack.c.h.bf16 %v3719
        %v3808 = vunpack.c.l.bf16 %v3720
        %v3809 = vunpack.c.l.bf16 %v3721
        %v3810 = vunpack.c.l.bf16 %v3722
        %v3811 = vunpack.c.l.bf16 %v3723
        %v3812 = vunpack.c.h.bf16 %v3720
        %v3813 = vunpack.c.h.bf16 %v3721
        %v3814 = vunpack.c.h.bf16 %v3722
        %v3815 = vunpack.c.h.bf16 %v3723
        %v3816 = vunpack.c.l.bf16 %v3724
        %v3817 = vunpack.c.l.bf16 %v3725
        %v3818 = vunpack.c.l.bf16 %v3726
        %v3819 = vunpack.c.l.bf16 %v3727
        %v3820 = vunpack.c.h.bf16 %v3724
        %v3821 = vunpack.c.h.bf16 %v3725
        %v3822 = vunpack.c.h.bf16 %v3726
        %v3823 = vunpack.c.h.bf16 %v3727
        %v3824 = vunpack.c.l.bf16 %v3728
        %v3825 = vunpack.c.l.bf16 %v3729
        %v3826 = vunpack.c.l.bf16 %v3730
        %v3827 = vunpack.c.l.bf16 %v3731
        %v3828 = vunpack.c.h.bf16 %v3728
        %v3829 = vunpack.c.h.bf16 %v3729
        %v3830 = vunpack.c.h.bf16 %v3730
        %v3831 = vunpack.c.h.bf16 %v3731
        %v3832 = vunpack.c.l.bf16 %v3732
        %v3833 = vunpack.c.l.bf16 %v3733
        %v3834 = vunpack.c.l.bf16 %v3734
        %v3835 = vunpack.c.l.bf16 %v3735
        %v3836 = vunpack.c.h.bf16 %v3732
        %v3837 = vunpack.c.h.bf16 %v3733
        %v3838 = vunpack.c.h.bf16 %v3734
        %v3839 = vunpack.c.h.bf16 %v3735
        %v3840 = vunpack.c.l.bf16 %v3736
        %v3841 = vunpack.c.l.bf16 %v3737
        %v3842 = vunpack.c.l.bf16 %v3738
        %v3843 = vunpack.c.l.bf16 %v3739
        %v3844 = vunpack.c.h.bf16 %v3736
        %v3845 = vunpack.c.h.bf16 %v3737
        %v3846 = vunpack.c.h.bf16 %v3738
        %v3847 = vunpack.c.h.bf16 %v3739
        %v3848 = vunpack.c.l.bf16 %v3740
        %v3849 = vunpack.c.l.bf16 %v3741
        %v3850 = vunpack.c.l.bf16 %v3742
        %v3851 = vunpack.c.l.bf16 %v3743
        %v3852 = vunpack.c.h.bf16 %v3740
        %v3853 = vunpack.c.h.bf16 %v3741
        %v3854 = vunpack.c.h.bf16 %v3742
        %v3855 = vunpack.c.h.bf16 %v3743
        %v3856 = vunpack.c.l.bf16 %v3744
        %v3857 = vunpack.c.l.bf16 %v3745
        %v3858 = vunpack.c.l.bf16 %v3746
        %v3859 = vunpack.c.l.bf16 %v3747
        %v3860 = vunpack.c.h.bf16 %v3744
        %v3861 = vunpack.c.h.bf16 %v3745
        %v3862 = vunpack.c.h.bf16 %v3746
        %v3863 = vunpack.c.h.bf16 %v3747
        %v3864 = vunpack.c.l.bf16 %v3748
        %v3865 = vunpack.c.l.bf16 %v3749
        %v3866 = vunpack.c.l.bf16 %v3750
        %v3867 = vunpack.c.l.bf16 %v3751
        %v3868 = vunpack.c.h.bf16 %v3748
        %v3869 = vunpack.c.h.bf16 %v3749
        %v3870 = vunpack.c.h.bf16 %v3750
        %v3871 = vunpack.c.h.bf16 %v3751
        %v3872 = vunpack.c.l.bf16 %v3752
        %v3873 = vunpack.c.l.bf16 %v3753
        %v3874 = vunpack.c.l.bf16 %v3754
        %v3875 = vunpack.c.l.bf16 %v3755
        %v3876 = vunpack.c.h.bf16 %v3752
        %v3877 = vunpack.c.h.bf16 %v3753
        %v3878 = vunpack.c.h.bf16 %v3754
        %v3879 = vunpack.c.h.bf16 %v3755
        %v3880 = vunpack.c.l.bf16 %v3756
        %v3881 = vunpack.c.l.bf16 %v3757
        %v3882 = vunpack.c.l.bf16 %v3758
        %v3883 = vunpack.c.l.bf16 %v3759
        %v3884 = vunpack.c.h.bf16 %v3756
        %v3885 = vunpack.c.h.bf16 %v3757
        %v3886 = vunpack.c.h.bf16 %v3758
        %v3887 = vunpack.c.h.bf16 %v3759
        %v3888 = vsub.f32 %v3534, %v3760
        %v3889 = vsub.f32 %v3535, %v3761
        %v3890 = vsub.f32 %v3536, %v3762
        %v3891 = vsub.f32 %v3537, %v3763
        %v3892 = vsub.f32 %v3538, %v3764
        %v3893 = vsub.f32 %v3539, %v3765
        %v3894 = vsub.f32 %v3540, %v3766
        %v3895 = vsub.f32 %v3541, %v3767
        %v3896 = vsub.f32 %v3542, %v3768
        %v3897 = vsub.f32 %v3543, %v3769
        %v3898 = vsub.f32 %v3544, %v3770
        %v3899 = vsub.f32 %v3545, %v3771
        %v3900 = vsub.f32 %v3546, %v3772
        %v3901 = vsub.f32 %v3547, %v3773
        %v3902 = vsub.f32 %v3548, %v3774
        %v3903 = vsub.f32 %v3549, %v3775
        %v3904 = vsub.f32 %v3550, %v3776
        %v3905 = vsub.f32 %v3551, %v3777
        %v3906 = vsub.f32 %v3552, %v3778
        %v3907 = vsub.f32 %v3553, %v3779
        %v3908 = vsub.f32 %v3554, %v3780
        %v3909 = vsub.f32 %v3555, %v3781
        %v3910 = vsub.f32 %v3556, %v3782
        %v3911 = vsub.f32 %v3557, %v3783
        %v3912 = vsub.f32 %v3558, %v3784
        %v3913 = vsub.f32 %v3559, %v3785
        %v3914 = vsub.f32 %v3560, %v3786
        %v3915 = vsub.f32 %v3561, %v3787
        %v3916 = vsub.f32 %v3562, %v3788
        %v3917 = vsub.f32 %v3563, %v3789
        %v3918 = vsub.f32 %v3564, %v3790
        %v3919 = vsub.f32 %v3565, %v3791
        %v3920 = vsub.f32 %v3566, %v3792
        %v3921 = vsub.f32 %v3567, %v3793
        %v3922 = vsub.f32 %v3568, %v3794
        %v3923 = vsub.f32 %v3569, %v3795
        %v3924 = vsub.f32 %v3570, %v3796
        %v3925 = vsub.f32 %v3571, %v3797
        %v3926 = vsub.f32 %v3572, %v3798
        %v3927 = vsub.f32 %v3573, %v3799
        %v3928 = vsub.f32 %v3574, %v3800
        %v3929 = vsub.f32 %v3575, %v3801
        %v3930 = vsub.f32 %v3576, %v3802
        %v3931 = vsub.f32 %v3577, %v3803
        %v3932 = vsub.f32 %v3578, %v3804
        %v3933 = vsub.f32 %v3579, %v3805
        %v3934 = vsub.f32 %v3580, %v3806
        %v3935 = vsub.f32 %v3581, %v3807
        %v3936 = vsub.f32 %v3582, %v3808
        %v3937 = vsub.f32 %v3583, %v3809
        %v3938 = vsub.f32 %v3584, %v3810
        %v3939 = vsub.f32 %v3585, %v3811
        %v3940 = vsub.f32 %v3586, %v3812
        %v3941 = vsub.f32 %v3587, %v3813
        %v3942 = vsub.f32 %v3588, %v3814
        %v3943 = vsub.f32 %v3589, %v3815
        %v3944 = vsub.f32 %v3590, %v3816
        %v3945 = vsub.f32 %v3591, %v3817
        %v3946 = vsub.f32 %v3592, %v3818
        %v3947 = vsub.f32 %v3593, %v3819
        %v3948 = vsub.f32 %v3594, %v3820
        %v3949 = vsub.f32 %v3595, %v3821
        %v3950 = vsub.f32 %v3596, %v3822
        %v3951 = vsub.f32 %v3597, %v3823
        %v3952 = vsub.f32 %v3598, %v3824
        %v3953 = vsub.f32 %v3599, %v3825
        %v3954 = vsub.f32 %v3600, %v3826
        %v3955 = vsub.f32 %v3601, %v3827
        %v3956 = vsub.f32 %v3602, %v3828
        %v3957 = vsub.f32 %v3603, %v3829
        %v3958 = vsub.f32 %v3604, %v3830
        %v3959 = vsub.f32 %v3605, %v3831
        %v3960 = vsub.f32 %v3606, %v3832
        %v3961 = vsub.f32 %v3607, %v3833
        %v3962 = vsub.f32 %v3608, %v3834
        %v3963 = vsub.f32 %v3609, %v3835
        %v3964 = vsub.f32 %v3610, %v3836
        %v3965 = vsub.f32 %v3611, %v3837
        %v3966 = vsub.f32 %v3612, %v3838
        %v3967 = vsub.f32 %v3613, %v3839
        %v3968 = vsub.f32 %v3614, %v3840
        %v3969 = vsub.f32 %v3615, %v3841
        %v3970 = vsub.f32 %v3616, %v3842
        %v3971 = vsub.f32 %v3617, %v3843
        %v3972 = vsub.f32 %v3618, %v3844
        %v3973 = vsub.f32 %v3619, %v3845
        %v3974 = vsub.f32 %v3620, %v3846
        %v3975 = vsub.f32 %v3621, %v3847
        %v3976 = vsub.f32 %v3622, %v3848
        %v3977 = vsub.f32 %v3623, %v3849
        %v3978 = vsub.f32 %v3624, %v3850
        %v3979 = vsub.f32 %v3625, %v3851
        %v3980 = vsub.f32 %v3626, %v3852
        %v3981 = vsub.f32 %v3627, %v3853
        %v3982 = vsub.f32 %v3628, %v3854
        %v3983 = vsub.f32 %v3629, %v3855
        %v3984 = vsub.f32 %v3630, %v3856
        %v3985 = vsub.f32 %v3631, %v3857
        %v3986 = vsub.f32 %v3632, %v3858
        %v3987 = vsub.f32 %v3633, %v3859
        %v3988 = vsub.f32 %v3634, %v3860
        %v3989 = vsub.f32 %v3635, %v3861
        %v3990 = vsub.f32 %v3636, %v3862
        %v3991 = vsub.f32 %v3637, %v3863
        %v3992 = vsub.f32 %v3638, %v3864
        %v3993 = vsub.f32 %v3639, %v3865
        %v3994 = vsub.f32 %v3640, %v3866
        %v3995 = vsub.f32 %v3641, %v3867
        %v3996 = vsub.f32 %v3642, %v3868
        %v3997 = vsub.f32 %v3643, %v3869
        %v3998 = vsub.f32 %v3644, %v3870
        %v3999 = vsub.f32 %v3645, %v3871
        %v4000 = vsub.f32 %v3646, %v3872
        %v4001 = vsub.f32 %v3647, %v3873
        %v4002 = vsub.f32 %v3648, %v3874
        %v4003 = vsub.f32 %v3649, %v3875
        %v4004 = vsub.f32 %v3650, %v3876
        %v4005 = vsub.f32 %v3651, %v3877
        %v4006 = vsub.f32 %v3652, %v3878
        %v4007 = vsub.f32 %v3653, %v3879
        %v4008 = vsub.f32 %v3654, %v3880
        %v4009 = vsub.f32 %v3655, %v3881
        %v4010 = vsub.f32 %v3656, %v3882
        %v4011 = vsub.f32 %v3657, %v3883
        %v4012 = vsub.f32 %v3658, %v3884
        %v4013 = vsub.f32 %v3659, %v3885
        %v4014 = vsub.f32 %v3660, %v3886
        %v4015 = vsub.f32 %v3661, %v3887
        %v4017 = vlaneseq
        %v4018 = vshrl.u32 %v4017, 7
        %v4019 = vsub.s32 0, %v4018
        %v4020 = vrot.slane %v3695, %v4019
        %v4021 = vlaneseq
        %v4022 = vshrl.u32 %v4021, 7
        %v4023 = vsub.s32 1, %v4022
        %v4024 = vrot.slane %v3695, %v4023
        %4027 = vmatprep.subr.mxu0 %v3761
        %4028 = vmatpush1.msra.mxu0 %v3760
        %4029 = vmatprep.subr.mxu0 %v3765
        %4030 = vmatpush1.msra.mxu0 %v3764
        %4031 = vmatprep.subr.mxu0 %v3769
        %4032 = vmatpush1.msra.mxu0 %v3768
        %4033 = vmatprep.subr.mxu0 %v3773
        %4034 = vmatpush1.msra.mxu0 %v3772
        %4035 = vmatprep.subr.mxu0 %v3777
        %4036 = vmatpush1.msra.mxu0 %v3776
        %4037 = vmatprep.subr.mxu0 %v3781
        %4038 = vmatpush1.msra.mxu0 %v3780
        %4039 = vmatprep.subr.mxu0 %v3785
        %4040 = vmatpush1.msra.mxu0 %v3784
        %4041 = vmatprep.subr.mxu0 %v3789
        %4042 = vmatpush1.msra.mxu0 %v3788
        %4043 = vmatprep.subr.mxu0 %v3793
        %4044 = vmatpush1.msra.mxu0 %v3792
        %4045 = vmatprep.subr.mxu0 %v3797
        %4046 = vmatpush1.msra.mxu0 %v3796
        %4047 = vmatprep.subr.mxu0 %v3801
        %4048 = vmatpush1.msra.mxu0 %v3800
        %4049 = vmatprep.subr.mxu0 %v3805
        %4050 = vmatpush1.msra.mxu0 %v3804
        %4051 = vmatprep.subr.mxu0 %v3809
        %4052 = vmatpush1.msra.mxu0 %v3808
        %4053 = vmatprep.subr.mxu0 %v3813
        %4054 = vmatpush1.msra.mxu0 %v3812
        %4055 = vmatprep.subr.mxu0 %v3817
        %4056 = vmatpush1.msra.mxu0 %v3816
        %4057 = vmatprep.subr.mxu0 %v3821
        %4058 = vmatpush1.msra.mxu0 %v3820
        %4059 = vmatprep.subr.mxu0 %v3825
        %4060 = vmatpush1.msra.mxu0 %v3824
        %4061 = vmatprep.subr.mxu0 %v3829
        %4062 = vmatpush1.msra.mxu0 %v3828
        %4063 = vmatprep.subr.mxu0 %v3833
        %4064 = vmatpush1.msra.mxu0 %v3832
        %4065 = vmatprep.subr.mxu0 %v3837
        %4066 = vmatpush1.msra.mxu0 %v3836
        %4067 = vmatprep.subr.mxu0 %v3841
        %4068 = vmatpush1.msra.mxu0 %v3840
        %4069 = vmatprep.subr.mxu0 %v3845
        %4070 = vmatpush1.msra.mxu0 %v3844
        %4071 = vmatprep.subr.mxu0 %v3849
        %4072 = vmatpush1.msra.mxu0 %v3848
        %4073 = vmatprep.subr.mxu0 %v3853
        %4074 = vmatpush1.msra.mxu0 %v3852
        %4075 = vmatprep.subr.mxu0 %v3857
        %4076 = vmatpush1.msra.mxu0 %v3856
        %4077 = vmatprep.subr.mxu0 %v3861
        %4078 = vmatpush1.msra.mxu0 %v3860
        %4079 = vmatprep.subr.mxu0 %v3865
        %4080 = vmatpush1.msra.mxu0 %v3864
        %4081 = vmatprep.subr.mxu0 %v3869
        %4082 = vmatpush1.msra.mxu0 %v3868
        %4083 = vmatprep.subr.mxu0 %v3873
        %4084 = vmatpush1.msra.mxu0 %v3872
        %4085 = vmatprep.subr.mxu0 %v3877
        %4086 = vmatpush1.msra.mxu0 %v3876
        %4087 = vmatprep.subr.mxu0 %v3881
        %4088 = vmatpush1.msra.mxu0 %v3880
        %4089 = vmatprep.subr.mxu0 %v3885
        %4090 = vmatpush1.msra.mxu0 %v3884
        %4091 = vmatprep.mubr.f32.mxu0 %v4024
        %4092 = vmatmul.mubr.f32.gmra.mrb[0].mxu0 %v4020
        %v4093 = vpop.f32.mrb[0].mxu0
        %v4094 = vadd.f32 0.0, %v4093
        %v4095 = vpop.f32.mrb[0].mxu0
        %v4096 = vadd.f32 0.0, %v4095
        %4097 = vdwg.mxu0
        %4098 = vmatprep.subr.mxu0 %v3763
        %4099 = vmatpush1.msra.mxu0 %v3762
        %4100 = vmatprep.subr.mxu0 %v3767
        %4101 = vmatpush1.msra.mxu0 %v3766
        %4102 = vmatprep.subr.mxu0 %v3771
        %4103 = vmatpush1.msra.mxu0 %v3770
        %4104 = vmatprep.subr.mxu0 %v3775
        %4105 = vmatpush1.msra.mxu0 %v3774
        %4106 = vmatprep.subr.mxu0 %v3779
        %4107 = vmatpush1.msra.mxu0 %v3778
        %4108 = vmatprep.subr.mxu0 %v3783
        %4109 = vmatpush1.msra.mxu0 %v3782
        %4110 = vmatprep.subr.mxu0 %v3787
        %4111 = vmatpush1.msra.mxu0 %v3786
        %4112 = vmatprep.subr.mxu0 %v3791
        %4113 = vmatpush1.msra.mxu0 %v3790
        %4114 = vmatprep.subr.mxu0 %v3795
        %4115 = vmatpush1.msra.mxu0 %v3794
        %4116 = vmatprep.subr.mxu0 %v3799
        %4117 = vmatpush1.msra.mxu0 %v3798
        %4118 = vmatprep.subr.mxu0 %v3803
        %4119 = vmatpush1.msra.mxu0 %v3802
        %4120 = vmatprep.subr.mxu0 %v3807
        %4121 = vmatpush1.msra.mxu0 %v3806
        %4122 = vmatprep.subr.mxu0 %v3811
        %4123 = vmatpush1.msra.mxu0 %v3810
        %4124 = vmatprep.subr.mxu0 %v3815
        %4125 = vmatpush1.msra.mxu0 %v3814
        %4126 = vmatprep.subr.mxu0 %v3819
        %4127 = vmatpush1.msra.mxu0 %v3818
        %4128 = vmatprep.subr.mxu0 %v3823
        %4129 = vmatpush1.msra.mxu0 %v3822
        %4130 = vmatprep.subr.mxu0 %v3827
        %4131 = vmatpush1.msra.mxu0 %v3826
        %4132 = vmatprep.subr.mxu0 %v3831
        %4133 = vmatpush1.msra.mxu0 %v3830
        %4134 = vmatprep.subr.mxu0 %v3835
        %4135 = vmatpush1.msra.mxu0 %v3834
        %4136 = vmatprep.subr.mxu0 %v3839
        %4137 = vmatpush1.msra.mxu0 %v3838
        %4138 = vmatprep.subr.mxu0 %v3843
        %4139 = vmatpush1.msra.mxu0 %v3842
        %4140 = vmatprep.subr.mxu0 %v3847
        %4141 = vmatpush1.msra.mxu0 %v3846
        %4142 = vmatprep.subr.mxu0 %v3851
        %4143 = vmatpush1.msra.mxu0 %v3850
        %4144 = vmatprep.subr.mxu0 %v3855
        %4145 = vmatpush1.msra.mxu0 %v3854
        %4146 = vmatprep.subr.mxu0 %v3859
        %4147 = vmatpush1.msra.mxu0 %v3858
        %4148 = vmatprep.subr.mxu0 %v3863
        %4149 = vmatpush1.msra.mxu0 %v3862
        %4150 = vmatprep.subr.mxu0 %v3867
        %4151 = vmatpush1.msra.mxu0 %v3866
        %4152 = vmatprep.subr.mxu0 %v3871
        %4153 = vmatpush1.msra.mxu0 %v3870
        %4154 = vmatprep.subr.mxu0 %v3875
        %4155 = vmatpush1.msra.mxu0 %v3874
        %4156 = vmatprep.subr.mxu0 %v3879
        %4157 = vmatpush1.msra.mxu0 %v3878
        %4158 = vmatprep.subr.mxu0 %v3883
        %4159 = vmatpush1.msra.mxu0 %v3882
        %4160 = vmatprep.subr.mxu0 %v3887
        %4161 = vmatpush1.msra.mxu0 %v3886
        %4162 = vmatprep.mubr.f32.mxu0 %v4024
        %4163 = vmatmul.mubr.f32.gmra.mrb[0].mxu0 %v4020
        %v4164 = vpop.f32.mrb[0].mxu0
        %v4165 = vadd.f32 0.0, %v4164
        %v4166 = vpop.f32.mrb[0].mxu0
        %v4167 = vadd.f32 0.0, %v4166
        %4168 = vdwg.mxu0
        %4169 = vmatprep.subr.mxu0 %v3761
        %4170 = vmatpush1.msra.mxu0 %v3760
        %4171 = vmatprep.subr.mxu0 %v3765
        %4172 = vmatpush1.msra.mxu0 %v3764
        %4173 = vmatprep.subr.mxu0 %v3769
        %4174 = vmatpush1.msra.mxu0 %v3768
        %4175 = vmatprep.subr.mxu0 %v3773
        %4176 = vmatpush1.msra.mxu0 %v3772
        %4177 = vmatprep.subr.mxu0 %v3777
        %4178 = vmatpush1.msra.mxu0 %v3776
        %4179 = vmatprep.subr.mxu0 %v3781
        %4180 = vmatpush1.msra.mxu0 %v3780
        %4181 = vmatprep.subr.mxu0 %v3785
        %4182 = vmatpush1.msra.mxu0 %v3784
        %4183 = vmatprep.subr.mxu0 %v3789
        %4184 = vmatpush1.msra.mxu0 %v3788
        %4185 = vmatprep.subr.mxu0 %v3793
        %4186 = vmatpush1.msra.mxu0 %v3792
        %4187 = vmatprep.subr.mxu0 %v3797
        %4188 = vmatpush1.msra.mxu0 %v3796
        %4189 = vmatprep.subr.mxu0 %v3801
        %4190 = vmatpush1.msra.mxu0 %v3800
        %4191 = vmatprep.subr.mxu0 %v3805
        %4192 = vmatpush1.msra.mxu0 %v3804
        %4193 = vmatprep.subr.mxu0 %v3809
        %4194 = vmatpush1.msra.mxu0 %v3808
        %4195 = vmatprep.subr.mxu0 %v3813
        %4196 = vmatpush1.msra.mxu0 %v3812
        %4197 = vmatprep.subr.mxu0 %v3817
        %4198 = vmatpush1.msra.mxu0 %v3816
        %4199 = vmatprep.subr.mxu0 %v3821
        %4200 = vmatpush1.msra.mxu0 %v3820
        %4201 = vmatprep.subr.mxu0 %v3825
        %4202 = vmatpush1.msra.mxu0 %v3824
        %4203 = vmatprep.subr.mxu0 %v3829
        %4204 = vmatpush1.msra.mxu0 %v3828
        %4205 = vmatprep.subr.mxu0 %v3833
        %4206 = vmatpush1.msra.mxu0 %v3832
        %4207 = vmatprep.subr.mxu0 %v3837
        %4208 = vmatpush1.msra.mxu0 %v3836
        %4209 = vmatprep.subr.mxu0 %v3841
        %4210 = vmatpush1.msra.mxu0 %v3840
        %4211 = vmatprep.subr.mxu0 %v3845
        %4212 = vmatpush1.msra.mxu0 %v3844
        %4213 = vmatprep.subr.mxu0 %v3849
        %4214 = vmatpush1.msra.mxu0 %v3848
        %4215 = vmatprep.subr.mxu0 %v3853
        %4216 = vmatpush1.msra.mxu0 %v3852
        %4217 = vmatprep.subr.mxu0 %v3857
        %4218 = vmatpush1.msra.mxu0 %v3856
        %4219 = vmatprep.subr.mxu0 %v3861
        %4220 = vmatpush1.msra.mxu0 %v3860
        %4221 = vmatprep.subr.mxu0 %v3865
        %4222 = vmatpush1.msra.mxu0 %v3864
        %4223 = vmatprep.subr.mxu0 %v3869
        %4224 = vmatpush1.msra.mxu0 %v3868
        %4225 = vmatprep.subr.mxu0 %v3873
        %4226 = vmatpush1.msra.mxu0 %v3872
        %4227 = vmatprep.subr.mxu0 %v3877
        %4228 = vmatpush1.msra.mxu0 %v3876
        %4229 = vmatprep.subr.mxu0 %v3881
        %4230 = vmatpush1.msra.mxu0 %v3880
        %4231 = vmatprep.subr.mxu0 %v3885
        %4232 = vmatpush1.msra.mxu0 %v3884
        %4233 = vmatprep.mubr.f32.mxu0 %v3676
        %4234 = vmatmul.mubr.f32.gmra.mrb[0].mxu0 %v3675
        %v4235 = vpop.f32.mrb[0].mxu0
        %v4236 = vadd.f32 %v4094, %v4235
        %v4237 = vpop.f32.mrb[0].mxu0
        %v4238 = vadd.f32 %v4096, %v4237
        %4239 = vdwg.mxu0
        %4240 = vmatprep.subr.mxu0 %v3763
        %4241 = vmatpush1.msra.mxu0 %v3762
        %4242 = vmatprep.subr.mxu0 %v3767
        %4243 = vmatpush1.msra.mxu0 %v3766
        %4244 = vmatprep.subr.mxu0 %v3771
        %4245 = vmatpush1.msra.mxu0 %v3770
        %4246 = vmatprep.subr.mxu0 %v3775
        %4247 = vmatpush1.msra.mxu0 %v3774
        %4248 = vmatprep.subr.mxu0 %v3779
        %4249 = vmatpush1.msra.mxu0 %v3778
        %4250 = vmatprep.subr.mxu0 %v3783
        %4251 = vmatpush1.msra.mxu0 %v3782
        %4252 = vmatprep.subr.mxu0 %v3787
        %4253 = vmatpush1.msra.mxu0 %v3786
        %4254 = vmatprep.subr.mxu0 %v3791
        %4255 = vmatpush1.msra.mxu0 %v3790
        %4256 = vmatprep.subr.mxu0 %v3795
        %4257 = vmatpush1.msra.mxu0 %v3794
        %4258 = vmatprep.subr.mxu0 %v3799
        %4259 = vmatpush1.msra.mxu0 %v3798
        %4260 = vmatprep.subr.mxu0 %v3803
        %4261 = vmatpush1.msra.mxu0 %v3802
        %4262 = vmatprep.subr.mxu0 %v3807
        %4263 = vmatpush1.msra.mxu0 %v3806
        %4264 = vmatprep.subr.mxu0 %v3811
        %4265 = vmatpush1.msra.mxu0 %v3810
        %4266 = vmatprep.subr.mxu0 %v3815
        %4267 = vmatpush1.msra.mxu0 %v3814
        %4268 = vmatprep.subr.mxu0 %v3819
        %4269 = vmatpush1.msra.mxu0 %v3818
        %4270 = vmatprep.subr.mxu0 %v3823
        %4271 = vmatpush1.msra.mxu0 %v3822
        %4272 = vmatprep.subr.mxu0 %v3827
        %4273 = vmatpush1.msra.mxu0 %v3826
        %4274 = vmatprep.subr.mxu0 %v3831
        %4275 = vmatpush1.msra.mxu0 %v3830
        %4276 = vmatprep.subr.mxu0 %v3835
        %4277 = vmatpush1.msra.mxu0 %v3834
        %4278 = vmatprep.subr.mxu0 %v3839
        %4279 = vmatpush1.msra.mxu0 %v3838
        %4280 = vmatprep.subr.mxu0 %v3843
        %4281 = vmatpush1.msra.mxu0 %v3842
        %4282 = vmatprep.subr.mxu0 %v3847
        %4283 = vmatpush1.msra.mxu0 %v3846
        %4284 = vmatprep.subr.mxu0 %v3851
        %4285 = vmatpush1.msra.mxu0 %v3850
        %4286 = vmatprep.subr.mxu0 %v3855
        %4287 = vmatpush1.msra.mxu0 %v3854
        %4288 = vmatprep.subr.mxu0 %v3859
        %4289 = vmatpush1.msra.mxu0 %v3858
        %4290 = vmatprep.subr.mxu0 %v3863
        %4291 = vmatpush1.msra.mxu0 %v3862
        %4292 = vmatprep.subr.mxu0 %v3867
        %4293 = vmatpush1.msra.mxu0 %v3866
        %4294 = vmatprep.subr.mxu0 %v3871
        %4295 = vmatpush1.msra.mxu0 %v3870
        %4296 = vmatprep.subr.mxu0 %v3875
        %4297 = vmatpush1.msra.mxu0 %v3874
        %4298 = vmatprep.subr.mxu0 %v3879
        %4299 = vmatpush1.msra.mxu0 %v3878
        %4300 = vmatprep.subr.mxu0 %v3883
        %4301 = vmatpush1.msra.mxu0 %v3882
        %4302 = vmatprep.subr.mxu0 %v3887
        %4303 = vmatpush1.msra.mxu0 %v3886
        %4304 = vmatprep.mubr.f32.mxu0 %v3676
        %4305 = vmatmul.mubr.f32.gmra.mrb[0].mxu0 %v3675
        %v4306 = vpop.f32.mrb[0].mxu0
        %v4307 = vadd.f32 %v4165, %v4306
        %v4308 = vpop.f32.mrb[0].mxu0
        %v4309 = vadd.f32 %v4167, %v4308
        %4310 = vdwg.mxu0
        %4311 = vmatprep.subr.mxu0 %v3889
        %4312 = vmatpush1.msra.mxu0 %v3888
        %4313 = vmatprep.subr.mxu0 %v3893
        %4314 = vmatpush1.msra.mxu0 %v3892
        %4315 = vmatprep.subr.mxu0 %v3897
        %4316 = vmatpush1.msra.mxu0 %v3896
        %4317 = vmatprep.subr.mxu0 %v3901
        %4318 = vmatpush1.msra.mxu0 %v3900
        %4319 = vmatprep.subr.mxu0 %v3905
        %4320 = vmatpush1.msra.mxu0 %v3904
        %4321 = vmatprep.subr.mxu0 %v3909
        %4322 = vmatpush1.msra.mxu0 %v3908
        %4323 = vmatprep.subr.mxu0 %v3913
        %4324 = vmatpush1.msra.mxu0 %v3912
        %4325 = vmatprep.subr.mxu0 %v3917
        %4326 = vmatpush1.msra.mxu0 %v3916
        %4327 = vmatprep.subr.mxu0 %v3921
        %4328 = vmatpush1.msra.mxu0 %v3920
        %4329 = vmatprep.subr.mxu0 %v3925
        %4330 = vmatpush1.msra.mxu0 %v3924
        %4331 = vmatprep.subr.mxu0 %v3929
        %4332 = vmatpush1.msra.mxu0 %v3928
        %4333 = vmatprep.subr.mxu0 %v3933
        %4334 = vmatpush1.msra.mxu0 %v3932
        %4335 = vmatprep.subr.mxu0 %v3937
        %4336 = vmatpush1.msra.mxu0 %v3936
        %4337 = vmatprep.subr.mxu0 %v3941
        %4338 = vmatpush1.msra.mxu0 %v3940
        %4339 = vmatprep.subr.mxu0 %v3945
        %4340 = vmatpush1.msra.mxu0 %v3944
        %4341 = vmatprep.subr.mxu0 %v3949
        %4342 = vmatpush1.msra.mxu0 %v3948
        %4343 = vmatprep.subr.mxu0 %v3953
        %4344 = vmatpush1.msra.mxu0 %v3952
        %4345 = vmatprep.subr.mxu0 %v3957
        %4346 = vmatpush1.msra.mxu0 %v3956
        %4347 = vmatprep.subr.mxu0 %v3961
        %4348 = vmatpush1.msra.mxu0 %v3960
        %4349 = vmatprep.subr.mxu0 %v3965
        %4350 = vmatpush1.msra.mxu0 %v3964
        %4351 = vmatprep.subr.mxu0 %v3969
        %4352 = vmatpush1.msra.mxu0 %v3968
        %4353 = vmatprep.subr.mxu0 %v3973
        %4354 = vmatpush1.msra.mxu0 %v3972
        %4355 = vmatprep.subr.mxu0 %v3977
        %4356 = vmatpush1.msra.mxu0 %v3976
        %4357 = vmatprep.subr.mxu0 %v3981
        %4358 = vmatpush1.msra.mxu0 %v3980
        %4359 = vmatprep.subr.mxu0 %v3985
        %4360 = vmatpush1.msra.mxu0 %v3984
        %4361 = vmatprep.subr.mxu0 %v3989
        %4362 = vmatpush1.msra.mxu0 %v3988
        %4363 = vmatprep.subr.mxu0 %v3993
        %4364 = vmatpush1.msra.mxu0 %v3992
        %4365 = vmatprep.subr.mxu0 %v3997
        %4366 = vmatpush1.msra.mxu0 %v3996
        %4367 = vmatprep.subr.mxu0 %v4001
        %4368 = vmatpush1.msra.mxu0 %v4000
        %4369 = vmatprep.subr.mxu0 %v4005
        %4370 = vmatpush1.msra.mxu0 %v4004
        %4371 = vmatprep.subr.mxu0 %v4009
        %4372 = vmatpush1.msra.mxu0 %v4008
        %4373 = vmatprep.subr.mxu0 %v4013
        %4374 = vmatpush1.msra.mxu0 %v4012
        %4375 = vmatprep.mubr.f32.mxu0 %v3676
        %4376 = vmatmul.mubr.f32.gmra.mrb[0].mxu0 %v3675
        %v4377 = vpop.f32.mrb[0].mxu0
        %v4378 = vadd.f32 0.0, %v4377
        %v4379 = vpop.f32.mrb[0].mxu0
        %v4380 = vadd.f32 0.0, %v4379
        %4381 = vdwg.mxu0
        %4382 = vmatprep.subr.mxu0 %v3891
        %4383 = vmatpush1.msra.mxu0 %v3890
        %4384 = vmatprep.subr.mxu0 %v3895
        %4385 = vmatpush1.msra.mxu0 %v3894
        %4386 = vmatprep.subr.mxu0 %v3899
        %4387 = vmatpush1.msra.mxu0 %v3898
        %4388 = vmatprep.subr.mxu0 %v3903
        %4389 = vmatpush1.msra.mxu0 %v3902
        %4390 = vmatprep.subr.mxu0 %v3907
        %4391 = vmatpush1.msra.mxu0 %v3906
        %4392 = vmatprep.subr.mxu0 %v3911
        %4393 = vmatpush1.msra.mxu0 %v3910
        %4394 = vmatprep.subr.mxu0 %v3915
        %4395 = vmatpush1.msra.mxu0 %v3914
        %4396 = vmatprep.subr.mxu0 %v3919
        %4397 = vmatpush1.msra.mxu0 %v3918
        %4398 = vmatprep.subr.mxu0 %v3923
        %4399 = vmatpush1.msra.mxu0 %v3922
        %4400 = vmatprep.subr.mxu0 %v3927
        %4401 = vmatpush1.msra.mxu0 %v3926
        %4402 = vmatprep.subr.mxu0 %v3931
        %4403 = vmatpush1.msra.mxu0 %v3930
        %4404 = vmatprep.subr.mxu0 %v3935
        %4405 = vmatpush1.msra.mxu0 %v3934
        %4406 = vmatprep.subr.mxu0 %v3939
        %4407 = vmatpush1.msra.mxu0 %v3938
        %4408 = vmatprep.subr.mxu0 %v3943
        %4409 = vmatpush1.msra.mxu0 %v3942
        %4410 = vmatprep.subr.mxu0 %v3947
        %4411 = vmatpush1.msra.mxu0 %v3946
        %4412 = vmatprep.subr.mxu0 %v3951
        %4413 = vmatpush1.msra.mxu0 %v3950
        %4414 = vmatprep.subr.mxu0 %v3955
        %4415 = vmatpush1.msra.mxu0 %v3954
        %4416 = vmatprep.subr.mxu0 %v3959
        %4417 = vmatpush1.msra.mxu0 %v3958
        %4418 = vmatprep.subr.mxu0 %v3963
        %4419 = vmatpush1.msra.mxu0 %v3962
        %4420 = vmatprep.subr.mxu0 %v3967
        %4421 = vmatpush1.msra.mxu0 %v3966
        %4422 = vmatprep.subr.mxu0 %v3971
        %4423 = vmatpush1.msra.mxu0 %v3970
        %4424 = vmatprep.subr.mxu0 %v3975
        %4425 = vmatpush1.msra.mxu0 %v3974
        %4426 = vmatprep.subr.mxu0 %v3979
        %4427 = vmatpush1.msra.mxu0 %v3978
        %4428 = vmatprep.subr.mxu0 %v3983
        %4429 = vmatpush1.msra.mxu0 %v3982
        %4430 = vmatprep.subr.mxu0 %v3987
        %4431 = vmatpush1.msra.mxu0 %v3986
        %4432 = vmatprep.subr.mxu0 %v3991
        %4433 = vmatpush1.msra.mxu0 %v3990
        %4434 = vmatprep.subr.mxu0 %v3995
        %4435 = vmatpush1.msra.mxu0 %v3994
        %4436 = vmatprep.subr.mxu0 %v3999
        %4437 = vmatpush1.msra.mxu0 %v3998
        %4438 = vmatprep.subr.mxu0 %v4003
        %4439 = vmatpush1.msra.mxu0 %v4002
        %4440 = vmatprep.subr.mxu0 %v4007
        %4441 = vmatpush1.msra.mxu0 %v4006
        %4442 = vmatprep.subr.mxu0 %v4011
        %4443 = vmatpush1.msra.mxu0 %v4010
        %4444 = vmatprep.subr.mxu0 %v4015
        %4445 = vmatpush1.msra.mxu0 %v4014
        %4446 = vmatprep.mubr.f32.mxu0 %v3676
        %4447 = vmatmul.mubr.f32.gmra.mrb[0].mxu0 %v3675
        %v4448 = vpop.f32.mrb[0].mxu0
        %v4449 = vadd.f32 0.0, %v4448
        %v4450 = vpop.f32.mrb[0].mxu0
        %v4451 = vadd.f32 0.0, %v4450
        %4452 = vdwg.mxu0
        %v4453 = vadd.f32 %v4236, %v4378
        %v4454 = vadd.f32 %v4238, %v4380
        %v4455 = vadd.f32 %v4307, %v4449
        %v4456 = vadd.f32 %v4309, %v4451
        %v4457 = vld [vmem:[%s1989] ss:$2 sm:$0x3]
        %s4458 = scalar_lea.vmem [#allocation12], 1024
        %v4459 = vld [vmem:[%s4458] sm:$0xff]
        %v4460 = vld [vmem:[%s4458 + $0x8] sm:$0xff]
        %v4461 = vld [vmem:[%s4458 + $0x10] sm:$0xff]
        %v4462 = vld [vmem:[%s4458 + $0x18] sm:$0xff]
        %v4463 = vld [vmem:[%s4458 + $0x20] sm:$0xff]
        %v4464 = vld [vmem:[%s4458 + $0x28] sm:$0xff]
        %v4465 = vld [vmem:[%s4458 + $0x30] sm:$0xff]
        %v4466 = vld [vmem:[%s4458 + $0x38] sm:$0xff]
        %v4467 = vld [vmem:[%s4458 + $0x40] sm:$0xff]
        %v4468 = vld [vmem:[%s4458 + $0x48] sm:$0xff]
        %v4469 = vld [vmem:[%s4458 + $0x50] sm:$0xff]
        %v4470 = vld [vmem:[%s4458 + $0x58] sm:$0xff]
        %v4471 = vld [vmem:[%s4458 + $0x60] sm:$0xff]
        %v4472 = vld [vmem:[%s4458 + $0x68] sm:$0xff]
        %v4473 = vld [vmem:[%s4458 + $0x70] sm:$0xff]
        %v4474 = vld [vmem:[%s4458 + $0x78] sm:$0xff]
        %v4475 = vld [vmem:[%s4458 + $0x80] sm:$0xff]
        %v4476 = vld [vmem:[%s4458 + $0x88] sm:$0xff]
        %v4477 = vld [vmem:[%s4458 + $0x90] sm:$0xff]
        %v4478 = vld [vmem:[%s4458 + $0x98] sm:$0xff]
        %v4479 = vld [vmem:[%s4458 + $0xa0] sm:$0xff]
        %v4480 = vld [vmem:[%s4458 + $0xa8] sm:$0xff]
        %v4481 = vld [vmem:[%s4458 + $0xb0] sm:$0xff]
        %v4482 = vld [vmem:[%s4458 + $0xb8] sm:$0xff]
        %v4483 = vld [vmem:[%s4458 + $0xc0] sm:$0xff]
        %v4484 = vld [vmem:[%s4458 + $0xc8] sm:$0xff]
        %v4485 = vld [vmem:[%s4458 + $0xd0] sm:$0xff]
        %v4486 = vld [vmem:[%s4458 + $0xd8] sm:$0xff]
        %v4487 = vld [vmem:[%s4458 + $0xe0] sm:$0xff]
        %v4488 = vld [vmem:[%s4458 + $0xe8] sm:$0xff]
        %v4489 = vld [vmem:[%s4458 + $0xf0] sm:$0xff]
        %v4490 = vld [vmem:[%s4458 + $0xf8] sm:$0xff]
        %v4491 = vld [vmem:[%s4458 + $0x100] sm:$0xff]
        %v4492 = vld [vmem:[%s4458 + $0x108] sm:$0xff]
        %v4493 = vld [vmem:[%s4458 + $0x110] sm:$0xff]
        %v4494 = vld [vmem:[%s4458 + $0x118] sm:$0xff]
        %v4495 = vld [vmem:[%s4458 + $0x120] sm:$0xff]
        %v4496 = vld [vmem:[%s4458 + $0x128] sm:$0xff]
        %v4497 = vld [vmem:[%s4458 + $0x130] sm:$0xff]
        %v4498 = vld [vmem:[%s4458 + $0x138] sm:$0xff]
        %v4499 = vld [vmem:[%s4458 + $0x140] sm:$0xff]
        %v4500 = vld [vmem:[%s4458 + $0x148] sm:$0xff]
        %v4501 = vld [vmem:[%s4458 + $0x150] sm:$0xff]
        %v4502 = vld [vmem:[%s4458 + $0x158] sm:$0xff]
        %v4503 = vld [vmem:[%s4458 + $0x160] sm:$0xff]
        %v4504 = vld [vmem:[%s4458 + $0x168] sm:$0xff]
        %v4505 = vld [vmem:[%s4458 + $0x170] sm:$0xff]
        %v4506 = vld [vmem:[%s4458 + $0x178] sm:$0xff]
        %v4507 = vld [vmem:[%s4458 + $0x180] sm:$0xff]
        %v4508 = vld [vmem:[%s4458 + $0x188] sm:$0xff]
        %v4509 = vld [vmem:[%s4458 + $0x190] sm:$0xff]
        %v4510 = vld [vmem:[%s4458 + $0x198] sm:$0xff]
        %v4511 = vld [vmem:[%s4458 + $0x1a0] sm:$0xff]
        %v4512 = vld [vmem:[%s4458 + $0x1a8] sm:$0xff]
        %v4513 = vld [vmem:[%s4458 + $0x1b0] sm:$0xff]
        %v4514 = vld [vmem:[%s4458 + $0x1b8] sm:$0xff]
        %v4515 = vld [vmem:[%s4458 + $0x1c0] sm:$0xff]
        %v4516 = vld [vmem:[%s4458 + $0x1c8] sm:$0xff]
        %v4517 = vld [vmem:[%s4458 + $0x1d0] sm:$0xff]
        %v4518 = vld [vmem:[%s4458 + $0x1d8] sm:$0xff]
        %v4519 = vld [vmem:[%s4458 + $0x1e0] sm:$0xff]
        %v4520 = vld [vmem:[%s4458 + $0x1e8] sm:$0xff]
        %v4521 = vld [vmem:[%s4458 + $0x1f0] sm:$0xff]
        %v4522 = vld [vmem:[%s4458 + $0x1f8] sm:$0xff]
        %v4523 = vld [vmem:[%s4458 + $0x200] sm:$0xff]
        %v4524 = vld [vmem:[%s4458 + $0x208] sm:$0xff]
        %v4525 = vld [vmem:[%s4458 + $0x210] sm:$0xff]
        %v4526 = vld [vmem:[%s4458 + $0x218] sm:$0xff]
        %v4527 = vld [vmem:[%s4458 + $0x220] sm:$0xff]
        %v4528 = vld [vmem:[%s4458 + $0x228] sm:$0xff]
        %v4529 = vld [vmem:[%s4458 + $0x230] sm:$0xff]
        %v4530 = vld [vmem:[%s4458 + $0x238] sm:$0xff]
        %v4531 = vld [vmem:[%s4458 + $0x240] sm:$0xff]
        %v4532 = vld [vmem:[%s4458 + $0x248] sm:$0xff]
        %v4533 = vld [vmem:[%s4458 + $0x250] sm:$0xff]
        %v4534 = vld [vmem:[%s4458 + $0x258] sm:$0xff]
        %v4535 = vld [vmem:[%s4458 + $0x260] sm:$0xff]
        %v4536 = vld [vmem:[%s4458 + $0x268] sm:$0xff]
        %v4537 = vld [vmem:[%s4458 + $0x270] sm:$0xff]
        %v4538 = vld [vmem:[%s4458 + $0x278] sm:$0xff]
        %v4539 = vld [vmem:[%s4458 + $0x280] sm:$0xff]
        %v4540 = vld [vmem:[%s4458 + $0x288] sm:$0xff]
        %v4541 = vld [vmem:[%s4458 + $0x290] sm:$0xff]
        %v4542 = vld [vmem:[%s4458 + $0x298] sm:$0xff]
        %v4543 = vld [vmem:[%s4458 + $0x2a0] sm:$0xff]
        %v4544 = vld [vmem:[%s4458 + $0x2a8] sm:$0xff]
        %v4545 = vld [vmem:[%s4458 + $0x2b0] sm:$0xff]
        %v4546 = vld [vmem:[%s4458 + $0x2b8] sm:$0xff]
        %v4547 = vld [vmem:[%s4458 + $0x2c0] sm:$0xff]
        %v4548 = vld [vmem:[%s4458 + $0x2c8] sm:$0xff]
        %v4549 = vld [vmem:[%s4458 + $0x2d0] sm:$0xff]
        %v4550 = vld [vmem:[%s4458 + $0x2d8] sm:$0xff]
        %v4551 = vld [vmem:[%s4458 + $0x2e0] sm:$0xff]
        %v4552 = vld [vmem:[%s4458 + $0x2e8] sm:$0xff]
        %v4553 = vld [vmem:[%s4458 + $0x2f0] sm:$0xff]
        %v4554 = vld [vmem:[%s4458 + $0x2f8] sm:$0xff]
        %v4555 = vld [vmem:[%s4458 + $0x300] sm:$0xff]
        %v4556 = vld [vmem:[%s4458 + $0x308] sm:$0xff]
        %v4557 = vld [vmem:[%s4458 + $0x310] sm:$0xff]
        %v4558 = vld [vmem:[%s4458 + $0x318] sm:$0xff]
        %v4559 = vld [vmem:[%s4458 + $0x320] sm:$0xff]
        %v4560 = vld [vmem:[%s4458 + $0x328] sm:$0xff]
        %v4561 = vld [vmem:[%s4458 + $0x330] sm:$0xff]
        %v4562 = vld [vmem:[%s4458 + $0x338] sm:$0xff]
        %v4563 = vld [vmem:[%s4458 + $0x340] sm:$0xff]
        %v4564 = vld [vmem:[%s4458 + $0x348] sm:$0xff]
        %v4565 = vld [vmem:[%s4458 + $0x350] sm:$0xff]
        %v4566 = vld [vmem:[%s4458 + $0x358] sm:$0xff]
        %v4567 = vld [vmem:[%s4458 + $0x360] sm:$0xff]
        %v4568 = vld [vmem:[%s4458 + $0x368] sm:$0xff]
        %v4569 = vld [vmem:[%s4458 + $0x370] sm:$0xff]
        %v4570 = vld [vmem:[%s4458 + $0x378] sm:$0xff]
        %v4571 = vld [vmem:[%s4458 + $0x380] sm:$0xff]
        %v4572 = vld [vmem:[%s4458 + $0x388] sm:$0xff]
        %v4573 = vld [vmem:[%s4458 + $0x390] sm:$0xff]
        %v4574 = vld [vmem:[%s4458 + $0x398] sm:$0xff]
        %v4575 = vld [vmem:[%s4458 + $0x3a0] sm:$0xff]
        %v4576 = vld [vmem:[%s4458 + $0x3a8] sm:$0xff]
        %v4577 = vld [vmem:[%s4458 + $0x3b0] sm:$0xff]
        %v4578 = vld [vmem:[%s4458 + $0x3b8] sm:$0xff]
        %v4579 = vld [vmem:[%s4458 + $0x3c0] sm:$0xff]
        %v4580 = vld [vmem:[%s4458 + $0x3c8] sm:$0xff]
        %v4581 = vld [vmem:[%s4458 + $0x3d0] sm:$0xff]
        %v4582 = vld [vmem:[%s4458 + $0x3d8] sm:$0xff]
        %v4583 = vld [vmem:[%s4458 + $0x3e0] sm:$0xff]
        %v4584 = vld [vmem:[%s4458 + $0x3e8] sm:$0xff]
        %v4585 = vld [vmem:[%s4458 + $0x3f0] sm:$0xff]
        %v4586 = vld [vmem:[%s4458 + $0x3f8] sm:$0xff]
        %v4588 = vlaneseq
        %v4589 = vshrl.u32 %v4588, 7
        %v4590 = vsub.s32 0, %v4589
        %v4591 = vrot.slane %v4457, %v4590
        %v4592 = vlaneseq
        %v4593 = vshrl.u32 %v4592, 7
        %v4594 = vsub.s32 1, %v4593
        %v4595 = vrot.slane %v4457, %v4594
        %v4598 = vpack.c.bf16 %v4591, %v4591
        %v4599 = vpack.c.bf16 %v4595, %v4595
        %v4600 = vunpack.c.l.bf16 %v4598
        %v4601 = vunpack.c.l.bf16 %v4599
        %v4604 = vcombine.low %v4600, %v4601
        %v4606 = vunpack.c.l.s4 1966171168
        %v4607 = vunpack.c.0.s8 %v4606
        %v4608 = vlaneseq
        %v4609 = vshrl.u32 %v4608, 7
        %v4610 = vsub.s32 %v4607, %v4609
        %v4611 = vrot.slane %v4604, %v4610
        %v4613 = vunpack.c.l.s4 1966171168
        %v4614 = vunpack.c.0.s8 %v4613
        %v4615 = vlaneseq
        %v4616 = vshrl.u32 %v4615, 7
        %v4617 = vsub.s32 %v4614, %v4616
        %v4618 = vrot.slane %v4611, %v4617
        %v4620 = vsub.f32 %v4457, %v4618
        %v4621 = vpack.c.bf16 %v4463, %v4459
        %v4622 = vpack.c.bf16 %v4464, %v4460
        %v4623 = vpack.c.bf16 %v4465, %v4461
        %v4624 = vpack.c.bf16 %v4466, %v4462
        %v4625 = vpack.c.bf16 %v4471, %v4467
        %v4626 = vpack.c.bf16 %v4472, %v4468
        %v4627 = vpack.c.bf16 %v4473, %v4469
        %v4628 = vpack.c.bf16 %v4474, %v4470
        %v4629 = vpack.c.bf16 %v4479, %v4475
        %v4630 = vpack.c.bf16 %v4480, %v4476
        %v4631 = vpack.c.bf16 %v4481, %v4477
        %v4632 = vpack.c.bf16 %v4482, %v4478
        %v4633 = vpack.c.bf16 %v4487, %v4483
        %v4634 = vpack.c.bf16 %v4488, %v4484
        %v4635 = vpack.c.bf16 %v4489, %v4485
        %v4636 = vpack.c.bf16 %v4490, %v4486
        %v4637 = vpack.c.bf16 %v4495, %v4491
        %v4638 = vpack.c.bf16 %v4496, %v4492
        %v4639 = vpack.c.bf16 %v4497, %v4493
        %v4640 = vpack.c.bf16 %v4498, %v4494
        %v4641 = vpack.c.bf16 %v4503, %v4499
        %v4642 = vpack.c.bf16 %v4504, %v4500
        %v4643 = vpack.c.bf16 %v4505, %v4501
        %v4644 = vpack.c.bf16 %v4506, %v4502
        %v4645 = vpack.c.bf16 %v4511, %v4507
        %v4646 = vpack.c.bf16 %v4512, %v4508
        %v4647 = vpack.c.bf16 %v4513, %v4509
        %v4648 = vpack.c.bf16 %v4514, %v4510
        %v4649 = vpack.c.bf16 %v4519, %v4515
        %v4650 = vpack.c.bf16 %v4520, %v4516
        %v4651 = vpack.c.bf16 %v4521, %v4517
        %v4652 = vpack.c.bf16 %v4522, %v4518
        %v4653 = vpack.c.bf16 %v4527, %v4523
        %v4654 = vpack.c.bf16 %v4528, %v4524
        %v4655 = vpack.c.bf16 %v4529, %v4525
        %v4656 = vpack.c.bf16 %v4530, %v4526
        %v4657 = vpack.c.bf16 %v4535, %v4531
        %v4658 = vpack.c.bf16 %v4536, %v4532
        %v4659 = vpack.c.bf16 %v4537, %v4533
        %v4660 = vpack.c.bf16 %v4538, %v4534
        %v4661 = vpack.c.bf16 %v4543, %v4539
        %v4662 = vpack.c.bf16 %v4544, %v4540
        %v4663 = vpack.c.bf16 %v4545, %v4541
        %v4664 = vpack.c.bf16 %v4546, %v4542
        %v4665 = vpack.c.bf16 %v4551, %v4547
        %v4666 = vpack.c.bf16 %v4552, %v4548
        %v4667 = vpack.c.bf16 %v4553, %v4549
        %v4668 = vpack.c.bf16 %v4554, %v4550
        %v4669 = vpack.c.bf16 %v4559, %v4555
        %v4670 = vpack.c.bf16 %v4560, %v4556
        %v4671 = vpack.c.bf16 %v4561, %v4557
        %v4672 = vpack.c.bf16 %v4562, %v4558
        %v4673 = vpack.c.bf16 %v4567, %v4563
        %v4674 = vpack.c.bf16 %v4568, %v4564
        %v4675 = vpack.c.bf16 %v4569, %v4565
        %v4676 = vpack.c.bf16 %v4570, %v4566
        %v4677 = vpack.c.bf16 %v4575, %v4571
        %v4678 = vpack.c.bf16 %v4576, %v4572
        %v4679 = vpack.c.bf16 %v4577, %v4573
        %v4680 = vpack.c.bf16 %v4578, %v4574
        %v4681 = vpack.c.bf16 %v4583, %v4579
        %v4682 = vpack.c.bf16 %v4584, %v4580
        %v4683 = vpack.c.bf16 %v4585, %v4581
        %v4684 = vpack.c.bf16 %v4586, %v4582
        %v4685 = vunpack.c.l.bf16 %v4621
        %v4686 = vunpack.c.l.bf16 %v4622
        %v4687 = vunpack.c.l.bf16 %v4623
        %v4688 = vunpack.c.l.bf16 %v4624
        %v4689 = vunpack.c.h.bf16 %v4621
        %v4690 = vunpack.c.h.bf16 %v4622
        %v4691 = vunpack.c.h.bf16 %v4623
        %v4692 = vunpack.c.h.bf16 %v4624
        %v4693 = vunpack.c.l.bf16 %v4625
        %v4694 = vunpack.c.l.bf16 %v4626
        %v4695 = vunpack.c.l.bf16 %v4627
        %v4696 = vunpack.c.l.bf16 %v4628
        %v4697 = vunpack.c.h.bf16 %v4625
        %v4698 = vunpack.c.h.bf16 %v4626
        %v4699 = vunpack.c.h.bf16 %v4627
        %v4700 = vunpack.c.h.bf16 %v4628
        %v4701 = vunpack.c.l.bf16 %v4629
        %v4702 = vunpack.c.l.bf16 %v4630
        %v4703 = vunpack.c.l.bf16 %v4631
        %v4704 = vunpack.c.l.bf16 %v4632
        %v4705 = vunpack.c.h.bf16 %v4629
        %v4706 = vunpack.c.h.bf16 %v4630
        %v4707 = vunpack.c.h.bf16 %v4631
        %v4708 = vunpack.c.h.bf16 %v4632
        %v4709 = vunpack.c.l.bf16 %v4633
        %v4710 = vunpack.c.l.bf16 %v4634
        %v4711 = vunpack.c.l.bf16 %v4635
        %v4712 = vunpack.c.l.bf16 %v4636
        %v4713 = vunpack.c.h.bf16 %v4633
        %v4714 = vunpack.c.h.bf16 %v4634
        %v4715 = vunpack.c.h.bf16 %v4635
        %v4716 = vunpack.c.h.bf16 %v4636
        %v4717 = vunpack.c.l.bf16 %v4637
        %v4718 = vunpack.c.l.bf16 %v4638
        %v4719 = vunpack.c.l.bf16 %v4639
        %v4720 = vunpack.c.l.bf16 %v4640
        %v4721 = vunpack.c.h.bf16 %v4637
        %v4722 = vunpack.c.h.bf16 %v4638
        %v4723 = vunpack.c.h.bf16 %v4639
        %v4724 = vunpack.c.h.bf16 %v4640
        %v4725 = vunpack.c.l.bf16 %v4641
        %v4726 = vunpack.c.l.bf16 %v4642
        %v4727 = vunpack.c.l.bf16 %v4643
        %v4728 = vunpack.c.l.bf16 %v4644
        %v4729 = vunpack.c.h.bf16 %v4641
        %v4730 = vunpack.c.h.bf16 %v4642
        %v4731 = vunpack.c.h.bf16 %v4643
        %v4732 = vunpack.c.h.bf16 %v4644
        %v4733 = vunpack.c.l.bf16 %v4645
        %v4734 = vunpack.c.l.bf16 %v4646
        %v4735 = vunpack.c.l.bf16 %v4647
        %v4736 = vunpack.c.l.bf16 %v4648
        %v4737 = vunpack.c.h.bf16 %v4645
        %v4738 = vunpack.c.h.bf16 %v4646
        %v4739 = vunpack.c.h.bf16 %v4647
        %v4740 = vunpack.c.h.bf16 %v4648
        %v4741 = vunpack.c.l.bf16 %v4649
        %v4742 = vunpack.c.l.bf16 %v4650
        %v4743 = vunpack.c.l.bf16 %v4651
        %v4744 = vunpack.c.l.bf16 %v4652
        %v4745 = vunpack.c.h.bf16 %v4649
        %v4746 = vunpack.c.h.bf16 %v4650
        %v4747 = vunpack.c.h.bf16 %v4651
        %v4748 = vunpack.c.h.bf16 %v4652
        %v4749 = vunpack.c.l.bf16 %v4653
        %v4750 = vunpack.c.l.bf16 %v4654
        %v4751 = vunpack.c.l.bf16 %v4655
        %v4752 = vunpack.c.l.bf16 %v4656
        %v4753 = vunpack.c.h.bf16 %v4653
        %v4754 = vunpack.c.h.bf16 %v4654
        %v4755 = vunpack.c.h.bf16 %v4655
        %v4756 = vunpack.c.h.bf16 %v4656
        %v4757 = vunpack.c.l.bf16 %v4657
        %v4758 = vunpack.c.l.bf16 %v4658
        %v4759 = vunpack.c.l.bf16 %v4659
        %v4760 = vunpack.c.l.bf16 %v4660
        %v4761 = vunpack.c.h.bf16 %v4657
        %v4762 = vunpack.c.h.bf16 %v4658
        %v4763 = vunpack.c.h.bf16 %v4659
        %v4764 = vunpack.c.h.bf16 %v4660
        %v4765 = vunpack.c.l.bf16 %v4661
        %v4766 = vunpack.c.l.bf16 %v4662
        %v4767 = vunpack.c.l.bf16 %v4663
        %v4768 = vunpack.c.l.bf16 %v4664
        %v4769 = vunpack.c.h.bf16 %v4661
        %v4770 = vunpack.c.h.bf16 %v4662
        %v4771 = vunpack.c.h.bf16 %v4663
        %v4772 = vunpack.c.h.bf16 %v4664
        %v4773 = vunpack.c.l.bf16 %v4665
        %v4774 = vunpack.c.l.bf16 %v4666
        %v4775 = vunpack.c.l.bf16 %v4667
        %v4776 = vunpack.c.l.bf16 %v4668
        %v4777 = vunpack.c.h.bf16 %v4665
        %v4778 = vunpack.c.h.bf16 %v4666
        %v4779 = vunpack.c.h.bf16 %v4667
        %v4780 = vunpack.c.h.bf16 %v4668
        %v4781 = vunpack.c.l.bf16 %v4669
        %v4782 = vunpack.c.l.bf16 %v4670
        %v4783 = vunpack.c.l.bf16 %v4671
        %v4784 = vunpack.c.l.bf16 %v4672
        %v4785 = vunpack.c.h.bf16 %v4669
        %v4786 = vunpack.c.h.bf16 %v4670
        %v4787 = vunpack.c.h.bf16 %v4671
        %v4788 = vunpack.c.h.bf16 %v4672
        %v4789 = vunpack.c.l.bf16 %v4673
        %v4790 = vunpack.c.l.bf16 %v4674
        %v4791 = vunpack.c.l.bf16 %v4675
        %v4792 = vunpack.c.l.bf16 %v4676
        %v4793 = vunpack.c.h.bf16 %v4673
        %v4794 = vunpack.c.h.bf16 %v4674
        %v4795 = vunpack.c.h.bf16 %v4675
        %v4796 = vunpack.c.h.bf16 %v4676
        %v4797 = vunpack.c.l.bf16 %v4677
        %v4798 = vunpack.c.l.bf16 %v4678
        %v4799 = vunpack.c.l.bf16 %v4679
        %v4800 = vunpack.c.l.bf16 %v4680
        %v4801 = vunpack.c.h.bf16 %v4677
        %v4802 = vunpack.c.h.bf16 %v4678
        %v4803 = vunpack.c.h.bf16 %v4679
        %v4804 = vunpack.c.h.bf16 %v4680
        %v4805 = vunpack.c.l.bf16 %v4681
        %v4806 = vunpack.c.l.bf16 %v4682
        %v4807 = vunpack.c.l.bf16 %v4683
        %v4808 = vunpack.c.l.bf16 %v4684
        %v4809 = vunpack.c.h.bf16 %v4681
        %v4810 = vunpack.c.h.bf16 %v4682
        %v4811 = vunpack.c.h.bf16 %v4683
        %v4812 = vunpack.c.h.bf16 %v4684
        %v4813 = vsub.f32 %v4459, %v4685
        %v4814 = vsub.f32 %v4460, %v4686
        %v4815 = vsub.f32 %v4461, %v4687
        %v4816 = vsub.f32 %v4462, %v4688
        %v4817 = vsub.f32 %v4463, %v4689
        %v4818 = vsub.f32 %v4464, %v4690
        %v4819 = vsub.f32 %v4465, %v4691
        %v4820 = vsub.f32 %v4466, %v4692
        %v4821 = vsub.f32 %v4467, %v4693
        %v4822 = vsub.f32 %v4468, %v4694
        %v4823 = vsub.f32 %v4469, %v4695
        %v4824 = vsub.f32 %v4470, %v4696
        %v4825 = vsub.f32 %v4471, %v4697
        %v4826 = vsub.f32 %v4472, %v4698
        %v4827 = vsub.f32 %v4473, %v4699
        %v4828 = vsub.f32 %v4474, %v4700
        %v4829 = vsub.f32 %v4475, %v4701
        %v4830 = vsub.f32 %v4476, %v4702
        %v4831 = vsub.f32 %v4477, %v4703
        %v4832 = vsub.f32 %v4478, %v4704
        %v4833 = vsub.f32 %v4479, %v4705
        %v4834 = vsub.f32 %v4480, %v4706
        %v4835 = vsub.f32 %v4481, %v4707
        %v4836 = vsub.f32 %v4482, %v4708
        %v4837 = vsub.f32 %v4483, %v4709
        %v4838 = vsub.f32 %v4484, %v4710
        %v4839 = vsub.f32 %v4485, %v4711
        %v4840 = vsub.f32 %v4486, %v4712
        %v4841 = vsub.f32 %v4487, %v4713
        %v4842 = vsub.f32 %v4488, %v4714
        %v4843 = vsub.f32 %v4489, %v4715
        %v4844 = vsub.f32 %v4490, %v4716
        %v4845 = vsub.f32 %v4491, %v4717
        %v4846 = vsub.f32 %v4492, %v4718
        %v4847 = vsub.f32 %v4493, %v4719
        %v4848 = vsub.f32 %v4494, %v4720
        %v4849 = vsub.f32 %v4495, %v4721
        %v4850 = vsub.f32 %v4496, %v4722
        %v4851 = vsub.f32 %v4497, %v4723
        %v4852 = vsub.f32 %v4498, %v4724
        %v4853 = vsub.f32 %v4499, %v4725
        %v4854 = vsub.f32 %v4500, %v4726
        %v4855 = vsub.f32 %v4501, %v4727
        %v4856 = vsub.f32 %v4502, %v4728
        %v4857 = vsub.f32 %v4503, %v4729
        %v4858 = vsub.f32 %v4504, %v4730
        %v4859 = vsub.f32 %v4505, %v4731
        %v4860 = vsub.f32 %v4506, %v4732
        %v4861 = vsub.f32 %v4507, %v4733
        %v4862 = vsub.f32 %v4508, %v4734
        %v4863 = vsub.f32 %v4509, %v4735
        %v4864 = vsub.f32 %v4510, %v4736
        %v4865 = vsub.f32 %v4511, %v4737
        %v4866 = vsub.f32 %v4512, %v4738
        %v4867 = vsub.f32 %v4513, %v4739
        %v4868 = vsub.f32 %v4514, %v4740
        %v4869 = vsub.f32 %v4515, %v4741
        %v4870 = vsub.f32 %v4516, %v4742
        %v4871 = vsub.f32 %v4517, %v4743
        %v4872 = vsub.f32 %v4518, %v4744
        %v4873 = vsub.f32 %v4519, %v4745
        %v4874 = vsub.f32 %v4520, %v4746
        %v4875 = vsub.f32 %v4521, %v4747
        %v4876 = vsub.f32 %v4522, %v4748
        %v4877 = vsub.f32 %v4523, %v4749
        %v4878 = vsub.f32 %v4524, %v4750
        %v4879 = vsub.f32 %v4525, %v4751
        %v4880 = vsub.f32 %v4526, %v4752
        %v4881 = vsub.f32 %v4527, %v4753
        %v4882 = vsub.f32 %v4528, %v4754
        %v4883 = vsub.f32 %v4529, %v4755
        %v4884 = vsub.f32 %v4530, %v4756
        %v4885 = vsub.f32 %v4531, %v4757
        %v4886 = vsub.f32 %v4532, %v4758
        %v4887 = vsub.f32 %v4533, %v4759
        %v4888 = vsub.f32 %v4534, %v4760
        %v4889 = vsub.f32 %v4535, %v4761
        %v4890 = vsub.f32 %v4536, %v4762
        %v4891 = vsub.f32 %v4537, %v4763
        %v4892 = vsub.f32 %v4538, %v4764
        %v4893 = vsub.f32 %v4539, %v4765
        %v4894 = vsub.f32 %v4540, %v4766
        %v4895 = vsub.f32 %v4541, %v4767
        %v4896 = vsub.f32 %v4542, %v4768
        %v4897 = vsub.f32 %v4543, %v4769
        %v4898 = vsub.f32 %v4544, %v4770
        %v4899 = vsub.f32 %v4545, %v4771
        %v4900 = vsub.f32 %v4546, %v4772
        %v4901 = vsub.f32 %v4547, %v4773
        %v4902 = vsub.f32 %v4548, %v4774
        %v4903 = vsub.f32 %v4549, %v4775
        %v4904 = vsub.f32 %v4550, %v4776
        %v4905 = vsub.f32 %v4551, %v4777
        %v4906 = vsub.f32 %v4552, %v4778
        %v4907 = vsub.f32 %v4553, %v4779
        %v4908 = vsub.f32 %v4554, %v4780
        %v4909 = vsub.f32 %v4555, %v4781
        %v4910 = vsub.f32 %v4556, %v4782
        %v4911 = vsub.f32 %v4557, %v4783
        %v4912 = vsub.f32 %v4558, %v4784
        %v4913 = vsub.f32 %v4559, %v4785
        %v4914 = vsub.f32 %v4560, %v4786
        %v4915 = vsub.f32 %v4561, %v4787
        %v4916 = vsub.f32 %v4562, %v4788
        %v4917 = vsub.f32 %v4563, %v4789
        %v4918 = vsub.f32 %v4564, %v4790
        %v4919 = vsub.f32 %v4565, %v4791
        %v4920 = vsub.f32 %v4566, %v4792
        %v4921 = vsub.f32 %v4567, %v4793
        %v4922 = vsub.f32 %v4568, %v4794
        %v4923 = vsub.f32 %v4569, %v4795
        %v4924 = vsub.f32 %v4570, %v4796
        %v4925 = vsub.f32 %v4571, %v4797
        %v4926 = vsub.f32 %v4572, %v4798
        %v4927 = vsub.f32 %v4573, %v4799
        %v4928 = vsub.f32 %v4574, %v4800
        %v4929 = vsub.f32 %v4575, %v4801
        %v4930 = vsub.f32 %v4576, %v4802
        %v4931 = vsub.f32 %v4577, %v4803
        %v4932 = vsub.f32 %v4578, %v4804
        %v4933 = vsub.f32 %v4579, %v4805
        %v4934 = vsub.f32 %v4580, %v4806
        %v4935 = vsub.f32 %v4581, %v4807
        %v4936 = vsub.f32 %v4582, %v4808
        %v4937 = vsub.f32 %v4583, %v4809
        %v4938 = vsub.f32 %v4584, %v4810
        %v4939 = vsub.f32 %v4585, %v4811
        %v4940 = vsub.f32 %v4586, %v4812
        %v4942 = vlaneseq
        %v4943 = vshrl.u32 %v4942, 7
        %v4944 = vsub.s32 0, %v4943
        %v4945 = vrot.slane %v4620, %v4944
        %v4946 = vlaneseq
        %v4947 = vshrl.u32 %v4946, 7
        %v4948 = vsub.s32 1, %v4947
        %v4949 = vrot.slane %v4620, %v4948
        %4952 = vmatprep.subr.mxu0 %v4686
        %4953 = vmatpush1.msra.mxu0 %v4685
        %4954 = vmatprep.subr.mxu0 %v4690
        %4955 = vmatpush1.msra.mxu0 %v4689
        %4956 = vmatprep.subr.mxu0 %v4694
        %4957 = vmatpush1.msra.mxu0 %v4693
        %4958 = vmatprep.subr.mxu0 %v4698
        %4959 = vmatpush1.msra.mxu0 %v4697
        %4960 = vmatprep.subr.mxu0 %v4702
        %4961 = vmatpush1.msra.mxu0 %v4701
        %4962 = vmatprep.subr.mxu0 %v4706
        %4963 = vmatpush1.msra.mxu0 %v4705
        %4964 = vmatprep.subr.mxu0 %v4710
        %4965 = vmatpush1.msra.mxu0 %v4709
        %4966 = vmatprep.subr.mxu0 %v4714
        %4967 = vmatpush1.msra.mxu0 %v4713
        %4968 = vmatprep.subr.mxu0 %v4718
        %4969 = vmatpush1.msra.mxu0 %v4717
        %4970 = vmatprep.subr.mxu0 %v4722
        %4971 = vmatpush1.msra.mxu0 %v4721
        %4972 = vmatprep.subr.mxu0 %v4726
        %4973 = vmatpush1.msra.mxu0 %v4725
        %4974 = vmatprep.subr.mxu0 %v4730
        %4975 = vmatpush1.msra.mxu0 %v4729
        %4976 = vmatprep.subr.mxu0 %v4734
        %4977 = vmatpush1.msra.mxu0 %v4733
        %4978 = vmatprep.subr.mxu0 %v4738
        %4979 = vmatpush1.msra.mxu0 %v4737
        %4980 = vmatprep.subr.mxu0 %v4742
        %4981 = vmatpush1.msra.mxu0 %v4741
        %4982 = vmatprep.subr.mxu0 %v4746
        %4983 = vmatpush1.msra.mxu0 %v4745
        %4984 = vmatprep.subr.mxu0 %v4750
        %4985 = vmatpush1.msra.mxu0 %v4749
        %4986 = vmatprep.subr.mxu0 %v4754
        %4987 = vmatpush1.msra.mxu0 %v4753
        %4988 = vmatprep.subr.mxu0 %v4758
        %4989 = vmatpush1.msra.mxu0 %v4757
        %4990 = vmatprep.subr.mxu0 %v4762
        %4991 = vmatpush1.msra.mxu0 %v4761
        %4992 = vmatprep.subr.mxu0 %v4766
        %4993 = vmatpush1.msra.mxu0 %v4765
        %4994 = vmatprep.subr.mxu0 %v4770
        %4995 = vmatpush1.msra.mxu0 %v4769
        %4996 = vmatprep.subr.mxu0 %v4774
        %4997 = vmatpush1.msra.mxu0 %v4773
        %4998 = vmatprep.subr.mxu0 %v4778
        %4999 = vmatpush1.msra.mxu0 %v4777
        %5000 = vmatprep.subr.mxu0 %v4782
        %5001 = vmatpush1.msra.mxu0 %v4781
        %5002 = vmatprep.subr.mxu0 %v4786
        %5003 = vmatpush1.msra.mxu0 %v4785
        %5004 = vmatprep.subr.mxu0 %v4790
        %5005 = vmatpush1.msra.mxu0 %v4789
        %5006 = vmatprep.subr.mxu0 %v4794
        %5007 = vmatpush1.msra.mxu0 %v4793
        %5008 = vmatprep.subr.mxu0 %v4798
        %5009 = vmatpush1.msra.mxu0 %v4797
        %5010 = vmatprep.subr.mxu0 %v4802
        %5011 = vmatpush1.msra.mxu0 %v4801
        %5012 = vmatprep.subr.mxu0 %v4806
        %5013 = vmatpush1.msra.mxu0 %v4805
        %5014 = vmatprep.subr.mxu0 %v4810
        %5015 = vmatpush1.msra.mxu0 %v4809
        %5016 = vmatprep.mubr.f32.mxu0 %v4949
        %5017 = vmatmul.mubr.f32.gmra.mrb[0].mxu0 %v4945
        %v5018 = vpop.f32.mrb[0].mxu0
        %v5019 = vadd.f32 0.0, %v5018
        %v5020 = vpop.f32.mrb[0].mxu0
        %v5021 = vadd.f32 0.0, %v5020
        %5022 = vdwg.mxu0
        %5023 = vmatprep.subr.mxu0 %v4688
        %5024 = vmatpush1.msra.mxu0 %v4687
        %5025 = vmatprep.subr.mxu0 %v4692
        %5026 = vmatpush1.msra.mxu0 %v4691
        %5027 = vmatprep.subr.mxu0 %v4696
        %5028 = vmatpush1.msra.mxu0 %v4695
        %5029 = vmatprep.subr.mxu0 %v4700
        %5030 = vmatpush1.msra.mxu0 %v4699
        %5031 = vmatprep.subr.mxu0 %v4704
        %5032 = vmatpush1.msra.mxu0 %v4703
        %5033 = vmatprep.subr.mxu0 %v4708
        %5034 = vmatpush1.msra.mxu0 %v4707
        %5035 = vmatprep.subr.mxu0 %v4712
        %5036 = vmatpush1.msra.mxu0 %v4711
        %5037 = vmatprep.subr.mxu0 %v4716
        %5038 = vmatpush1.msra.mxu0 %v4715
        %5039 = vmatprep.subr.mxu0 %v4720
        %5040 = vmatpush1.msra.mxu0 %v4719
        %5041 = vmatprep.subr.mxu0 %v4724
        %5042 = vmatpush1.msra.mxu0 %v4723
        %5043 = vmatprep.subr.mxu0 %v4728
        %5044 = vmatpush1.msra.mxu0 %v4727
        %5045 = vmatprep.subr.mxu0 %v4732
        %5046 = vmatpush1.msra.mxu0 %v4731
        %5047 = vmatprep.subr.mxu0 %v4736
        %5048 = vmatpush1.msra.mxu0 %v4735
        %5049 = vmatprep.subr.mxu0 %v4740
        %5050 = vmatpush1.msra.mxu0 %v4739
        %5051 = vmatprep.subr.mxu0 %v4744
        %5052 = vmatpush1.msra.mxu0 %v4743
        %5053 = vmatprep.subr.mxu0 %v4748
        %5054 = vmatpush1.msra.mxu0 %v4747
        %5055 = vmatprep.subr.mxu0 %v4752
        %5056 = vmatpush1.msra.mxu0 %v4751
        %5057 = vmatprep.subr.mxu0 %v4756
        %5058 = vmatpush1.msra.mxu0 %v4755
        %5059 = vmatprep.subr.mxu0 %v4760
        %5060 = vmatpush1.msra.mxu0 %v4759
        %5061 = vmatprep.subr.mxu0 %v4764
        %5062 = vmatpush1.msra.mxu0 %v4763
        %5063 = vmatprep.subr.mxu0 %v4768
        %5064 = vmatpush1.msra.mxu0 %v4767
        %5065 = vmatprep.subr.mxu0 %v4772
        %5066 = vmatpush1.msra.mxu0 %v4771
        %5067 = vmatprep.subr.mxu0 %v4776
        %5068 = vmatpush1.msra.mxu0 %v4775
        %5069 = vmatprep.subr.mxu0 %v4780
        %5070 = vmatpush1.msra.mxu0 %v4779
        %5071 = vmatprep.subr.mxu0 %v4784
        %5072 = vmatpush1.msra.mxu0 %v4783
        %5073 = vmatprep.subr.mxu0 %v4788
        %5074 = vmatpush1.msra.mxu0 %v4787
        %5075 = vmatprep.subr.mxu0 %v4792
        %5076 = vmatpush1.msra.mxu0 %v4791
        %5077 = vmatprep.subr.mxu0 %v4796
        %5078 = vmatpush1.msra.mxu0 %v4795
        %5079 = vmatprep.subr.mxu0 %v4800
        %5080 = vmatpush1.msra.mxu0 %v4799
        %5081 = vmatprep.subr.mxu0 %v4804
        %5082 = vmatpush1.msra.mxu0 %v4803
        %5083 = vmatprep.subr.mxu0 %v4808
        %5084 = vmatpush1.msra.mxu0 %v4807
        %5085 = vmatprep.subr.mxu0 %v4812
        %5086 = vmatpush1.msra.mxu0 %v4811
        %5087 = vmatprep.mubr.f32.mxu0 %v4949
        %5088 = vmatmul.mubr.f32.gmra.mrb[0].mxu0 %v4945
        %v5089 = vpop.f32.mrb[0].mxu0
        %v5090 = vadd.f32 0.0, %v5089
        %v5091 = vpop.f32.mrb[0].mxu0
        %v5092 = vadd.f32 0.0, %v5091
        %5093 = vdwg.mxu0
        %5094 = vmatprep.subr.mxu0 %v4686
        %5095 = vmatpush1.msra.mxu0 %v4685
        %5096 = vmatprep.subr.mxu0 %v4690
        %5097 = vmatpush1.msra.mxu0 %v4689
        %5098 = vmatprep.subr.mxu0 %v4694
        %5099 = vmatpush1.msra.mxu0 %v4693
        %5100 = vmatprep.subr.mxu0 %v4698
        %5101 = vmatpush1.msra.mxu0 %v4697
        %5102 = vmatprep.subr.mxu0 %v4702
        %5103 = vmatpush1.msra.mxu0 %v4701
        %5104 = vmatprep.subr.mxu0 %v4706
        %5105 = vmatpush1.msra.mxu0 %v4705
        %5106 = vmatprep.subr.mxu0 %v4710
        %5107 = vmatpush1.msra.mxu0 %v4709
        %5108 = vmatprep.subr.mxu0 %v4714
        %5109 = vmatpush1.msra.mxu0 %v4713
        %5110 = vmatprep.subr.mxu0 %v4718
        %5111 = vmatpush1.msra.mxu0 %v4717
        %5112 = vmatprep.subr.mxu0 %v4722
        %5113 = vmatpush1.msra.mxu0 %v4721
        %5114 = vmatprep.subr.mxu0 %v4726
        %5115 = vmatpush1.msra.mxu0 %v4725
        %5116 = vmatprep.subr.mxu0 %v4730
        %5117 = vmatpush1.msra.mxu0 %v4729
        %5118 = vmatprep.subr.mxu0 %v4734
        %5119 = vmatpush1.msra.mxu0 %v4733
        %5120 = vmatprep.subr.mxu0 %v4738
        %5121 = vmatpush1.msra.mxu0 %v4737
        %5122 = vmatprep.subr.mxu0 %v4742
        %5123 = vmatpush1.msra.mxu0 %v4741
        %5124 = vmatprep.subr.mxu0 %v4746
        %5125 = vmatpush1.msra.mxu0 %v4745
        %5126 = vmatprep.subr.mxu0 %v4750
        %5127 = vmatpush1.msra.mxu0 %v4749
        %5128 = vmatprep.subr.mxu0 %v4754
        %5129 = vmatpush1.msra.mxu0 %v4753
        %5130 = vmatprep.subr.mxu0 %v4758
        %5131 = vmatpush1.msra.mxu0 %v4757
        %5132 = vmatprep.subr.mxu0 %v4762
        %5133 = vmatpush1.msra.mxu0 %v4761
        %5134 = vmatprep.subr.mxu0 %v4766
        %5135 = vmatpush1.msra.mxu0 %v4765
        %5136 = vmatprep.subr.mxu0 %v4770
        %5137 = vmatpush1.msra.mxu0 %v4769
        %5138 = vmatprep.subr.mxu0 %v4774
        %5139 = vmatpush1.msra.mxu0 %v4773
        %5140 = vmatprep.subr.mxu0 %v4778
        %5141 = vmatpush1.msra.mxu0 %v4777
        %5142 = vmatprep.subr.mxu0 %v4782
        %5143 = vmatpush1.msra.mxu0 %v4781
        %5144 = vmatprep.subr.mxu0 %v4786
        %5145 = vmatpush1.msra.mxu0 %v4785
        %5146 = vmatprep.subr.mxu0 %v4790
        %5147 = vmatpush1.msra.mxu0 %v4789
        %5148 = vmatprep.subr.mxu0 %v4794
        %5149 = vmatpush1.msra.mxu0 %v4793
        %5150 = vmatprep.subr.mxu0 %v4798
        %5151 = vmatpush1.msra.mxu0 %v4797
        %5152 = vmatprep.subr.mxu0 %v4802
        %5153 = vmatpush1.msra.mxu0 %v4801
        %5154 = vmatprep.subr.mxu0 %v4806
        %5155 = vmatpush1.msra.mxu0 %v4805
        %5156 = vmatprep.subr.mxu0 %v4810
        %5157 = vmatpush1.msra.mxu0 %v4809
        %5158 = vmatprep.mubr.f32.mxu0 %v4601
        %5159 = vmatmul.mubr.f32.gmra.mrb[0].mxu0 %v4600
        %v5160 = vpop.f32.mrb[0].mxu0
        %v5161 = vadd.f32 %v5019, %v5160
        %v5162 = vpop.f32.mrb[0].mxu0
        %v5163 = vadd.f32 %v5021, %v5162
        %5164 = vdwg.mxu0
        %5165 = vmatprep.subr.mxu0 %v4688
        %5166 = vmatpush1.msra.mxu0 %v4687
        %5167 = vmatprep.subr.mxu0 %v4692
        %5168 = vmatpush1.msra.mxu0 %v4691
        %5169 = vmatprep.subr.mxu0 %v4696
        %5170 = vmatpush1.msra.mxu0 %v4695
        %5171 = vmatprep.subr.mxu0 %v4700
        %5172 = vmatpush1.msra.mxu0 %v4699
        %5173 = vmatprep.subr.mxu0 %v4704
        %5174 = vmatpush1.msra.mxu0 %v4703
        %5175 = vmatprep.subr.mxu0 %v4708
        %5176 = vmatpush1.msra.mxu0 %v4707
        %5177 = vmatprep.subr.mxu0 %v4712
        %5178 = vmatpush1.msra.mxu0 %v4711
        %5179 = vmatprep.subr.mxu0 %v4716
        %5180 = vmatpush1.msra.mxu0 %v4715
        %5181 = vmatprep.subr.mxu0 %v4720
        %5182 = vmatpush1.msra.mxu0 %v4719
        %5183 = vmatprep.subr.mxu0 %v4724
        %5184 = vmatpush1.msra.mxu0 %v4723
        %5185 = vmatprep.subr.mxu0 %v4728
        %5186 = vmatpush1.msra.mxu0 %v4727
        %5187 = vmatprep.subr.mxu0 %v4732
        %5188 = vmatpush1.msra.mxu0 %v4731
        %5189 = vmatprep.subr.mxu0 %v4736
        %5190 = vmatpush1.msra.mxu0 %v4735
        %5191 = vmatprep.subr.mxu0 %v4740
        %5192 = vmatpush1.msra.mxu0 %v4739
        %5193 = vmatprep.subr.mxu0 %v4744
        %5194 = vmatpush1.msra.mxu0 %v4743
        %5195 = vmatprep.subr.mxu0 %v4748
        %5196 = vmatpush1.msra.mxu0 %v4747
        %5197 = vmatprep.subr.mxu0 %v4752
        %5198 = vmatpush1.msra.mxu0 %v4751
        %5199 = vmatprep.subr.mxu0 %v4756
        %5200 = vmatpush1.msra.mxu0 %v4755
        %5201 = vmatprep.subr.mxu0 %v4760
        %5202 = vmatpush1.msra.mxu0 %v4759
        %5203 = vmatprep.subr.mxu0 %v4764
        %5204 = vmatpush1.msra.mxu0 %v4763
        %5205 = vmatprep.subr.mxu0 %v4768
        %5206 = vmatpush1.msra.mxu0 %v4767
        %5207 = vmatprep.subr.mxu0 %v4772
        %5208 = vmatpush1.msra.mxu0 %v4771
        %5209 = vmatprep.subr.mxu0 %v4776
        %5210 = vmatpush1.msra.mxu0 %v4775
        %5211 = vmatprep.subr.mxu0 %v4780
        %5212 = vmatpush1.msra.mxu0 %v4779
        %5213 = vmatprep.subr.mxu0 %v4784
        %5214 = vmatpush1.msra.mxu0 %v4783
        %5215 = vmatprep.subr.mxu0 %v4788
        %5216 = vmatpush1.msra.mxu0 %v4787
        %5217 = vmatprep.subr.mxu0 %v4792
        %5218 = vmatpush1.msra.mxu0 %v4791
        %5219 = vmatprep.subr.mxu0 %v4796
        %5220 = vmatpush1.msra.mxu0 %v4795
        %5221 = vmatprep.subr.mxu0 %v4800
        %5222 = vmatpush1.msra.mxu0 %v4799
        %5223 = vmatprep.subr.mxu0 %v4804
        %5224 = vmatpush1.msra.mxu0 %v4803
        %5225 = vmatprep.subr.mxu0 %v4808
        %5226 = vmatpush1.msra.mxu0 %v4807
        %5227 = vmatprep.subr.mxu0 %v4812
        %5228 = vmatpush1.msra.mxu0 %v4811
        %5229 = vmatprep.mubr.f32.mxu0 %v4601
        %5230 = vmatmul.mubr.f32.gmra.mrb[0].mxu0 %v4600
        %v5231 = vpop.f32.mrb[0].mxu0
        %v5232 = vadd.f32 %v5090, %v5231
        %v5233 = vpop.f32.mrb[0].mxu0
        %v5234 = vadd.f32 %v5092, %v5233
        %5235 = vdwg.mxu0
        %5236 = vmatprep.subr.mxu0 %v4814
        %5237 = vmatpush1.msra.mxu0 %v4813
        %5238 = vmatprep.subr.mxu0 %v4818
        %5239 = vmatpush1.msra.mxu0 %v4817
        %5240 = vmatprep.subr.mxu0 %v4822
        %5241 = vmatpush1.msra.mxu0 %v4821
        %5242 = vmatprep.subr.mxu0 %v4826
        %5243 = vmatpush1.msra.mxu0 %v4825
        %5244 = vmatprep.subr.mxu0 %v4830
        %5245 = vmatpush1.msra.mxu0 %v4829
        %5246 = vmatprep.subr.mxu0 %v4834
        %5247 = vmatpush1.msra.mxu0 %v4833
        %5248 = vmatprep.subr.mxu0 %v4838
        %5249 = vmatpush1.msra.mxu0 %v4837
        %5250 = vmatprep.subr.mxu0 %v4842
        %5251 = vmatpush1.msra.mxu0 %v4841
        %5252 = vmatprep.subr.mxu0 %v4846
        %5253 = vmatpush1.msra.mxu0 %v4845
        %5254 = vmatprep.subr.mxu0 %v4850
        %5255 = vmatpush1.msra.mxu0 %v4849
        %5256 = vmatprep.subr.mxu0 %v4854
        %5257 = vmatpush1.msra.mxu0 %v4853
        %5258 = vmatprep.subr.mxu0 %v4858
        %5259 = vmatpush1.msra.mxu0 %v4857
        %5260 = vmatprep.subr.mxu0 %v4862
        %5261 = vmatpush1.msra.mxu0 %v4861
        %5262 = vmatprep.subr.mxu0 %v4866
        %5263 = vmatpush1.msra.mxu0 %v4865
        %5264 = vmatprep.subr.mxu0 %v4870
        %5265 = vmatpush1.msra.mxu0 %v4869
        %5266 = vmatprep.subr.mxu0 %v4874
        %5267 = vmatpush1.msra.mxu0 %v4873
        %5268 = vmatprep.subr.mxu0 %v4878
        %5269 = vmatpush1.msra.mxu0 %v4877
        %5270 = vmatprep.subr.mxu0 %v4882
        %5271 = vmatpush1.msra.mxu0 %v4881
        %5272 = vmatprep.subr.mxu0 %v4886
        %5273 = vmatpush1.msra.mxu0 %v4885
        %5274 = vmatprep.subr.mxu0 %v4890
        %5275 = vmatpush1.msra.mxu0 %v4889
        %5276 = vmatprep.subr.mxu0 %v4894
        %5277 = vmatpush1.msra.mxu0 %v4893
        %5278 = vmatprep.subr.mxu0 %v4898
        %5279 = vmatpush1.msra.mxu0 %v4897
        %5280 = vmatprep.subr.mxu0 %v4902
        %5281 = vmatpush1.msra.mxu0 %v4901
        %5282 = vmatprep.subr.mxu0 %v4906
        %5283 = vmatpush1.msra.mxu0 %v4905
        %5284 = vmatprep.subr.mxu0 %v4910
        %5285 = vmatpush1.msra.mxu0 %v4909
        %5286 = vmatprep.subr.mxu0 %v4914
        %5287 = vmatpush1.msra.mxu0 %v4913
        %5288 = vmatprep.subr.mxu0 %v4918
        %5289 = vmatpush1.msra.mxu0 %v4917
        %5290 = vmatprep.subr.mxu0 %v4922
        %5291 = vmatpush1.msra.mxu0 %v4921
        %5292 = vmatprep.subr.mxu0 %v4926
        %5293 = vmatpush1.msra.mxu0 %v4925
        %5294 = vmatprep.subr.mxu0 %v4930
        %5295 = vmatpush1.msra.mxu0 %v4929
        %5296 = vmatprep.subr.mxu0 %v4934
        %5297 = vmatpush1.msra.mxu0 %v4933
        %5298 = vmatprep.subr.mxu0 %v4938
        %5299 = vmatpush1.msra.mxu0 %v4937
        %5300 = vmatprep.mubr.f32.mxu0 %v4601
        %5301 = vmatmul.mubr.f32.gmra.mrb[0].mxu0 %v4600
        %v5302 = vpop.f32.mrb[0].mxu0
        %v5303 = vadd.f32 0.0, %v5302
        %v5304 = vpop.f32.mrb[0].mxu0
        %v5305 = vadd.f32 0.0, %v5304
        %5306 = vdwg.mxu0
        %5307 = vmatprep.subr.mxu0 %v4816
        %5308 = vmatpush1.msra.mxu0 %v4815
        %5309 = vmatprep.subr.mxu0 %v4820
        %5310 = vmatpush1.msra.mxu0 %v4819
        %5311 = vmatprep.subr.mxu0 %v4824
        %5312 = vmatpush1.msra.mxu0 %v4823
        %5313 = vmatprep.subr.mxu0 %v4828
        %5314 = vmatpush1.msra.mxu0 %v4827
        %5315 = vmatprep.subr.mxu0 %v4832
        %5316 = vmatpush1.msra.mxu0 %v4831
        %5317 = vmatprep.subr.mxu0 %v4836
        %5318 = vmatpush1.msra.mxu0 %v4835
        %5319 = vmatprep.subr.mxu0 %v4840
        %5320 = vmatpush1.msra.mxu0 %v4839
        %5321 = vmatprep.subr.mxu0 %v4844
        %5322 = vmatpush1.msra.mxu0 %v4843
        %5323 = vmatprep.subr.mxu0 %v4848
        %5324 = vmatpush1.msra.mxu0 %v4847
        %5325 = vmatprep.subr.mxu0 %v4852
        %5326 = vmatpush1.msra.mxu0 %v4851
        %5327 = vmatprep.subr.mxu0 %v4856
        %5328 = vmatpush1.msra.mxu0 %v4855
        %5329 = vmatprep.subr.mxu0 %v4860
        %5330 = vmatpush1.msra.mxu0 %v4859
        %5331 = vmatprep.subr.mxu0 %v4864
        %5332 = vmatpush1.msra.mxu0 %v4863
        %5333 = vmatprep.subr.mxu0 %v4868
        %5334 = vmatpush1.msra.mxu0 %v4867
        %5335 = vmatprep.subr.mxu0 %v4872
        %5336 = vmatpush1.msra.mxu0 %v4871
        %5337 = vmatprep.subr.mxu0 %v4876
        %5338 = vmatpush1.msra.mxu0 %v4875
        %5339 = vmatprep.subr.mxu0 %v4880
        %5340 = vmatpush1.msra.mxu0 %v4879
        %5341 = vmatprep.subr.mxu0 %v4884
        %5342 = vmatpush1.msra.mxu0 %v4883
        %5343 = vmatprep.subr.mxu0 %v4888
        %5344 = vmatpush1.msra.mxu0 %v4887
        %5345 = vmatprep.subr.mxu0 %v4892
        %5346 = vmatpush1.msra.mxu0 %v4891
        %5347 = vmatprep.subr.mxu0 %v4896
        %5348 = vmatpush1.msra.mxu0 %v4895
        %5349 = vmatprep.subr.mxu0 %v4900
        %5350 = vmatpush1.msra.mxu0 %v4899
        %5351 = vmatprep.subr.mxu0 %v4904
        %5352 = vmatpush1.msra.mxu0 %v4903
        %5353 = vmatprep.subr.mxu0 %v4908
        %5354 = vmatpush1.msra.mxu0 %v4907
        %5355 = vmatprep.subr.mxu0 %v4912
        %5356 = vmatpush1.msra.mxu0 %v4911
        %5357 = vmatprep.subr.mxu0 %v4916
        %5358 = vmatpush1.msra.mxu0 %v4915
        %5359 = vmatprep.subr.mxu0 %v4920
        %5360 = vmatpush1.msra.mxu0 %v4919
        %5361 = vmatprep.subr.mxu0 %v4924
        %5362 = vmatpush1.msra.mxu0 %v4923
        %5363 = vmatprep.subr.mxu0 %v4928
        %5364 = vmatpush1.msra.mxu0 %v4927
        %5365 = vmatprep.subr.mxu0 %v4932
        %5366 = vmatpush1.msra.mxu0 %v4931
        %5367 = vmatprep.subr.mxu0 %v4936
        %5368 = vmatpush1.msra.mxu0 %v4935
        %5369 = vmatprep.subr.mxu0 %v4940
        %5370 = vmatpush1.msra.mxu0 %v4939
        %5371 = vmatprep.mubr.f32.mxu0 %v4601
        %5372 = vmatmul.mubr.f32.gmra.mrb[0].mxu0 %v4600
        %v5373 = vpop.f32.mrb[0].mxu0
        %v5374 = vadd.f32 0.0, %v5373
        %v5375 = vpop.f32.mrb[0].mxu0
        %v5376 = vadd.f32 0.0, %v5375
        %5377 = vdwg.mxu0
        %v5378 = vadd.f32 %v5161, %v5303
        %v5379 = vadd.f32 %v5163, %v5305
        %v5380 = vadd.f32 %v5232, %v5374
        %v5381 = vadd.f32 %v5234, %v5376
        %v5382 = vadd.f32 %v4453, %v5378
        %v5383 = vadd.f32 %v4454, %v5379
        %v5384 = vadd.f32 %v4455, %v5380
        %v5385 = vadd.f32 %v4456, %v5381
        %v5386 = vld [vmem:[%s10] sm:$0x1]
        %5388 = vset.pattern.permute.xlu0 0
        %5389 = vperm.xlu0 %5388, %v5386
        %v5390 = vpop.permute.xlu0 %5389
        %v5392 = vadd.f32 %v5382, %v5390
        %v5393 = vadd.f32 %v5383, %v5390
        %v5394 = vmax.f32 %v5392, 0.0
        %v5395 = vmax.f32 %v5393, 0.0
        %v5398 = vcombine.low %v5394, %v5395
        %v5400 = vunpack.c.l.s4 1966171168
        %v5401 = vunpack.c.0.s8 %v5400
        %v5402 = vlaneseq
        %v5403 = vshrl.u32 %v5402, 7
        %v5404 = vsub.s32 %v5401, %v5403
        %v5405 = vrot.slane %v5398, %v5404
        %v5407 = vunpack.c.l.s4 1966171168
        %v5408 = vunpack.c.0.s8 %v5407
        %v5409 = vlaneseq
        %v5410 = vshrl.u32 %v5409, 7
        %v5411 = vsub.s32 %v5408, %v5410
        %v5412 = vrot.slane %v5405, %v5411
        %s5414 = scalar_lea.vmem [#allocation3], 2
        %5415 = vst.msk [vmem:[%s5414] ss:$4 sm:$0x3] %vm2950, %v5412
        %v5416 = vld [vmem:[%s10 + $0x1] sm:$0x1]
        %5418 = vset.pattern.permute.xlu0 0
        %5419 = vperm.xlu0 %5418, %v5416
        %v5420 = vpop.permute.xlu0 %5419
        %v5422 = vadd.f32 %v5384, %v5420
        %v5423 = vadd.f32 %v5385, %v5420
        %v5424 = vmax.f32 %v5422, 0.0
        %v5425 = vmax.f32 %v5423, 0.0
        %v5428 = vcombine.low %v5424, %v5425
        %v5430 = vunpack.c.l.s4 1966171168
        %v5431 = vunpack.c.0.s8 %v5430
        %v5432 = vlaneseq
        %v5433 = vshrl.u32 %v5432, 7
        %v5434 = vsub.s32 %v5431, %v5433
        %v5435 = vrot.slane %v5428, %v5434
        %v5437 = vunpack.c.l.s4 1966171168
        %v5438 = vunpack.c.0.s8 %v5437
        %v5439 = vlaneseq
        %v5440 = vshrl.u32 %v5439, 7
        %v5441 = vsub.s32 %v5438, %v5440
        %v5442 = vrot.slane %v5435, %v5441
        %s5444 = scalar_lea.vmem [#allocation3], 3
        %5445 = vst.msk [vmem:[%s5444] ss:$4 sm:$0x3] %vm2950, %v5442
        %v5446 = vld [vmem:[#allocation3] sm:$0xff]
        %v5447 = vld [vmem:[#allocation15] sm:$0xff]
        %v5448 = vld [vmem:[#allocation15 + $0x8] sm:$0xff]
        %v5449 = vld [vmem:[#allocation15 + $0x10] sm:$0xff]
        %v5450 = vld [vmem:[#allocation15 + $0x18] sm:$0xff]
        %v5451 = vld [vmem:[#allocation15 + $0x20] sm:$0xff]
        %v5452 = vld [vmem:[#allocation15 + $0x28] sm:$0xff]
        %v5453 = vld [vmem:[#allocation15 + $0x30] sm:$0xff]
        %v5454 = vld [vmem:[#allocation15 + $0x38] sm:$0xff]
        %v5455 = vld [vmem:[#allocation15 + $0x40] sm:$0xff]
        %v5456 = vld [vmem:[#allocation15 + $0x48] sm:$0xff]
        %v5457 = vld [vmem:[#allocation15 + $0x50] sm:$0xff]
        %v5458 = vld [vmem:[#allocation15 + $0x58] sm:$0xff]
        %v5459 = vld [vmem:[#allocation15 + $0x60] sm:$0xff]
        %v5460 = vld [vmem:[#allocation15 + $0x68] sm:$0xff]
        %v5461 = vld [vmem:[#allocation15 + $0x70] sm:$0xff]
        %v5462 = vld [vmem:[#allocation15 + $0x78] sm:$0xff]
        %v5463 = vld [vmem:[#allocation15 + $0x80] sm:$0xff]
        %v5464 = vld [vmem:[#allocation15 + $0x88] sm:$0xff]
        %v5465 = vld [vmem:[#allocation15 + $0x90] sm:$0xff]
        %v5466 = vld [vmem:[#allocation15 + $0x98] sm:$0xff]
        %v5467 = vld [vmem:[#allocation15 + $0xa0] sm:$0xff]
        %v5468 = vld [vmem:[#allocation15 + $0xa8] sm:$0xff]
        %v5469 = vld [vmem:[#allocation15 + $0xb0] sm:$0xff]
        %v5470 = vld [vmem:[#allocation15 + $0xb8] sm:$0xff]
        %v5471 = vld [vmem:[#allocation15 + $0xc0] sm:$0xff]
        %v5472 = vld [vmem:[#allocation15 + $0xc8] sm:$0xff]
        %v5473 = vld [vmem:[#allocation15 + $0xd0] sm:$0xff]
        %v5474 = vld [vmem:[#allocation15 + $0xd8] sm:$0xff]
        %v5475 = vld [vmem:[#allocation15 + $0xe0] sm:$0xff]
        %v5476 = vld [vmem:[#allocation15 + $0xe8] sm:$0xff]
        %v5477 = vld [vmem:[#allocation15 + $0xf0] sm:$0xff]
        %v5478 = vld [vmem:[#allocation15 + $0xf8] sm:$0xff]
        %v5479 = vld [vmem:[#allocation15 + $0x100] sm:$0xff]
        %v5480 = vld [vmem:[#allocation15 + $0x108] sm:$0xff]
        %v5481 = vld [vmem:[#allocation15 + $0x110] sm:$0xff]
        %v5482 = vld [vmem:[#allocation15 + $0x118] sm:$0xff]
        %v5483 = vld [vmem:[#allocation15 + $0x120] sm:$0xff]
        %v5484 = vld [vmem:[#allocation15 + $0x128] sm:$0xff]
        %v5485 = vld [vmem:[#allocation15 + $0x130] sm:$0xff]
        %v5486 = vld [vmem:[#allocation15 + $0x138] sm:$0xff]
        %v5487 = vld [vmem:[#allocation15 + $0x140] sm:$0xff]
        %v5488 = vld [vmem:[#allocation15 + $0x148] sm:$0xff]
        %v5489 = vld [vmem:[#allocation15 + $0x150] sm:$0xff]
        %v5490 = vld [vmem:[#allocation15 + $0x158] sm:$0xff]
        %v5491 = vld [vmem:[#allocation15 + $0x160] sm:$0xff]
        %v5492 = vld [vmem:[#allocation15 + $0x168] sm:$0xff]
        %v5493 = vld [vmem:[#allocation15 + $0x170] sm:$0xff]
        %v5494 = vld [vmem:[#allocation15 + $0x178] sm:$0xff]
        %v5495 = vld [vmem:[#allocation15 + $0x180] sm:$0xff]
        %v5496 = vld [vmem:[#allocation15 + $0x188] sm:$0xff]
        %v5497 = vld [vmem:[#allocation15 + $0x190] sm:$0xff]
        %v5498 = vld [vmem:[#allocation15 + $0x198] sm:$0xff]
        %v5499 = vld [vmem:[#allocation15 + $0x1a0] sm:$0xff]
        %v5500 = vld [vmem:[#allocation15 + $0x1a8] sm:$0xff]
        %v5501 = vld [vmem:[#allocation15 + $0x1b0] sm:$0xff]
        %v5502 = vld [vmem:[#allocation15 + $0x1b8] sm:$0xff]
        %v5503 = vld [vmem:[#allocation15 + $0x1c0] sm:$0xff]
        %v5504 = vld [vmem:[#allocation15 + $0x1c8] sm:$0xff]
        %v5505 = vld [vmem:[#allocation15 + $0x1d0] sm:$0xff]
        %v5506 = vld [vmem:[#allocation15 + $0x1d8] sm:$0xff]
        %v5507 = vld [vmem:[#allocation15 + $0x1e0] sm:$0xff]
        %v5508 = vld [vmem:[#allocation15 + $0x1e8] sm:$0xff]
        %v5509 = vld [vmem:[#allocation15 + $0x1f0] sm:$0xff]
        %v5510 = vld [vmem:[#allocation15 + $0x1f8] sm:$0xff]
        %v5511 = vld [vmem:[#allocation15 + $0x200] sm:$0xff]
        %v5512 = vld [vmem:[#allocation15 + $0x208] sm:$0xff]
        %v5513 = vld [vmem:[#allocation15 + $0x210] sm:$0xff]
        %v5514 = vld [vmem:[#allocation15 + $0x218] sm:$0xff]
        %v5515 = vld [vmem:[#allocation15 + $0x220] sm:$0xff]
        %v5516 = vld [vmem:[#allocation15 + $0x228] sm:$0xff]
        %v5517 = vld [vmem:[#allocation15 + $0x230] sm:$0xff]
        %v5518 = vld [vmem:[#allocation15 + $0x238] sm:$0xff]
        %v5519 = vld [vmem:[#allocation15 + $0x240] sm:$0xff]
        %v5520 = vld [vmem:[#allocation15 + $0x248] sm:$0xff]
        %v5521 = vld [vmem:[#allocation15 + $0x250] sm:$0xff]
        %v5522 = vld [vmem:[#allocation15 + $0x258] sm:$0xff]
        %v5523 = vld [vmem:[#allocation15 + $0x260] sm:$0xff]
        %v5524 = vld [vmem:[#allocation15 + $0x268] sm:$0xff]
        %v5525 = vld [vmem:[#allocation15 + $0x270] sm:$0xff]
        %v5526 = vld [vmem:[#allocation15 + $0x278] sm:$0xff]
        %v5527 = vld [vmem:[#allocation15 + $0x280] sm:$0xff]
        %v5528 = vld [vmem:[#allocation15 + $0x288] sm:$0xff]
        %v5529 = vld [vmem:[#allocation15 + $0x290] sm:$0xff]
        %v5530 = vld [vmem:[#allocation15 + $0x298] sm:$0xff]
        %v5531 = vld [vmem:[#allocation15 + $0x2a0] sm:$0xff]
        %v5532 = vld [vmem:[#allocation15 + $0x2a8] sm:$0xff]
        %v5533 = vld [vmem:[#allocation15 + $0x2b0] sm:$0xff]
        %v5534 = vld [vmem:[#allocation15 + $0x2b8] sm:$0xff]
        %v5535 = vld [vmem:[#allocation15 + $0x2c0] sm:$0xff]
        %v5536 = vld [vmem:[#allocation15 + $0x2c8] sm:$0xff]
        %v5537 = vld [vmem:[#allocation15 + $0x2d0] sm:$0xff]
        %v5538 = vld [vmem:[#allocation15 + $0x2d8] sm:$0xff]
        %v5539 = vld [vmem:[#allocation15 + $0x2e0] sm:$0xff]
        %v5540 = vld [vmem:[#allocation15 + $0x2e8] sm:$0xff]
        %v5541 = vld [vmem:[#allocation15 + $0x2f0] sm:$0xff]
        %v5542 = vld [vmem:[#allocation15 + $0x2f8] sm:$0xff]
        %v5543 = vld [vmem:[#allocation15 + $0x300] sm:$0xff]
        %v5544 = vld [vmem:[#allocation15 + $0x308] sm:$0xff]
        %v5545 = vld [vmem:[#allocation15 + $0x310] sm:$0xff]
        %v5546 = vld [vmem:[#allocation15 + $0x318] sm:$0xff]
        %v5547 = vld [vmem:[#allocation15 + $0x320] sm:$0xff]
        %v5548 = vld [vmem:[#allocation15 + $0x328] sm:$0xff]
        %v5549 = vld [vmem:[#allocation15 + $0x330] sm:$0xff]
        %v5550 = vld [vmem:[#allocation15 + $0x338] sm:$0xff]
        %v5551 = vld [vmem:[#allocation15 + $0x340] sm:$0xff]
        %v5552 = vld [vmem:[#allocation15 + $0x348] sm:$0xff]
        %v5553 = vld [vmem:[#allocation15 + $0x350] sm:$0xff]
        %v5554 = vld [vmem:[#allocation15 + $0x358] sm:$0xff]
        %v5555 = vld [vmem:[#allocation15 + $0x360] sm:$0xff]
        %v5556 = vld [vmem:[#allocation15 + $0x368] sm:$0xff]
        %v5557 = vld [vmem:[#allocation15 + $0x370] sm:$0xff]
        %v5558 = vld [vmem:[#allocation15 + $0x378] sm:$0xff]
        %v5559 = vld [vmem:[#allocation15 + $0x380] sm:$0xff]
        %v5560 = vld [vmem:[#allocation15 + $0x388] sm:$0xff]
        %v5561 = vld [vmem:[#allocation15 + $0x390] sm:$0xff]
        %v5562 = vld [vmem:[#allocation15 + $0x398] sm:$0xff]
        %v5563 = vld [vmem:[#allocation15 + $0x3a0] sm:$0xff]
        %v5564 = vld [vmem:[#allocation15 + $0x3a8] sm:$0xff]
        %v5565 = vld [vmem:[#allocation15 + $0x3b0] sm:$0xff]
        %v5566 = vld [vmem:[#allocation15 + $0x3b8] sm:$0xff]
        %v5567 = vld [vmem:[#allocation15 + $0x3c0] sm:$0xff]
        %v5568 = vld [vmem:[#allocation15 + $0x3c8] sm:$0xff]
        %v5569 = vld [vmem:[#allocation15 + $0x3d0] sm:$0xff]
        %v5570 = vld [vmem:[#allocation15 + $0x3d8] sm:$0xff]
        %v5571 = vld [vmem:[#allocation15 + $0x3e0] sm:$0xff]
        %v5572 = vld [vmem:[#allocation15 + $0x3e8] sm:$0xff]
        %v5573 = vld [vmem:[#allocation15 + $0x3f0] sm:$0xff]
        %v5574 = vld [vmem:[#allocation15 + $0x3f8] sm:$0xff]
        %v5575 = vld [vmem:[#allocation15 + $0x400] sm:$0xff]
        %v5576 = vld [vmem:[#allocation15 + $0x408] sm:$0xff]
        %v5577 = vld [vmem:[#allocation15 + $0x410] sm:$0xff]
        %v5578 = vld [vmem:[#allocation15 + $0x418] sm:$0xff]
        %v5579 = vld [vmem:[#allocation15 + $0x420] sm:$0xff]
        %v5580 = vld [vmem:[#allocation15 + $0x428] sm:$0xff]
        %v5581 = vld [vmem:[#allocation15 + $0x430] sm:$0xff]
        %v5582 = vld [vmem:[#allocation15 + $0x438] sm:$0xff]
        %v5583 = vld [vmem:[#allocation15 + $0x440] sm:$0xff]
        %v5584 = vld [vmem:[#allocation15 + $0x448] sm:$0xff]
        %v5585 = vld [vmem:[#allocation15 + $0x450] sm:$0xff]
        %v5586 = vld [vmem:[#allocation15 + $0x458] sm:$0xff]
        %v5587 = vld [vmem:[#allocation15 + $0x460] sm:$0xff]
        %v5588 = vld [vmem:[#allocation15 + $0x468] sm:$0xff]
        %v5589 = vld [vmem:[#allocation15 + $0x470] sm:$0xff]
        %v5590 = vld [vmem:[#allocation15 + $0x478] sm:$0xff]
        %v5591 = vld [vmem:[#allocation15 + $0x480] sm:$0xff]
        %v5592 = vld [vmem:[#allocation15 + $0x488] sm:$0xff]
        %v5593 = vld [vmem:[#allocation15 + $0x490] sm:$0xff]
        %v5594 = vld [vmem:[#allocation15 + $0x498] sm:$0xff]
        %v5595 = vld [vmem:[#allocation15 + $0x4a0] sm:$0xff]
        %v5596 = vld [vmem:[#allocation15 + $0x4a8] sm:$0xff]
        %v5597 = vld [vmem:[#allocation15 + $0x4b0] sm:$0xff]
        %v5598 = vld [vmem:[#allocation15 + $0x4b8] sm:$0xff]
        %v5599 = vld [vmem:[#allocation15 + $0x4c0] sm:$0xff]
        %v5600 = vld [vmem:[#allocation15 + $0x4c8] sm:$0xff]
        %v5601 = vld [vmem:[#allocation15 + $0x4d0] sm:$0xff]
        %v5602 = vld [vmem:[#allocation15 + $0x4d8] sm:$0xff]
        %v5603 = vld [vmem:[#allocation15 + $0x4e0] sm:$0xff]
        %v5604 = vld [vmem:[#allocation15 + $0x4e8] sm:$0xff]
        %v5605 = vld [vmem:[#allocation15 + $0x4f0] sm:$0xff]
        %v5606 = vld [vmem:[#allocation15 + $0x4f8] sm:$0xff]
        %v5607 = vld [vmem:[#allocation15 + $0x500] sm:$0xff]
        %v5608 = vld [vmem:[#allocation15 + $0x508] sm:$0xff]
        %v5609 = vld [vmem:[#allocation15 + $0x510] sm:$0xff]
        %v5610 = vld [vmem:[#allocation15 + $0x518] sm:$0xff]
        %v5611 = vld [vmem:[#allocation15 + $0x520] sm:$0xff]
        %v5612 = vld [vmem:[#allocation15 + $0x528] sm:$0xff]
        %v5613 = vld [vmem:[#allocation15 + $0x530] sm:$0xff]
        %v5614 = vld [vmem:[#allocation15 + $0x538] sm:$0xff]
        %v5615 = vld [vmem:[#allocation15 + $0x540] sm:$0xff]
        %v5616 = vld [vmem:[#allocation15 + $0x548] sm:$0xff]
        %v5617 = vld [vmem:[#allocation15 + $0x550] sm:$0xff]
        %v5618 = vld [vmem:[#allocation15 + $0x558] sm:$0xff]
        %v5619 = vld [vmem:[#allocation15 + $0x560] sm:$0xff]
        %v5620 = vld [vmem:[#allocation15 + $0x568] sm:$0xff]
        %v5621 = vld [vmem:[#allocation15 + $0x570] sm:$0xff]
        %v5622 = vld [vmem:[#allocation15 + $0x578] sm:$0xff]
        %v5623 = vld [vmem:[#allocation15 + $0x580] sm:$0xff]
        %v5624 = vld [vmem:[#allocation15 + $0x588] sm:$0xff]
        %v5625 = vld [vmem:[#allocation15 + $0x590] sm:$0xff]
        %v5626 = vld [vmem:[#allocation15 + $0x598] sm:$0xff]
        %v5627 = vld [vmem:[#allocation15 + $0x5a0] sm:$0xff]
        %v5628 = vld [vmem:[#allocation15 + $0x5a8] sm:$0xff]
        %v5629 = vld [vmem:[#allocation15 + $0x5b0] sm:$0xff]
        %v5630 = vld [vmem:[#allocation15 + $0x5b8] sm:$0xff]
        %v5631 = vld [vmem:[#allocation15 + $0x5c0] sm:$0xff]
        %v5632 = vld [vmem:[#allocation15 + $0x5c8] sm:$0xff]
        %v5633 = vld [vmem:[#allocation15 + $0x5d0] sm:$0xff]
        %v5634 = vld [vmem:[#allocation15 + $0x5d8] sm:$0xff]
        %v5635 = vld [vmem:[#allocation15 + $0x5e0] sm:$0xff]
        %v5636 = vld [vmem:[#allocation15 + $0x5e8] sm:$0xff]
        %v5637 = vld [vmem:[#allocation15 + $0x5f0] sm:$0xff]
        %v5638 = vld [vmem:[#allocation15 + $0x5f8] sm:$0xff]
        %v5639 = vld [vmem:[#allocation15 + $0x600] sm:$0xff]
        %v5640 = vld [vmem:[#allocation15 + $0x608] sm:$0xff]
        %v5641 = vld [vmem:[#allocation15 + $0x610] sm:$0xff]
        %v5642 = vld [vmem:[#allocation15 + $0x618] sm:$0xff]
        %v5643 = vld [vmem:[#allocation15 + $0x620] sm:$0xff]
        %v5644 = vld [vmem:[#allocation15 + $0x628] sm:$0xff]
        %v5645 = vld [vmem:[#allocation15 + $0x630] sm:$0xff]
        %v5646 = vld [vmem:[#allocation15 + $0x638] sm:$0xff]
        %v5647 = vld [vmem:[#allocation15 + $0x640] sm:$0xff]
        %v5648 = vld [vmem:[#allocation15 + $0x648] sm:$0xff]
        %v5649 = vld [vmem:[#allocation15 + $0x650] sm:$0xff]
        %v5650 = vld [vmem:[#allocation15 + $0x658] sm:$0xff]
        %v5651 = vld [vmem:[#allocation15 + $0x660] sm:$0xff]
        %v5652 = vld [vmem:[#allocation15 + $0x668] sm:$0xff]
        %v5653 = vld [vmem:[#allocation15 + $0x670] sm:$0xff]
        %v5654 = vld [vmem:[#allocation15 + $0x678] sm:$0xff]
        %v5655 = vld [vmem:[#allocation15 + $0x680] sm:$0xff]
        %v5656 = vld [vmem:[#allocation15 + $0x688] sm:$0xff]
        %v5657 = vld [vmem:[#allocation15 + $0x690] sm:$0xff]
        %v5658 = vld [vmem:[#allocation15 + $0x698] sm:$0xff]
        %v5659 = vld [vmem:[#allocation15 + $0x6a0] sm:$0xff]
        %v5660 = vld [vmem:[#allocation15 + $0x6a8] sm:$0xff]
        %v5661 = vld [vmem:[#allocation15 + $0x6b0] sm:$0xff]
        %v5662 = vld [vmem:[#allocation15 + $0x6b8] sm:$0xff]
        %v5663 = vld [vmem:[#allocation15 + $0x6c0] sm:$0xff]
        %v5664 = vld [vmem:[#allocation15 + $0x6c8] sm:$0xff]
        %v5665 = vld [vmem:[#allocation15 + $0x6d0] sm:$0xff]
        %v5666 = vld [vmem:[#allocation15 + $0x6d8] sm:$0xff]
        %v5667 = vld [vmem:[#allocation15 + $0x6e0] sm:$0xff]
        %v5668 = vld [vmem:[#allocation15 + $0x6e8] sm:$0xff]
        %v5669 = vld [vmem:[#allocation15 + $0x6f0] sm:$0xff]
        %v5670 = vld [vmem:[#allocation15 + $0x6f8] sm:$0xff]
        %v5671 = vld [vmem:[#allocation15 + $0x700] sm:$0xff]
        %v5672 = vld [vmem:[#allocation15 + $0x708] sm:$0xff]
        %v5673 = vld [vmem:[#allocation15 + $0x710] sm:$0xff]
        %v5674 = vld [vmem:[#allocation15 + $0x718] sm:$0xff]
        %v5675 = vld [vmem:[#allocation15 + $0x720] sm:$0xff]
        %v5676 = vld [vmem:[#allocation15 + $0x728] sm:$0xff]
        %v5677 = vld [vmem:[#allocation15 + $0x730] sm:$0xff]
        %v5678 = vld [vmem:[#allocation15 + $0x738] sm:$0xff]
        %v5679 = vld [vmem:[#allocation15 + $0x740] sm:$0xff]
        %v5680 = vld [vmem:[#allocation15 + $0x748] sm:$0xff]
        %v5681 = vld [vmem:[#allocation15 + $0x750] sm:$0xff]
        %v5682 = vld [vmem:[#allocation15 + $0x758] sm:$0xff]
        %v5683 = vld [vmem:[#allocation15 + $0x760] sm:$0xff]
        %v5684 = vld [vmem:[#allocation15 + $0x768] sm:$0xff]
        %v5685 = vld [vmem:[#allocation15 + $0x770] sm:$0xff]
        %v5686 = vld [vmem:[#allocation15 + $0x778] sm:$0xff]
        %v5687 = vld [vmem:[#allocation15 + $0x780] sm:$0xff]
        %v5688 = vld [vmem:[#allocation15 + $0x788] sm:$0xff]
        %v5689 = vld [vmem:[#allocation15 + $0x790] sm:$0xff]
        %v5690 = vld [vmem:[#allocation15 + $0x798] sm:$0xff]
        %v5691 = vld [vmem:[#allocation15 + $0x7a0] sm:$0xff]
        %v5692 = vld [vmem:[#allocation15 + $0x7a8] sm:$0xff]
        %v5693 = vld [vmem:[#allocation15 + $0x7b0] sm:$0xff]
        %v5694 = vld [vmem:[#allocation15 + $0x7b8] sm:$0xff]
        %v5695 = vld [vmem:[#allocation15 + $0x7c0] sm:$0xff]
        %v5696 = vld [vmem:[#allocation15 + $0x7c8] sm:$0xff]
        %v5697 = vld [vmem:[#allocation15 + $0x7d0] sm:$0xff]
        %v5698 = vld [vmem:[#allocation15 + $0x7d8] sm:$0xff]
        %v5699 = vld [vmem:[#allocation15 + $0x7e0] sm:$0xff]
        %v5700 = vld [vmem:[#allocation15 + $0x7e8] sm:$0xff]
        %v5701 = vld [vmem:[#allocation15 + $0x7f0] sm:$0xff]
        %v5702 = vld [vmem:[#allocation15 + $0x7f8] sm:$0xff]
        %v5703 = vld [vmem:[#allocation13] sm:$0x3]
        %v5704 = vpack.c.bf16 %v5703, %v5703
        %v5705 = vunpack.c.l.bf16 %v5704
        %v5706 = vsub.f32 %v5703, %v5705
        %v5708 = vcombine.high %v5446, %v5446
        %v5710 = vpack.c.bf16 %v5446, %v5446
        %v5711 = vpack.c.bf16 %v5708, %v5708
        %v5712 = vunpack.c.l.bf16 %v5710
        %v5713 = vunpack.c.l.bf16 %v5711
        %v5716 = vcombine.low %v5712, %v5713
        %v5718 = vsub.f32 %v5446, %v5716
        %vm5719 = vcmask 31744
        %v5721 = vsel %vm5719, %v5706, 0
        %vm5723 = vcmask 1043456
        %v5724 = vsel %vm5723, %v5712, 0
        %v5726 = vsel %vm5723, %v5713, 0
        %5728 = vmatprep.subr.mxu0 %v5726
        %5729 = vmatpush1.msra.mxu0 %v5724
        %5730 = vmatprep.subr.mxu0 0.0
        %5731 = vmatpush1.msra.mxu0 0.0
        %5732 = vmatprep.subr.mxu0 0.0
        %5733 = vmatpush1.msra.mxu0 0.0
        %5734 = vmatprep.subr.mxu0 0.0
        %5735 = vmatpush1.msra.mxu0 0.0
        %5736 = vmatprep.subr.mxu0 0.0
        %5737 = vmatpush1.msra.mxu0 0.0
        %5738 = vmatprep.subr.mxu0 0.0
        %5739 = vmatpush1.msra.mxu0 0.0
        %5740 = vmatprep.subr.mxu0 0.0
        %5741 = vmatpush1.msra.mxu0 0.0
        %5742 = vmatprep.subr.mxu0 0.0
        %5743 = vmatpush1.msra.mxu0 0.0
        %5744 = vmatprep.subr.mxu0 0.0
        %5745 = vmatpush1.msra.mxu0 0.0
        %5746 = vmatprep.subr.mxu0 0.0
        %5747 = vmatpush1.msra.mxu0 0.0
        %5748 = vmatprep.subr.mxu0 0.0
        %5749 = vmatpush1.msra.mxu0 0.0
        %5750 = vmatprep.subr.mxu0 0.0
        %5751 = vmatpush1.msra.mxu0 0.0
        %5752 = vmatprep.subr.mxu0 0.0
        %5753 = vmatpush1.msra.mxu0 0.0
        %5754 = vmatprep.subr.mxu0 0.0
        %5755 = vmatpush1.msra.mxu0 0.0
        %5756 = vmatprep.subr.mxu0 0.0
        %5757 = vmatpush1.msra.mxu0 0.0
        %5758 = vmatprep.subr.mxu0 0.0
        %5759 = vmatpush1.msra.mxu0 0.0
        %5760 = vmatprep.subr.mxu0 0.0
        %5761 = vmatpush1.msra.mxu0 0.0
        %5762 = vmatprep.subr.mxu0 0.0
        %5763 = vmatpush1.msra.mxu0 0.0
        %5764 = vmatprep.subr.mxu0 0.0
        %5765 = vmatpush1.msra.mxu0 0.0
        %5766 = vmatprep.subr.mxu0 0.0
        %5767 = vmatpush1.msra.mxu0 0.0
        %5768 = vmatprep.subr.mxu0 0.0
        %5769 = vmatpush1.msra.mxu0 0.0
        %5770 = vmatprep.subr.mxu0 0.0
        %5771 = vmatpush1.msra.mxu0 0.0
        %5772 = vmatprep.subr.mxu0 0.0
        %5773 = vmatpush1.msra.mxu0 0.0
        %5774 = vmatprep.subr.mxu0 0.0
        %5775 = vmatpush1.msra.mxu0 0.0
        %5776 = vmatprep.subr.mxu0 0.0
        %5777 = vmatpush1.msra.mxu0 0.0
        %5778 = vmatprep.subr.mxu0 0.0
        %5779 = vmatpush1.msra.mxu0 0.0
        %5780 = vmatprep.subr.mxu0 0.0
        %5781 = vmatpush1.msra.mxu0 0.0
        %5782 = vmatprep.subr.mxu0 0.0
        %5783 = vmatpush1.msra.mxu0 0.0
        %5784 = vmatprep.subr.mxu0 0.0
        %5785 = vmatpush1.msra.mxu0 0.0
        %5786 = vmatprep.subr.mxu0 0.0
        %5787 = vmatpush1.msra.mxu0 0.0
        %5788 = vmatprep.subr.mxu0 0.0
        %5789 = vmatpush1.msra.mxu0 0.0
        %5790 = vmatprep.subr.mxu0 0.0
        %5791 = vmatpush1.msra.mxu0 0.0
        %5792 = vmatprep.mubr.f32.mxu0 0.0
        %5793 = vmatmul.mubr.f32.gmra.mrb[0].mxu0 %v5721
        %v5794 = vpop.f32.mrb[0].mxu0
        %v5795 = vadd.f32 0.0, %v5794
        %v5796 = vpop.f32.mrb[0].mxu0
        %v5797 = vadd.f32 0.0, %v5796
        %5798 = vdwg.mxu0
        %v5800 = vsel %vm5719, %v5705, 0
        %5802 = vmatprep.subr.mxu0 %v5726
        %5803 = vmatpush1.msra.mxu0 %v5724
        %5804 = vmatprep.subr.mxu0 0.0
        %5805 = vmatpush1.msra.mxu0 0.0
        %5806 = vmatprep.subr.mxu0 0.0
        %5807 = vmatpush1.msra.mxu0 0.0
        %5808 = vmatprep.subr.mxu0 0.0
        %5809 = vmatpush1.msra.mxu0 0.0
        %5810 = vmatprep.subr.mxu0 0.0
        %5811 = vmatpush1.msra.mxu0 0.0
        %5812 = vmatprep.subr.mxu0 0.0
        %5813 = vmatpush1.msra.mxu0 0.0
        %5814 = vmatprep.subr.mxu0 0.0
        %5815 = vmatpush1.msra.mxu0 0.0
        %5816 = vmatprep.subr.mxu0 0.0
        %5817 = vmatpush1.msra.mxu0 0.0
        %5818 = vmatprep.subr.mxu0 0.0
        %5819 = vmatpush1.msra.mxu0 0.0
        %5820 = vmatprep.subr.mxu0 0.0
        %5821 = vmatpush1.msra.mxu0 0.0
        %5822 = vmatprep.subr.mxu0 0.0
        %5823 = vmatpush1.msra.mxu0 0.0
        %5824 = vmatprep.subr.mxu0 0.0
        %5825 = vmatpush1.msra.mxu0 0.0
        %5826 = vmatprep.subr.mxu0 0.0
        %5827 = vmatpush1.msra.mxu0 0.0
        %5828 = vmatprep.subr.mxu0 0.0
        %5829 = vmatpush1.msra.mxu0 0.0
        %5830 = vmatprep.subr.mxu0 0.0
        %5831 = vmatpush1.msra.mxu0 0.0
        %5832 = vmatprep.subr.mxu0 0.0
        %5833 = vmatpush1.msra.mxu0 0.0
        %5834 = vmatprep.subr.mxu0 0.0
        %5835 = vmatpush1.msra.mxu0 0.0
        %5836 = vmatprep.subr.mxu0 0.0
        %5837 = vmatpush1.msra.mxu0 0.0
        %5838 = vmatprep.subr.mxu0 0.0
        %5839 = vmatpush1.msra.mxu0 0.0
        %5840 = vmatprep.subr.mxu0 0.0
        %5841 = vmatpush1.msra.mxu0 0.0
        %5842 = vmatprep.subr.mxu0 0.0
        %5843 = vmatpush1.msra.mxu0 0.0
        %5844 = vmatprep.subr.mxu0 0.0
        %5845 = vmatpush1.msra.mxu0 0.0
        %5846 = vmatprep.subr.mxu0 0.0
        %5847 = vmatpush1.msra.mxu0 0.0
        %5848 = vmatprep.subr.mxu0 0.0
        %5849 = vmatpush1.msra.mxu0 0.0
        %5850 = vmatprep.subr.mxu0 0.0
        %5851 = vmatpush1.msra.mxu0 0.0
        %5852 = vmatprep.subr.mxu0 0.0
        %5853 = vmatpush1.msra.mxu0 0.0
        %5854 = vmatprep.subr.mxu0 0.0
        %5855 = vmatpush1.msra.mxu0 0.0
        %5856 = vmatprep.subr.mxu0 0.0
        %5857 = vmatpush1.msra.mxu0 0.0
        %5858 = vmatprep.subr.mxu0 0.0
        %5859 = vmatpush1.msra.mxu0 0.0
        %5860 = vmatprep.subr.mxu0 0.0
        %5861 = vmatpush1.msra.mxu0 0.0
        %5862 = vmatprep.subr.mxu0 0.0
        %5863 = vmatpush1.msra.mxu0 0.0
        %5864 = vmatprep.subr.mxu0 0.0
        %5865 = vmatpush1.msra.mxu0 0.0
        %5866 = vmatprep.mubr.f32.mxu0 0.0
        %5867 = vmatmul.mubr.f32.gmra.mrb[0].mxu0 %v5800
        %v5868 = vpop.f32.mrb[0].mxu0
        %v5869 = vadd.f32 %v5795, %v5868
        %v5870 = vpop.f32.mrb[0].mxu0
        %v5871 = vadd.f32 %v5797, %v5870
        %5872 = vdwg.mxu0
        %v5874 = vcombine.high %v5718, %v5718
        %v5875 = vsel %vm5723, %v5718, 0
        %v5877 = vsel %vm5723, %v5874, 0
        %5879 = vmatprep.subr.mxu0 %v5877
        %5880 = vmatpush1.msra.mxu0 %v5875
        %5881 = vmatprep.subr.mxu0 0.0
        %5882 = vmatpush1.msra.mxu0 0.0
        %5883 = vmatprep.subr.mxu0 0.0
        %5884 = vmatpush1.msra.mxu0 0.0
        %5885 = vmatprep.subr.mxu0 0.0
        %5886 = vmatpush1.msra.mxu0 0.0
        %5887 = vmatprep.subr.mxu0 0.0
        %5888 = vmatpush1.msra.mxu0 0.0
        %5889 = vmatprep.subr.mxu0 0.0
        %5890 = vmatpush1.msra.mxu0 0.0
        %5891 = vmatprep.subr.mxu0 0.0
        %5892 = vmatpush1.msra.mxu0 0.0
        %5893 = vmatprep.subr.mxu0 0.0
        %5894 = vmatpush1.msra.mxu0 0.0
        %5895 = vmatprep.subr.mxu0 0.0
        %5896 = vmatpush1.msra.mxu0 0.0
        %5897 = vmatprep.subr.mxu0 0.0
        %5898 = vmatpush1.msra.mxu0 0.0
        %5899 = vmatprep.subr.mxu0 0.0
        %5900 = vmatpush1.msra.mxu0 0.0
        %5901 = vmatprep.subr.mxu0 0.0
        %5902 = vmatpush1.msra.mxu0 0.0
        %5903 = vmatprep.subr.mxu0 0.0
        %5904 = vmatpush1.msra.mxu0 0.0
        %5905 = vmatprep.subr.mxu0 0.0
        %5906 = vmatpush1.msra.mxu0 0.0
        %5907 = vmatprep.subr.mxu0 0.0
        %5908 = vmatpush1.msra.mxu0 0.0
        %5909 = vmatprep.subr.mxu0 0.0
        %5910 = vmatpush1.msra.mxu0 0.0
        %5911 = vmatprep.subr.mxu0 0.0
        %5912 = vmatpush1.msra.mxu0 0.0
        %5913 = vmatprep.subr.mxu0 0.0
        %5914 = vmatpush1.msra.mxu0 0.0
        %5915 = vmatprep.subr.mxu0 0.0
        %5916 = vmatpush1.msra.mxu0 0.0
        %5917 = vmatprep.subr.mxu0 0.0
        %5918 = vmatpush1.msra.mxu0 0.0
        %5919 = vmatprep.subr.mxu0 0.0
        %5920 = vmatpush1.msra.mxu0 0.0
        %5921 = vmatprep.subr.mxu0 0.0
        %5922 = vmatpush1.msra.mxu0 0.0
        %5923 = vmatprep.subr.mxu0 0.0
        %5924 = vmatpush1.msra.mxu0 0.0
        %5925 = vmatprep.subr.mxu0 0.0
        %5926 = vmatpush1.msra.mxu0 0.0
        %5927 = vmatprep.subr.mxu0 0.0
        %5928 = vmatpush1.msra.mxu0 0.0
        %5929 = vmatprep.subr.mxu0 0.0
        %5930 = vmatpush1.msra.mxu0 0.0
        %5931 = vmatprep.subr.mxu0 0.0
        %5932 = vmatpush1.msra.mxu0 0.0
        %5933 = vmatprep.subr.mxu0 0.0
        %5934 = vmatpush1.msra.mxu0 0.0
        %5935 = vmatprep.subr.mxu0 0.0
        %5936 = vmatpush1.msra.mxu0 0.0
        %5937 = vmatprep.subr.mxu0 0.0
        %5938 = vmatpush1.msra.mxu0 0.0
        %5939 = vmatprep.subr.mxu0 0.0
        %5940 = vmatpush1.msra.mxu0 0.0
        %5941 = vmatprep.subr.mxu0 0.0
        %5942 = vmatpush1.msra.mxu0 0.0
        %5943 = vmatprep.mubr.f32.mxu0 0.0
        %5944 = vmatmul.mubr.f32.gmra.mrb[0].mxu0 %v5800
        %v5945 = vpop.f32.mrb[0].mxu0
        %v5946 = vadd.f32 0.0, %v5945
        %v5947 = vpop.f32.mrb[0].mxu0
        %v5948 = vadd.f32 0.0, %v5947
        %5949 = vdwg.mxu0
        %v5950 = vadd.f32 %v5869, %v5946
        %v5951 = vadd.f32 %v5871, %v5948
        %v5952 = vld [vmem:[%s12] sm:$0x3]
        %5954 = vset.pattern.permute.xlu0 0
        %5955 = vperm.xlu0 %5954, %v5952
        %v5956 = vpop.permute.xlu0 %5955
        %v5958 = vadd.f32 %v5950, %v5956
        %v5959 = vadd.f32 %v5951, %v5956
        %v5960 = vmax.f32 %v5958, 0.0
        %v5961 = vmax.f32 %v5959, 0.0
        %v5962 = vld [vmem:[%s13] sm:$0x3]
        %v5963 = vpack.c.bf16 %v5962, %v5962
        %v5964 = vunpack.c.l.bf16 %v5963
        %v5965 = vsub.f32 %v5962, %v5964
        %v5966 = vpack.c.bf16 %v5960, %v5960
        %v5967 = vpack.c.bf16 %v5961, %v5961
        %v5968 = vunpack.c.l.bf16 %v5966
        %v5969 = vunpack.c.l.bf16 %v5967
        %v5970 = vsub.f32 %v5960, %v5968
        %v5971 = vsub.f32 %v5961, %v5969
        %vm5972 = vcmask 15360
        %v5974 = vsel %vm5972, %v5965, 0
        %vm5976 = vcmask 1041408
        %v5978 = vsel %vm5976, %v5968, 0
        %v5981 = vsel %vm5976, %v5969, 0
        %5983 = vmatprep.subr.mxu0 %v5981
        %5984 = vmatpush1.msra.mxu0 %v5978
        %5985 = vmatprep.subr.mxu0 0.0
        %5986 = vmatpush1.msra.mxu0 0.0
        %5987 = vmatprep.subr.mxu0 0.0
        %5988 = vmatpush1.msra.mxu0 0.0
        %5989 = vmatprep.subr.mxu0 0.0
        %5990 = vmatpush1.msra.mxu0 0.0
        %5991 = vmatprep.subr.mxu0 0.0
        %5992 = vmatpush1.msra.mxu0 0.0
        %5993 = vmatprep.subr.mxu0 0.0
        %5994 = vmatpush1.msra.mxu0 0.0
        %5995 = vmatprep.subr.mxu0 0.0
        %5996 = vmatpush1.msra.mxu0 0.0
        %5997 = vmatprep.subr.mxu0 0.0
        %5998 = vmatpush1.msra.mxu0 0.0
        %5999 = vmatprep.subr.mxu0 0.0
        %6000 = vmatpush1.msra.mxu0 0.0
        %6001 = vmatprep.subr.mxu0 0.0
        %6002 = vmatpush1.msra.mxu0 0.0
        %6003 = vmatprep.subr.mxu0 0.0
        %6004 = vmatpush1.msra.mxu0 0.0
        %6005 = vmatprep.subr.mxu0 0.0
        %6006 = vmatpush1.msra.mxu0 0.0
        %6007 = vmatprep.subr.mxu0 0.0
        %6008 = vmatpush1.msra.mxu0 0.0
        %6009 = vmatprep.subr.mxu0 0.0
        %6010 = vmatpush1.msra.mxu0 0.0
        %6011 = vmatprep.subr.mxu0 0.0
        %6012 = vmatpush1.msra.mxu0 0.0
        %6013 = vmatprep.subr.mxu0 0.0
        %6014 = vmatpush1.msra.mxu0 0.0
        %6015 = vmatprep.subr.mxu0 0.0
        %6016 = vmatpush1.msra.mxu0 0.0
        %6017 = vmatprep.subr.mxu0 0.0
        %6018 = vmatpush1.msra.mxu0 0.0
        %6019 = vmatprep.subr.mxu0 0.0
        %6020 = vmatpush1.msra.mxu0 0.0
        %6021 = vmatprep.subr.mxu0 0.0
        %6022 = vmatpush1.msra.mxu0 0.0
        %6023 = vmatprep.subr.mxu0 0.0
        %6024 = vmatpush1.msra.mxu0 0.0
        %6025 = vmatprep.subr.mxu0 0.0
        %6026 = vmatpush1.msra.mxu0 0.0
        %6027 = vmatprep.subr.mxu0 0.0
        %6028 = vmatpush1.msra.mxu0 0.0
        %6029 = vmatprep.subr.mxu0 0.0
        %6030 = vmatpush1.msra.mxu0 0.0
        %6031 = vmatprep.subr.mxu0 0.0
        %6032 = vmatpush1.msra.mxu0 0.0
        %6033 = vmatprep.subr.mxu0 0.0
        %6034 = vmatpush1.msra.mxu0 0.0
        %6035 = vmatprep.subr.mxu0 0.0
        %6036 = vmatpush1.msra.mxu0 0.0
        %6037 = vmatprep.subr.mxu0 0.0
        %6038 = vmatpush1.msra.mxu0 0.0
        %6039 = vmatprep.subr.mxu0 0.0
        %6040 = vmatpush1.msra.mxu0 0.0
        %6041 = vmatprep.subr.mxu0 0.0
        %6042 = vmatpush1.msra.mxu0 0.0
        %6043 = vmatprep.subr.mxu0 0.0
        %6044 = vmatpush1.msra.mxu0 0.0
        %6045 = vmatprep.subr.mxu0 0.0
        %6046 = vmatpush1.msra.mxu0 0.0
        %6047 = vmatprep.mubr.f32.mxu0 0.0
        %6048 = vmatmul.mubr.f32.gmra.mrb[0].mxu0 %v5974
        %v6049 = vpop.f32.mrb[0].mxu0
        %v6050 = vadd.f32 0.0, %v6049
        %v6051 = vpop.f32.mrb[0].mxu0
        %v6052 = vadd.f32 0.0, %v6051
        %6053 = vdwg.mxu0
        %v6055 = vsel %vm5972, %v5964, 0
        %6057 = vmatprep.subr.mxu0 %v5981
        %6058 = vmatpush1.msra.mxu0 %v5978
        %6059 = vmatprep.subr.mxu0 0.0
        %6060 = vmatpush1.msra.mxu0 0.0
        %6061 = vmatprep.subr.mxu0 0.0
        %6062 = vmatpush1.msra.mxu0 0.0
        %6063 = vmatprep.subr.mxu0 0.0
        %6064 = vmatpush1.msra.mxu0 0.0
        %6065 = vmatprep.subr.mxu0 0.0
        %6066 = vmatpush1.msra.mxu0 0.0
        %6067 = vmatprep.subr.mxu0 0.0
        %6068 = vmatpush1.msra.mxu0 0.0
        %6069 = vmatprep.subr.mxu0 0.0
        %6070 = vmatpush1.msra.mxu0 0.0
        %6071 = vmatprep.subr.mxu0 0.0
        %6072 = vmatpush1.msra.mxu0 0.0
        %6073 = vmatprep.subr.mxu0 0.0
        %6074 = vmatpush1.msra.mxu0 0.0
        %6075 = vmatprep.subr.mxu0 0.0
        %6076 = vmatpush1.msra.mxu0 0.0
        %6077 = vmatprep.subr.mxu0 0.0
        %6078 = vmatpush1.msra.mxu0 0.0
        %6079 = vmatprep.subr.mxu0 0.0
        %6080 = vmatpush1.msra.mxu0 0.0
        %6081 = vmatprep.subr.mxu0 0.0
        %6082 = vmatpush1.msra.mxu0 0.0
        %6083 = vmatprep.subr.mxu0 0.0
        %6084 = vmatpush1.msra.mxu0 0.0
        %6085 = vmatprep.subr.mxu0 0.0
        %6086 = vmatpush1.msra.mxu0 0.0
        %6087 = vmatprep.subr.mxu0 0.0
        %6088 = vmatpush1.msra.mxu0 0.0
        %6089 = vmatprep.subr.mxu0 0.0
        %6090 = vmatpush1.msra.mxu0 0.0
        %6091 = vmatprep.subr.mxu0 0.0
        %6092 = vmatpush1.msra.mxu0 0.0
        %6093 = vmatprep.subr.mxu0 0.0
        %6094 = vmatpush1.msra.mxu0 0.0
        %6095 = vmatprep.subr.mxu0 0.0
        %6096 = vmatpush1.msra.mxu0 0.0
        %6097 = vmatprep.subr.mxu0 0.0
        %6098 = vmatpush1.msra.mxu0 0.0
        %6099 = vmatprep.subr.mxu0 0.0
        %6100 = vmatpush1.msra.mxu0 0.0
        %6101 = vmatprep.subr.mxu0 0.0
        %6102 = vmatpush1.msra.mxu0 0.0
        %6103 = vmatprep.subr.mxu0 0.0
        %6104 = vmatpush1.msra.mxu0 0.0
        %6105 = vmatprep.subr.mxu0 0.0
        %6106 = vmatpush1.msra.mxu0 0.0
        %6107 = vmatprep.subr.mxu0 0.0
        %6108 = vmatpush1.msra.mxu0 0.0
        %6109 = vmatprep.subr.mxu0 0.0
        %6110 = vmatpush1.msra.mxu0 0.0
        %6111 = vmatprep.subr.mxu0 0.0
        %6112 = vmatpush1.msra.mxu0 0.0
        %6113 = vmatprep.subr.mxu0 0.0
        %6114 = vmatpush1.msra.mxu0 0.0
        %6115 = vmatprep.subr.mxu0 0.0
        %6116 = vmatpush1.msra.mxu0 0.0
        %6117 = vmatprep.subr.mxu0 0.0
        %6118 = vmatpush1.msra.mxu0 0.0
        %6119 = vmatprep.subr.mxu0 0.0
        %6120 = vmatpush1.msra.mxu0 0.0
        %6121 = vmatprep.mubr.f32.mxu0 0.0
        %6122 = vmatmul.mubr.f32.gmra.mrb[0].mxu0 %v6055
        %v6123 = vpop.f32.mrb[0].mxu0
        %v6124 = vadd.f32 %v6050, %v6123
        %v6125 = vpop.f32.mrb[0].mxu0
        %v6126 = vadd.f32 %v6052, %v6125
        %6127 = vdwg.mxu0
        %v6129 = vsel %vm5976, %v5970, 0
        %v6132 = vsel %vm5976, %v5971, 0
        %6134 = vmatprep.subr.mxu0 %v6132
        %6135 = vmatpush1.msra.mxu0 %v6129
        %6136 = vmatprep.subr.mxu0 0.0
        %6137 = vmatpush1.msra.mxu0 0.0
        %6138 = vmatprep.subr.mxu0 0.0
        %6139 = vmatpush1.msra.mxu0 0.0
        %6140 = vmatprep.subr.mxu0 0.0
        %6141 = vmatpush1.msra.mxu0 0.0
        %6142 = vmatprep.subr.mxu0 0.0
        %6143 = vmatpush1.msra.mxu0 0.0
        %6144 = vmatprep.subr.mxu0 0.0
        %6145 = vmatpush1.msra.mxu0 0.0
        %6146 = vmatprep.subr.mxu0 0.0
        %6147 = vmatpush1.msra.mxu0 0.0
        %6148 = vmatprep.subr.mxu0 0.0
        %6149 = vmatpush1.msra.mxu0 0.0
        %6150 = vmatprep.subr.mxu0 0.0
        %6151 = vmatpush1.msra.mxu0 0.0
        %6152 = vmatprep.subr.mxu0 0.0
        %6153 = vmatpush1.msra.mxu0 0.0
        %6154 = vmatprep.subr.mxu0 0.0
        %6155 = vmatpush1.msra.mxu0 0.0
        %6156 = vmatprep.subr.mxu0 0.0
        %6157 = vmatpush1.msra.mxu0 0.0
        %6158 = vmatprep.subr.mxu0 0.0
        %6159 = vmatpush1.msra.mxu0 0.0
        %6160 = vmatprep.subr.mxu0 0.0
        %6161 = vmatpush1.msra.mxu0 0.0
        %6162 = vmatprep.subr.mxu0 0.0
        %6163 = vmatpush1.msra.mxu0 0.0
        %6164 = vmatprep.subr.mxu0 0.0
        %6165 = vmatpush1.msra.mxu0 0.0
        %6166 = vmatprep.subr.mxu0 0.0
        %6167 = vmatpush1.msra.mxu0 0.0
        %6168 = vmatprep.subr.mxu0 0.0
        %6169 = vmatpush1.msra.mxu0 0.0
        %6170 = vmatprep.subr.mxu0 0.0
        %6171 = vmatpush1.msra.mxu0 0.0
        %6172 = vmatprep.subr.mxu0 0.0
        %6173 = vmatpush1.msra.mxu0 0.0
        %6174 = vmatprep.subr.mxu0 0.0
        %6175 = vmatpush1.msra.mxu0 0.0
        %6176 = vmatprep.subr.mxu0 0.0
        %6177 = vmatpush1.msra.mxu0 0.0
        %6178 = vmatprep.subr.mxu0 0.0
        %6179 = vmatpush1.msra.mxu0 0.0
        %6180 = vmatprep.subr.mxu0 0.0
        %6181 = vmatpush1.msra.mxu0 0.0
        %6182 = vmatprep.subr.mxu0 0.0
        %6183 = vmatpush1.msra.mxu0 0.0
        %6184 = vmatprep.subr.mxu0 0.0
        %6185 = vmatpush1.msra.mxu0 0.0
        %6186 = vmatprep.subr.mxu0 0.0
        %6187 = vmatpush1.msra.mxu0 0.0
        %6188 = vmatprep.subr.mxu0 0.0
        %6189 = vmatpush1.msra.mxu0 0.0
        %6190 = vmatprep.subr.mxu0 0.0
        %6191 = vmatpush1.msra.mxu0 0.0
        %6192 = vmatprep.subr.mxu0 0.0
        %6193 = vmatpush1.msra.mxu0 0.0
        %6194 = vmatprep.subr.mxu0 0.0
        %6195 = vmatpush1.msra.mxu0 0.0
        %6196 = vmatprep.subr.mxu0 0.0
        %6197 = vmatpush1.msra.mxu0 0.0
        %6198 = vmatprep.mubr.f32.mxu0 0.0
        %6199 = vmatmul.mubr.f32.gmra.mrb[0].mxu0 %v6055
        %v6200 = vpop.f32.mrb[0].mxu0
        %v6201 = vadd.f32 0.0, %v6200
        %v6202 = vpop.f32.mrb[0].mxu0
        %v6203 = vadd.f32 0.0, %v6202
        %6204 = vdwg.mxu0
        %v6205 = vadd.f32 %v6124, %v6201
        %v6206 = vadd.f32 %v6126, %v6203
        %v6207 = vld [vmem:[%s14] sm:$0x3]
        %6209 = vset.pattern.permute.xlu0 0
        %6210 = vperm.xlu0 %6209, %v6207
        %v6211 = vpop.permute.xlu0 %6210
        %v6213 = vadd.f32 %v6205, %v6211
        %v6214 = vadd.f32 %v6206, %v6211
        %v6215 = vpack.c.bf16 %v6213, %v6213
        %v6216 = vpack.c.bf16 %v6214, %v6214
        %v6217 = vunpack.c.l.bf16 %v6215
        %v6218 = vunpack.c.l.bf16 %v6216
        %v6219 = vsub.f32 %v6213, %v6217
        %v6220 = vsub.f32 %v6214, %v6218
        %v6221 = vpack.c.bf16 %v5455, %v5447
        %v6222 = vpack.c.bf16 %v5456, %v5448
        %v6223 = vpack.c.bf16 %v5457, %v5449
        %v6224 = vpack.c.bf16 %v5458, %v5450
        %v6225 = vpack.c.bf16 %v5459, %v5451
        %v6226 = vpack.c.bf16 %v5460, %v5452
        %v6227 = vpack.c.bf16 %v5461, %v5453
        %v6228 = vpack.c.bf16 %v5462, %v5454
        %v6229 = vpack.c.bf16 %v5471, %v5463
        %v6230 = vpack.c.bf16 %v5472, %v5464
        %v6231 = vpack.c.bf16 %v5473, %v5465
        %v6232 = vpack.c.bf16 %v5474, %v5466
        %v6233 = vpack.c.bf16 %v5475, %v5467
        %v6234 = vpack.c.bf16 %v5476, %v5468
        %v6235 = vpack.c.bf16 %v5477, %v5469
        %v6236 = vpack.c.bf16 %v5478, %v5470
        %v6237 = vpack.c.bf16 %v5487, %v5479
        %v6238 = vpack.c.bf16 %v5488, %v5480
        %v6239 = vpack.c.bf16 %v5489, %v5481
        %v6240 = vpack.c.bf16 %v5490, %v5482
        %v6241 = vpack.c.bf16 %v5491, %v5483
        %v6242 = vpack.c.bf16 %v5492, %v5484
        %v6243 = vpack.c.bf16 %v5493, %v5485
        %v6244 = vpack.c.bf16 %v5494, %v5486
        %v6245 = vpack.c.bf16 %v5503, %v5495
        %v6246 = vpack.c.bf16 %v5504, %v5496
        %v6247 = vpack.c.bf16 %v5505, %v5497
        %v6248 = vpack.c.bf16 %v5506, %v5498
        %v6249 = vpack.c.bf16 %v5507, %v5499
        %v6250 = vpack.c.bf16 %v5508, %v5500
        %v6251 = vpack.c.bf16 %v5509, %v5501
        %v6252 = vpack.c.bf16 %v5510, %v5502
        %v6253 = vpack.c.bf16 %v5519, %v5511
        %v6254 = vpack.c.bf16 %v5520, %v5512
        %v6255 = vpack.c.bf16 %v5521, %v5513
        %v6256 = vpack.c.bf16 %v5522, %v5514
        %v6257 = vpack.c.bf16 %v5523, %v5515
        %v6258 = vpack.c.bf16 %v5524, %v5516
        %v6259 = vpack.c.bf16 %v5525, %v5517
        %v6260 = vpack.c.bf16 %v5526, %v5518
        %v6261 = vpack.c.bf16 %v5535, %v5527
        %v6262 = vpack.c.bf16 %v5536, %v5528
        %v6263 = vpack.c.bf16 %v5537, %v5529
        %v6264 = vpack.c.bf16 %v5538, %v5530
        %v6265 = vpack.c.bf16 %v5539, %v5531
        %v6266 = vpack.c.bf16 %v5540, %v5532
        %v6267 = vpack.c.bf16 %v5541, %v5533
        %v6268 = vpack.c.bf16 %v5542, %v5534
        %v6269 = vpack.c.bf16 %v5551, %v5543
        %v6270 = vpack.c.bf16 %v5552, %v5544
        %v6271 = vpack.c.bf16 %v5553, %v5545
        %v6272 = vpack.c.bf16 %v5554, %v5546
        %v6273 = vpack.c.bf16 %v5555, %v5547
        %v6274 = vpack.c.bf16 %v5556, %v5548
        %v6275 = vpack.c.bf16 %v5557, %v5549
        %v6276 = vpack.c.bf16 %v5558, %v5550
        %v6277 = vpack.c.bf16 %v5567, %v5559
        %v6278 = vpack.c.bf16 %v5568, %v5560
        %v6279 = vpack.c.bf16 %v5569, %v5561
        %v6280 = vpack.c.bf16 %v5570, %v5562
        %v6281 = vpack.c.bf16 %v5571, %v5563
        %v6282 = vpack.c.bf16 %v5572, %v5564
        %v6283 = vpack.c.bf16 %v5573, %v5565
        %v6284 = vpack.c.bf16 %v5574, %v5566
        %v6285 = vpack.c.bf16 %v5583, %v5575
        %v6286 = vpack.c.bf16 %v5584, %v5576
        %v6287 = vpack.c.bf16 %v5585, %v5577
        %v6288 = vpack.c.bf16 %v5586, %v5578
        %v6289 = vpack.c.bf16 %v5587, %v5579
        %v6290 = vpack.c.bf16 %v5588, %v5580
        %v6291 = vpack.c.bf16 %v5589, %v5581
        %v6292 = vpack.c.bf16 %v5590, %v5582
        %v6293 = vpack.c.bf16 %v5599, %v5591
        %v6294 = vpack.c.bf16 %v5600, %v5592
        %v6295 = vpack.c.bf16 %v5601, %v5593
        %v6296 = vpack.c.bf16 %v5602, %v5594
        %v6297 = vpack.c.bf16 %v5603, %v5595
        %v6298 = vpack.c.bf16 %v5604, %v5596
        %v6299 = vpack.c.bf16 %v5605, %v5597
        %v6300 = vpack.c.bf16 %v5606, %v5598
        %v6301 = vpack.c.bf16 %v5615, %v5607
        %v6302 = vpack.c.bf16 %v5616, %v5608
        %v6303 = vpack.c.bf16 %v5617, %v5609
        %v6304 = vpack.c.bf16 %v5618, %v5610
        %v6305 = vpack.c.bf16 %v5619, %v5611
        %v6306 = vpack.c.bf16 %v5620, %v5612
        %v6307 = vpack.c.bf16 %v5621, %v5613
        %v6308 = vpack.c.bf16 %v5622, %v5614
        %v6309 = vpack.c.bf16 %v5631, %v5623
        %v6310 = vpack.c.bf16 %v5632, %v5624
        %v6311 = vpack.c.bf16 %v5633, %v5625
        %v6312 = vpack.c.bf16 %v5634, %v5626
        %v6313 = vpack.c.bf16 %v5635, %v5627
        %v6314 = vpack.c.bf16 %v5636, %v5628
        %v6315 = vpack.c.bf16 %v5637, %v5629
        %v6316 = vpack.c.bf16 %v5638, %v5630
        %v6317 = vpack.c.bf16 %v5647, %v5639
        %v6318 = vpack.c.bf16 %v5648, %v5640
        %v6319 = vpack.c.bf16 %v5649, %v5641
        %v6320 = vpack.c.bf16 %v5650, %v5642
        %v6321 = vpack.c.bf16 %v5651, %v5643
        %v6322 = vpack.c.bf16 %v5652, %v5644
        %v6323 = vpack.c.bf16 %v5653, %v5645
        %v6324 = vpack.c.bf16 %v5654, %v5646
        %v6325 = vpack.c.bf16 %v5663, %v5655
        %v6326 = vpack.c.bf16 %v5664, %v5656
        %v6327 = vpack.c.bf16 %v5665, %v5657
        %v6328 = vpack.c.bf16 %v5666, %v5658
        %v6329 = vpack.c.bf16 %v5667, %v5659
        %v6330 = vpack.c.bf16 %v5668, %v5660
        %v6331 = vpack.c.bf16 %v5669, %v5661
        %v6332 = vpack.c.bf16 %v5670, %v5662
        %v6333 = vpack.c.bf16 %v5679, %v5671
        %v6334 = vpack.c.bf16 %v5680, %v5672
        %v6335 = vpack.c.bf16 %v5681, %v5673
        %v6336 = vpack.c.bf16 %v5682, %v5674
        %v6337 = vpack.c.bf16 %v5683, %v5675
        %v6338 = vpack.c.bf16 %v5684, %v5676
        %v6339 = vpack.c.bf16 %v5685, %v5677
        %v6340 = vpack.c.bf16 %v5686, %v5678
        %v6341 = vpack.c.bf16 %v5695, %v5687
        %v6342 = vpack.c.bf16 %v5696, %v5688
        %v6343 = vpack.c.bf16 %v5697, %v5689
        %v6344 = vpack.c.bf16 %v5698, %v5690
        %v6345 = vpack.c.bf16 %v5699, %v5691
        %v6346 = vpack.c.bf16 %v5700, %v5692
        %v6347 = vpack.c.bf16 %v5701, %v5693
        %v6348 = vpack.c.bf16 %v5702, %v5694
        %v6349 = vunpack.c.l.bf16 %v6221
        %v6350 = vunpack.c.l.bf16 %v6222
        %v6351 = vunpack.c.l.bf16 %v6223
        %v6352 = vunpack.c.l.bf16 %v6224
        %v6353 = vunpack.c.l.bf16 %v6225
        %v6354 = vunpack.c.l.bf16 %v6226
        %v6355 = vunpack.c.l.bf16 %v6227
        %v6356 = vunpack.c.l.bf16 %v6228
        %v6357 = vunpack.c.h.bf16 %v6221
        %v6358 = vunpack.c.h.bf16 %v6222
        %v6359 = vunpack.c.h.bf16 %v6223
        %v6360 = vunpack.c.h.bf16 %v6224
        %v6361 = vunpack.c.h.bf16 %v6225
        %v6362 = vunpack.c.h.bf16 %v6226
        %v6363 = vunpack.c.h.bf16 %v6227
        %v6364 = vunpack.c.h.bf16 %v6228
        %v6365 = vunpack.c.l.bf16 %v6229
        %v6366 = vunpack.c.l.bf16 %v6230
        %v6367 = vunpack.c.l.bf16 %v6231
        %v6368 = vunpack.c.l.bf16 %v6232
        %v6369 = vunpack.c.l.bf16 %v6233
        %v6370 = vunpack.c.l.bf16 %v6234
        %v6371 = vunpack.c.l.bf16 %v6235
        %v6372 = vunpack.c.l.bf16 %v6236
        %v6373 = vunpack.c.h.bf16 %v6229
        %v6374 = vunpack.c.h.bf16 %v6230
        %v6375 = vunpack.c.h.bf16 %v6231
        %v6376 = vunpack.c.h.bf16 %v6232
        %v6377 = vunpack.c.h.bf16 %v6233
        %v6378 = vunpack.c.h.bf16 %v6234
        %v6379 = vunpack.c.h.bf16 %v6235
        %v6380 = vunpack.c.h.bf16 %v6236
        %v6381 = vunpack.c.l.bf16 %v6237
        %v6382 = vunpack.c.l.bf16 %v6238
        %v6383 = vunpack.c.l.bf16 %v6239
        %v6384 = vunpack.c.l.bf16 %v6240
        %v6385 = vunpack.c.l.bf16 %v6241
        %v6386 = vunpack.c.l.bf16 %v6242
        %v6387 = vunpack.c.l.bf16 %v6243
        %v6388 = vunpack.c.l.bf16 %v6244
        %v6389 = vunpack.c.h.bf16 %v6237
        %v6390 = vunpack.c.h.bf16 %v6238
        %v6391 = vunpack.c.h.bf16 %v6239
        %v6392 = vunpack.c.h.bf16 %v6240
        %v6393 = vunpack.c.h.bf16 %v6241
        %v6394 = vunpack.c.h.bf16 %v6242
        %v6395 = vunpack.c.h.bf16 %v6243
        %v6396 = vunpack.c.h.bf16 %v6244
        %v6397 = vunpack.c.l.bf16 %v6245
        %v6398 = vunpack.c.l.bf16 %v6246
        %v6399 = vunpack.c.l.bf16 %v6247
        %v6400 = vunpack.c.l.bf16 %v6248
        %v6401 = vunpack.c.l.bf16 %v6249
        %v6402 = vunpack.c.l.bf16 %v6250
        %v6403 = vunpack.c.l.bf16 %v6251
        %v6404 = vunpack.c.l.bf16 %v6252
        %v6405 = vunpack.c.h.bf16 %v6245
        %v6406 = vunpack.c.h.bf16 %v6246
        %v6407 = vunpack.c.h.bf16 %v6247
        %v6408 = vunpack.c.h.bf16 %v6248
        %v6409 = vunpack.c.h.bf16 %v6249
        %v6410 = vunpack.c.h.bf16 %v6250
        %v6411 = vunpack.c.h.bf16 %v6251
        %v6412 = vunpack.c.h.bf16 %v6252
        %v6413 = vunpack.c.l.bf16 %v6253
        %v6414 = vunpack.c.l.bf16 %v6254
        %v6415 = vunpack.c.l.bf16 %v6255
        %v6416 = vunpack.c.l.bf16 %v6256
        %v6417 = vunpack.c.l.bf16 %v6257
        %v6418 = vunpack.c.l.bf16 %v6258
        %v6419 = vunpack.c.l.bf16 %v6259
        %v6420 = vunpack.c.l.bf16 %v6260
        %v6421 = vunpack.c.h.bf16 %v6253
        %v6422 = vunpack.c.h.bf16 %v6254
        %v6423 = vunpack.c.h.bf16 %v6255
        %v6424 = vunpack.c.h.bf16 %v6256
        %v6425 = vunpack.c.h.bf16 %v6257
        %v6426 = vunpack.c.h.bf16 %v6258
        %v6427 = vunpack.c.h.bf16 %v6259
        %v6428 = vunpack.c.h.bf16 %v6260
        %v6429 = vunpack.c.l.bf16 %v6261
        %v6430 = vunpack.c.l.bf16 %v6262
        %v6431 = vunpack.c.l.bf16 %v6263
        %v6432 = vunpack.c.l.bf16 %v6264
        %v6433 = vunpack.c.l.bf16 %v6265
        %v6434 = vunpack.c.l.bf16 %v6266
        %v6435 = vunpack.c.l.bf16 %v6267
        %v6436 = vunpack.c.l.bf16 %v6268
        %v6437 = vunpack.c.h.bf16 %v6261
        %v6438 = vunpack.c.h.bf16 %v6262
        %v6439 = vunpack.c.h.bf16 %v6263
        %v6440 = vunpack.c.h.bf16 %v6264
        %v6441 = vunpack.c.h.bf16 %v6265
        %v6442 = vunpack.c.h.bf16 %v6266
        %v6443 = vunpack.c.h.bf16 %v6267
        %v6444 = vunpack.c.h.bf16 %v6268
        %v6445 = vunpack.c.l.bf16 %v6269
        %v6446 = vunpack.c.l.bf16 %v6270
        %v6447 = vunpack.c.l.bf16 %v6271
        %v6448 = vunpack.c.l.bf16 %v6272
        %v6449 = vunpack.c.l.bf16 %v6273
        %v6450 = vunpack.c.l.bf16 %v6274
        %v6451 = vunpack.c.l.bf16 %v6275
        %v6452 = vunpack.c.l.bf16 %v6276
        %v6453 = vunpack.c.h.bf16 %v6269
        %v6454 = vunpack.c.h.bf16 %v6270
        %v6455 = vunpack.c.h.bf16 %v6271
        %v6456 = vunpack.c.h.bf16 %v6272
        %v6457 = vunpack.c.h.bf16 %v6273
        %v6458 = vunpack.c.h.bf16 %v6274
        %v6459 = vunpack.c.h.bf16 %v6275
        %v6460 = vunpack.c.h.bf16 %v6276
        %v6461 = vunpack.c.l.bf16 %v6277
        %v6462 = vunpack.c.l.bf16 %v6278
        %v6463 = vunpack.c.l.bf16 %v6279
        %v6464 = vunpack.c.l.bf16 %v6280
        %v6465 = vunpack.c.l.bf16 %v6281
        %v6466 = vunpack.c.l.bf16 %v6282
        %v6467 = vunpack.c.l.bf16 %v6283
        %v6468 = vunpack.c.l.bf16 %v6284
        %v6469 = vunpack.c.h.bf16 %v6277
        %v6470 = vunpack.c.h.bf16 %v6278
        %v6471 = vunpack.c.h.bf16 %v6279
        %v6472 = vunpack.c.h.bf16 %v6280
        %v6473 = vunpack.c.h.bf16 %v6281
        %v6474 = vunpack.c.h.bf16 %v6282
        %v6475 = vunpack.c.h.bf16 %v6283
        %v6476 = vunpack.c.h.bf16 %v6284
        %v6477 = vunpack.c.l.bf16 %v6285
        %v6478 = vunpack.c.l.bf16 %v6286
        %v6479 = vunpack.c.l.bf16 %v6287
        %v6480 = vunpack.c.l.bf16 %v6288
        %v6481 = vunpack.c.l.bf16 %v6289
        %v6482 = vunpack.c.l.bf16 %v6290
        %v6483 = vunpack.c.l.bf16 %v6291
        %v6484 = vunpack.c.l.bf16 %v6292
        %v6485 = vunpack.c.h.bf16 %v6285
        %v6486 = vunpack.c.h.bf16 %v6286
        %v6487 = vunpack.c.h.bf16 %v6287
        %v6488 = vunpack.c.h.bf16 %v6288
        %v6489 = vunpack.c.h.bf16 %v6289
        %v6490 = vunpack.c.h.bf16 %v6290
        %v6491 = vunpack.c.h.bf16 %v6291
        %v6492 = vunpack.c.h.bf16 %v6292
        %v6493 = vunpack.c.l.bf16 %v6293
        %v6494 = vunpack.c.l.bf16 %v6294
        %v6495 = vunpack.c.l.bf16 %v6295
        %v6496 = vunpack.c.l.bf16 %v6296
        %v6497 = vunpack.c.l.bf16 %v6297
        %v6498 = vunpack.c.l.bf16 %v6298
        %v6499 = vunpack.c.l.bf16 %v6299
        %v6500 = vunpack.c.l.bf16 %v6300
        %v6501 = vunpack.c.h.bf16 %v6293
        %v6502 = vunpack.c.h.bf16 %v6294
        %v6503 = vunpack.c.h.bf16 %v6295
        %v6504 = vunpack.c.h.bf16 %v6296
        %v6505 = vunpack.c.h.bf16 %v6297
        %v6506 = vunpack.c.h.bf16 %v6298
        %v6507 = vunpack.c.h.bf16 %v6299
        %v6508 = vunpack.c.h.bf16 %v6300
        %v6509 = vunpack.c.l.bf16 %v6301
        %v6510 = vunpack.c.l.bf16 %v6302
        %v6511 = vunpack.c.l.bf16 %v6303
        %v6512 = vunpack.c.l.bf16 %v6304
        %v6513 = vunpack.c.l.bf16 %v6305
        %v6514 = vunpack.c.l.bf16 %v6306
        %v6515 = vunpack.c.l.bf16 %v6307
        %v6516 = vunpack.c.l.bf16 %v6308
        %v6517 = vunpack.c.h.bf16 %v6301
        %v6518 = vunpack.c.h.bf16 %v6302
        %v6519 = vunpack.c.h.bf16 %v6303
        %v6520 = vunpack.c.h.bf16 %v6304
        %v6521 = vunpack.c.h.bf16 %v6305
        %v6522 = vunpack.c.h.bf16 %v6306
        %v6523 = vunpack.c.h.bf16 %v6307
        %v6524 = vunpack.c.h.bf16 %v6308
        %v6525 = vunpack.c.l.bf16 %v6309
        %v6526 = vunpack.c.l.bf16 %v6310
        %v6527 = vunpack.c.l.bf16 %v6311
        %v6528 = vunpack.c.l.bf16 %v6312
        %v6529 = vunpack.c.l.bf16 %v6313
        %v6530 = vunpack.c.l.bf16 %v6314
        %v6531 = vunpack.c.l.bf16 %v6315
        %v6532 = vunpack.c.l.bf16 %v6316
        %v6533 = vunpack.c.h.bf16 %v6309
        %v6534 = vunpack.c.h.bf16 %v6310
        %v6535 = vunpack.c.h.bf16 %v6311
        %v6536 = vunpack.c.h.bf16 %v6312
        %v6537 = vunpack.c.h.bf16 %v6313
        %v6538 = vunpack.c.h.bf16 %v6314
        %v6539 = vunpack.c.h.bf16 %v6315
        %v6540 = vunpack.c.h.bf16 %v6316
        %v6541 = vunpack.c.l.bf16 %v6317
        %v6542 = vunpack.c.l.bf16 %v6318
        %v6543 = vunpack.c.l.bf16 %v6319
        %v6544 = vunpack.c.l.bf16 %v6320
        %v6545 = vunpack.c.l.bf16 %v6321
        %v6546 = vunpack.c.l.bf16 %v6322
        %v6547 = vunpack.c.l.bf16 %v6323
        %v6548 = vunpack.c.l.bf16 %v6324
        %v6549 = vunpack.c.h.bf16 %v6317
        %v6550 = vunpack.c.h.bf16 %v6318
        %v6551 = vunpack.c.h.bf16 %v6319
        %v6552 = vunpack.c.h.bf16 %v6320
        %v6553 = vunpack.c.h.bf16 %v6321
        %v6554 = vunpack.c.h.bf16 %v6322
        %v6555 = vunpack.c.h.bf16 %v6323
        %v6556 = vunpack.c.h.bf16 %v6324
        %v6557 = vunpack.c.l.bf16 %v6325
        %v6558 = vunpack.c.l.bf16 %v6326
        %v6559 = vunpack.c.l.bf16 %v6327
        %v6560 = vunpack.c.l.bf16 %v6328
        %v6561 = vunpack.c.l.bf16 %v6329
        %v6562 = vunpack.c.l.bf16 %v6330
        %v6563 = vunpack.c.l.bf16 %v6331
        %v6564 = vunpack.c.l.bf16 %v6332
        %v6565 = vunpack.c.h.bf16 %v6325
        %v6566 = vunpack.c.h.bf16 %v6326
        %v6567 = vunpack.c.h.bf16 %v6327
        %v6568 = vunpack.c.h.bf16 %v6328
        %v6569 = vunpack.c.h.bf16 %v6329
        %v6570 = vunpack.c.h.bf16 %v6330
        %v6571 = vunpack.c.h.bf16 %v6331
        %v6572 = vunpack.c.h.bf16 %v6332
        %v6573 = vunpack.c.l.bf16 %v6333
        %v6574 = vunpack.c.l.bf16 %v6334
        %v6575 = vunpack.c.l.bf16 %v6335
        %v6576 = vunpack.c.l.bf16 %v6336
        %v6577 = vunpack.c.l.bf16 %v6337
        %v6578 = vunpack.c.l.bf16 %v6338
        %v6579 = vunpack.c.l.bf16 %v6339
        %v6580 = vunpack.c.l.bf16 %v6340
        %v6581 = vunpack.c.h.bf16 %v6333
        %v6582 = vunpack.c.h.bf16 %v6334
        %v6583 = vunpack.c.h.bf16 %v6335
        %v6584 = vunpack.c.h.bf16 %v6336
        %v6585 = vunpack.c.h.bf16 %v6337
        %v6586 = vunpack.c.h.bf16 %v6338
        %v6587 = vunpack.c.h.bf16 %v6339
        %v6588 = vunpack.c.h.bf16 %v6340
        %v6589 = vunpack.c.l.bf16 %v6341
        %v6590 = vunpack.c.l.bf16 %v6342
        %v6591 = vunpack.c.l.bf16 %v6343
        %v6592 = vunpack.c.l.bf16 %v6344
        %v6593 = vunpack.c.l.bf16 %v6345
        %v6594 = vunpack.c.l.bf16 %v6346
        %v6595 = vunpack.c.l.bf16 %v6347
        %v6596 = vunpack.c.l.bf16 %v6348
        %v6597 = vunpack.c.h.bf16 %v6341
        %v6598 = vunpack.c.h.bf16 %v6342
        %v6599 = vunpack.c.h.bf16 %v6343
        %v6600 = vunpack.c.h.bf16 %v6344
        %v6601 = vunpack.c.h.bf16 %v6345
        %v6602 = vunpack.c.h.bf16 %v6346
        %v6603 = vunpack.c.h.bf16 %v6347
        %v6604 = vunpack.c.h.bf16 %v6348
        %v6605 = vsub.f32 %v5447, %v6349
        %v6606 = vsub.f32 %v5448, %v6350
        %v6607 = vsub.f32 %v5449, %v6351
        %v6608 = vsub.f32 %v5450, %v6352
        %v6609 = vsub.f32 %v5451, %v6353
        %v6610 = vsub.f32 %v5452, %v6354
        %v6611 = vsub.f32 %v5453, %v6355
        %v6612 = vsub.f32 %v5454, %v6356
        %v6613 = vsub.f32 %v5455, %v6357
        %v6614 = vsub.f32 %v5456, %v6358
        %v6615 = vsub.f32 %v5457, %v6359
        %v6616 = vsub.f32 %v5458, %v6360
        %v6617 = vsub.f32 %v5459, %v6361
        %v6618 = vsub.f32 %v5460, %v6362
        %v6619 = vsub.f32 %v5461, %v6363
        %v6620 = vsub.f32 %v5462, %v6364
        %v6621 = vsub.f32 %v5463, %v6365
        %v6622 = vsub.f32 %v5464, %v6366
        %v6623 = vsub.f32 %v5465, %v6367
        %v6624 = vsub.f32 %v5466, %v6368
        %v6625 = vsub.f32 %v5467, %v6369
        %v6626 = vsub.f32 %v5468, %v6370
        %v6627 = vsub.f32 %v5469, %v6371
        %v6628 = vsub.f32 %v5470, %v6372
        %v6629 = vsub.f32 %v5471, %v6373
        %v6630 = vsub.f32 %v5472, %v6374
        %v6631 = vsub.f32 %v5473, %v6375
        %v6632 = vsub.f32 %v5474, %v6376
        %v6633 = vsub.f32 %v5475, %v6377
        %v6634 = vsub.f32 %v5476, %v6378
        %v6635 = vsub.f32 %v5477, %v6379
        %v6636 = vsub.f32 %v5478, %v6380
        %v6637 = vsub.f32 %v5479, %v6381
        %v6638 = vsub.f32 %v5480, %v6382
        %v6639 = vsub.f32 %v5481, %v6383
        %v6640 = vsub.f32 %v5482, %v6384
        %v6641 = vsub.f32 %v5483, %v6385
        %v6642 = vsub.f32 %v5484, %v6386
        %v6643 = vsub.f32 %v5485, %v6387
        %v6644 = vsub.f32 %v5486, %v6388
        %v6645 = vsub.f32 %v5487, %v6389
        %v6646 = vsub.f32 %v5488, %v6390
        %v6647 = vsub.f32 %v5489, %v6391
        %v6648 = vsub.f32 %v5490, %v6392
        %v6649 = vsub.f32 %v5491, %v6393
        %v6650 = vsub.f32 %v5492, %v6394
        %v6651 = vsub.f32 %v5493, %v6395
        %v6652 = vsub.f32 %v5494, %v6396
        %v6653 = vsub.f32 %v5495, %v6397
        %v6654 = vsub.f32 %v5496, %v6398
        %v6655 = vsub.f32 %v5497, %v6399
        %v6656 = vsub.f32 %v5498, %v6400
        %v6657 = vsub.f32 %v5499, %v6401
        %v6658 = vsub.f32 %v5500, %v6402
        %v6659 = vsub.f32 %v5501, %v6403
        %v6660 = vsub.f32 %v5502, %v6404
        %v6661 = vsub.f32 %v5503, %v6405
        %v6662 = vsub.f32 %v5504, %v6406
        %v6663 = vsub.f32 %v5505, %v6407
        %v6664 = vsub.f32 %v5506, %v6408
        %v6665 = vsub.f32 %v5507, %v6409
        %v6666 = vsub.f32 %v5508, %v6410
        %v6667 = vsub.f32 %v5509, %v6411
        %v6668 = vsub.f32 %v5510, %v6412
        %v6669 = vsub.f32 %v5511, %v6413
        %v6670 = vsub.f32 %v5512, %v6414
        %v6671 = vsub.f32 %v5513, %v6415
        %v6672 = vsub.f32 %v5514, %v6416
        %v6673 = vsub.f32 %v5515, %v6417
        %v6674 = vsub.f32 %v5516, %v6418
        %v6675 = vsub.f32 %v5517, %v6419
        %v6676 = vsub.f32 %v5518, %v6420
        %v6677 = vsub.f32 %v5519, %v6421
        %v6678 = vsub.f32 %v5520, %v6422
        %v6679 = vsub.f32 %v5521, %v6423
        %v6680 = vsub.f32 %v5522, %v6424
        %v6681 = vsub.f32 %v5523, %v6425
        %v6682 = vsub.f32 %v5524, %v6426
        %v6683 = vsub.f32 %v5525, %v6427
        %v6684 = vsub.f32 %v5526, %v6428
        %v6685 = vsub.f32 %v5527, %v6429
        %v6686 = vsub.f32 %v5528, %v6430
        %v6687 = vsub.f32 %v5529, %v6431
        %v6688 = vsub.f32 %v5530, %v6432
        %v6689 = vsub.f32 %v5531, %v6433
        %v6690 = vsub.f32 %v5532, %v6434
        %v6691 = vsub.f32 %v5533, %v6435
        %v6692 = vsub.f32 %v5534, %v6436
        %v6693 = vsub.f32 %v5535, %v6437
        %v6694 = vsub.f32 %v5536, %v6438
        %v6695 = vsub.f32 %v5537, %v6439
        %v6696 = vsub.f32 %v5538, %v6440
        %v6697 = vsub.f32 %v5539, %v6441
        %v6698 = vsub.f32 %v5540, %v6442
        %v6699 = vsub.f32 %v5541, %v6443
        %v6700 = vsub.f32 %v5542, %v6444
        %v6701 = vsub.f32 %v5543, %v6445
        %v6702 = vsub.f32 %v5544, %v6446
        %v6703 = vsub.f32 %v5545, %v6447
        %v6704 = vsub.f32 %v5546, %v6448
        %v6705 = vsub.f32 %v5547, %v6449
        %v6706 = vsub.f32 %v5548, %v6450
        %v6707 = vsub.f32 %v5549, %v6451
        %v6708 = vsub.f32 %v5550, %v6452
        %v6709 = vsub.f32 %v5551, %v6453
        %v6710 = vsub.f32 %v5552, %v6454
        %v6711 = vsub.f32 %v5553, %v6455
        %v6712 = vsub.f32 %v5554, %v6456
        %v6713 = vsub.f32 %v5555, %v6457
        %v6714 = vsub.f32 %v5556, %v6458
        %v6715 = vsub.f32 %v5557, %v6459
        %v6716 = vsub.f32 %v5558, %v6460
        %v6717 = vsub.f32 %v5559, %v6461
        %v6718 = vsub.f32 %v5560, %v6462
        %v6719 = vsub.f32 %v5561, %v6463
        %v6720 = vsub.f32 %v5562, %v6464
        %v6721 = vsub.f32 %v5563, %v6465
        %v6722 = vsub.f32 %v5564, %v6466
        %v6723 = vsub.f32 %v5565, %v6467
        %v6724 = vsub.f32 %v5566, %v6468
        %v6725 = vsub.f32 %v5567, %v6469
        %v6726 = vsub.f32 %v5568, %v6470
        %v6727 = vsub.f32 %v5569, %v6471
        %v6728 = vsub.f32 %v5570, %v6472
        %v6729 = vsub.f32 %v5571, %v6473
        %v6730 = vsub.f32 %v5572, %v6474
        %v6731 = vsub.f32 %v5573, %v6475
        %v6732 = vsub.f32 %v5574, %v6476
        %v6733 = vsub.f32 %v5575, %v6477
        %v6734 = vsub.f32 %v5576, %v6478
        %v6735 = vsub.f32 %v5577, %v6479
        %v6736 = vsub.f32 %v5578, %v6480
        %v6737 = vsub.f32 %v5579, %v6481
        %v6738 = vsub.f32 %v5580, %v6482
        %v6739 = vsub.f32 %v5581, %v6483
        %v6740 = vsub.f32 %v5582, %v6484
        %v6741 = vsub.f32 %v5583, %v6485
        %v6742 = vsub.f32 %v5584, %v6486
        %v6743 = vsub.f32 %v5585, %v6487
        %v6744 = vsub.f32 %v5586, %v6488
        %v6745 = vsub.f32 %v5587, %v6489
        %v6746 = vsub.f32 %v5588, %v6490
        %v6747 = vsub.f32 %v5589, %v6491
        %v6748 = vsub.f32 %v5590, %v6492
        %v6749 = vsub.f32 %v5591, %v6493
        %v6750 = vsub.f32 %v5592, %v6494
        %v6751 = vsub.f32 %v5593, %v6495
        %v6752 = vsub.f32 %v5594, %v6496
        %v6753 = vsub.f32 %v5595, %v6497
        %v6754 = vsub.f32 %v5596, %v6498
        %v6755 = vsub.f32 %v5597, %v6499
        %v6756 = vsub.f32 %v5598, %v6500
        %v6757 = vsub.f32 %v5599, %v6501
        %v6758 = vsub.f32 %v5600, %v6502
        %v6759 = vsub.f32 %v5601, %v6503
        %v6760 = vsub.f32 %v5602, %v6504
        %v6761 = vsub.f32 %v5603, %v6505
        %v6762 = vsub.f32 %v5604, %v6506
        %v6763 = vsub.f32 %v5605, %v6507
        %v6764 = vsub.f32 %v5606, %v6508
        %v6765 = vsub.f32 %v5607, %v6509
        %v6766 = vsub.f32 %v5608, %v6510
        %v6767 = vsub.f32 %v5609, %v6511
        %v6768 = vsub.f32 %v5610, %v6512
        %v6769 = vsub.f32 %v5611, %v6513
        %v6770 = vsub.f32 %v5612, %v6514
        %v6771 = vsub.f32 %v5613, %v6515
        %v6772 = vsub.f32 %v5614, %v6516
        %v6773 = vsub.f32 %v5615, %v6517
        %v6774 = vsub.f32 %v5616, %v6518
        %v6775 = vsub.f32 %v5617, %v6519
        %v6776 = vsub.f32 %v5618, %v6520
        %v6777 = vsub.f32 %v5619, %v6521
        %v6778 = vsub.f32 %v5620, %v6522
        %v6779 = vsub.f32 %v5621, %v6523
        %v6780 = vsub.f32 %v5622, %v6524
        %v6781 = vsub.f32 %v5623, %v6525
        %v6782 = vsub.f32 %v5624, %v6526
        %v6783 = vsub.f32 %v5625, %v6527
        %v6784 = vsub.f32 %v5626, %v6528
        %v6785 = vsub.f32 %v5627, %v6529
        %v6786 = vsub.f32 %v5628, %v6530
        %v6787 = vsub.f32 %v5629, %v6531
        %v6788 = vsub.f32 %v5630, %v6532
        %v6789 = vsub.f32 %v5631, %v6533
        %v6790 = vsub.f32 %v5632, %v6534
        %v6791 = vsub.f32 %v5633, %v6535
        %v6792 = vsub.f32 %v5634, %v6536
        %v6793 = vsub.f32 %v5635, %v6537
        %v6794 = vsub.f32 %v5636, %v6538
        %v6795 = vsub.f32 %v5637, %v6539
        %v6796 = vsub.f32 %v5638, %v6540
        %v6797 = vsub.f32 %v5639, %v6541
        %v6798 = vsub.f32 %v5640, %v6542
        %v6799 = vsub.f32 %v5641, %v6543
        %v6800 = vsub.f32 %v5642, %v6544
        %v6801 = vsub.f32 %v5643, %v6545
        %v6802 = vsub.f32 %v5644, %v6546
        %v6803 = vsub.f32 %v5645, %v6547
        %v6804 = vsub.f32 %v5646, %v6548
        %v6805 = vsub.f32 %v5647, %v6549
        %v6806 = vsub.f32 %v5648, %v6550
        %v6807 = vsub.f32 %v5649, %v6551
        %v6808 = vsub.f32 %v5650, %v6552
        %v6809 = vsub.f32 %v5651, %v6553
        %v6810 = vsub.f32 %v5652, %v6554
        %v6811 = vsub.f32 %v5653, %v6555
        %v6812 = vsub.f32 %v5654, %v6556
        %v6813 = vsub.f32 %v5655, %v6557
        %v6814 = vsub.f32 %v5656, %v6558
        %v6815 = vsub.f32 %v5657, %v6559
        %v6816 = vsub.f32 %v5658, %v6560
        %v6817 = vsub.f32 %v5659, %v6561
        %v6818 = vsub.f32 %v5660, %v6562
        %v6819 = vsub.f32 %v5661, %v6563
        %v6820 = vsub.f32 %v5662, %v6564
        %v6821 = vsub.f32 %v5663, %v6565
        %v6822 = vsub.f32 %v5664, %v6566
        %v6823 = vsub.f32 %v5665, %v6567
        %v6824 = vsub.f32 %v5666, %v6568
        %v6825 = vsub.f32 %v5667, %v6569
        %v6826 = vsub.f32 %v5668, %v6570
        %v6827 = vsub.f32 %v5669, %v6571
        %v6828 = vsub.f32 %v5670, %v6572
        %v6829 = vsub.f32 %v5671, %v6573
        %v6830 = vsub.f32 %v5672, %v6574
        %v6831 = vsub.f32 %v5673, %v6575
        %v6832 = vsub.f32 %v5674, %v6576
        %v6833 = vsub.f32 %v5675, %v6577
        %v6834 = vsub.f32 %v5676, %v6578
        %v6835 = vsub.f32 %v5677, %v6579
        %v6836 = vsub.f32 %v5678, %v6580
        %v6837 = vsub.f32 %v5679, %v6581
        %v6838 = vsub.f32 %v5680, %v6582
        %v6839 = vsub.f32 %v5681, %v6583
        %v6840 = vsub.f32 %v5682, %v6584
        %v6841 = vsub.f32 %v5683, %v6585
        %v6842 = vsub.f32 %v5684, %v6586
        %v6843 = vsub.f32 %v5685, %v6587
        %v6844 = vsub.f32 %v5686, %v6588
        %v6845 = vsub.f32 %v5687, %v6589
        %v6846 = vsub.f32 %v5688, %v6590
        %v6847 = vsub.f32 %v5689, %v6591
        %v6848 = vsub.f32 %v5690, %v6592
        %v6849 = vsub.f32 %v5691, %v6593
        %v6850 = vsub.f32 %v5692, %v6594
        %v6851 = vsub.f32 %v5693, %v6595
        %v6852 = vsub.f32 %v5694, %v6596
        %v6853 = vsub.f32 %v5695, %v6597
        %v6854 = vsub.f32 %v5696, %v6598
        %v6855 = vsub.f32 %v5697, %v6599
        %v6856 = vsub.f32 %v5698, %v6600
        %v6857 = vsub.f32 %v5699, %v6601
        %v6858 = vsub.f32 %v5700, %v6602
        %v6859 = vsub.f32 %v5701, %v6603
        %v6860 = vsub.f32 %v5702, %v6604
        %6861 = vmatprep.subr.mxu0 %v6350
        %6862 = vmatpush1.msra.mxu0 %v6349
        %6863 = vmatprep.subr.mxu0 %v6358
        %6864 = vmatpush1.msra.mxu0 %v6357
        %6865 = vmatprep.subr.mxu0 %v6366
        %6866 = vmatpush1.msra.mxu0 %v6365
        %6867 = vmatprep.subr.mxu0 %v6374
        %6868 = vmatpush1.msra.mxu0 %v6373
        %6869 = vmatprep.subr.mxu0 %v6382
        %6870 = vmatpush1.msra.mxu0 %v6381
        %6871 = vmatprep.subr.mxu0 %v6390
        %6872 = vmatpush1.msra.mxu0 %v6389
        %6873 = vmatprep.subr.mxu0 %v6398
        %6874 = vmatpush1.msra.mxu0 %v6397
        %6875 = vmatprep.subr.mxu0 %v6406
        %6876 = vmatpush1.msra.mxu0 %v6405
        %6877 = vmatprep.subr.mxu0 %v6414
        %6878 = vmatpush1.msra.mxu0 %v6413
        %6879 = vmatprep.subr.mxu0 %v6422
        %6880 = vmatpush1.msra.mxu0 %v6421
        %6881 = vmatprep.subr.mxu0 %v6430
        %6882 = vmatpush1.msra.mxu0 %v6429
        %6883 = vmatprep.subr.mxu0 %v6438
        %6884 = vmatpush1.msra.mxu0 %v6437
        %6885 = vmatprep.subr.mxu0 %v6446
        %6886 = vmatpush1.msra.mxu0 %v6445
        %6887 = vmatprep.subr.mxu0 %v6454
        %6888 = vmatpush1.msra.mxu0 %v6453
        %6889 = vmatprep.subr.mxu0 %v6462
        %6890 = vmatpush1.msra.mxu0 %v6461
        %6891 = vmatprep.subr.mxu0 %v6470
        %6892 = vmatpush1.msra.mxu0 %v6469
        %6893 = vmatprep.subr.mxu0 %v6478
        %6894 = vmatpush1.msra.mxu0 %v6477
        %6895 = vmatprep.subr.mxu0 %v6486
        %6896 = vmatpush1.msra.mxu0 %v6485
        %6897 = vmatprep.subr.mxu0 %v6494
        %6898 = vmatpush1.msra.mxu0 %v6493
        %6899 = vmatprep.subr.mxu0 %v6502
        %6900 = vmatpush1.msra.mxu0 %v6501
        %6901 = vmatprep.subr.mxu0 %v6510
        %6902 = vmatpush1.msra.mxu0 %v6509
        %6903 = vmatprep.subr.mxu0 %v6518
        %6904 = vmatpush1.msra.mxu0 %v6517
        %6905 = vmatprep.subr.mxu0 %v6526
        %6906 = vmatpush1.msra.mxu0 %v6525
        %6907 = vmatprep.subr.mxu0 %v6534
        %6908 = vmatpush1.msra.mxu0 %v6533
        %6909 = vmatprep.subr.mxu0 %v6542
        %6910 = vmatpush1.msra.mxu0 %v6541
        %6911 = vmatprep.subr.mxu0 %v6550
        %6912 = vmatpush1.msra.mxu0 %v6549
        %6913 = vmatprep.subr.mxu0 %v6558
        %6914 = vmatpush1.msra.mxu0 %v6557
        %6915 = vmatprep.subr.mxu0 %v6566
        %6916 = vmatpush1.msra.mxu0 %v6565
        %6917 = vmatprep.subr.mxu0 %v6574
        %6918 = vmatpush1.msra.mxu0 %v6573
        %6919 = vmatprep.subr.mxu0 %v6582
        %6920 = vmatpush1.msra.mxu0 %v6581
        %6921 = vmatprep.subr.mxu0 %v6590
        %6922 = vmatpush1.msra.mxu0 %v6589
        %6923 = vmatprep.subr.mxu0 %v6598
        %6924 = vmatpush1.msra.mxu0 %v6597
        %6925 = vmatprep.mubr.f32.mxu0 %v6220
        %6926 = vmatmul.mubr.f32.gmra.mrb[0].mxu0 %v6219
        %v6927 = vpop.f32.mrb[0].mxu0
        %v6928 = vadd.f32 0.0, %v6927
        %v6929 = vpop.f32.mrb[0].mxu0
        %v6930 = vadd.f32 0.0, %v6929
        %6931 = vdwg.mxu0
        %6932 = vmatprep.subr.mxu0 %v6352
        %6933 = vmatpush1.msra.mxu0 %v6351
        %6934 = vmatprep.subr.mxu0 %v6360
        %6935 = vmatpush1.msra.mxu0 %v6359
        %6936 = vmatprep.subr.mxu0 %v6368
        %6937 = vmatpush1.msra.mxu0 %v6367
        %6938 = vmatprep.subr.mxu0 %v6376
        %6939 = vmatpush1.msra.mxu0 %v6375
        %6940 = vmatprep.subr.mxu0 %v6384
        %6941 = vmatpush1.msra.mxu0 %v6383
        %6942 = vmatprep.subr.mxu0 %v6392
        %6943 = vmatpush1.msra.mxu0 %v6391
        %6944 = vmatprep.subr.mxu0 %v6400
        %6945 = vmatpush1.msra.mxu0 %v6399
        %6946 = vmatprep.subr.mxu0 %v6408
        %6947 = vmatpush1.msra.mxu0 %v6407
        %6948 = vmatprep.subr.mxu0 %v6416
        %6949 = vmatpush1.msra.mxu0 %v6415
        %6950 = vmatprep.subr.mxu0 %v6424
        %6951 = vmatpush1.msra.mxu0 %v6423
        %6952 = vmatprep.subr.mxu0 %v6432
        %6953 = vmatpush1.msra.mxu0 %v6431
        %6954 = vmatprep.subr.mxu0 %v6440
        %6955 = vmatpush1.msra.mxu0 %v6439
        %6956 = vmatprep.subr.mxu0 %v6448
        %6957 = vmatpush1.msra.mxu0 %v6447
        %6958 = vmatprep.subr.mxu0 %v6456
        %6959 = vmatpush1.msra.mxu0 %v6455
        %6960 = vmatprep.subr.mxu0 %v6464
        %6961 = vmatpush1.msra.mxu0 %v6463
        %6962 = vmatprep.subr.mxu0 %v6472
        %6963 = vmatpush1.msra.mxu0 %v6471
        %6964 = vmatprep.subr.mxu0 %v6480
        %6965 = vmatpush1.msra.mxu0 %v6479
        %6966 = vmatprep.subr.mxu0 %v6488
        %6967 = vmatpush1.msra.mxu0 %v6487
        %6968 = vmatprep.subr.mxu0 %v6496
        %6969 = vmatpush1.msra.mxu0 %v6495
        %6970 = vmatprep.subr.mxu0 %v6504
        %6971 = vmatpush1.msra.mxu0 %v6503
        %6972 = vmatprep.subr.mxu0 %v6512
        %6973 = vmatpush1.msra.mxu0 %v6511
        %6974 = vmatprep.subr.mxu0 %v6520
        %6975 = vmatpush1.msra.mxu0 %v6519
        %6976 = vmatprep.subr.mxu0 %v6528
        %6977 = vmatpush1.msra.mxu0 %v6527
        %6978 = vmatprep.subr.mxu0 %v6536
        %6979 = vmatpush1.msra.mxu0 %v6535
        %6980 = vmatprep.subr.mxu0 %v6544
        %6981 = vmatpush1.msra.mxu0 %v6543
        %6982 = vmatprep.subr.mxu0 %v6552
        %6983 = vmatpush1.msra.mxu0 %v6551
        %6984 = vmatprep.subr.mxu0 %v6560
        %6985 = vmatpush1.msra.mxu0 %v6559
        %6986 = vmatprep.subr.mxu0 %v6568
        %6987 = vmatpush1.msra.mxu0 %v6567
        %6988 = vmatprep.subr.mxu0 %v6576
        %6989 = vmatpush1.msra.mxu0 %v6575
        %6990 = vmatprep.subr.mxu0 %v6584
        %6991 = vmatpush1.msra.mxu0 %v6583
        %6992 = vmatprep.subr.mxu0 %v6592
        %6993 = vmatpush1.msra.mxu0 %v6591
        %6994 = vmatprep.subr.mxu0 %v6600
        %6995 = vmatpush1.msra.mxu0 %v6599
        %6996 = vmatprep.mubr.f32.mxu0 %v6220
        %6997 = vmatmul.mubr.f32.gmra.mrb[0].mxu0 %v6219
        %v6998 = vpop.f32.mrb[0].mxu0
        %v6999 = vadd.f32 0.0, %v6998
        %v7000 = vpop.f32.mrb[0].mxu0
        %v7001 = vadd.f32 0.0, %v7000
        %7002 = vdwg.mxu0
        %7003 = vmatprep.subr.mxu0 %v6354
        %7004 = vmatpush1.msra.mxu0 %v6353
        %7005 = vmatprep.subr.mxu0 %v6362
        %7006 = vmatpush1.msra.mxu0 %v6361
        %7007 = vmatprep.subr.mxu0 %v6370
        %7008 = vmatpush1.msra.mxu0 %v6369
        %7009 = vmatprep.subr.mxu0 %v6378
        %7010 = vmatpush1.msra.mxu0 %v6377
        %7011 = vmatprep.subr.mxu0 %v6386
        %7012 = vmatpush1.msra.mxu0 %v6385
        %7013 = vmatprep.subr.mxu0 %v6394
        %7014 = vmatpush1.msra.mxu0 %v6393
        %7015 = vmatprep.subr.mxu0 %v6402
        %7016 = vmatpush1.msra.mxu0 %v6401
        %7017 = vmatprep.subr.mxu0 %v6410
        %7018 = vmatpush1.msra.mxu0 %v6409
        %7019 = vmatprep.subr.mxu0 %v6418
        %7020 = vmatpush1.msra.mxu0 %v6417
        %7021 = vmatprep.subr.mxu0 %v6426
        %7022 = vmatpush1.msra.mxu0 %v6425
        %7023 = vmatprep.subr.mxu0 %v6434
        %7024 = vmatpush1.msra.mxu0 %v6433
        %7025 = vmatprep.subr.mxu0 %v6442
        %7026 = vmatpush1.msra.mxu0 %v6441
        %7027 = vmatprep.subr.mxu0 %v6450
        %7028 = vmatpush1.msra.mxu0 %v6449
        %7029 = vmatprep.subr.mxu0 %v6458
        %7030 = vmatpush1.msra.mxu0 %v6457
        %7031 = vmatprep.subr.mxu0 %v6466
        %7032 = vmatpush1.msra.mxu0 %v6465
        %7033 = vmatprep.subr.mxu0 %v6474
        %7034 = vmatpush1.msra.mxu0 %v6473
        %7035 = vmatprep.subr.mxu0 %v6482
        %7036 = vmatpush1.msra.mxu0 %v6481
        %7037 = vmatprep.subr.mxu0 %v6490
        %7038 = vmatpush1.msra.mxu0 %v6489
        %7039 = vmatprep.subr.mxu0 %v6498
        %7040 = vmatpush1.msra.mxu0 %v6497
        %7041 = vmatprep.subr.mxu0 %v6506
        %7042 = vmatpush1.msra.mxu0 %v6505
        %7043 = vmatprep.subr.mxu0 %v6514
        %7044 = vmatpush1.msra.mxu0 %v6513
        %7045 = vmatprep.subr.mxu0 %v6522
        %7046 = vmatpush1.msra.mxu0 %v6521
        %7047 = vmatprep.subr.mxu0 %v6530
        %7048 = vmatpush1.msra.mxu0 %v6529
        %7049 = vmatprep.subr.mxu0 %v6538
        %7050 = vmatpush1.msra.mxu0 %v6537
        %7051 = vmatprep.subr.mxu0 %v6546
        %7052 = vmatpush1.msra.mxu0 %v6545
        %7053 = vmatprep.subr.mxu0 %v6554
        %7054 = vmatpush1.msra.mxu0 %v6553
        %7055 = vmatprep.subr.mxu0 %v6562
        %7056 = vmatpush1.msra.mxu0 %v6561
        %7057 = vmatprep.subr.mxu0 %v6570
        %7058 = vmatpush1.msra.mxu0 %v6569
        %7059 = vmatprep.subr.mxu0 %v6578
        %7060 = vmatpush1.msra.mxu0 %v6577
        %7061 = vmatprep.subr.mxu0 %v6586
        %7062 = vmatpush1.msra.mxu0 %v6585
        %7063 = vmatprep.subr.mxu0 %v6594
        %7064 = vmatpush1.msra.mxu0 %v6593
        %7065 = vmatprep.subr.mxu0 %v6602
        %7066 = vmatpush1.msra.mxu0 %v6601
        %7067 = vmatprep.mubr.f32.mxu0 %v6220
        %7068 = vmatmul.mubr.f32.gmra.mrb[0].mxu0 %v6219
        %v7069 = vpop.f32.mrb[0].mxu0
        %v7070 = vadd.f32 0.0, %v7069
        %v7071 = vpop.f32.mrb[0].mxu0
        %v7072 = vadd.f32 0.0, %v7071
        %7073 = vdwg.mxu0
        %7074 = vmatprep.subr.mxu0 %v6356
        %7075 = vmatpush1.msra.mxu0 %v6355
        %7076 = vmatprep.subr.mxu0 %v6364
        %7077 = vmatpush1.msra.mxu0 %v6363
        %7078 = vmatprep.subr.mxu0 %v6372
        %7079 = vmatpush1.msra.mxu0 %v6371
        %7080 = vmatprep.subr.mxu0 %v6380
        %7081 = vmatpush1.msra.mxu0 %v6379
        %7082 = vmatprep.subr.mxu0 %v6388
        %7083 = vmatpush1.msra.mxu0 %v6387
        %7084 = vmatprep.subr.mxu0 %v6396
        %7085 = vmatpush1.msra.mxu0 %v6395
        %7086 = vmatprep.subr.mxu0 %v6404
        %7087 = vmatpush1.msra.mxu0 %v6403
        %7088 = vmatprep.subr.mxu0 %v6412
        %7089 = vmatpush1.msra.mxu0 %v6411
        %7090 = vmatprep.subr.mxu0 %v6420
        %7091 = vmatpush1.msra.mxu0 %v6419
        %7092 = vmatprep.subr.mxu0 %v6428
        %7093 = vmatpush1.msra.mxu0 %v6427
        %7094 = vmatprep.subr.mxu0 %v6436
        %7095 = vmatpush1.msra.mxu0 %v6435
        %7096 = vmatprep.subr.mxu0 %v6444
        %7097 = vmatpush1.msra.mxu0 %v6443
        %7098 = vmatprep.subr.mxu0 %v6452
        %7099 = vmatpush1.msra.mxu0 %v6451
        %7100 = vmatprep.subr.mxu0 %v6460
        %7101 = vmatpush1.msra.mxu0 %v6459
        %7102 = vmatprep.subr.mxu0 %v6468
        %7103 = vmatpush1.msra.mxu0 %v6467
        %7104 = vmatprep.subr.mxu0 %v6476
        %7105 = vmatpush1.msra.mxu0 %v6475
        %7106 = vmatprep.subr.mxu0 %v6484
        %7107 = vmatpush1.msra.mxu0 %v6483
        %7108 = vmatprep.subr.mxu0 %v6492
        %7109 = vmatpush1.msra.mxu0 %v6491
        %7110 = vmatprep.subr.mxu0 %v6500
        %7111 = vmatpush1.msra.mxu0 %v6499
        %7112 = vmatprep.subr.mxu0 %v6508
        %7113 = vmatpush1.msra.mxu0 %v6507
        %7114 = vmatprep.subr.mxu0 %v6516
        %7115 = vmatpush1.msra.mxu0 %v6515
        %7116 = vmatprep.subr.mxu0 %v6524
        %7117 = vmatpush1.msra.mxu0 %v6523
        %7118 = vmatprep.subr.mxu0 %v6532
        %7119 = vmatpush1.msra.mxu0 %v6531
        %7120 = vmatprep.subr.mxu0 %v6540
        %7121 = vmatpush1.msra.mxu0 %v6539
        %7122 = vmatprep.subr.mxu0 %v6548
        %7123 = vmatpush1.msra.mxu0 %v6547
        %7124 = vmatprep.subr.mxu0 %v6556
        %7125 = vmatpush1.msra.mxu0 %v6555
        %7126 = vmatprep.subr.mxu0 %v6564
        %7127 = vmatpush1.msra.mxu0 %v6563
        %7128 = vmatprep.subr.mxu0 %v6572
        %7129 = vmatpush1.msra.mxu0 %v6571
        %7130 = vmatprep.subr.mxu0 %v6580
        %7131 = vmatpush1.msra.mxu0 %v6579
        %7132 = vmatprep.subr.mxu0 %v6588
        %7133 = vmatpush1.msra.mxu0 %v6587
        %7134 = vmatprep.subr.mxu0 %v6596
        %7135 = vmatpush1.msra.mxu0 %v6595
        %7136 = vmatprep.subr.mxu0 %v6604
        %7137 = vmatpush1.msra.mxu0 %v6603
        %7138 = vmatprep.mubr.f32.mxu0 %v6220
        %7139 = vmatmul.mubr.f32.gmra.mrb[0].mxu0 %v6219
        %v7140 = vpop.f32.mrb[0].mxu0
        %v7141 = vadd.f32 0.0, %v7140
        %v7142 = vpop.f32.mrb[0].mxu0
        %v7143 = vadd.f32 0.0, %v7142
        %7144 = vdwg.mxu0
        %7145 = vmatprep.subr.mxu0 %v6350
        %7146 = vmatpush1.msra.mxu0 %v6349
        %7147 = vmatprep.subr.mxu0 %v6358
        %7148 = vmatpush1.msra.mxu0 %v6357
        %7149 = vmatprep.subr.mxu0 %v6366
        %7150 = vmatpush1.msra.mxu0 %v6365
        %7151 = vmatprep.subr.mxu0 %v6374
        %7152 = vmatpush1.msra.mxu0 %v6373
        %7153 = vmatprep.subr.mxu0 %v6382
        %7154 = vmatpush1.msra.mxu0 %v6381
        %7155 = vmatprep.subr.mxu0 %v6390
        %7156 = vmatpush1.msra.mxu0 %v6389
        %7157 = vmatprep.subr.mxu0 %v6398
        %7158 = vmatpush1.msra.mxu0 %v6397
        %7159 = vmatprep.subr.mxu0 %v6406
        %7160 = vmatpush1.msra.mxu0 %v6405
        %7161 = vmatprep.subr.mxu0 %v6414
        %7162 = vmatpush1.msra.mxu0 %v6413
        %7163 = vmatprep.subr.mxu0 %v6422
        %7164 = vmatpush1.msra.mxu0 %v6421
        %7165 = vmatprep.subr.mxu0 %v6430
        %7166 = vmatpush1.msra.mxu0 %v6429
        %7167 = vmatprep.subr.mxu0 %v6438
        %7168 = vmatpush1.msra.mxu0 %v6437
        %7169 = vmatprep.subr.mxu0 %v6446
        %7170 = vmatpush1.msra.mxu0 %v6445
        %7171 = vmatprep.subr.mxu0 %v6454
        %7172 = vmatpush1.msra.mxu0 %v6453
        %7173 = vmatprep.subr.mxu0 %v6462
        %7174 = vmatpush1.msra.mxu0 %v6461
        %7175 = vmatprep.subr.mxu0 %v6470
        %7176 = vmatpush1.msra.mxu0 %v6469
        %7177 = vmatprep.subr.mxu0 %v6478
        %7178 = vmatpush1.msra.mxu0 %v6477
        %7179 = vmatprep.subr.mxu0 %v6486
        %7180 = vmatpush1.msra.mxu0 %v6485
        %7181 = vmatprep.subr.mxu0 %v6494
        %7182 = vmatpush1.msra.mxu0 %v6493
        %7183 = vmatprep.subr.mxu0 %v6502
        %7184 = vmatpush1.msra.mxu0 %v6501
        %7185 = vmatprep.subr.mxu0 %v6510
        %7186 = vmatpush1.msra.mxu0 %v6509
        %7187 = vmatprep.subr.mxu0 %v6518
        %7188 = vmatpush1.msra.mxu0 %v6517
        %7189 = vmatprep.subr.mxu0 %v6526
        %7190 = vmatpush1.msra.mxu0 %v6525
        %7191 = vmatprep.subr.mxu0 %v6534
        %7192 = vmatpush1.msra.mxu0 %v6533
        %7193 = vmatprep.subr.mxu0 %v6542
        %7194 = vmatpush1.msra.mxu0 %v6541
        %7195 = vmatprep.subr.mxu0 %v6550
        %7196 = vmatpush1.msra.mxu0 %v6549
        %7197 = vmatprep.subr.mxu0 %v6558
        %7198 = vmatpush1.msra.mxu0 %v6557
        %7199 = vmatprep.subr.mxu0 %v6566
        %7200 = vmatpush1.msra.mxu0 %v6565
        %7201 = vmatprep.subr.mxu0 %v6574
        %7202 = vmatpush1.msra.mxu0 %v6573
        %7203 = vmatprep.subr.mxu0 %v6582
        %7204 = vmatpush1.msra.mxu0 %v6581
        %7205 = vmatprep.subr.mxu0 %v6590
        %7206 = vmatpush1.msra.mxu0 %v6589
        %7207 = vmatprep.subr.mxu0 %v6598
        %7208 = vmatpush1.msra.mxu0 %v6597
        %7209 = vmatprep.mubr.f32.mxu0 %v6218
        %7210 = vmatmul.mubr.f32.gmra.mrb[0].mxu0 %v6217
        %v7211 = vpop.f32.mrb[0].mxu0
        %v7212 = vadd.f32 %v6928, %v7211
        %v7213 = vpop.f32.mrb[0].mxu0
        %v7214 = vadd.f32 %v6930, %v7213
        %7215 = vdwg.mxu0
        %7216 = vmatprep.subr.mxu0 %v6352
        %7217 = vmatpush1.msra.mxu0 %v6351
        %7218 = vmatprep.subr.mxu0 %v6360
        %7219 = vmatpush1.msra.mxu0 %v6359
        %7220 = vmatprep.subr.mxu0 %v6368
        %7221 = vmatpush1.msra.mxu0 %v6367
        %7222 = vmatprep.subr.mxu0 %v6376
        %7223 = vmatpush1.msra.mxu0 %v6375
        %7224 = vmatprep.subr.mxu0 %v6384
        %7225 = vmatpush1.msra.mxu0 %v6383
        %7226 = vmatprep.subr.mxu0 %v6392
        %7227 = vmatpush1.msra.mxu0 %v6391
        %7228 = vmatprep.subr.mxu0 %v6400
        %7229 = vmatpush1.msra.mxu0 %v6399
        %7230 = vmatprep.subr.mxu0 %v6408
        %7231 = vmatpush1.msra.mxu0 %v6407
        %7232 = vmatprep.subr.mxu0 %v6416
        %7233 = vmatpush1.msra.mxu0 %v6415
        %7234 = vmatprep.subr.mxu0 %v6424
        %7235 = vmatpush1.msra.mxu0 %v6423
        %7236 = vmatprep.subr.mxu0 %v6432
        %7237 = vmatpush1.msra.mxu0 %v6431
        %7238 = vmatprep.subr.mxu0 %v6440
        %7239 = vmatpush1.msra.mxu0 %v6439
        %7240 = vmatprep.subr.mxu0 %v6448
        %7241 = vmatpush1.msra.mxu0 %v6447
        %7242 = vmatprep.subr.mxu0 %v6456
        %7243 = vmatpush1.msra.mxu0 %v6455
        %7244 = vmatprep.subr.mxu0 %v6464
        %7245 = vmatpush1.msra.mxu0 %v6463
        %7246 = vmatprep.subr.mxu0 %v6472
        %7247 = vmatpush1.msra.mxu0 %v6471
        %7248 = vmatprep.subr.mxu0 %v6480
        %7249 = vmatpush1.msra.mxu0 %v6479
        %7250 = vmatprep.subr.mxu0 %v6488
        %7251 = vmatpush1.msra.mxu0 %v6487
        %7252 = vmatprep.subr.mxu0 %v6496
        %7253 = vmatpush1.msra.mxu0 %v6495
        %7254 = vmatprep.subr.mxu0 %v6504
        %7255 = vmatpush1.msra.mxu0 %v6503
        %7256 = vmatprep.subr.mxu0 %v6512
        %7257 = vmatpush1.msra.mxu0 %v6511
        %7258 = vmatprep.subr.mxu0 %v6520
        %7259 = vmatpush1.msra.mxu0 %v6519
        %7260 = vmatprep.subr.mxu0 %v6528
        %7261 = vmatpush1.msra.mxu0 %v6527
        %7262 = vmatprep.subr.mxu0 %v6536
        %7263 = vmatpush1.msra.mxu0 %v6535
        %7264 = vmatprep.subr.mxu0 %v6544
        %7265 = vmatpush1.msra.mxu0 %v6543
        %7266 = vmatprep.subr.mxu0 %v6552
        %7267 = vmatpush1.msra.mxu0 %v6551
        %7268 = vmatprep.subr.mxu0 %v6560
        %7269 = vmatpush1.msra.mxu0 %v6559
        %7270 = vmatprep.subr.mxu0 %v6568
        %7271 = vmatpush1.msra.mxu0 %v6567
        %7272 = vmatprep.subr.mxu0 %v6576
        %7273 = vmatpush1.msra.mxu0 %v6575
        %7274 = vmatprep.subr.mxu0 %v6584
        %7275 = vmatpush1.msra.mxu0 %v6583
        %7276 = vmatprep.subr.mxu0 %v6592
        %7277 = vmatpush1.msra.mxu0 %v6591
        %7278 = vmatprep.subr.mxu0 %v6600
        %7279 = vmatpush1.msra.mxu0 %v6599
        %7280 = vmatprep.mubr.f32.mxu0 %v6218
        %7281 = vmatmul.mubr.f32.gmra.mrb[0].mxu0 %v6217
        %v7282 = vpop.f32.mrb[0].mxu0
        %v7283 = vadd.f32 %v6999, %v7282
        %v7284 = vpop.f32.mrb[0].mxu0
        %v7285 = vadd.f32 %v7001, %v7284
        %7286 = vdwg.mxu0
        %7287 = vmatprep.subr.mxu0 %v6354
        %7288 = vmatpush1.msra.mxu0 %v6353
        %7289 = vmatprep.subr.mxu0 %v6362
        %7290 = vmatpush1.msra.mxu0 %v6361
        %7291 = vmatprep.subr.mxu0 %v6370
        %7292 = vmatpush1.msra.mxu0 %v6369
        %7293 = vmatprep.subr.mxu0 %v6378
        %7294 = vmatpush1.msra.mxu0 %v6377
        %7295 = vmatprep.subr.mxu0 %v6386
        %7296 = vmatpush1.msra.mxu0 %v6385
        %7297 = vmatprep.subr.mxu0 %v6394
        %7298 = vmatpush1.msra.mxu0 %v6393
        %7299 = vmatprep.subr.mxu0 %v6402
        %7300 = vmatpush1.msra.mxu0 %v6401
        %7301 = vmatprep.subr.mxu0 %v6410
        %7302 = vmatpush1.msra.mxu0 %v6409
        %7303 = vmatprep.subr.mxu0 %v6418
        %7304 = vmatpush1.msra.mxu0 %v6417
        %7305 = vmatprep.subr.mxu0 %v6426
        %7306 = vmatpush1.msra.mxu0 %v6425
        %7307 = vmatprep.subr.mxu0 %v6434
        %7308 = vmatpush1.msra.mxu0 %v6433
        %7309 = vmatprep.subr.mxu0 %v6442
        %7310 = vmatpush1.msra.mxu0 %v6441
        %7311 = vmatprep.subr.mxu0 %v6450
        %7312 = vmatpush1.msra.mxu0 %v6449
        %7313 = vmatprep.subr.mxu0 %v6458
        %7314 = vmatpush1.msra.mxu0 %v6457
        %7315 = vmatprep.subr.mxu0 %v6466
        %7316 = vmatpush1.msra.mxu0 %v6465
        %7317 = vmatprep.subr.mxu0 %v6474
        %7318 = vmatpush1.msra.mxu0 %v6473
        %7319 = vmatprep.subr.mxu0 %v6482
        %7320 = vmatpush1.msra.mxu0 %v6481
        %7321 = vmatprep.subr.mxu0 %v6490
        %7322 = vmatpush1.msra.mxu0 %v6489
        %7323 = vmatprep.subr.mxu0 %v6498
        %7324 = vmatpush1.msra.mxu0 %v6497
        %7325 = vmatprep.subr.mxu0 %v6506
        %7326 = vmatpush1.msra.mxu0 %v6505
        %7327 = vmatprep.subr.mxu0 %v6514
        %7328 = vmatpush1.msra.mxu0 %v6513
        %7329 = vmatprep.subr.mxu0 %v6522
        %7330 = vmatpush1.msra.mxu0 %v6521
        %7331 = vmatprep.subr.mxu0 %v6530
        %7332 = vmatpush1.msra.mxu0 %v6529
        %7333 = vmatprep.subr.mxu0 %v6538
        %7334 = vmatpush1.msra.mxu0 %v6537
        %7335 = vmatprep.subr.mxu0 %v6546
        %7336 = vmatpush1.msra.mxu0 %v6545
        %7337 = vmatprep.subr.mxu0 %v6554
        %7338 = vmatpush1.msra.mxu0 %v6553
        %7339 = vmatprep.subr.mxu0 %v6562
        %7340 = vmatpush1.msra.mxu0 %v6561
        %7341 = vmatprep.subr.mxu0 %v6570
        %7342 = vmatpush1.msra.mxu0 %v6569
        %7343 = vmatprep.subr.mxu0 %v6578
        %7344 = vmatpush1.msra.mxu0 %v6577
        %7345 = vmatprep.subr.mxu0 %v6586
        %7346 = vmatpush1.msra.mxu0 %v6585
        %7347 = vmatprep.subr.mxu0 %v6594
        %7348 = vmatpush1.msra.mxu0 %v6593
        %7349 = vmatprep.subr.mxu0 %v6602
        %7350 = vmatpush1.msra.mxu0 %v6601
        %7351 = vmatprep.mubr.f32.mxu0 %v6218
        %7352 = vmatmul.mubr.f32.gmra.mrb[0].mxu0 %v6217
        %v7353 = vpop.f32.mrb[0].mxu0
        %v7354 = vadd.f32 %v7070, %v7353
        %v7355 = vpop.f32.mrb[0].mxu0
        %v7356 = vadd.f32 %v7072, %v7355
        %7357 = vdwg.mxu0
        %7358 = vmatprep.subr.mxu0 %v6356
        %7359 = vmatpush1.msra.mxu0 %v6355
        %7360 = vmatprep.subr.mxu0 %v6364
        %7361 = vmatpush1.msra.mxu0 %v6363
        %7362 = vmatprep.subr.mxu0 %v6372
        %7363 = vmatpush1.msra.mxu0 %v6371
        %7364 = vmatprep.subr.mxu0 %v6380
        %7365 = vmatpush1.msra.mxu0 %v6379
        %7366 = vmatprep.subr.mxu0 %v6388
        %7367 = vmatpush1.msra.mxu0 %v6387
        %7368 = vmatprep.subr.mxu0 %v6396
        %7369 = vmatpush1.msra.mxu0 %v6395
        %7370 = vmatprep.subr.mxu0 %v6404
        %7371 = vmatpush1.msra.mxu0 %v6403
        %7372 = vmatprep.subr.mxu0 %v6412
        %7373 = vmatpush1.msra.mxu0 %v6411
        %7374 = vmatprep.subr.mxu0 %v6420
        %7375 = vmatpush1.msra.mxu0 %v6419
        %7376 = vmatprep.subr.mxu0 %v6428
        %7377 = vmatpush1.msra.mxu0 %v6427
        %7378 = vmatprep.subr.mxu0 %v6436
        %7379 = vmatpush1.msra.mxu0 %v6435
        %7380 = vmatprep.subr.mxu0 %v6444
        %7381 = vmatpush1.msra.mxu0 %v6443
        %7382 = vmatprep.subr.mxu0 %v6452
        %7383 = vmatpush1.msra.mxu0 %v6451
        %7384 = vmatprep.subr.mxu0 %v6460
        %7385 = vmatpush1.msra.mxu0 %v6459
        %7386 = vmatprep.subr.mxu0 %v6468
        %7387 = vmatpush1.msra.mxu0 %v6467
        %7388 = vmatprep.subr.mxu0 %v6476
        %7389 = vmatpush1.msra.mxu0 %v6475
        %7390 = vmatprep.subr.mxu0 %v6484
        %7391 = vmatpush1.msra.mxu0 %v6483
        %7392 = vmatprep.subr.mxu0 %v6492
        %7393 = vmatpush1.msra.mxu0 %v6491
        %7394 = vmatprep.subr.mxu0 %v6500
        %7395 = vmatpush1.msra.mxu0 %v6499
        %7396 = vmatprep.subr.mxu0 %v6508
        %7397 = vmatpush1.msra.mxu0 %v6507
        %7398 = vmatprep.subr.mxu0 %v6516
        %7399 = vmatpush1.msra.mxu0 %v6515
        %7400 = vmatprep.subr.mxu0 %v6524
        %7401 = vmatpush1.msra.mxu0 %v6523
        %7402 = vmatprep.subr.mxu0 %v6532
        %7403 = vmatpush1.msra.mxu0 %v6531
        %7404 = vmatprep.subr.mxu0 %v6540
        %7405 = vmatpush1.msra.mxu0 %v6539
        %7406 = vmatprep.subr.mxu0 %v6548
        %7407 = vmatpush1.msra.mxu0 %v6547
        %7408 = vmatprep.subr.mxu0 %v6556
        %7409 = vmatpush1.msra.mxu0 %v6555
        %7410 = vmatprep.subr.mxu0 %v6564
        %7411 = vmatpush1.msra.mxu0 %v6563
        %7412 = vmatprep.subr.mxu0 %v6572
        %7413 = vmatpush1.msra.mxu0 %v6571
        %7414 = vmatprep.subr.mxu0 %v6580
        %7415 = vmatpush1.msra.mxu0 %v6579
        %7416 = vmatprep.subr.mxu0 %v6588
        %7417 = vmatpush1.msra.mxu0 %v6587
        %7418 = vmatprep.subr.mxu0 %v6596
        %7419 = vmatpush1.msra.mxu0 %v6595
        %7420 = vmatprep.subr.mxu0 %v6604
        %7421 = vmatpush1.msra.mxu0 %v6603
        %7422 = vmatprep.mubr.f32.mxu0 %v6218
        %7423 = vmatmul.mubr.f32.gmra.mrb[0].mxu0 %v6217
        %v7424 = vpop.f32.mrb[0].mxu0
        %v7425 = vadd.f32 %v7141, %v7424
        %v7426 = vpop.f32.mrb[0].mxu0
        %v7427 = vadd.f32 %v7143, %v7426
        %7428 = vdwg.mxu0
        %7429 = vmatprep.subr.mxu0 %v6606
        %7430 = vmatpush1.msra.mxu0 %v6605
        %7431 = vmatprep.subr.mxu0 %v6614
        %7432 = vmatpush1.msra.mxu0 %v6613
        %7433 = vmatprep.subr.mxu0 %v6622
        %7434 = vmatpush1.msra.mxu0 %v6621
        %7435 = vmatprep.subr.mxu0 %v6630
        %7436 = vmatpush1.msra.mxu0 %v6629
        %7437 = vmatprep.subr.mxu0 %v6638
        %7438 = vmatpush1.msra.mxu0 %v6637
        %7439 = vmatprep.subr.mxu0 %v6646
        %7440 = vmatpush1.msra.mxu0 %v6645
        %7441 = vmatprep.subr.mxu0 %v6654
        %7442 = vmatpush1.msra.mxu0 %v6653
        %7443 = vmatprep.subr.mxu0 %v6662
        %7444 = vmatpush1.msra.mxu0 %v6661
        %7445 = vmatprep.subr.mxu0 %v6670
        %7446 = vmatpush1.msra.mxu0 %v6669
        %7447 = vmatprep.subr.mxu0 %v6678
        %7448 = vmatpush1.msra.mxu0 %v6677
        %7449 = vmatprep.subr.mxu0 %v6686
        %7450 = vmatpush1.msra.mxu0 %v6685
        %7451 = vmatprep.subr.mxu0 %v6694
        %7452 = vmatpush1.msra.mxu0 %v6693
        %7453 = vmatprep.subr.mxu0 %v6702
        %7454 = vmatpush1.msra.mxu0 %v6701
        %7455 = vmatprep.subr.mxu0 %v6710
        %7456 = vmatpush1.msra.mxu0 %v6709
        %7457 = vmatprep.subr.mxu0 %v6718
        %7458 = vmatpush1.msra.mxu0 %v6717
        %7459 = vmatprep.subr.mxu0 %v6726
        %7460 = vmatpush1.msra.mxu0 %v6725
        %7461 = vmatprep.subr.mxu0 %v6734
        %7462 = vmatpush1.msra.mxu0 %v6733
        %7463 = vmatprep.subr.mxu0 %v6742
        %7464 = vmatpush1.msra.mxu0 %v6741
        %7465 = vmatprep.subr.mxu0 %v6750
        %7466 = vmatpush1.msra.mxu0 %v6749
        %7467 = vmatprep.subr.mxu0 %v6758
        %7468 = vmatpush1.msra.mxu0 %v6757
        %7469 = vmatprep.subr.mxu0 %v6766
        %7470 = vmatpush1.msra.mxu0 %v6765
        %7471 = vmatprep.subr.mxu0 %v6774
        %7472 = vmatpush1.msra.mxu0 %v6773
        %7473 = vmatprep.subr.mxu0 %v6782
        %7474 = vmatpush1.msra.mxu0 %v6781
        %7475 = vmatprep.subr.mxu0 %v6790
        %7476 = vmatpush1.msra.mxu0 %v6789
        %7477 = vmatprep.subr.mxu0 %v6798
        %7478 = vmatpush1.msra.mxu0 %v6797
        %7479 = vmatprep.subr.mxu0 %v6806
        %7480 = vmatpush1.msra.mxu0 %v6805
        %7481 = vmatprep.subr.mxu0 %v6814
        %7482 = vmatpush1.msra.mxu0 %v6813
        %7483 = vmatprep.subr.mxu0 %v6822
        %7484 = vmatpush1.msra.mxu0 %v6821
        %7485 = vmatprep.subr.mxu0 %v6830
        %7486 = vmatpush1.msra.mxu0 %v6829
        %7487 = vmatprep.subr.mxu0 %v6838
        %7488 = vmatpush1.msra.mxu0 %v6837
        %7489 = vmatprep.subr.mxu0 %v6846
        %7490 = vmatpush1.msra.mxu0 %v6845
        %7491 = vmatprep.subr.mxu0 %v6854
        %7492 = vmatpush1.msra.mxu0 %v6853
        %7493 = vmatprep.mubr.f32.mxu0 %v6218
        %7494 = vmatmul.mubr.f32.gmra.mrb[0].mxu0 %v6217
        %v7495 = vpop.f32.mrb[0].mxu0
        %v7496 = vadd.f32 0.0, %v7495
        %v7497 = vpop.f32.mrb[0].mxu0
        %v7498 = vadd.f32 0.0, %v7497
        %7499 = vdwg.mxu0
        %7500 = vmatprep.subr.mxu0 %v6608
        %7501 = vmatpush1.msra.mxu0 %v6607
        %7502 = vmatprep.subr.mxu0 %v6616
        %7503 = vmatpush1.msra.mxu0 %v6615
        %7504 = vmatprep.subr.mxu0 %v6624
        %7505 = vmatpush1.msra.mxu0 %v6623
        %7506 = vmatprep.subr.mxu0 %v6632
        %7507 = vmatpush1.msra.mxu0 %v6631
        %7508 = vmatprep.subr.mxu0 %v6640
        %7509 = vmatpush1.msra.mxu0 %v6639
        %7510 = vmatprep.subr.mxu0 %v6648
        %7511 = vmatpush1.msra.mxu0 %v6647
        %7512 = vmatprep.subr.mxu0 %v6656
        %7513 = vmatpush1.msra.mxu0 %v6655
        %7514 = vmatprep.subr.mxu0 %v6664
        %7515 = vmatpush1.msra.mxu0 %v6663
        %7516 = vmatprep.subr.mxu0 %v6672
        %7517 = vmatpush1.msra.mxu0 %v6671
        %7518 = vmatprep.subr.mxu0 %v6680
        %7519 = vmatpush1.msra.mxu0 %v6679
        %7520 = vmatprep.subr.mxu0 %v6688
        %7521 = vmatpush1.msra.mxu0 %v6687
        %7522 = vmatprep.subr.mxu0 %v6696
        %7523 = vmatpush1.msra.mxu0 %v6695
        %7524 = vmatprep.subr.mxu0 %v6704
        %7525 = vmatpush1.msra.mxu0 %v6703
        %7526 = vmatprep.subr.mxu0 %v6712
        %7527 = vmatpush1.msra.mxu0 %v6711
        %7528 = vmatprep.subr.mxu0 %v6720
        %7529 = vmatpush1.msra.mxu0 %v6719
        %7530 = vmatprep.subr.mxu0 %v6728
        %7531 = vmatpush1.msra.mxu0 %v6727
        %7532 = vmatprep.subr.mxu0 %v6736
        %7533 = vmatpush1.msra.mxu0 %v6735
        %7534 = vmatprep.subr.mxu0 %v6744
        %7535 = vmatpush1.msra.mxu0 %v6743
        %7536 = vmatprep.subr.mxu0 %v6752
        %7537 = vmatpush1.msra.mxu0 %v6751
        %7538 = vmatprep.subr.mxu0 %v6760
        %7539 = vmatpush1.msra.mxu0 %v6759
        %7540 = vmatprep.subr.mxu0 %v6768
        %7541 = vmatpush1.msra.mxu0 %v6767
        %7542 = vmatprep.subr.mxu0 %v6776
        %7543 = vmatpush1.msra.mxu0 %v6775
        %7544 = vmatprep.subr.mxu0 %v6784
        %7545 = vmatpush1.msra.mxu0 %v6783
        %7546 = vmatprep.subr.mxu0 %v6792
        %7547 = vmatpush1.msra.mxu0 %v6791
        %7548 = vmatprep.subr.mxu0 %v6800
        %7549 = vmatpush1.msra.mxu0 %v6799
        %7550 = vmatprep.subr.mxu0 %v6808
        %7551 = vmatpush1.msra.mxu0 %v6807
        %7552 = vmatprep.subr.mxu0 %v6816
        %7553 = vmatpush1.msra.mxu0 %v6815
        %7554 = vmatprep.subr.mxu0 %v6824
        %7555 = vmatpush1.msra.mxu0 %v6823
        %7556 = vmatprep.subr.mxu0 %v6832
        %7557 = vmatpush1.msra.mxu0 %v6831
        %7558 = vmatprep.subr.mxu0 %v6840
        %7559 = vmatpush1.msra.mxu0 %v6839
        %7560 = vmatprep.subr.mxu0 %v6848
        %7561 = vmatpush1.msra.mxu0 %v6847
        %7562 = vmatprep.subr.mxu0 %v6856
        %7563 = vmatpush1.msra.mxu0 %v6855
        %7564 = vmatprep.mubr.f32.mxu0 %v6218
        %7565 = vmatmul.mubr.f32.gmra.mrb[0].mxu0 %v6217
        %v7566 = vpop.f32.mrb[0].mxu0
        %v7567 = vadd.f32 0.0, %v7566
        %v7568 = vpop.f32.mrb[0].mxu0
        %v7569 = vadd.f32 0.0, %v7568
        %7570 = vdwg.mxu0
        %7571 = vmatprep.subr.mxu0 %v6610
        %7572 = vmatpush1.msra.mxu0 %v6609
        %7573 = vmatprep.subr.mxu0 %v6618
        %7574 = vmatpush1.msra.mxu0 %v6617
        %7575 = vmatprep.subr.mxu0 %v6626
        %7576 = vmatpush1.msra.mxu0 %v6625
        %7577 = vmatprep.subr.mxu0 %v6634
        %7578 = vmatpush1.msra.mxu0 %v6633
        %7579 = vmatprep.subr.mxu0 %v6642
        %7580 = vmatpush1.msra.mxu0 %v6641
        %7581 = vmatprep.subr.mxu0 %v6650
        %7582 = vmatpush1.msra.mxu0 %v6649
        %7583 = vmatprep.subr.mxu0 %v6658
        %7584 = vmatpush1.msra.mxu0 %v6657
        %7585 = vmatprep.subr.mxu0 %v6666
        %7586 = vmatpush1.msra.mxu0 %v6665
        %7587 = vmatprep.subr.mxu0 %v6674
        %7588 = vmatpush1.msra.mxu0 %v6673
        %7589 = vmatprep.subr.mxu0 %v6682
        %7590 = vmatpush1.msra.mxu0 %v6681
        %7591 = vmatprep.subr.mxu0 %v6690
        %7592 = vmatpush1.msra.mxu0 %v6689
        %7593 = vmatprep.subr.mxu0 %v6698
        %7594 = vmatpush1.msra.mxu0 %v6697
        %7595 = vmatprep.subr.mxu0 %v6706
        %7596 = vmatpush1.msra.mxu0 %v6705
        %7597 = vmatprep.subr.mxu0 %v6714
        %7598 = vmatpush1.msra.mxu0 %v6713
        %7599 = vmatprep.subr.mxu0 %v6722
        %7600 = vmatpush1.msra.mxu0 %v6721
        %7601 = vmatprep.subr.mxu0 %v6730
        %7602 = vmatpush1.msra.mxu0 %v6729
        %7603 = vmatprep.subr.mxu0 %v6738
        %7604 = vmatpush1.msra.mxu0 %v6737
        %7605 = vmatprep.subr.mxu0 %v6746
        %7606 = vmatpush1.msra.mxu0 %v6745
        %7607 = vmatprep.subr.mxu0 %v6754
        %7608 = vmatpush1.msra.mxu0 %v6753
        %7609 = vmatprep.subr.mxu0 %v6762
        %7610 = vmatpush1.msra.mxu0 %v6761
        %7611 = vmatprep.subr.mxu0 %v6770
        %7612 = vmatpush1.msra.mxu0 %v6769
        %7613 = vmatprep.subr.mxu0 %v6778
        %7614 = vmatpush1.msra.mxu0 %v6777
        %7615 = vmatprep.subr.mxu0 %v6786
        %7616 = vmatpush1.msra.mxu0 %v6785
        %7617 = vmatprep.subr.mxu0 %v6794
        %7618 = vmatpush1.msra.mxu0 %v6793
        %7619 = vmatprep.subr.mxu0 %v6802
        %7620 = vmatpush1.msra.mxu0 %v6801
        %7621 = vmatprep.subr.mxu0 %v6810
        %7622 = vmatpush1.msra.mxu0 %v6809
        %7623 = vmatprep.subr.mxu0 %v6818
        %7624 = vmatpush1.msra.mxu0 %v6817
        %7625 = vmatprep.subr.mxu0 %v6826
        %7626 = vmatpush1.msra.mxu0 %v6825
        %7627 = vmatprep.subr.mxu0 %v6834
        %7628 = vmatpush1.msra.mxu0 %v6833
        %7629 = vmatprep.subr.mxu0 %v6842
        %7630 = vmatpush1.msra.mxu0 %v6841
        %7631 = vmatprep.subr.mxu0 %v6850
        %7632 = vmatpush1.msra.mxu0 %v6849
        %7633 = vmatprep.subr.mxu0 %v6858
        %7634 = vmatpush1.msra.mxu0 %v6857
        %7635 = vmatprep.mubr.f32.mxu0 %v6218
        %7636 = vmatmul.mubr.f32.gmra.mrb[0].mxu0 %v6217
        %v7637 = vpop.f32.mrb[0].mxu0
        %v7638 = vadd.f32 0.0, %v7637
        %v7639 = vpop.f32.mrb[0].mxu0
        %v7640 = vadd.f32 0.0, %v7639
        %7641 = vdwg.mxu0
        %7642 = vmatprep.subr.mxu0 %v6612
        %7643 = vmatpush1.msra.mxu0 %v6611
        %7644 = vmatprep.subr.mxu0 %v6620
        %7645 = vmatpush1.msra.mxu0 %v6619
        %7646 = vmatprep.subr.mxu0 %v6628
        %7647 = vmatpush1.msra.mxu0 %v6627
        %7648 = vmatprep.subr.mxu0 %v6636
        %7649 = vmatpush1.msra.mxu0 %v6635
        %7650 = vmatprep.subr.mxu0 %v6644
        %7651 = vmatpush1.msra.mxu0 %v6643
        %7652 = vmatprep.subr.mxu0 %v6652
        %7653 = vmatpush1.msra.mxu0 %v6651
        %7654 = vmatprep.subr.mxu0 %v6660
        %7655 = vmatpush1.msra.mxu0 %v6659
        %7656 = vmatprep.subr.mxu0 %v6668
        %7657 = vmatpush1.msra.mxu0 %v6667
        %7658 = vmatprep.subr.mxu0 %v6676
        %7659 = vmatpush1.msra.mxu0 %v6675
        %7660 = vmatprep.subr.mxu0 %v6684
        %7661 = vmatpush1.msra.mxu0 %v6683
        %7662 = vmatprep.subr.mxu0 %v6692
        %7663 = vmatpush1.msra.mxu0 %v6691
        %7664 = vmatprep.subr.mxu0 %v6700
        %7665 = vmatpush1.msra.mxu0 %v6699
        %7666 = vmatprep.subr.mxu0 %v6708
        %7667 = vmatpush1.msra.mxu0 %v6707
        %7668 = vmatprep.subr.mxu0 %v6716
        %7669 = vmatpush1.msra.mxu0 %v6715
        %7670 = vmatprep.subr.mxu0 %v6724
        %7671 = vmatpush1.msra.mxu0 %v6723
        %7672 = vmatprep.subr.mxu0 %v6732
        %7673 = vmatpush1.msra.mxu0 %v6731
        %7674 = vmatprep.subr.mxu0 %v6740
        %7675 = vmatpush1.msra.mxu0 %v6739
        %7676 = vmatprep.subr.mxu0 %v6748
        %7677 = vmatpush1.msra.mxu0 %v6747
        %7678 = vmatprep.subr.mxu0 %v6756
        %7679 = vmatpush1.msra.mxu0 %v6755
        %7680 = vmatprep.subr.mxu0 %v6764
        %7681 = vmatpush1.msra.mxu0 %v6763
        %7682 = vmatprep.subr.mxu0 %v6772
        %7683 = vmatpush1.msra.mxu0 %v6771
        %7684 = vmatprep.subr.mxu0 %v6780
        %7685 = vmatpush1.msra.mxu0 %v6779
        %7686 = vmatprep.subr.mxu0 %v6788
        %7687 = vmatpush1.msra.mxu0 %v6787
        %7688 = vmatprep.subr.mxu0 %v6796
        %7689 = vmatpush1.msra.mxu0 %v6795
        %7690 = vmatprep.subr.mxu0 %v6804
        %7691 = vmatpush1.msra.mxu0 %v6803
        %7692 = vmatprep.subr.mxu0 %v6812
        %7693 = vmatpush1.msra.mxu0 %v6811
        %7694 = vmatprep.subr.mxu0 %v6820
        %7695 = vmatpush1.msra.mxu0 %v6819
        %7696 = vmatprep.subr.mxu0 %v6828
        %7697 = vmatpush1.msra.mxu0 %v6827
        %7698 = vmatprep.subr.mxu0 %v6836
        %7699 = vmatpush1.msra.mxu0 %v6835
        %7700 = vmatprep.subr.mxu0 %v6844
        %7701 = vmatpush1.msra.mxu0 %v6843
        %7702 = vmatprep.subr.mxu0 %v6852
        %7703 = vmatpush1.msra.mxu0 %v6851
        %7704 = vmatprep.subr.mxu0 %v6860
        %7705 = vmatpush1.msra.mxu0 %v6859
        %7706 = vmatprep.mubr.f32.mxu0 %v6218
        %7707 = vmatmul.mubr.f32.gmra.mrb[0].mxu0 %v6217
        %v7708 = vpop.f32.mrb[0].mxu0
        %v7709 = vadd.f32 0.0, %v7708
        %v7710 = vpop.f32.mrb[0].mxu0
        %v7711 = vadd.f32 0.0, %v7710
        %7712 = vdwg.mxu0
        %v7713 = vadd.f32 %v7212, %v7496
        %v7714 = vadd.f32 %v7214, %v7498
        %v7715 = vadd.f32 %v7283, %v7567
        %v7716 = vadd.f32 %v7285, %v7569
        %v7717 = vadd.f32 %v7354, %v7638
        %v7718 = vadd.f32 %v7356, %v7640
        %v7719 = vadd.f32 %v7425, %v7709
        %v7720 = vadd.f32 %v7427, %v7711
        %v7721 = vsel %vm5976, %v7713, -inf
        %v7722 = vrot.slane %v7721, 4
        %v7723 = vmax.f32 %v7721, %v7722
        %v7724 = vrot.slane %v7723, 2
        %v7725 = vmax.f32 %v7723, %v7724
        %v7726 = vrot.slane %v7725, 1
        %v7727 = vmax.f32 %v7725, %v7726
        %v7728 = vsel %vm5976, %v7714, -inf
        %v7729 = vrot.slane %v7728, 4
        %v7730 = vmax.f32 %v7728, %v7729
        %v7731 = vrot.slane %v7730, 2
        %v7732 = vmax.f32 %v7730, %v7731
        %v7733 = vrot.slane %v7732, 1
        %v7734 = vmax.f32 %v7732, %v7733
        %v7735 = vsel %vm5976, %v7715, -inf
        %v7736 = vrot.slane %v7735, 4
        %v7737 = vmax.f32 %v7735, %v7736
        %v7738 = vrot.slane %v7737, 2
        %v7739 = vmax.f32 %v7737, %v7738
        %v7740 = vrot.slane %v7739, 1
        %v7741 = vmax.f32 %v7739, %v7740
        %v7742 = vsel %vm5976, %v7716, -inf
        %v7743 = vrot.slane %v7742, 4
        %v7744 = vmax.f32 %v7742, %v7743
        %v7745 = vrot.slane %v7744, 2
        %v7746 = vmax.f32 %v7744, %v7745
        %v7747 = vrot.slane %v7746, 1
        %v7748 = vmax.f32 %v7746, %v7747
        %v7749 = vsel %vm5976, %v7717, -inf
        %v7750 = vrot.slane %v7749, 4
        %v7751 = vmax.f32 %v7749, %v7750
        %v7752 = vrot.slane %v7751, 2
        %v7753 = vmax.f32 %v7751, %v7752
        %v7754 = vrot.slane %v7753, 1
        %v7755 = vmax.f32 %v7753, %v7754
        %v7756 = vsel %vm5976, %v7718, -inf
        %v7757 = vrot.slane %v7756, 4
        %v7758 = vmax.f32 %v7756, %v7757
        %v7759 = vrot.slane %v7758, 2
        %v7760 = vmax.f32 %v7758, %v7759
        %v7761 = vrot.slane %v7760, 1
        %v7762 = vmax.f32 %v7760, %v7761
        %v7763 = vsel %vm5976, %v7719, -inf
        %v7764 = vrot.slane %v7763, 4
        %v7765 = vmax.f32 %v7763, %v7764
        %v7766 = vrot.slane %v7765, 2
        %v7767 = vmax.f32 %v7765, %v7766
        %v7768 = vrot.slane %v7767, 1
        %v7769 = vmax.f32 %v7767, %v7768
        %v7770 = vsel %vm5976, %v7720, -inf
        %v7771 = vrot.slane %v7770, 4
        %v7772 = vmax.f32 %v7770, %v7771
        %v7773 = vrot.slane %v7772, 2
        %v7774 = vmax.f32 %v7772, %v7773
        %v7775 = vrot.slane %v7774, 1
        %v7776 = vmax.f32 %v7774, %v7775
        %v7777 = vsub.f32 %v7713, %v7727
        %v7778 = vsub.f32 %v7714, %v7734
        %v7779 = vsub.f32 %v7715, %v7741
        %v7780 = vsub.f32 %v7716, %v7748
        %v7781 = vsub.f32 %v7717, %v7755
        %v7782 = vsub.f32 %v7718, %v7762
        %v7783 = vsub.f32 %v7719, %v7769
        %v7784 = vsub.f32 %v7720, %v7776
        %v7785 = vmul.f32 %v7777, 1.442695
        %v7786 = vpow.pop %v7785
        %v7787 = vmul.f32 %v7778, 1.442695
        %v7788 = vpow.pop %v7787
        %v7789 = vmul.f32 %v7779, 1.442695
        %v7790 = vpow.pop %v7789
        %v7791 = vmul.f32 %v7780, 1.442695
        %v7792 = vpow.pop %v7791
        %v7793 = vmul.f32 %v7781, 1.442695
        %v7794 = vpow.pop %v7793
        %v7795 = vmul.f32 %v7782, 1.442695
        %v7796 = vpow.pop %v7795
        %v7797 = vmul.f32 %v7783, 1.442695
        %v7798 = vpow.pop %v7797
        %v7799 = vmul.f32 %v7784, 1.442695
        %v7800 = vpow.pop %v7799
        %v7801 = vsel %vm5976, %v7786, 0.0
        %v7802 = vrot.slane %v7801, 4
        %v7803 = vadd.f32 %v7801, %v7802
        %v7804 = vrot.slane %v7803, 2
        %v7805 = vadd.f32 %v7803, %v7804
        %v7806 = vrot.slane %v7805, 1
        %v7807 = vadd.f32 %v7805, %v7806
        %v7808 = vsel %vm5976, %v7788, 0.0
        %v7809 = vrot.slane %v7808, 4
        %v7810 = vadd.f32 %v7808, %v7809
        %v7811 = vrot.slane %v7810, 2
        %v7812 = vadd.f32 %v7810, %v7811
        %v7813 = vrot.slane %v7812, 1
        %v7814 = vadd.f32 %v7812, %v7813
        %v7815 = vsel %vm5976, %v7790, 0.0
        %v7816 = vrot.slane %v7815, 4
        %v7817 = vadd.f32 %v7815, %v7816
        %v7818 = vrot.slane %v7817, 2
        %v7819 = vadd.f32 %v7817, %v7818
        %v7820 = vrot.slane %v7819, 1
        %v7821 = vadd.f32 %v7819, %v7820
        %v7822 = vsel %vm5976, %v7792, 0.0
        %v7823 = vrot.slane %v7822, 4
        %v7824 = vadd.f32 %v7822, %v7823
        %v7825 = vrot.slane %v7824, 2
        %v7826 = vadd.f32 %v7824, %v7825
        %v7827 = vrot.slane %v7826, 1
        %v7828 = vadd.f32 %v7826, %v7827
        %v7829 = vsel %vm5976, %v7794, 0.0
        %v7830 = vrot.slane %v7829, 4
        %v7831 = vadd.f32 %v7829, %v7830
        %v7832 = vrot.slane %v7831, 2
        %v7833 = vadd.f32 %v7831, %v7832
        %v7834 = vrot.slane %v7833, 1
        %v7835 = vadd.f32 %v7833, %v7834
        %v7836 = vsel %vm5976, %v7796, 0.0
        %v7837 = vrot.slane %v7836, 4
        %v7838 = vadd.f32 %v7836, %v7837
        %v7839 = vrot.slane %v7838, 2
        %v7840 = vadd.f32 %v7838, %v7839
        %v7841 = vrot.slane %v7840, 1
        %v7842 = vadd.f32 %v7840, %v7841
        %v7843 = vsel %vm5976, %v7798, 0.0
        %v7844 = vrot.slane %v7843, 4
        %v7845 = vadd.f32 %v7843, %v7844
        %v7846 = vrot.slane %v7845, 2
        %v7847 = vadd.f32 %v7845, %v7846
        %v7848 = vrot.slane %v7847, 1
        %v7849 = vadd.f32 %v7847, %v7848
        %v7850 = vsel %vm5976, %v7800, 0.0
        %v7851 = vrot.slane %v7850, 4
        %v7852 = vadd.f32 %v7850, %v7851
        %v7853 = vrot.slane %v7852, 2
        %v7854 = vadd.f32 %v7852, %v7853
        %v7855 = vrot.slane %v7854, 1
        %v7856 = vadd.f32 %v7854, %v7855
        %v7857 = vrcp.pop %v7807
        %v7858 = vrcp.pop %v7814
        %v7859 = vrcp.pop %v7821
        %v7860 = vrcp.pop %v7828
        %v7861 = vrcp.pop %v7835
        %v7862 = vrcp.pop %v7842
        %v7863 = vrcp.pop %v7849
        %v7864 = vrcp.pop %v7856
        %v7865 = vmul.f32 %v7786, %v7857
        %v7866 = vmul.f32 %v7788, %v7858
        %v7867 = vmul.f32 %v7790, %v7859
        %v7868 = vmul.f32 %v7792, %v7860
        %v7869 = vmul.f32 %v7794, %v7861
        %v7870 = vmul.f32 %v7796, %v7862
        %v7871 = vmul.f32 %v7798, %v7863
        %v7872 = vmul.f32 %v7800, %v7864
        %v7881 = vcombine.low %v7865, %v7866
        %v7882 = vcombine.low %v7867, %v7868
        %v7884 = vunpack.c.l.s4 1983009808
        %v7885 = vunpack.c.0.s8 %v7884
        %v7886 = vlaneseq
        %v7887 = vshrl.u32 %v7886, 7
        %v7888 = vsub.s32 %v7885, %v7887
        %v7889 = vrot.slane %v7881, %v7888
        %v7891 = vunpack.c.l.s4 1983009808
        %v7892 = vunpack.c.0.s8 %v7891
        %v7893 = vlaneseq
        %v7894 = vshrl.u32 %v7893, 7
        %v7895 = vsub.s32 %v7892, %v7894
        %v7896 = vrot.slane %v7882, %v7895
        %v7897 = vcombine.low %v7889, %v7896
        %v7898 = vcombine.low %v7869, %v7870
        %v7899 = vcombine.low %v7871, %v7872
        %v7901 = vunpack.c.l.s4 1983009808
        %v7902 = vunpack.c.0.s8 %v7901
        %v7903 = vlaneseq
        %v7904 = vshrl.u32 %v7903, 7
        %v7905 = vsub.s32 %v7902, %v7904
        %v7906 = vrot.slane %v7898, %v7905
        %v7908 = vunpack.c.l.s4 1983009808
        %v7909 = vunpack.c.0.s8 %v7908
        %v7910 = vlaneseq
        %v7911 = vshrl.u32 %v7910, 7
        %v7912 = vsub.s32 %v7909, %v7911
        %v7913 = vrot.slane %v7899, %v7912
        %v7914 = vcombine.low %v7906, %v7913
        %7917 = vst [vmem:[%s776] sm:$0xff] %v7897
        %7918 = vst [vmem:[%s776 + $0x8] sm:$0xff] %v7914
        %v7919 = vld [vmem:[%s15] sm:$0xff]
        %v7920 = vld [vmem:[%s15 + $0x8] sm:$0xff]
        %v7921 = vld [vmem:[%s15 + $0x10] sm:$0xff]
        %v7922 = vld [vmem:[%s15 + $0x18] sm:$0xff]
        %v7923 = vpack.c.bf16 %v7920, %v7919
        %v7924 = vpack.c.bf16 %v7922, %v7921
        %v7925 = vunpack.c.l.bf16 %v7923
        %v7926 = vunpack.c.h.bf16 %v7923
        %v7927 = vunpack.c.l.bf16 %v7924
        %v7928 = vunpack.c.h.bf16 %v7924
        %v7929 = vsub.f32 %v7919, %v7925
        %v7930 = vsub.f32 %v7920, %v7926
        %v7931 = vsub.f32 %v7921, %v7927
        %v7932 = vsub.f32 %v7922, %v7928
        %v7934 = vsel %vm5719, %v7929, 0
        %v7937 = vsel %vm5719, %v7930, 0
        %v7940 = vsel %vm5719, %v7931, 0
        %v7943 = vsel %vm5719, %v7932, 0
        %7945 = vmatprep.subr.mxu0 %v5726
        %7946 = vmatpush1.msra.mxu0 %v5724
        %7947 = vmatprep.subr.mxu0 0.0
        %7948 = vmatpush1.msra.mxu0 0.0
        %7949 = vmatprep.subr.mxu0 0.0
        %7950 = vmatpush1.msra.mxu0 0.0
        %7951 = vmatprep.subr.mxu0 0.0
        %7952 = vmatpush1.msra.mxu0 0.0
        %7953 = vmatprep.subr.mxu0 0.0
        %7954 = vmatpush1.msra.mxu0 0.0
        %7955 = vmatprep.subr.mxu0 0.0
        %7956 = vmatpush1.msra.mxu0 0.0
        %7957 = vmatprep.subr.mxu0 0.0
        %7958 = vmatpush1.msra.mxu0 0.0
        %7959 = vmatprep.subr.mxu0 0.0
        %7960 = vmatpush1.msra.mxu0 0.0
        %7961 = vmatprep.subr.mxu0 0.0
        %7962 = vmatpush1.msra.mxu0 0.0
        %7963 = vmatprep.subr.mxu0 0.0
        %7964 = vmatpush1.msra.mxu0 0.0
        %7965 = vmatprep.subr.mxu0 0.0
        %7966 = vmatpush1.msra.mxu0 0.0
        %7967 = vmatprep.subr.mxu0 0.0
        %7968 = vmatpush1.msra.mxu0 0.0
        %7969 = vmatprep.subr.mxu0 0.0
        %7970 = vmatpush1.msra.mxu0 0.0
        %7971 = vmatprep.subr.mxu0 0.0
        %7972 = vmatpush1.msra.mxu0 0.0
        %7973 = vmatprep.subr.mxu0 0.0
        %7974 = vmatpush1.msra.mxu0 0.0
        %7975 = vmatprep.subr.mxu0 0.0
        %7976 = vmatpush1.msra.mxu0 0.0
        %7977 = vmatprep.subr.mxu0 0.0
        %7978 = vmatpush1.msra.mxu0 0.0
        %7979 = vmatprep.subr.mxu0 0.0
        %7980 = vmatpush1.msra.mxu0 0.0
        %7981 = vmatprep.subr.mxu0 0.0
        %7982 = vmatpush1.msra.mxu0 0.0
        %7983 = vmatprep.subr.mxu0 0.0
        %7984 = vmatpush1.msra.mxu0 0.0
        %7985 = vmatprep.subr.mxu0 0.0
        %7986 = vmatpush1.msra.mxu0 0.0
        %7987 = vmatprep.subr.mxu0 0.0
        %7988 = vmatpush1.msra.mxu0 0.0
        %7989 = vmatprep.subr.mxu0 0.0
        %7990 = vmatpush1.msra.mxu0 0.0
        %7991 = vmatprep.subr.mxu0 0.0
        %7992 = vmatpush1.msra.mxu0 0.0
        %7993 = vmatprep.subr.mxu0 0.0
        %7994 = vmatpush1.msra.mxu0 0.0
        %7995 = vmatprep.subr.mxu0 0.0
        %7996 = vmatpush1.msra.mxu0 0.0
        %7997 = vmatprep.subr.mxu0 0.0
        %7998 = vmatpush1.msra.mxu0 0.0
        %7999 = vmatprep.subr.mxu0 0.0
        %8000 = vmatpush1.msra.mxu0 0.0
        %8001 = vmatprep.subr.mxu0 0.0
        %8002 = vmatpush1.msra.mxu0 0.0
        %8003 = vmatprep.subr.mxu0 0.0
        %8004 = vmatpush1.msra.mxu0 0.0
        %8005 = vmatprep.subr.mxu0 0.0
        %8006 = vmatpush1.msra.mxu0 0.0
        %8007 = vmatprep.subr.mxu0 0.0
        %8008 = vmatpush1.msra.mxu0 0.0
        %8009 = vmatprep.mubr.f32.mxu0 0.0
        %8010 = vmatmul.mubr.f32.gmra.mrb[0].mxu0 %v7934
        %v8011 = vpop.f32.mrb[0].mxu0
        %v8012 = vadd.f32 0.0, %v8011
        %v8013 = vpop.f32.mrb[0].mxu0
        %v8014 = vadd.f32 0.0, %v8013
        %8015 = vmatprep.mubr.f32.mxu0 0.0
        %8016 = vmatmul.mubr.f32.gmra.mrb[0].mxu0 %v7937
        %v8017 = vpop.f32.mrb[0].mxu0
        %v8018 = vadd.f32 0.0, %v8017
        %v8019 = vpop.f32.mrb[0].mxu0
        %v8020 = vadd.f32 0.0, %v8019
        %8021 = vmatprep.mubr.f32.mxu0 0.0
        %8022 = vmatmul.mubr.f32.gmra.mrb[0].mxu0 %v7940
        %v8023 = vpop.f32.mrb[0].mxu0
        %v8024 = vadd.f32 0.0, %v8023
        %v8025 = vpop.f32.mrb[0].mxu0
        %v8026 = vadd.f32 0.0, %v8025
        %8027 = vmatprep.mubr.f32.mxu0 0.0
        %8028 = vmatmul.mubr.f32.gmra.mrb[0].mxu0 %v7943
        %v8029 = vpop.f32.mrb[0].mxu0
        %v8030 = vadd.f32 0.0, %v8029
        %v8031 = vpop.f32.mrb[0].mxu0
        %v8032 = vadd.f32 0.0, %v8031
        %8033 = vdwg.mxu0
        %v8035 = vsel %vm5719, %v7925, 0
        %v8038 = vsel %vm5719, %v7926, 0
        %v8041 = vsel %vm5719, %v7927, 0
        %v8044 = vsel %vm5719, %v7928, 0
        %8046 = vmatprep.subr.mxu0 %v5726
        %8047 = vmatpush1.msra.mxu0 %v5724
        %8048 = vmatprep.subr.mxu0 0.0
        %8049 = vmatpush1.msra.mxu0 0.0
        %8050 = vmatprep.subr.mxu0 0.0
        %8051 = vmatpush1.msra.mxu0 0.0
        %8052 = vmatprep.subr.mxu0 0.0
        %8053 = vmatpush1.msra.mxu0 0.0
        %8054 = vmatprep.subr.mxu0 0.0
        %8055 = vmatpush1.msra.mxu0 0.0
        %8056 = vmatprep.subr.mxu0 0.0
        %8057 = vmatpush1.msra.mxu0 0.0
        %8058 = vmatprep.subr.mxu0 0.0
        %8059 = vmatpush1.msra.mxu0 0.0
        %8060 = vmatprep.subr.mxu0 0.0
        %8061 = vmatpush1.msra.mxu0 0.0
        %8062 = vmatprep.subr.mxu0 0.0
        %8063 = vmatpush1.msra.mxu0 0.0
        %8064 = vmatprep.subr.mxu0 0.0
        %8065 = vmatpush1.msra.mxu0 0.0
        %8066 = vmatprep.subr.mxu0 0.0
        %8067 = vmatpush1.msra.mxu0 0.0
        %8068 = vmatprep.subr.mxu0 0.0
        %8069 = vmatpush1.msra.mxu0 0.0
        %8070 = vmatprep.subr.mxu0 0.0
        %8071 = vmatpush1.msra.mxu0 0.0
        %8072 = vmatprep.subr.mxu0 0.0
        %8073 = vmatpush1.msra.mxu0 0.0
        %8074 = vmatprep.subr.mxu0 0.0
        %8075 = vmatpush1.msra.mxu0 0.0
        %8076 = vmatprep.subr.mxu0 0.0
        %8077 = vmatpush1.msra.mxu0 0.0
        %8078 = vmatprep.subr.mxu0 0.0
        %8079 = vmatpush1.msra.mxu0 0.0
        %8080 = vmatprep.subr.mxu0 0.0
        %8081 = vmatpush1.msra.mxu0 0.0
        %8082 = vmatprep.subr.mxu0 0.0
        %8083 = vmatpush1.msra.mxu0 0.0
        %8084 = vmatprep.subr.mxu0 0.0
        %8085 = vmatpush1.msra.mxu0 0.0
        %8086 = vmatprep.subr.mxu0 0.0
        %8087 = vmatpush1.msra.mxu0 0.0
        %8088 = vmatprep.subr.mxu0 0.0
        %8089 = vmatpush1.msra.mxu0 0.0
        %8090 = vmatprep.subr.mxu0 0.0
        %8091 = vmatpush1.msra.mxu0 0.0
        %8092 = vmatprep.subr.mxu0 0.0
        %8093 = vmatpush1.msra.mxu0 0.0
        %8094 = vmatprep.subr.mxu0 0.0
        %8095 = vmatpush1.msra.mxu0 0.0
        %8096 = vmatprep.subr.mxu0 0.0
        %8097 = vmatpush1.msra.mxu0 0.0
        %8098 = vmatprep.subr.mxu0 0.0
        %8099 = vmatpush1.msra.mxu0 0.0
        %8100 = vmatprep.subr.mxu0 0.0
        %8101 = vmatpush1.msra.mxu0 0.0
        %8102 = vmatprep.subr.mxu0 0.0
        %8103 = vmatpush1.msra.mxu0 0.0
        %8104 = vmatprep.subr.mxu0 0.0
        %8105 = vmatpush1.msra.mxu0 0.0
        %8106 = vmatprep.subr.mxu0 0.0
        %8107 = vmatpush1.msra.mxu0 0.0
        %8108 = vmatprep.subr.mxu0 0.0
        %8109 = vmatpush1.msra.mxu0 0.0
        %8110 = vmatprep.mubr.f32.mxu0 0.0
        %8111 = vmatmul.mubr.f32.gmra.mrb[0].mxu0 %v8035
        %v8112 = vpop.f32.mrb[0].mxu0
        %v8113 = vadd.f32 %v8012, %v8112
        %v8114 = vpop.f32.mrb[0].mxu0
        %v8115 = vadd.f32 %v8014, %v8114
        %8116 = vmatprep.mubr.f32.mxu0 0.0
        %8117 = vmatmul.mubr.f32.gmra.mrb[0].mxu0 %v8038
        %v8118 = vpop.f32.mrb[0].mxu0
        %v8119 = vadd.f32 %v8018, %v8118
        %v8120 = vpop.f32.mrb[0].mxu0
        %v8121 = vadd.f32 %v8020, %v8120
        %8122 = vmatprep.mubr.f32.mxu0 0.0
        %8123 = vmatmul.mubr.f32.gmra.mrb[0].mxu0 %v8041
        %v8124 = vpop.f32.mrb[0].mxu0
        %v8125 = vadd.f32 %v8024, %v8124
        %v8126 = vpop.f32.mrb[0].mxu0
        %v8127 = vadd.f32 %v8026, %v8126
        %8128 = vmatprep.mubr.f32.mxu0 0.0
        %8129 = vmatmul.mubr.f32.gmra.mrb[0].mxu0 %v8044
        %v8130 = vpop.f32.mrb[0].mxu0
        %v8131 = vadd.f32 %v8030, %v8130
        %v8132 = vpop.f32.mrb[0].mxu0
        %v8133 = vadd.f32 %v8032, %v8132
        %8134 = vdwg.mxu0
        %8135 = vmatprep.subr.mxu0 %v5877
        %8136 = vmatpush1.msra.mxu0 %v5875
        %8137 = vmatprep.subr.mxu0 0.0
        %8138 = vmatpush1.msra.mxu0 0.0
        %8139 = vmatprep.subr.mxu0 0.0
        %8140 = vmatpush1.msra.mxu0 0.0
        %8141 = vmatprep.subr.mxu0 0.0
        %8142 = vmatpush1.msra.mxu0 0.0
        %8143 = vmatprep.subr.mxu0 0.0
        %8144 = vmatpush1.msra.mxu0 0.0
        %8145 = vmatprep.subr.mxu0 0.0
        %8146 = vmatpush1.msra.mxu0 0.0
        %8147 = vmatprep.subr.mxu0 0.0
        %8148 = vmatpush1.msra.mxu0 0.0
        %8149 = vmatprep.subr.mxu0 0.0
        %8150 = vmatpush1.msra.mxu0 0.0
        %8151 = vmatprep.subr.mxu0 0.0
        %8152 = vmatpush1.msra.mxu0 0.0
        %8153 = vmatprep.subr.mxu0 0.0
        %8154 = vmatpush1.msra.mxu0 0.0
        %8155 = vmatprep.subr.mxu0 0.0
        %8156 = vmatpush1.msra.mxu0 0.0
        %8157 = vmatprep.subr.mxu0 0.0
        %8158 = vmatpush1.msra.mxu0 0.0
        %8159 = vmatprep.subr.mxu0 0.0
        %8160 = vmatpush1.msra.mxu0 0.0
        %8161 = vmatprep.subr.mxu0 0.0
        %8162 = vmatpush1.msra.mxu0 0.0
        %8163 = vmatprep.subr.mxu0 0.0
        %8164 = vmatpush1.msra.mxu0 0.0
        %8165 = vmatprep.subr.mxu0 0.0
        %8166 = vmatpush1.msra.mxu0 0.0
        %8167 = vmatprep.subr.mxu0 0.0
        %8168 = vmatpush1.msra.mxu0 0.0
        %8169 = vmatprep.subr.mxu0 0.0
        %8170 = vmatpush1.msra.mxu0 0.0
        %8171 = vmatprep.subr.mxu0 0.0
        %8172 = vmatpush1.msra.mxu0 0.0
        %8173 = vmatprep.subr.mxu0 0.0
        %8174 = vmatpush1.msra.mxu0 0.0
        %8175 = vmatprep.subr.mxu0 0.0
        %8176 = vmatpush1.msra.mxu0 0.0
        %8177 = vmatprep.subr.mxu0 0.0
        %8178 = vmatpush1.msra.mxu0 0.0
        %8179 = vmatprep.subr.mxu0 0.0
        %8180 = vmatpush1.msra.mxu0 0.0
        %8181 = vmatprep.subr.mxu0 0.0
        %8182 = vmatpush1.msra.mxu0 0.0
        %8183 = vmatprep.subr.mxu0 0.0
        %8184 = vmatpush1.msra.mxu0 0.0
        %8185 = vmatprep.subr.mxu0 0.0
        %8186 = vmatpush1.msra.mxu0 0.0
        %8187 = vmatprep.subr.mxu0 0.0
        %8188 = vmatpush1.msra.mxu0 0.0
        %8189 = vmatprep.subr.mxu0 0.0
        %8190 = vmatpush1.msra.mxu0 0.0
        %8191 = vmatprep.subr.mxu0 0.0
        %8192 = vmatpush1.msra.mxu0 0.0
        %8193 = vmatprep.subr.mxu0 0.0
        %8194 = vmatpush1.msra.mxu0 0.0
        %8195 = vmatprep.subr.mxu0 0.0
        %8196 = vmatpush1.msra.mxu0 0.0
        %8197 = vmatprep.subr.mxu0 0.0
        %8198 = vmatpush1.msra.mxu0 0.0
        %8199 = vmatprep.mubr.f32.mxu0 0.0
        %8200 = vmatmul.mubr.f32.gmra.mrb[0].mxu0 %v8035
        %v8201 = vpop.f32.mrb[0].mxu0
        %v8202 = vadd.f32 0.0, %v8201
        %v8203 = vpop.f32.mrb[0].mxu0
        %v8204 = vadd.f32 0.0, %v8203
        %8205 = vmatprep.mubr.f32.mxu0 0.0
        %8206 = vmatmul.mubr.f32.gmra.mrb[0].mxu0 %v8038
        %v8207 = vpop.f32.mrb[0].mxu0
        %v8208 = vadd.f32 0.0, %v8207
        %v8209 = vpop.f32.mrb[0].mxu0
        %v8210 = vadd.f32 0.0, %v8209
        %8211 = vmatprep.mubr.f32.mxu0 0.0
        %8212 = vmatmul.mubr.f32.gmra.mrb[0].mxu0 %v8041
        %v8213 = vpop.f32.mrb[0].mxu0
        %v8214 = vadd.f32 0.0, %v8213
        %v8215 = vpop.f32.mrb[0].mxu0
        %v8216 = vadd.f32 0.0, %v8215
        %8217 = vmatprep.mubr.f32.mxu0 0.0
        %8218 = vmatmul.mubr.f32.gmra.mrb[0].mxu0 %v8044
        %v8219 = vpop.f32.mrb[0].mxu0
        %v8220 = vadd.f32 0.0, %v8219
        %v8221 = vpop.f32.mrb[0].mxu0
        %v8222 = vadd.f32 0.0, %v8221
        %8223 = vdwg.mxu0
        %v8224 = vadd.f32 %v8113, %v8202
        %v8225 = vadd.f32 %v8115, %v8204
        %v8226 = vadd.f32 %v8119, %v8208
        %v8227 = vadd.f32 %v8121, %v8210
        %v8228 = vadd.f32 %v8125, %v8214
        %v8229 = vadd.f32 %v8127, %v8216
        %v8230 = vadd.f32 %v8131, %v8220
        %v8231 = vadd.f32 %v8133, %v8222
        %v8232 = vld [vmem:[%s16] sm:$0xff]
        %v8233 = vld [vmem:[%s16 + $0x8] sm:$0xff]
        %v8234 = vld [vmem:[%s16 + $0x10] sm:$0xff]
        %v8235 = vld [vmem:[%s16 + $0x18] sm:$0xff]
        %8237 = vset.pattern.permute.xlu0 0
        %8238 = vperm.xlu0 %8237, %v8232
        %v8239 = vpop.permute.xlu0 %8238
        %8242 = vset.pattern.permute.xlu0 0
        %8243 = vperm.xlu0 %8242, %v8233
        %v8244 = vpop.permute.xlu0 %8243
        %8247 = vset.pattern.permute.xlu0 0
        %8248 = vperm.xlu0 %8247, %v8234
        %v8249 = vpop.permute.xlu0 %8248
        %8252 = vset.pattern.permute.xlu0 0
        %8253 = vperm.xlu0 %8252, %v8235
        %v8254 = vpop.permute.xlu0 %8253
        %v8256 = vadd.f32 %v8224, %v8239
        %v8257 = vadd.f32 %v8225, %v8239
        %v8258 = vadd.f32 %v8226, %v8244
        %v8259 = vadd.f32 %v8227, %v8244
        %v8260 = vadd.f32 %v8228, %v8249
        %v8261 = vadd.f32 %v8229, %v8249
        %v8262 = vadd.f32 %v8230, %v8254
        %v8263 = vadd.f32 %v8231, %v8254
        %v8264 = vmax.f32 %v8256, 0.0
        %v8265 = vmax.f32 %v8257, 0.0
        %v8266 = vmax.f32 %v8258, 0.0
        %v8267 = vmax.f32 %v8259, 0.0
        %v8268 = vmax.f32 %v8260, 0.0
        %v8269 = vmax.f32 %v8261, 0.0
        %v8270 = vmax.f32 %v8262, 0.0
        %v8271 = vmax.f32 %v8263, 0.0
        %v8272 = vld [vmem:[%s17] sm:$0xff]
        %v8273 = vld [vmem:[%s17 + $0x8] sm:$0xff]
        %v8274 = vld [vmem:[%s17 + $0x10] sm:$0xff]
        %v8275 = vld [vmem:[%s17 + $0x18] sm:$0xff]
        %v8276 = vpack.c.bf16 %v8273, %v8272
        %v8277 = vpack.c.bf16 %v8275, %v8274
        %v8278 = vunpack.c.l.bf16 %v8276
        %v8279 = vunpack.c.h.bf16 %v8276
        %v8280 = vunpack.c.l.bf16 %v8277
        %v8281 = vunpack.c.h.bf16 %v8277
        %v8282 = vsub.f32 %v8272, %v8278
        %v8283 = vsub.f32 %v8273, %v8279
        %v8284 = vsub.f32 %v8274, %v8280
        %v8285 = vsub.f32 %v8275, %v8281
        %v8286 = vpack.c.bf16 %v8266, %v8264
        %v8287 = vpack.c.bf16 %v8267, %v8265
        %v8288 = vpack.c.bf16 %v8270, %v8268
        %v8289 = vpack.c.bf16 %v8271, %v8269
        %v8290 = vunpack.c.l.bf16 %v8286
        %v8291 = vunpack.c.l.bf16 %v8287
        %v8292 = vunpack.c.h.bf16 %v8286
        %v8293 = vunpack.c.h.bf16 %v8287
        %v8294 = vunpack.c.l.bf16 %v8288
        %v8295 = vunpack.c.l.bf16 %v8289
        %v8296 = vunpack.c.h.bf16 %v8288
        %v8297 = vunpack.c.h.bf16 %v8289
        %v8298 = vsub.f32 %v8264, %v8290
        %v8299 = vsub.f32 %v8265, %v8291
        %v8300 = vsub.f32 %v8266, %v8292
        %v8301 = vsub.f32 %v8267, %v8293
        %v8302 = vsub.f32 %v8268, %v8294
        %v8303 = vsub.f32 %v8269, %v8295
        %v8304 = vsub.f32 %v8270, %v8296
        %v8305 = vsub.f32 %v8271, %v8297
        %v8307 = vsel %vm821, %v8282, 0
        %v8310 = vsel %vm821, %v8283, 0
        %v8313 = vsel %vm821, %v8284, 0
        %v8316 = vsel %vm821, %v8285, 0
        %8318 = vmatprep.subr.mxu0 %v8291
        %8319 = vmatpush1.msra.mxu0 %v8290
        %8320 = vmatprep.subr.mxu0 %v8293
        %8321 = vmatpush1.msra.mxu0 %v8292
        %8322 = vmatprep.subr.mxu0 %v8295
        %8323 = vmatpush1.msra.mxu0 %v8294
        %8324 = vmatprep.subr.mxu0 %v8297
        %8325 = vmatpush1.msra.mxu0 %v8296
        %8326 = vmatprep.subr.mxu0 0.0
        %8327 = vmatpush1.msra.mxu0 0.0
        %8328 = vmatprep.subr.mxu0 0.0
        %8329 = vmatpush1.msra.mxu0 0.0
        %8330 = vmatprep.subr.mxu0 0.0
        %8331 = vmatpush1.msra.mxu0 0.0
        %8332 = vmatprep.subr.mxu0 0.0
        %8333 = vmatpush1.msra.mxu0 0.0
        %8334 = vmatprep.subr.mxu0 0.0
        %8335 = vmatpush1.msra.mxu0 0.0
        %8336 = vmatprep.subr.mxu0 0.0
        %8337 = vmatpush1.msra.mxu0 0.0
        %8338 = vmatprep.subr.mxu0 0.0
        %8339 = vmatpush1.msra.mxu0 0.0
        %8340 = vmatprep.subr.mxu0 0.0
        %8341 = vmatpush1.msra.mxu0 0.0
        %8342 = vmatprep.subr.mxu0 0.0
        %8343 = vmatpush1.msra.mxu0 0.0
        %8344 = vmatprep.subr.mxu0 0.0
        %8345 = vmatpush1.msra.mxu0 0.0
        %8346 = vmatprep.subr.mxu0 0.0
        %8347 = vmatpush1.msra.mxu0 0.0
        %8348 = vmatprep.subr.mxu0 0.0
        %8349 = vmatpush1.msra.mxu0 0.0
        %8350 = vmatprep.subr.mxu0 0.0
        %8351 = vmatpush1.msra.mxu0 0.0
        %8352 = vmatprep.subr.mxu0 0.0
        %8353 = vmatpush1.msra.mxu0 0.0
        %8354 = vmatprep.subr.mxu0 0.0
        %8355 = vmatpush1.msra.mxu0 0.0
        %8356 = vmatprep.subr.mxu0 0.0
        %8357 = vmatpush1.msra.mxu0 0.0
        %8358 = vmatprep.subr.mxu0 0.0
        %8359 = vmatpush1.msra.mxu0 0.0
        %8360 = vmatprep.subr.mxu0 0.0
        %8361 = vmatpush1.msra.mxu0 0.0
        %8362 = vmatprep.subr.mxu0 0.0
        %8363 = vmatpush1.msra.mxu0 0.0
        %8364 = vmatprep.subr.mxu0 0.0
        %8365 = vmatpush1.msra.mxu0 0.0
        %8366 = vmatprep.subr.mxu0 0.0
        %8367 = vmatpush1.msra.mxu0 0.0
        %8368 = vmatprep.subr.mxu0 0.0
        %8369 = vmatpush1.msra.mxu0 0.0
        %8370 = vmatprep.subr.mxu0 0.0
        %8371 = vmatpush1.msra.mxu0 0.0
        %8372 = vmatprep.subr.mxu0 0.0
        %8373 = vmatpush1.msra.mxu0 0.0
        %8374 = vmatprep.subr.mxu0 0.0
        %8375 = vmatpush1.msra.mxu0 0.0
        %8376 = vmatprep.subr.mxu0 0.0
        %8377 = vmatpush1.msra.mxu0 0.0
        %8378 = vmatprep.subr.mxu0 0.0
        %8379 = vmatpush1.msra.mxu0 0.0
        %8380 = vmatprep.subr.mxu0 0.0
        %8381 = vmatpush1.msra.mxu0 0.0
        %8382 = vmatprep.mubr.f32.mxu0 0.0
        %8383 = vmatmul.mubr.f32.gmra.mrb[0].mxu0 %v8307
        %v8384 = vpop.f32.mrb[0].mxu0
        %v8385 = vadd.f32 0.0, %v8384
        %v8386 = vpop.f32.mrb[0].mxu0
        %v8387 = vadd.f32 0.0, %v8386
        %8388 = vmatprep.mubr.f32.mxu0 0.0
        %8389 = vmatmul.mubr.f32.gmra.mrb[0].mxu0 %v8310
        %v8390 = vpop.f32.mrb[0].mxu0
        %v8391 = vadd.f32 0.0, %v8390
        %v8392 = vpop.f32.mrb[0].mxu0
        %v8393 = vadd.f32 0.0, %v8392
        %8394 = vmatprep.mubr.f32.mxu0 0.0
        %8395 = vmatmul.mubr.f32.gmra.mrb[0].mxu0 %v8313
        %v8396 = vpop.f32.mrb[0].mxu0
        %v8397 = vadd.f32 0.0, %v8396
        %v8398 = vpop.f32.mrb[0].mxu0
        %v8399 = vadd.f32 0.0, %v8398
        %8400 = vmatprep.mubr.f32.mxu0 0.0
        %8401 = vmatmul.mubr.f32.gmra.mrb[0].mxu0 %v8316
        %v8402 = vpop.f32.mrb[0].mxu0
        %v8403 = vadd.f32 0.0, %v8402
        %v8404 = vpop.f32.mrb[0].mxu0
        %v8405 = vadd.f32 0.0, %v8404
        %8406 = vdwg.mxu0
        %v8408 = vsel %vm821, %v8278, 0
        %v8411 = vsel %vm821, %v8279, 0
        %v8414 = vsel %vm821, %v8280, 0
        %v8417 = vsel %vm821, %v8281, 0
        %8419 = vmatprep.subr.mxu0 %v8291
        %8420 = vmatpush1.msra.mxu0 %v8290
        %8421 = vmatprep.subr.mxu0 %v8293
        %8422 = vmatpush1.msra.mxu0 %v8292
        %8423 = vmatprep.subr.mxu0 %v8295
        %8424 = vmatpush1.msra.mxu0 %v8294
        %8425 = vmatprep.subr.mxu0 %v8297
        %8426 = vmatpush1.msra.mxu0 %v8296
        %8427 = vmatprep.subr.mxu0 0.0
        %8428 = vmatpush1.msra.mxu0 0.0
        %8429 = vmatprep.subr.mxu0 0.0
        %8430 = vmatpush1.msra.mxu0 0.0
        %8431 = vmatprep.subr.mxu0 0.0
        %8432 = vmatpush1.msra.mxu0 0.0
        %8433 = vmatprep.subr.mxu0 0.0
        %8434 = vmatpush1.msra.mxu0 0.0
        %8435 = vmatprep.subr.mxu0 0.0
        %8436 = vmatpush1.msra.mxu0 0.0
        %8437 = vmatprep.subr.mxu0 0.0
        %8438 = vmatpush1.msra.mxu0 0.0
        %8439 = vmatprep.subr.mxu0 0.0
        %8440 = vmatpush1.msra.mxu0 0.0
        %8441 = vmatprep.subr.mxu0 0.0
        %8442 = vmatpush1.msra.mxu0 0.0
        %8443 = vmatprep.subr.mxu0 0.0
        %8444 = vmatpush1.msra.mxu0 0.0
        %8445 = vmatprep.subr.mxu0 0.0
        %8446 = vmatpush1.msra.mxu0 0.0
        %8447 = vmatprep.subr.mxu0 0.0
        %8448 = vmatpush1.msra.mxu0 0.0
        %8449 = vmatprep.subr.mxu0 0.0
        %8450 = vmatpush1.msra.mxu0 0.0
        %8451 = vmatprep.subr.mxu0 0.0
        %8452 = vmatpush1.msra.mxu0 0.0
        %8453 = vmatprep.subr.mxu0 0.0
        %8454 = vmatpush1.msra.mxu0 0.0
        %8455 = vmatprep.subr.mxu0 0.0
        %8456 = vmatpush1.msra.mxu0 0.0
        %8457 = vmatprep.subr.mxu0 0.0
        %8458 = vmatpush1.msra.mxu0 0.0
        %8459 = vmatprep.subr.mxu0 0.0
        %8460 = vmatpush1.msra.mxu0 0.0
        %8461 = vmatprep.subr.mxu0 0.0
        %8462 = vmatpush1.msra.mxu0 0.0
        %8463 = vmatprep.subr.mxu0 0.0
        %8464 = vmatpush1.msra.mxu0 0.0
        %8465 = vmatprep.subr.mxu0 0.0
        %8466 = vmatpush1.msra.mxu0 0.0
        %8467 = vmatprep.subr.mxu0 0.0
        %8468 = vmatpush1.msra.mxu0 0.0
        %8469 = vmatprep.subr.mxu0 0.0
        %8470 = vmatpush1.msra.mxu0 0.0
        %8471 = vmatprep.subr.mxu0 0.0
        %8472 = vmatpush1.msra.mxu0 0.0
        %8473 = vmatprep.subr.mxu0 0.0
        %8474 = vmatpush1.msra.mxu0 0.0
        %8475 = vmatprep.subr.mxu0 0.0
        %8476 = vmatpush1.msra.mxu0 0.0
        %8477 = vmatprep.subr.mxu0 0.0
        %8478 = vmatpush1.msra.mxu0 0.0
        %8479 = vmatprep.subr.mxu0 0.0
        %8480 = vmatpush1.msra.mxu0 0.0
        %8481 = vmatprep.subr.mxu0 0.0
        %8482 = vmatpush1.msra.mxu0 0.0
        %8483 = vmatprep.mubr.f32.mxu0 0.0
        %8484 = vmatmul.mubr.f32.gmra.mrb[0].mxu0 %v8408
        %v8485 = vpop.f32.mrb[0].mxu0
        %v8486 = vadd.f32 %v8385, %v8485
        %v8487 = vpop.f32.mrb[0].mxu0
        %v8488 = vadd.f32 %v8387, %v8487
        %8489 = vmatprep.mubr.f32.mxu0 0.0
        %8490 = vmatmul.mubr.f32.gmra.mrb[0].mxu0 %v8411
        %v8491 = vpop.f32.mrb[0].mxu0
        %v8492 = vadd.f32 %v8391, %v8491
        %v8493 = vpop.f32.mrb[0].mxu0
        %v8494 = vadd.f32 %v8393, %v8493
        %8495 = vmatprep.mubr.f32.mxu0 0.0
        %8496 = vmatmul.mubr.f32.gmra.mrb[0].mxu0 %v8414
        %v8497 = vpop.f32.mrb[0].mxu0
        %v8498 = vadd.f32 %v8397, %v8497
        %v8499 = vpop.f32.mrb[0].mxu0
        %v8500 = vadd.f32 %v8399, %v8499
        %8501 = vmatprep.mubr.f32.mxu0 0.0
        %8502 = vmatmul.mubr.f32.gmra.mrb[0].mxu0 %v8417
        %v8503 = vpop.f32.mrb[0].mxu0
        %v8504 = vadd.f32 %v8403, %v8503
        %v8505 = vpop.f32.mrb[0].mxu0
        %v8506 = vadd.f32 %v8405, %v8505
        %8507 = vdwg.mxu0
        %8508 = vmatprep.subr.mxu0 %v8299
        %8509 = vmatpush1.msra.mxu0 %v8298
        %8510 = vmatprep.subr.mxu0 %v8301
        %8511 = vmatpush1.msra.mxu0 %v8300
        %8512 = vmatprep.subr.mxu0 %v8303
        %8513 = vmatpush1.msra.mxu0 %v8302
        %8514 = vmatprep.subr.mxu0 %v8305
        %8515 = vmatpush1.msra.mxu0 %v8304
        %8516 = vmatprep.subr.mxu0 0.0
        %8517 = vmatpush1.msra.mxu0 0.0
        %8518 = vmatprep.subr.mxu0 0.0
        %8519 = vmatpush1.msra.mxu0 0.0
        %8520 = vmatprep.subr.mxu0 0.0
        %8521 = vmatpush1.msra.mxu0 0.0
        %8522 = vmatprep.subr.mxu0 0.0
        %8523 = vmatpush1.msra.mxu0 0.0
        %8524 = vmatprep.subr.mxu0 0.0
        %8525 = vmatpush1.msra.mxu0 0.0
        %8526 = vmatprep.subr.mxu0 0.0
        %8527 = vmatpush1.msra.mxu0 0.0
        %8528 = vmatprep.subr.mxu0 0.0
        %8529 = vmatpush1.msra.mxu0 0.0
        %8530 = vmatprep.subr.mxu0 0.0
        %8531 = vmatpush1.msra.mxu0 0.0
        %8532 = vmatprep.subr.mxu0 0.0
        %8533 = vmatpush1.msra.mxu0 0.0
        %8534 = vmatprep.subr.mxu0 0.0
        %8535 = vmatpush1.msra.mxu0 0.0
        %8536 = vmatprep.subr.mxu0 0.0
        %8537 = vmatpush1.msra.mxu0 0.0
        %8538 = vmatprep.subr.mxu0 0.0
        %8539 = vmatpush1.msra.mxu0 0.0
        %8540 = vmatprep.subr.mxu0 0.0
        %8541 = vmatpush1.msra.mxu0 0.0
        %8542 = vmatprep.subr.mxu0 0.0
        %8543 = vmatpush1.msra.mxu0 0.0
        %8544 = vmatprep.subr.mxu0 0.0
        %8545 = vmatpush1.msra.mxu0 0.0
        %8546 = vmatprep.subr.mxu0 0.0
        %8547 = vmatpush1.msra.mxu0 0.0
        %8548 = vmatprep.subr.mxu0 0.0
        %8549 = vmatpush1.msra.mxu0 0.0
        %8550 = vmatprep.subr.mxu0 0.0
        %8551 = vmatpush1.msra.mxu0 0.0
        %8552 = vmatprep.subr.mxu0 0.0
        %8553 = vmatpush1.msra.mxu0 0.0
        %8554 = vmatprep.subr.mxu0 0.0
        %8555 = vmatpush1.msra.mxu0 0.0
        %8556 = vmatprep.subr.mxu0 0.0
        %8557 = vmatpush1.msra.mxu0 0.0
        %8558 = vmatprep.subr.mxu0 0.0
        %8559 = vmatpush1.msra.mxu0 0.0
        %8560 = vmatprep.subr.mxu0 0.0
        %8561 = vmatpush1.msra.mxu0 0.0
        %8562 = vmatprep.subr.mxu0 0.0
        %8563 = vmatpush1.msra.mxu0 0.0
        %8564 = vmatprep.subr.mxu0 0.0
        %8565 = vmatpush1.msra.mxu0 0.0
        %8566 = vmatprep.subr.mxu0 0.0
        %8567 = vmatpush1.msra.mxu0 0.0
        %8568 = vmatprep.subr.mxu0 0.0
        %8569 = vmatpush1.msra.mxu0 0.0
        %8570 = vmatprep.subr.mxu0 0.0
        %8571 = vmatpush1.msra.mxu0 0.0
        %8572 = vmatprep.mubr.f32.mxu0 0.0
        %8573 = vmatmul.mubr.f32.gmra.mrb[0].mxu0 %v8408
        %v8574 = vpop.f32.mrb[0].mxu0
        %v8575 = vadd.f32 0.0, %v8574
        %v8576 = vpop.f32.mrb[0].mxu0
        %v8577 = vadd.f32 0.0, %v8576
        %8578 = vmatprep.mubr.f32.mxu0 0.0
        %8579 = vmatmul.mubr.f32.gmra.mrb[0].mxu0 %v8411
        %v8580 = vpop.f32.mrb[0].mxu0
        %v8581 = vadd.f32 0.0, %v8580
        %v8582 = vpop.f32.mrb[0].mxu0
        %v8583 = vadd.f32 0.0, %v8582
        %8584 = vmatprep.mubr.f32.mxu0 0.0
        %8585 = vmatmul.mubr.f32.gmra.mrb[0].mxu0 %v8414
        %v8586 = vpop.f32.mrb[0].mxu0
        %v8587 = vadd.f32 0.0, %v8586
        %v8588 = vpop.f32.mrb[0].mxu0
        %v8589 = vadd.f32 0.0, %v8588
        %8590 = vmatprep.mubr.f32.mxu0 0.0
        %8591 = vmatmul.mubr.f32.gmra.mrb[0].mxu0 %v8417
        %v8592 = vpop.f32.mrb[0].mxu0
        %v8593 = vadd.f32 0.0, %v8592
        %v8594 = vpop.f32.mrb[0].mxu0
        %v8595 = vadd.f32 0.0, %v8594
        %8596 = vdwg.mxu0
        %v8597 = vadd.f32 %v8486, %v8575
        %v8598 = vadd.f32 %v8488, %v8577
        %v8599 = vadd.f32 %v8492, %v8581
        %v8600 = vadd.f32 %v8494, %v8583
        %v8601 = vadd.f32 %v8498, %v8587
        %v8602 = vadd.f32 %v8500, %v8589
        %v8603 = vadd.f32 %v8504, %v8593
        %v8604 = vadd.f32 %v8506, %v8595
        %v8605 = vld [vmem:[%s18] sm:$0xff]
        %v8606 = vld [vmem:[%s18 + $0x8] sm:$0xff]
        %v8607 = vld [vmem:[%s18 + $0x10] sm:$0xff]
        %v8608 = vld [vmem:[%s18 + $0x18] sm:$0xff]
        %8610 = vset.pattern.permute.xlu0 0
        %8611 = vperm.xlu0 %8610, %v8605
        %v8612 = vpop.permute.xlu0 %8611
        %8615 = vset.pattern.permute.xlu0 0
        %8616 = vperm.xlu0 %8615, %v8606
        %v8617 = vpop.permute.xlu0 %8616
        %8620 = vset.pattern.permute.xlu0 0
        %8621 = vperm.xlu0 %8620, %v8607
        %v8622 = vpop.permute.xlu0 %8621
        %8625 = vset.pattern.permute.xlu0 0
        %8626 = vperm.xlu0 %8625, %v8608
        %v8627 = vpop.permute.xlu0 %8626
        %v8629 = vadd.f32 %v8597, %v8612
        %v8630 = vadd.f32 %v8598, %v8612
        %v8631 = vadd.f32 %v8599, %v8617
        %v8632 = vadd.f32 %v8600, %v8617
        %v8633 = vadd.f32 %v8601, %v8622
        %v8634 = vadd.f32 %v8602, %v8622
        %v8635 = vadd.f32 %v8603, %v8627
        %v8636 = vadd.f32 %v8604, %v8627
        %v8637 = vpack.c.bf16 %v8631, %v8629
        %v8638 = vpack.c.bf16 %v8632, %v8630
        %v8639 = vpack.c.bf16 %v8635, %v8633
        %v8640 = vpack.c.bf16 %v8636, %v8634
        %v8641 = vunpack.c.l.bf16 %v8637
        %v8642 = vunpack.c.l.bf16 %v8638
        %v8643 = vunpack.c.h.bf16 %v8637
        %v8644 = vunpack.c.h.bf16 %v8638
        %v8645 = vunpack.c.l.bf16 %v8639
        %v8646 = vunpack.c.l.bf16 %v8640
        %v8647 = vunpack.c.h.bf16 %v8639
        %v8648 = vunpack.c.h.bf16 %v8640
        %v8649 = vsub.f32 %v8629, %v8641
        %v8650 = vsub.f32 %v8630, %v8642
        %v8651 = vsub.f32 %v8631, %v8643
        %v8652 = vsub.f32 %v8632, %v8644
        %v8653 = vsub.f32 %v8633, %v8645
        %v8654 = vsub.f32 %v8634, %v8646
        %v8655 = vsub.f32 %v8635, %v8647
        %v8656 = vsub.f32 %v8636, %v8648
        %8657 = vmatprep.subr.mxu0 %v6350
        %8658 = vmatpush1.msra.mxu0 %v6349
        %8659 = vmatprep.subr.mxu0 %v6358
        %8660 = vmatpush1.msra.mxu0 %v6357
        %8661 = vmatprep.subr.mxu0 %v6366
        %8662 = vmatpush1.msra.mxu0 %v6365
        %8663 = vmatprep.subr.mxu0 %v6374
        %8664 = vmatpush1.msra.mxu0 %v6373
        %8665 = vmatprep.subr.mxu0 %v6382
        %8666 = vmatpush1.msra.mxu0 %v6381
        %8667 = vmatprep.subr.mxu0 %v6390
        %8668 = vmatpush1.msra.mxu0 %v6389
        %8669 = vmatprep.subr.mxu0 %v6398
        %8670 = vmatpush1.msra.mxu0 %v6397
        %8671 = vmatprep.subr.mxu0 %v6406
        %8672 = vmatpush1.msra.mxu0 %v6405
        %8673 = vmatprep.subr.mxu0 %v6414
        %8674 = vmatpush1.msra.mxu0 %v6413
        %8675 = vmatprep.subr.mxu0 %v6422
        %8676 = vmatpush1.msra.mxu0 %v6421
        %8677 = vmatprep.subr.mxu0 %v6430
        %8678 = vmatpush1.msra.mxu0 %v6429
        %8679 = vmatprep.subr.mxu0 %v6438
        %8680 = vmatpush1.msra.mxu0 %v6437
        %8681 = vmatprep.subr.mxu0 %v6446
        %8682 = vmatpush1.msra.mxu0 %v6445
        %8683 = vmatprep.subr.mxu0 %v6454
        %8684 = vmatpush1.msra.mxu0 %v6453
        %8685 = vmatprep.subr.mxu0 %v6462
        %8686 = vmatpush1.msra.mxu0 %v6461
        %8687 = vmatprep.subr.mxu0 %v6470
        %8688 = vmatpush1.msra.mxu0 %v6469
        %8689 = vmatprep.subr.mxu0 %v6478
        %8690 = vmatpush1.msra.mxu0 %v6477
        %8691 = vmatprep.subr.mxu0 %v6486
        %8692 = vmatpush1.msra.mxu0 %v6485
        %8693 = vmatprep.subr.mxu0 %v6494
        %8694 = vmatpush1.msra.mxu0 %v6493
        %8695 = vmatprep.subr.mxu0 %v6502
        %8696 = vmatpush1.msra.mxu0 %v6501
        %8697 = vmatprep.subr.mxu0 %v6510
        %8698 = vmatpush1.msra.mxu0 %v6509
        %8699 = vmatprep.subr.mxu0 %v6518
        %8700 = vmatpush1.msra.mxu0 %v6517
        %8701 = vmatprep.subr.mxu0 %v6526
        %8702 = vmatpush1.msra.mxu0 %v6525
        %8703 = vmatprep.subr.mxu0 %v6534
        %8704 = vmatpush1.msra.mxu0 %v6533
        %8705 = vmatprep.subr.mxu0 %v6542
        %8706 = vmatpush1.msra.mxu0 %v6541
        %8707 = vmatprep.subr.mxu0 %v6550
        %8708 = vmatpush1.msra.mxu0 %v6549
        %8709 = vmatprep.subr.mxu0 %v6558
        %8710 = vmatpush1.msra.mxu0 %v6557
        %8711 = vmatprep.subr.mxu0 %v6566
        %8712 = vmatpush1.msra.mxu0 %v6565
        %8713 = vmatprep.subr.mxu0 %v6574
        %8714 = vmatpush1.msra.mxu0 %v6573
        %8715 = vmatprep.subr.mxu0 %v6582
        %8716 = vmatpush1.msra.mxu0 %v6581
        %8717 = vmatprep.subr.mxu0 %v6590
        %8718 = vmatpush1.msra.mxu0 %v6589
        %8719 = vmatprep.subr.mxu0 %v6598
        %8720 = vmatpush1.msra.mxu0 %v6597
        %8721 = vmatprep.mubr.f32.mxu0 %v8650
        %8722 = vmatmul.mubr.f32.gmra.mrb[0].mxu0 %v8649
        %v8723 = vpop.f32.mrb[0].mxu0
        %v8724 = vadd.f32 0.0, %v8723
        %v8725 = vpop.f32.mrb[0].mxu0
        %v8726 = vadd.f32 0.0, %v8725
        %8727 = vmatprep.mubr.f32.mxu0 %v8652
        %8728 = vmatmul.mubr.f32.gmra.mrb[0].mxu0 %v8651
        %v8729 = vpop.f32.mrb[0].mxu0
        %v8730 = vadd.f32 0.0, %v8729
        %v8731 = vpop.f32.mrb[0].mxu0
        %v8732 = vadd.f32 0.0, %v8731
        %8733 = vmatprep.mubr.f32.mxu0 %v8654
        %8734 = vmatmul.mubr.f32.gmra.mrb[0].mxu0 %v8653
        %v8735 = vpop.f32.mrb[0].mxu0
        %v8736 = vadd.f32 0.0, %v8735
        %v8737 = vpop.f32.mrb[0].mxu0
        %v8738 = vadd.f32 0.0, %v8737
        %8739 = vmatprep.mubr.f32.mxu0 %v8656
        %8740 = vmatmul.mubr.f32.gmra.mrb[0].mxu0 %v8655
        %v8741 = vpop.f32.mrb[0].mxu0
        %v8742 = vadd.f32 0.0, %v8741
        %v8743 = vpop.f32.mrb[0].mxu0
        %v8744 = vadd.f32 0.0, %v8743
        %8745 = vdwg.mxu0
        %8746 = vmatprep.subr.mxu0 %v6352
        %8747 = vmatpush1.msra.mxu0 %v6351
        %8748 = vmatprep.subr.mxu0 %v6360
        %8749 = vmatpush1.msra.mxu0 %v6359
        %8750 = vmatprep.subr.mxu0 %v6368
        %8751 = vmatpush1.msra.mxu0 %v6367
        %8752 = vmatprep.subr.mxu0 %v6376
        %8753 = vmatpush1.msra.mxu0 %v6375
        %8754 = vmatprep.subr.mxu0 %v6384
        %8755 = vmatpush1.msra.mxu0 %v6383
        %8756 = vmatprep.subr.mxu0 %v6392
        %8757 = vmatpush1.msra.mxu0 %v6391
        %8758 = vmatprep.subr.mxu0 %v6400
        %8759 = vmatpush1.msra.mxu0 %v6399
        %8760 = vmatprep.subr.mxu0 %v6408
        %8761 = vmatpush1.msra.mxu0 %v6407
        %8762 = vmatprep.subr.mxu0 %v6416
        %8763 = vmatpush1.msra.mxu0 %v6415
        %8764 = vmatprep.subr.mxu0 %v6424
        %8765 = vmatpush1.msra.mxu0 %v6423
        %8766 = vmatprep.subr.mxu0 %v6432
        %8767 = vmatpush1.msra.mxu0 %v6431
        %8768 = vmatprep.subr.mxu0 %v6440
        %8769 = vmatpush1.msra.mxu0 %v6439
        %8770 = vmatprep.subr.mxu0 %v6448
        %8771 = vmatpush1.msra.mxu0 %v6447
        %8772 = vmatprep.subr.mxu0 %v6456
        %8773 = vmatpush1.msra.mxu0 %v6455
        %8774 = vmatprep.subr.mxu0 %v6464
        %8775 = vmatpush1.msra.mxu0 %v6463
        %8776 = vmatprep.subr.mxu0 %v6472
        %8777 = vmatpush1.msra.mxu0 %v6471
        %8778 = vmatprep.subr.mxu0 %v6480
        %8779 = vmatpush1.msra.mxu0 %v6479
        %8780 = vmatprep.subr.mxu0 %v6488
        %8781 = vmatpush1.msra.mxu0 %v6487
        %8782 = vmatprep.subr.mxu0 %v6496
        %8783 = vmatpush1.msra.mxu0 %v6495
        %8784 = vmatprep.subr.mxu0 %v6504
        %8785 = vmatpush1.msra.mxu0 %v6503
        %8786 = vmatprep.subr.mxu0 %v6512
        %8787 = vmatpush1.msra.mxu0 %v6511
        %8788 = vmatprep.subr.mxu0 %v6520
        %8789 = vmatpush1.msra.mxu0 %v6519
        %8790 = vmatprep.subr.mxu0 %v6528
        %8791 = vmatpush1.msra.mxu0 %v6527
        %8792 = vmatprep.subr.mxu0 %v6536
        %8793 = vmatpush1.msra.mxu0 %v6535
        %8794 = vmatprep.subr.mxu0 %v6544
        %8795 = vmatpush1.msra.mxu0 %v6543
        %8796 = vmatprep.subr.mxu0 %v6552
        %8797 = vmatpush1.msra.mxu0 %v6551
        %8798 = vmatprep.subr.mxu0 %v6560
        %8799 = vmatpush1.msra.mxu0 %v6559
        %8800 = vmatprep.subr.mxu0 %v6568
        %8801 = vmatpush1.msra.mxu0 %v6567
        %8802 = vmatprep.subr.mxu0 %v6576
        %8803 = vmatpush1.msra.mxu0 %v6575
        %8804 = vmatprep.subr.mxu0 %v6584
        %8805 = vmatpush1.msra.mxu0 %v6583
        %8806 = vmatprep.subr.mxu0 %v6592
        %8807 = vmatpush1.msra.mxu0 %v6591
        %8808 = vmatprep.subr.mxu0 %v6600
        %8809 = vmatpush1.msra.mxu0 %v6599
        %8810 = vmatprep.mubr.f32.mxu0 %v8650
        %8811 = vmatmul.mubr.f32.gmra.mrb[0].mxu0 %v8649
        %v8812 = vpop.f32.mrb[0].mxu0
        %v8813 = vadd.f32 0.0, %v8812
        %v8814 = vpop.f32.mrb[0].mxu0
        %v8815 = vadd.f32 0.0, %v8814
        %8816 = vmatprep.mubr.f32.mxu0 %v8652
        %8817 = vmatmul.mubr.f32.gmra.mrb[0].mxu0 %v8651
        %v8818 = vpop.f32.mrb[0].mxu0
        %v8819 = vadd.f32 0.0, %v8818
        %v8820 = vpop.f32.mrb[0].mxu0
        %v8821 = vadd.f32 0.0, %v8820
        %8822 = vmatprep.mubr.f32.mxu0 %v8654
        %8823 = vmatmul.mubr.f32.gmra.mrb[0].mxu0 %v8653
        %v8824 = vpop.f32.mrb[0].mxu0
        %v8825 = vadd.f32 0.0, %v8824
        %v8826 = vpop.f32.mrb[0].mxu0
        %v8827 = vadd.f32 0.0, %v8826
        %8828 = vmatprep.mubr.f32.mxu0 %v8656
        %8829 = vmatmul.mubr.f32.gmra.mrb[0].mxu0 %v8655
        %v8830 = vpop.f32.mrb[0].mxu0
        %v8831 = vadd.f32 0.0, %v8830
        %v8832 = vpop.f32.mrb[0].mxu0
        %v8833 = vadd.f32 0.0, %v8832
        %8834 = vdwg.mxu0
        %8835 = vmatprep.subr.mxu0 %v6354
        %8836 = vmatpush1.msra.mxu0 %v6353
        %8837 = vmatprep.subr.mxu0 %v6362
        %8838 = vmatpush1.msra.mxu0 %v6361
        %8839 = vmatprep.subr.mxu0 %v6370
        %8840 = vmatpush1.msra.mxu0 %v6369
        %8841 = vmatprep.subr.mxu0 %v6378
        %8842 = vmatpush1.msra.mxu0 %v6377
        %8843 = vmatprep.subr.mxu0 %v6386
        %8844 = vmatpush1.msra.mxu0 %v6385
        %8845 = vmatprep.subr.mxu0 %v6394
        %8846 = vmatpush1.msra.mxu0 %v6393
        %8847 = vmatprep.subr.mxu0 %v6402
        %8848 = vmatpush1.msra.mxu0 %v6401
        %8849 = vmatprep.subr.mxu0 %v6410
        %8850 = vmatpush1.msra.mxu0 %v6409
        %8851 = vmatprep.subr.mxu0 %v6418
        %8852 = vmatpush1.msra.mxu0 %v6417
        %8853 = vmatprep.subr.mxu0 %v6426
        %8854 = vmatpush1.msra.mxu0 %v6425
        %8855 = vmatprep.subr.mxu0 %v6434
        %8856 = vmatpush1.msra.mxu0 %v6433
        %8857 = vmatprep.subr.mxu0 %v6442
        %8858 = vmatpush1.msra.mxu0 %v6441
        %8859 = vmatprep.subr.mxu0 %v6450
        %8860 = vmatpush1.msra.mxu0 %v6449
        %8861 = vmatprep.subr.mxu0 %v6458
        %8862 = vmatpush1.msra.mxu0 %v6457
        %8863 = vmatprep.subr.mxu0 %v6466
        %8864 = vmatpush1.msra.mxu0 %v6465
        %8865 = vmatprep.subr.mxu0 %v6474
        %8866 = vmatpush1.msra.mxu0 %v6473
        %8867 = vmatprep.subr.mxu0 %v6482
        %8868 = vmatpush1.msra.mxu0 %v6481
        %8869 = vmatprep.subr.mxu0 %v6490
        %8870 = vmatpush1.msra.mxu0 %v6489
        %8871 = vmatprep.subr.mxu0 %v6498
        %8872 = vmatpush1.msra.mxu0 %v6497
        %8873 = vmatprep.subr.mxu0 %v6506
        %8874 = vmatpush1.msra.mxu0 %v6505
        %8875 = vmatprep.subr.mxu0 %v6514
        %8876 = vmatpush1.msra.mxu0 %v6513
        %8877 = vmatprep.subr.mxu0 %v6522
        %8878 = vmatpush1.msra.mxu0 %v6521
        %8879 = vmatprep.subr.mxu0 %v6530
        %8880 = vmatpush1.msra.mxu0 %v6529
        %8881 = vmatprep.subr.mxu0 %v6538
        %8882 = vmatpush1.msra.mxu0 %v6537
        %8883 = vmatprep.subr.mxu0 %v6546
        %8884 = vmatpush1.msra.mxu0 %v6545
        %8885 = vmatprep.subr.mxu0 %v6554
        %8886 = vmatpush1.msra.mxu0 %v6553
        %8887 = vmatprep.subr.mxu0 %v6562
        %8888 = vmatpush1.msra.mxu0 %v6561
        %8889 = vmatprep.subr.mxu0 %v6570
        %8890 = vmatpush1.msra.mxu0 %v6569
        %8891 = vmatprep.subr.mxu0 %v6578
        %8892 = vmatpush1.msra.mxu0 %v6577
        %8893 = vmatprep.subr.mxu0 %v6586
        %8894 = vmatpush1.msra.mxu0 %v6585
        %8895 = vmatprep.subr.mxu0 %v6594
        %8896 = vmatpush1.msra.mxu0 %v6593
        %8897 = vmatprep.subr.mxu0 %v6602
        %8898 = vmatpush1.msra.mxu0 %v6601
        %8899 = vmatprep.mubr.f32.mxu0 %v8650
        %8900 = vmatmul.mubr.f32.gmra.mrb[0].mxu0 %v8649
        %v8901 = vpop.f32.mrb[0].mxu0
        %v8902 = vadd.f32 0.0, %v8901
        %v8903 = vpop.f32.mrb[0].mxu0
        %v8904 = vadd.f32 0.0, %v8903
        %8905 = vmatprep.mubr.f32.mxu0 %v8652
        %8906 = vmatmul.mubr.f32.gmra.mrb[0].mxu0 %v8651
        %v8907 = vpop.f32.mrb[0].mxu0
        %v8908 = vadd.f32 0.0, %v8907
        %v8909 = vpop.f32.mrb[0].mxu0
        %v8910 = vadd.f32 0.0, %v8909
        %8911 = vmatprep.mubr.f32.mxu0 %v8654
        %8912 = vmatmul.mubr.f32.gmra.mrb[0].mxu0 %v8653
        %v8913 = vpop.f32.mrb[0].mxu0
        %v8914 = vadd.f32 0.0, %v8913
        %v8915 = vpop.f32.mrb[0].mxu0
        %v8916 = vadd.f32 0.0, %v8915
        %8917 = vmatprep.mubr.f32.mxu0 %v8656
        %8918 = vmatmul.mubr.f32.gmra.mrb[0].mxu0 %v8655
        %v8919 = vpop.f32.mrb[0].mxu0
        %v8920 = vadd.f32 0.0, %v8919
        %v8921 = vpop.f32.mrb[0].mxu0
        %v8922 = vadd.f32 0.0, %v8921
        %8923 = vdwg.mxu0
        %8924 = vmatprep.subr.mxu0 %v6356
        %8925 = vmatpush1.msra.mxu0 %v6355
        %8926 = vmatprep.subr.mxu0 %v6364
        %8927 = vmatpush1.msra.mxu0 %v6363
        %8928 = vmatprep.subr.mxu0 %v6372
        %8929 = vmatpush1.msra.mxu0 %v6371
        %8930 = vmatprep.subr.mxu0 %v6380
        %8931 = vmatpush1.msra.mxu0 %v6379
        %8932 = vmatprep.subr.mxu0 %v6388
        %8933 = vmatpush1.msra.mxu0 %v6387
        %8934 = vmatprep.subr.mxu0 %v6396
        %8935 = vmatpush1.msra.mxu0 %v6395
        %8936 = vmatprep.subr.mxu0 %v6404
        %8937 = vmatpush1.msra.mxu0 %v6403
        %8938 = vmatprep.subr.mxu0 %v6412
        %8939 = vmatpush1.msra.mxu0 %v6411
        %8940 = vmatprep.subr.mxu0 %v6420
        %8941 = vmatpush1.msra.mxu0 %v6419
        %8942 = vmatprep.subr.mxu0 %v6428
        %8943 = vmatpush1.msra.mxu0 %v6427
        %8944 = vmatprep.subr.mxu0 %v6436
        %8945 = vmatpush1.msra.mxu0 %v6435
        %8946 = vmatprep.subr.mxu0 %v6444
        %8947 = vmatpush1.msra.mxu0 %v6443
        %8948 = vmatprep.subr.mxu0 %v6452
        %8949 = vmatpush1.msra.mxu0 %v6451
        %8950 = vmatprep.subr.mxu0 %v6460
        %8951 = vmatpush1.msra.mxu0 %v6459
        %8952 = vmatprep.subr.mxu0 %v6468
        %8953 = vmatpush1.msra.mxu0 %v6467
        %8954 = vmatprep.subr.mxu0 %v6476
        %8955 = vmatpush1.msra.mxu0 %v6475
        %8956 = vmatprep.subr.mxu0 %v6484
        %8957 = vmatpush1.msra.mxu0 %v6483
        %8958 = vmatprep.subr.mxu0 %v6492
        %8959 = vmatpush1.msra.mxu0 %v6491
        %8960 = vmatprep.subr.mxu0 %v6500
        %8961 = vmatpush1.msra.mxu0 %v6499
        %8962 = vmatprep.subr.mxu0 %v6508
        %8963 = vmatpush1.msra.mxu0 %v6507
        %8964 = vmatprep.subr.mxu0 %v6516
        %8965 = vmatpush1.msra.mxu0 %v6515
        %8966 = vmatprep.subr.mxu0 %v6524
        %8967 = vmatpush1.msra.mxu0 %v6523
        %8968 = vmatprep.subr.mxu0 %v6532
        %8969 = vmatpush1.msra.mxu0 %v6531
        %8970 = vmatprep.subr.mxu0 %v6540
        %8971 = vmatpush1.msra.mxu0 %v6539
        %8972 = vmatprep.subr.mxu0 %v6548
        %8973 = vmatpush1.msra.mxu0 %v6547
        %8974 = vmatprep.subr.mxu0 %v6556
        %8975 = vmatpush1.msra.mxu0 %v6555
        %8976 = vmatprep.subr.mxu0 %v6564
        %8977 = vmatpush1.msra.mxu0 %v6563
        %8978 = vmatprep.subr.mxu0 %v6572
        %8979 = vmatpush1.msra.mxu0 %v6571
        %8980 = vmatprep.subr.mxu0 %v6580
        %8981 = vmatpush1.msra.mxu0 %v6579
        %8982 = vmatprep.subr.mxu0 %v6588
        %8983 = vmatpush1.msra.mxu0 %v6587
        %8984 = vmatprep.subr.mxu0 %v6596
        %8985 = vmatpush1.msra.mxu0 %v6595
        %8986 = vmatprep.subr.mxu0 %v6604
        %8987 = vmatpush1.msra.mxu0 %v6603
        %8988 = vmatprep.mubr.f32.mxu0 %v8650
        %8989 = vmatmul.mubr.f32.gmra.mrb[0].mxu0 %v8649
        %v8990 = vpop.f32.mrb[0].mxu0
        %v8991 = vadd.f32 0.0, %v8990
        %v8992 = vpop.f32.mrb[0].mxu0
        %v8993 = vadd.f32 0.0, %v8992
        %8994 = vmatprep.mubr.f32.mxu0 %v8652
        %8995 = vmatmul.mubr.f32.gmra.mrb[0].mxu0 %v8651
        %v8996 = vpop.f32.mrb[0].mxu0
        %v8997 = vadd.f32 0.0, %v8996
        %v8998 = vpop.f32.mrb[0].mxu0
        %v8999 = vadd.f32 0.0, %v8998
        %9000 = vmatprep.mubr.f32.mxu0 %v8654
        %9001 = vmatmul.mubr.f32.gmra.mrb[0].mxu0 %v8653
        %v9002 = vpop.f32.mrb[0].mxu0
        %v9003 = vadd.f32 0.0, %v9002
        %v9004 = vpop.f32.mrb[0].mxu0
        %v9005 = vadd.f32 0.0, %v9004
        %9006 = vmatprep.mubr.f32.mxu0 %v8656
        %9007 = vmatmul.mubr.f32.gmra.mrb[0].mxu0 %v8655
        %v9008 = vpop.f32.mrb[0].mxu0
        %v9009 = vadd.f32 0.0, %v9008
        %v9010 = vpop.f32.mrb[0].mxu0
        %v9011 = vadd.f32 0.0, %v9010
        %9012 = vdwg.mxu0
        %9013 = vmatprep.subr.mxu0 %v6350
        %9014 = vmatpush1.msra.mxu0 %v6349
        %9015 = vmatprep.subr.mxu0 %v6358
        %9016 = vmatpush1.msra.mxu0 %v6357
        %9017 = vmatprep.subr.mxu0 %v6366
        %9018 = vmatpush1.msra.mxu0 %v6365
        %9019 = vmatprep.subr.mxu0 %v6374
        %9020 = vmatpush1.msra.mxu0 %v6373
        %9021 = vmatprep.subr.mxu0 %v6382
        %9022 = vmatpush1.msra.mxu0 %v6381
        %9023 = vmatprep.subr.mxu0 %v6390
        %9024 = vmatpush1.msra.mxu0 %v6389
        %9025 = vmatprep.subr.mxu0 %v6398
        %9026 = vmatpush1.msra.mxu0 %v6397
        %9027 = vmatprep.subr.mxu0 %v6406
        %9028 = vmatpush1.msra.mxu0 %v6405
        %9029 = vmatprep.subr.mxu0 %v6414
        %9030 = vmatpush1.msra.mxu0 %v6413
        %9031 = vmatprep.subr.mxu0 %v6422
        %9032 = vmatpush1.msra.mxu0 %v6421
        %9033 = vmatprep.subr.mxu0 %v6430
        %9034 = vmatpush1.msra.mxu0 %v6429
        %9035 = vmatprep.subr.mxu0 %v6438
        %9036 = vmatpush1.msra.mxu0 %v6437
        %9037 = vmatprep.subr.mxu0 %v6446
        %9038 = vmatpush1.msra.mxu0 %v6445
        %9039 = vmatprep.subr.mxu0 %v6454
        %9040 = vmatpush1.msra.mxu0 %v6453
        %9041 = vmatprep.subr.mxu0 %v6462
        %9042 = vmatpush1.msra.mxu0 %v6461
        %9043 = vmatprep.subr.mxu0 %v6470
        %9044 = vmatpush1.msra.mxu0 %v6469
        %9045 = vmatprep.subr.mxu0 %v6478
        %9046 = vmatpush1.msra.mxu0 %v6477
        %9047 = vmatprep.subr.mxu0 %v6486
        %9048 = vmatpush1.msra.mxu0 %v6485
        %9049 = vmatprep.subr.mxu0 %v6494
        %9050 = vmatpush1.msra.mxu0 %v6493
        %9051 = vmatprep.subr.mxu0 %v6502
        %9052 = vmatpush1.msra.mxu0 %v6501
        %9053 = vmatprep.subr.mxu0 %v6510
        %9054 = vmatpush1.msra.mxu0 %v6509
        %9055 = vmatprep.subr.mxu0 %v6518
        %9056 = vmatpush1.msra.mxu0 %v6517
        %9057 = vmatprep.subr.mxu0 %v6526
        %9058 = vmatpush1.msra.mxu0 %v6525
        %9059 = vmatprep.subr.mxu0 %v6534
        %9060 = vmatpush1.msra.mxu0 %v6533
        %9061 = vmatprep.subr.mxu0 %v6542
        %9062 = vmatpush1.msra.mxu0 %v6541
        %9063 = vmatprep.subr.mxu0 %v6550
        %9064 = vmatpush1.msra.mxu0 %v6549
        %9065 = vmatprep.subr.mxu0 %v6558
        %9066 = vmatpush1.msra.mxu0 %v6557
        %9067 = vmatprep.subr.mxu0 %v6566
        %9068 = vmatpush1.msra.mxu0 %v6565
        %9069 = vmatprep.subr.mxu0 %v6574
        %9070 = vmatpush1.msra.mxu0 %v6573
        %9071 = vmatprep.subr.mxu0 %v6582
        %9072 = vmatpush1.msra.mxu0 %v6581
        %9073 = vmatprep.subr.mxu0 %v6590
        %9074 = vmatpush1.msra.mxu0 %v6589
        %9075 = vmatprep.subr.mxu0 %v6598
        %9076 = vmatpush1.msra.mxu0 %v6597
        %9077 = vmatprep.mubr.f32.mxu0 %v8642
        %9078 = vmatmul.mubr.f32.gmra.mrb[0].mxu0 %v8641
        %v9079 = vpop.f32.mrb[0].mxu0
        %v9080 = vadd.f32 %v8724, %v9079
        %v9081 = vpop.f32.mrb[0].mxu0
        %v9082 = vadd.f32 %v8726, %v9081
        %9083 = vmatprep.mubr.f32.mxu0 %v8644
        %9084 = vmatmul.mubr.f32.gmra.mrb[0].mxu0 %v8643
        %v9085 = vpop.f32.mrb[0].mxu0
        %v9086 = vadd.f32 %v8730, %v9085
        %v9087 = vpop.f32.mrb[0].mxu0
        %v9088 = vadd.f32 %v8732, %v9087
        %9089 = vmatprep.mubr.f32.mxu0 %v8646
        %9090 = vmatmul.mubr.f32.gmra.mrb[0].mxu0 %v8645
        %v9091 = vpop.f32.mrb[0].mxu0
        %v9092 = vadd.f32 %v8736, %v9091
        %v9093 = vpop.f32.mrb[0].mxu0
        %v9094 = vadd.f32 %v8738, %v9093
        %9095 = vmatprep.mubr.f32.mxu0 %v8648
        %9096 = vmatmul.mubr.f32.gmra.mrb[0].mxu0 %v8647
        %v9097 = vpop.f32.mrb[0].mxu0
        %v9098 = vadd.f32 %v8742, %v9097
        %v9099 = vpop.f32.mrb[0].mxu0
        %v9100 = vadd.f32 %v8744, %v9099
        %9101 = vdwg.mxu0
        %9102 = vmatprep.subr.mxu0 %v6352
        %9103 = vmatpush1.msra.mxu0 %v6351
        %9104 = vmatprep.subr.mxu0 %v6360
        %9105 = vmatpush1.msra.mxu0 %v6359
        %9106 = vmatprep.subr.mxu0 %v6368
        %9107 = vmatpush1.msra.mxu0 %v6367
        %9108 = vmatprep.subr.mxu0 %v6376
        %9109 = vmatpush1.msra.mxu0 %v6375
        %9110 = vmatprep.subr.mxu0 %v6384
        %9111 = vmatpush1.msra.mxu0 %v6383
        %9112 = vmatprep.subr.mxu0 %v6392
        %9113 = vmatpush1.msra.mxu0 %v6391
        %9114 = vmatprep.subr.mxu0 %v6400
        %9115 = vmatpush1.msra.mxu0 %v6399
        %9116 = vmatprep.subr.mxu0 %v6408
        %9117 = vmatpush1.msra.mxu0 %v6407
        %9118 = vmatprep.subr.mxu0 %v6416
        %9119 = vmatpush1.msra.mxu0 %v6415
        %9120 = vmatprep.subr.mxu0 %v6424
        %9121 = vmatpush1.msra.mxu0 %v6423
        %9122 = vmatprep.subr.mxu0 %v6432
        %9123 = vmatpush1.msra.mxu0 %v6431
        %9124 = vmatprep.subr.mxu0 %v6440
        %9125 = vmatpush1.msra.mxu0 %v6439
        %9126 = vmatprep.subr.mxu0 %v6448
        %9127 = vmatpush1.msra.mxu0 %v6447
        %9128 = vmatprep.subr.mxu0 %v6456
        %9129 = vmatpush1.msra.mxu0 %v6455
        %9130 = vmatprep.subr.mxu0 %v6464
        %9131 = vmatpush1.msra.mxu0 %v6463
        %9132 = vmatprep.subr.mxu0 %v6472
        %9133 = vmatpush1.msra.mxu0 %v6471
        %9134 = vmatprep.subr.mxu0 %v6480
        %9135 = vmatpush1.msra.mxu0 %v6479
        %9136 = vmatprep.subr.mxu0 %v6488
        %9137 = vmatpush1.msra.mxu0 %v6487
        %9138 = vmatprep.subr.mxu0 %v6496
        %9139 = vmatpush1.msra.mxu0 %v6495
        %9140 = vmatprep.subr.mxu0 %v6504
        %9141 = vmatpush1.msra.mxu0 %v6503
        %9142 = vmatprep.subr.mxu0 %v6512
        %9143 = vmatpush1.msra.mxu0 %v6511
        %9144 = vmatprep.subr.mxu0 %v6520
        %9145 = vmatpush1.msra.mxu0 %v6519
        %9146 = vmatprep.subr.mxu0 %v6528
        %9147 = vmatpush1.msra.mxu0 %v6527
        %9148 = vmatprep.subr.mxu0 %v6536
        %9149 = vmatpush1.msra.mxu0 %v6535
        %9150 = vmatprep.subr.mxu0 %v6544
        %9151 = vmatpush1.msra.mxu0 %v6543
        %9152 = vmatprep.subr.mxu0 %v6552
        %9153 = vmatpush1.msra.mxu0 %v6551
        %9154 = vmatprep.subr.mxu0 %v6560
        %9155 = vmatpush1.msra.mxu0 %v6559
        %9156 = vmatprep.subr.mxu0 %v6568
        %9157 = vmatpush1.msra.mxu0 %v6567
        %9158 = vmatprep.subr.mxu0 %v6576
        %9159 = vmatpush1.msra.mxu0 %v6575
        %9160 = vmatprep.subr.mxu0 %v6584
        %9161 = vmatpush1.msra.mxu0 %v6583
        %9162 = vmatprep.subr.mxu0 %v6592
        %9163 = vmatpush1.msra.mxu0 %v6591
        %9164 = vmatprep.subr.mxu0 %v6600
        %9165 = vmatpush1.msra.mxu0 %v6599
        %9166 = vmatprep.mubr.f32.mxu0 %v8642
        %9167 = vmatmul.mubr.f32.gmra.mrb[0].mxu0 %v8641
        %v9168 = vpop.f32.mrb[0].mxu0
        %v9169 = vadd.f32 %v8813, %v9168
        %v9170 = vpop.f32.mrb[0].mxu0
        %v9171 = vadd.f32 %v8815, %v9170
        %9172 = vmatprep.mubr.f32.mxu0 %v8644
        %9173 = vmatmul.mubr.f32.gmra.mrb[0].mxu0 %v8643
        %v9174 = vpop.f32.mrb[0].mxu0
        %v9175 = vadd.f32 %v8819, %v9174
        %v9176 = vpop.f32.mrb[0].mxu0
        %v9177 = vadd.f32 %v8821, %v9176
        %9178 = vmatprep.mubr.f32.mxu0 %v8646
        %9179 = vmatmul.mubr.f32.gmra.mrb[0].mxu0 %v8645
        %v9180 = vpop.f32.mrb[0].mxu0
        %v9181 = vadd.f32 %v8825, %v9180
        %v9182 = vpop.f32.mrb[0].mxu0
        %v9183 = vadd.f32 %v8827, %v9182
        %9184 = vmatprep.mubr.f32.mxu0 %v8648
        %9185 = vmatmul.mubr.f32.gmra.mrb[0].mxu0 %v8647
        %v9186 = vpop.f32.mrb[0].mxu0
        %v9187 = vadd.f32 %v8831, %v9186
        %v9188 = vpop.f32.mrb[0].mxu0
        %v9189 = vadd.f32 %v8833, %v9188
        %9190 = vdwg.mxu0
        %9191 = vmatprep.subr.mxu0 %v6354
        %9192 = vmatpush1.msra.mxu0 %v6353
        %9193 = vmatprep.subr.mxu0 %v6362
        %9194 = vmatpush1.msra.mxu0 %v6361
        %9195 = vmatprep.subr.mxu0 %v6370
        %9196 = vmatpush1.msra.mxu0 %v6369
        %9197 = vmatprep.subr.mxu0 %v6378
        %9198 = vmatpush1.msra.mxu0 %v6377
        %9199 = vmatprep.subr.mxu0 %v6386
        %9200 = vmatpush1.msra.mxu0 %v6385
        %9201 = vmatprep.subr.mxu0 %v6394
        %9202 = vmatpush1.msra.mxu0 %v6393
        %9203 = vmatprep.subr.mxu0 %v6402
        %9204 = vmatpush1.msra.mxu0 %v6401
        %9205 = vmatprep.subr.mxu0 %v6410
        %9206 = vmatpush1.msra.mxu0 %v6409
        %9207 = vmatprep.subr.mxu0 %v6418
        %9208 = vmatpush1.msra.mxu0 %v6417
        %9209 = vmatprep.subr.mxu0 %v6426
        %9210 = vmatpush1.msra.mxu0 %v6425
        %9211 = vmatprep.subr.mxu0 %v6434
        %9212 = vmatpush1.msra.mxu0 %v6433
        %9213 = vmatprep.subr.mxu0 %v6442
        %9214 = vmatpush1.msra.mxu0 %v6441
        %9215 = vmatprep.subr.mxu0 %v6450
        %9216 = vmatpush1.msra.mxu0 %v6449
        %9217 = vmatprep.subr.mxu0 %v6458
        %9218 = vmatpush1.msra.mxu0 %v6457
        %9219 = vmatprep.subr.mxu0 %v6466
        %9220 = vmatpush1.msra.mxu0 %v6465
        %9221 = vmatprep.subr.mxu0 %v6474
        %9222 = vmatpush1.msra.mxu0 %v6473
        %9223 = vmatprep.subr.mxu0 %v6482
        %9224 = vmatpush1.msra.mxu0 %v6481
        %9225 = vmatprep.subr.mxu0 %v6490
        %9226 = vmatpush1.msra.mxu0 %v6489
        %9227 = vmatprep.subr.mxu0 %v6498
        %9228 = vmatpush1.msra.mxu0 %v6497
        %9229 = vmatprep.subr.mxu0 %v6506
        %9230 = vmatpush1.msra.mxu0 %v6505
        %9231 = vmatprep.subr.mxu0 %v6514
        %9232 = vmatpush1.msra.mxu0 %v6513
        %9233 = vmatprep.subr.mxu0 %v6522
        %9234 = vmatpush1.msra.mxu0 %v6521
        %9235 = vmatprep.subr.mxu0 %v6530
        %9236 = vmatpush1.msra.mxu0 %v6529
        %9237 = vmatprep.subr.mxu0 %v6538
        %9238 = vmatpush1.msra.mxu0 %v6537
        %9239 = vmatprep.subr.mxu0 %v6546
        %9240 = vmatpush1.msra.mxu0 %v6545
        %9241 = vmatprep.subr.mxu0 %v6554
        %9242 = vmatpush1.msra.mxu0 %v6553
        %9243 = vmatprep.subr.mxu0 %v6562
        %9244 = vmatpush1.msra.mxu0 %v6561
        %9245 = vmatprep.subr.mxu0 %v6570
        %9246 = vmatpush1.msra.mxu0 %v6569
        %9247 = vmatprep.subr.mxu0 %v6578
        %9248 = vmatpush1.msra.mxu0 %v6577
        %9249 = vmatprep.subr.mxu0 %v6586
        %9250 = vmatpush1.msra.mxu0 %v6585
        %9251 = vmatprep.subr.mxu0 %v6594
        %9252 = vmatpush1.msra.mxu0 %v6593
        %9253 = vmatprep.subr.mxu0 %v6602
        %9254 = vmatpush1.msra.mxu0 %v6601
        %9255 = vmatprep.mubr.f32.mxu0 %v8642
        %9256 = vmatmul.mubr.f32.gmra.mrb[0].mxu0 %v8641
        %v9257 = vpop.f32.mrb[0].mxu0
        %v9258 = vadd.f32 %v8902, %v9257
        %v9259 = vpop.f32.mrb[0].mxu0
        %v9260 = vadd.f32 %v8904, %v9259
        %9261 = vmatprep.mubr.f32.mxu0 %v8644
        %9262 = vmatmul.mubr.f32.gmra.mrb[0].mxu0 %v8643
        %v9263 = vpop.f32.mrb[0].mxu0
        %v9264 = vadd.f32 %v8908, %v9263
        %v9265 = vpop.f32.mrb[0].mxu0
        %v9266 = vadd.f32 %v8910, %v9265
        %9267 = vmatprep.mubr.f32.mxu0 %v8646
        %9268 = vmatmul.mubr.f32.gmra.mrb[0].mxu0 %v8645
        %v9269 = vpop.f32.mrb[0].mxu0
        %v9270 = vadd.f32 %v8914, %v9269
        %v9271 = vpop.f32.mrb[0].mxu0
        %v9272 = vadd.f32 %v8916, %v9271
        %9273 = vmatprep.mubr.f32.mxu0 %v8648
        %9274 = vmatmul.mubr.f32.gmra.mrb[0].mxu0 %v8647
        %v9275 = vpop.f32.mrb[0].mxu0
        %v9276 = vadd.f32 %v8920, %v9275
        %v9277 = vpop.f32.mrb[0].mxu0
        %v9278 = vadd.f32 %v8922, %v9277
        %9279 = vdwg.mxu0
        %9280 = vmatprep.subr.mxu0 %v6356
        %9281 = vmatpush1.msra.mxu0 %v6355
        %9282 = vmatprep.subr.mxu0 %v6364
        %9283 = vmatpush1.msra.mxu0 %v6363
        %9284 = vmatprep.subr.mxu0 %v6372
        %9285 = vmatpush1.msra.mxu0 %v6371
        %9286 = vmatprep.subr.mxu0 %v6380
        %9287 = vmatpush1.msra.mxu0 %v6379
        %9288 = vmatprep.subr.mxu0 %v6388
        %9289 = vmatpush1.msra.mxu0 %v6387
        %9290 = vmatprep.subr.mxu0 %v6396
        %9291 = vmatpush1.msra.mxu0 %v6395
        %9292 = vmatprep.subr.mxu0 %v6404
        %9293 = vmatpush1.msra.mxu0 %v6403
        %9294 = vmatprep.subr.mxu0 %v6412
        %9295 = vmatpush1.msra.mxu0 %v6411
        %9296 = vmatprep.subr.mxu0 %v6420
        %9297 = vmatpush1.msra.mxu0 %v6419
        %9298 = vmatprep.subr.mxu0 %v6428
        %9299 = vmatpush1.msra.mxu0 %v6427
        %9300 = vmatprep.subr.mxu0 %v6436
        %9301 = vmatpush1.msra.mxu0 %v6435
        %9302 = vmatprep.subr.mxu0 %v6444
        %9303 = vmatpush1.msra.mxu0 %v6443
        %9304 = vmatprep.subr.mxu0 %v6452
        %9305 = vmatpush1.msra.mxu0 %v6451
        %9306 = vmatprep.subr.mxu0 %v6460
        %9307 = vmatpush1.msra.mxu0 %v6459
        %9308 = vmatprep.subr.mxu0 %v6468
        %9309 = vmatpush1.msra.mxu0 %v6467
        %9310 = vmatprep.subr.mxu0 %v6476
        %9311 = vmatpush1.msra.mxu0 %v6475
        %9312 = vmatprep.subr.mxu0 %v6484
        %9313 = vmatpush1.msra.mxu0 %v6483
        %9314 = vmatprep.subr.mxu0 %v6492
        %9315 = vmatpush1.msra.mxu0 %v6491
        %9316 = vmatprep.subr.mxu0 %v6500
        %9317 = vmatpush1.msra.mxu0 %v6499
        %9318 = vmatprep.subr.mxu0 %v6508
        %9319 = vmatpush1.msra.mxu0 %v6507
        %9320 = vmatprep.subr.mxu0 %v6516
        %9321 = vmatpush1.msra.mxu0 %v6515
        %9322 = vmatprep.subr.mxu0 %v6524
        %9323 = vmatpush1.msra.mxu0 %v6523
        %9324 = vmatprep.subr.mxu0 %v6532
        %9325 = vmatpush1.msra.mxu0 %v6531
        %9326 = vmatprep.subr.mxu0 %v6540
        %9327 = vmatpush1.msra.mxu0 %v6539
        %9328 = vmatprep.subr.mxu0 %v6548
        %9329 = vmatpush1.msra.mxu0 %v6547
        %9330 = vmatprep.subr.mxu0 %v6556
        %9331 = vmatpush1.msra.mxu0 %v6555
        %9332 = vmatprep.subr.mxu0 %v6564
        %9333 = vmatpush1.msra.mxu0 %v6563
        %9334 = vmatprep.subr.mxu0 %v6572
        %9335 = vmatpush1.msra.mxu0 %v6571
        %9336 = vmatprep.subr.mxu0 %v6580
        %9337 = vmatpush1.msra.mxu0 %v6579
        %9338 = vmatprep.subr.mxu0 %v6588
        %9339 = vmatpush1.msra.mxu0 %v6587
        %9340 = vmatprep.subr.mxu0 %v6596
        %9341 = vmatpush1.msra.mxu0 %v6595
        %9342 = vmatprep.subr.mxu0 %v6604
        %9343 = vmatpush1.msra.mxu0 %v6603
        %9344 = vmatprep.mubr.f32.mxu0 %v8642
        %9345 = vmatmul.mubr.f32.gmra.mrb[0].mxu0 %v8641
        %v9346 = vpop.f32.mrb[0].mxu0
        %v9347 = vadd.f32 %v8991, %v9346
        %v9348 = vpop.f32.mrb[0].mxu0
        %v9349 = vadd.f32 %v8993, %v9348
        %9350 = vmatprep.mubr.f32.mxu0 %v8644
        %9351 = vmatmul.mubr.f32.gmra.mrb[0].mxu0 %v8643
        %v9352 = vpop.f32.mrb[0].mxu0
        %v9353 = vadd.f32 %v8997, %v9352
        %v9354 = vpop.f32.mrb[0].mxu0
        %v9355 = vadd.f32 %v8999, %v9354
        %9356 = vmatprep.mubr.f32.mxu0 %v8646
        %9357 = vmatmul.mubr.f32.gmra.mrb[0].mxu0 %v8645
        %v9358 = vpop.f32.mrb[0].mxu0
        %v9359 = vadd.f32 %v9003, %v9358
        %v9360 = vpop.f32.mrb[0].mxu0
        %v9361 = vadd.f32 %v9005, %v9360
        %9362 = vmatprep.mubr.f32.mxu0 %v8648
        %9363 = vmatmul.mubr.f32.gmra.mrb[0].mxu0 %v8647
        %v9364 = vpop.f32.mrb[0].mxu0
        %v9365 = vadd.f32 %v9009, %v9364
        %v9366 = vpop.f32.mrb[0].mxu0
        %v9367 = vadd.f32 %v9011, %v9366
        %9368 = vdwg.mxu0
        %9369 = vmatprep.subr.mxu0 %v6606
        %9370 = vmatpush1.msra.mxu0 %v6605
        %9371 = vmatprep.subr.mxu0 %v6614
        %9372 = vmatpush1.msra.mxu0 %v6613
        %9373 = vmatprep.subr.mxu0 %v6622
        %9374 = vmatpush1.msra.mxu0 %v6621
        %9375 = vmatprep.subr.mxu0 %v6630
        %9376 = vmatpush1.msra.mxu0 %v6629
        %9377 = vmatprep.subr.mxu0 %v6638
        %9378 = vmatpush1.msra.mxu0 %v6637
        %9379 = vmatprep.subr.mxu0 %v6646
        %9380 = vmatpush1.msra.mxu0 %v6645
        %9381 = vmatprep.subr.mxu0 %v6654
        %9382 = vmatpush1.msra.mxu0 %v6653
        %9383 = vmatprep.subr.mxu0 %v6662
        %9384 = vmatpush1.msra.mxu0 %v6661
        %9385 = vmatprep.subr.mxu0 %v6670
        %9386 = vmatpush1.msra.mxu0 %v6669
        %9387 = vmatprep.subr.mxu0 %v6678
        %9388 = vmatpush1.msra.mxu0 %v6677
        %9389 = vmatprep.subr.mxu0 %v6686
        %9390 = vmatpush1.msra.mxu0 %v6685
        %9391 = vmatprep.subr.mxu0 %v6694
        %9392 = vmatpush1.msra.mxu0 %v6693
        %9393 = vmatprep.subr.mxu0 %v6702
        %9394 = vmatpush1.msra.mxu0 %v6701
        %9395 = vmatprep.subr.mxu0 %v6710
        %9396 = vmatpush1.msra.mxu0 %v6709
        %9397 = vmatprep.subr.mxu0 %v6718
        %9398 = vmatpush1.msra.mxu0 %v6717
        %9399 = vmatprep.subr.mxu0 %v6726
        %9400 = vmatpush1.msra.mxu0 %v6725
        %9401 = vmatprep.subr.mxu0 %v6734
        %9402 = vmatpush1.msra.mxu0 %v6733
        %9403 = vmatprep.subr.mxu0 %v6742
        %9404 = vmatpush1.msra.mxu0 %v6741
        %9405 = vmatprep.subr.mxu0 %v6750
        %9406 = vmatpush1.msra.mxu0 %v6749
        %9407 = vmatprep.subr.mxu0 %v6758
        %9408 = vmatpush1.msra.mxu0 %v6757
        %9409 = vmatprep.subr.mxu0 %v6766
        %9410 = vmatpush1.msra.mxu0 %v6765
        %9411 = vmatprep.subr.mxu0 %v6774
        %9412 = vmatpush1.msra.mxu0 %v6773
        %9413 = vmatprep.subr.mxu0 %v6782
        %9414 = vmatpush1.msra.mxu0 %v6781
        %9415 = vmatprep.subr.mxu0 %v6790
        %9416 = vmatpush1.msra.mxu0 %v6789
        %9417 = vmatprep.subr.mxu0 %v6798
        %9418 = vmatpush1.msra.mxu0 %v6797
        %9419 = vmatprep.subr.mxu0 %v6806
        %9420 = vmatpush1.msra.mxu0 %v6805
        %9421 = vmatprep.subr.mxu0 %v6814
        %9422 = vmatpush1.msra.mxu0 %v6813
        %9423 = vmatprep.subr.mxu0 %v6822
        %9424 = vmatpush1.msra.mxu0 %v6821
        %9425 = vmatprep.subr.mxu0 %v6830
        %9426 = vmatpush1.msra.mxu0 %v6829
        %9427 = vmatprep.subr.mxu0 %v6838
        %9428 = vmatpush1.msra.mxu0 %v6837
        %9429 = vmatprep.subr.mxu0 %v6846
        %9430 = vmatpush1.msra.mxu0 %v6845
        %9431 = vmatprep.subr.mxu0 %v6854
        %9432 = vmatpush1.msra.mxu0 %v6853
        %9433 = vmatprep.mubr.f32.mxu0 %v8642
        %9434 = vmatmul.mubr.f32.gmra.mrb[0].mxu0 %v8641
        %v9435 = vpop.f32.mrb[0].mxu0
        %v9436 = vadd.f32 0.0, %v9435
        %v9437 = vpop.f32.mrb[0].mxu0
        %v9438 = vadd.f32 0.0, %v9437
        %9439 = vmatprep.mubr.f32.mxu0 %v8644
        %9440 = vmatmul.mubr.f32.gmra.mrb[0].mxu0 %v8643
        %v9441 = vpop.f32.mrb[0].mxu0
        %v9442 = vadd.f32 0.0, %v9441
        %v9443 = vpop.f32.mrb[0].mxu0
        %v9444 = vadd.f32 0.0, %v9443
        %9445 = vmatprep.mubr.f32.mxu0 %v8646
        %9446 = vmatmul.mubr.f32.gmra.mrb[0].mxu0 %v8645
        %v9447 = vpop.f32.mrb[0].mxu0
        %v9448 = vadd.f32 0.0, %v9447
        %v9449 = vpop.f32.mrb[0].mxu0
        %v9450 = vadd.f32 0.0, %v9449
        %9451 = vmatprep.mubr.f32.mxu0 %v8648
        %9452 = vmatmul.mubr.f32.gmra.mrb[0].mxu0 %v8647
        %v9453 = vpop.f32.mrb[0].mxu0
        %v9454 = vadd.f32 0.0, %v9453
        %v9455 = vpop.f32.mrb[0].mxu0
        %v9456 = vadd.f32 0.0, %v9455
        %9457 = vdwg.mxu0
        %9458 = vmatprep.subr.mxu0 %v6608
        %9459 = vmatpush1.msra.mxu0 %v6607
        %9460 = vmatprep.subr.mxu0 %v6616
        %9461 = vmatpush1.msra.mxu0 %v6615
        %9462 = vmatprep.subr.mxu0 %v6624
        %9463 = vmatpush1.msra.mxu0 %v6623
        %9464 = vmatprep.subr.mxu0 %v6632
        %9465 = vmatpush1.msra.mxu0 %v6631
        %9466 = vmatprep.subr.mxu0 %v6640
        %9467 = vmatpush1.msra.mxu0 %v6639
        %9468 = vmatprep.subr.mxu0 %v6648
        %9469 = vmatpush1.msra.mxu0 %v6647
        %9470 = vmatprep.subr.mxu0 %v6656
        %9471 = vmatpush1.msra.mxu0 %v6655
        %9472 = vmatprep.subr.mxu0 %v6664
        %9473 = vmatpush1.msra.mxu0 %v6663
        %9474 = vmatprep.subr.mxu0 %v6672
        %9475 = vmatpush1.msra.mxu0 %v6671
        %9476 = vmatprep.subr.mxu0 %v6680
        %9477 = vmatpush1.msra.mxu0 %v6679
        %9478 = vmatprep.subr.mxu0 %v6688
        %9479 = vmatpush1.msra.mxu0 %v6687
        %9480 = vmatprep.subr.mxu0 %v6696
        %9481 = vmatpush1.msra.mxu0 %v6695
        %9482 = vmatprep.subr.mxu0 %v6704
        %9483 = vmatpush1.msra.mxu0 %v6703
        %9484 = vmatprep.subr.mxu0 %v6712
        %9485 = vmatpush1.msra.mxu0 %v6711
        %9486 = vmatprep.subr.mxu0 %v6720
        %9487 = vmatpush1.msra.mxu0 %v6719
        %9488 = vmatprep.subr.mxu0 %v6728
        %9489 = vmatpush1.msra.mxu0 %v6727
        %9490 = vmatprep.subr.mxu0 %v6736
        %9491 = vmatpush1.msra.mxu0 %v6735
        %9492 = vmatprep.subr.mxu0 %v6744
        %9493 = vmatpush1.msra.mxu0 %v6743
        %9494 = vmatprep.subr.mxu0 %v6752
        %9495 = vmatpush1.msra.mxu0 %v6751
        %9496 = vmatprep.subr.mxu0 %v6760
        %9497 = vmatpush1.msra.mxu0 %v6759
        %9498 = vmatprep.subr.mxu0 %v6768
        %9499 = vmatpush1.msra.mxu0 %v6767
        %9500 = vmatprep.subr.mxu0 %v6776
        %9501 = vmatpush1.msra.mxu0 %v6775
        %9502 = vmatprep.subr.mxu0 %v6784
        %9503 = vmatpush1.msra.mxu0 %v6783
        %9504 = vmatprep.subr.mxu0 %v6792
        %9505 = vmatpush1.msra.mxu0 %v6791
        %9506 = vmatprep.subr.mxu0 %v6800
        %9507 = vmatpush1.msra.mxu0 %v6799
        %9508 = vmatprep.subr.mxu0 %v6808
        %9509 = vmatpush1.msra.mxu0 %v6807
        %9510 = vmatprep.subr.mxu0 %v6816
        %9511 = vmatpush1.msra.mxu0 %v6815
        %9512 = vmatprep.subr.mxu0 %v6824
        %9513 = vmatpush1.msra.mxu0 %v6823
        %9514 = vmatprep.subr.mxu0 %v6832
        %9515 = vmatpush1.msra.mxu0 %v6831
        %9516 = vmatprep.subr.mxu0 %v6840
        %9517 = vmatpush1.msra.mxu0 %v6839
        %9518 = vmatprep.subr.mxu0 %v6848
        %9519 = vmatpush1.msra.mxu0 %v6847
        %9520 = vmatprep.subr.mxu0 %v6856
        %9521 = vmatpush1.msra.mxu0 %v6855
        %9522 = vmatprep.mubr.f32.mxu0 %v8642
        %9523 = vmatmul.mubr.f32.gmra.mrb[0].mxu0 %v8641
        %v9524 = vpop.f32.mrb[0].mxu0
        %v9525 = vadd.f32 0.0, %v9524
        %v9526 = vpop.f32.mrb[0].mxu0
        %v9527 = vadd.f32 0.0, %v9526
        %9528 = vmatprep.mubr.f32.mxu0 %v8644
        %9529 = vmatmul.mubr.f32.gmra.mrb[0].mxu0 %v8643
        %v9530 = vpop.f32.mrb[0].mxu0
        %v9531 = vadd.f32 0.0, %v9530
        %v9532 = vpop.f32.mrb[0].mxu0
        %v9533 = vadd.f32 0.0, %v9532
        %9534 = vmatprep.mubr.f32.mxu0 %v8646
        %9535 = vmatmul.mubr.f32.gmra.mrb[0].mxu0 %v8645
        %v9536 = vpop.f32.mrb[0].mxu0
        %v9537 = vadd.f32 0.0, %v9536
        %v9538 = vpop.f32.mrb[0].mxu0
        %v9539 = vadd.f32 0.0, %v9538
        %9540 = vmatprep.mubr.f32.mxu0 %v8648
        %9541 = vmatmul.mubr.f32.gmra.mrb[0].mxu0 %v8647
        %v9542 = vpop.f32.mrb[0].mxu0
        %v9543 = vadd.f32 0.0, %v9542
        %v9544 = vpop.f32.mrb[0].mxu0
        %v9545 = vadd.f32 0.0, %v9544
        %9546 = vdwg.mxu0
        %9547 = vmatprep.subr.mxu0 %v6610
        %9548 = vmatpush1.msra.mxu0 %v6609
        %9549 = vmatprep.subr.mxu0 %v6618
        %9550 = vmatpush1.msra.mxu0 %v6617
        %9551 = vmatprep.subr.mxu0 %v6626
        %9552 = vmatpush1.msra.mxu0 %v6625
        %9553 = vmatprep.subr.mxu0 %v6634
        %9554 = vmatpush1.msra.mxu0 %v6633
        %9555 = vmatprep.subr.mxu0 %v6642
        %9556 = vmatpush1.msra.mxu0 %v6641
        %9557 = vmatprep.subr.mxu0 %v6650
        %9558 = vmatpush1.msra.mxu0 %v6649
        %9559 = vmatprep.subr.mxu0 %v6658
        %9560 = vmatpush1.msra.mxu0 %v6657
        %9561 = vmatprep.subr.mxu0 %v6666
        %9562 = vmatpush1.msra.mxu0 %v6665
        %9563 = vmatprep.subr.mxu0 %v6674
        %9564 = vmatpush1.msra.mxu0 %v6673
        %9565 = vmatprep.subr.mxu0 %v6682
        %9566 = vmatpush1.msra.mxu0 %v6681
        %9567 = vmatprep.subr.mxu0 %v6690
        %9568 = vmatpush1.msra.mxu0 %v6689
        %9569 = vmatprep.subr.mxu0 %v6698
        %9570 = vmatpush1.msra.mxu0 %v6697
        %9571 = vmatprep.subr.mxu0 %v6706
        %9572 = vmatpush1.msra.mxu0 %v6705
        %9573 = vmatprep.subr.mxu0 %v6714
        %9574 = vmatpush1.msra.mxu0 %v6713
        %9575 = vmatprep.subr.mxu0 %v6722
        %9576 = vmatpush1.msra.mxu0 %v6721
        %9577 = vmatprep.subr.mxu0 %v6730
        %9578 = vmatpush1.msra.mxu0 %v6729
        %9579 = vmatprep.subr.mxu0 %v6738
        %9580 = vmatpush1.msra.mxu0 %v6737
        %9581 = vmatprep.subr.mxu0 %v6746
        %9582 = vmatpush1.msra.mxu0 %v6745
        %9583 = vmatprep.subr.mxu0 %v6754
        %9584 = vmatpush1.msra.mxu0 %v6753
        %9585 = vmatprep.subr.mxu0 %v6762
        %9586 = vmatpush1.msra.mxu0 %v6761
        %9587 = vmatprep.subr.mxu0 %v6770
        %9588 = vmatpush1.msra.mxu0 %v6769
        %9589 = vmatprep.subr.mxu0 %v6778
        %9590 = vmatpush1.msra.mxu0 %v6777
        %9591 = vmatprep.subr.mxu0 %v6786
        %9592 = vmatpush1.msra.mxu0 %v6785
        %9593 = vmatprep.subr.mxu0 %v6794
        %9594 = vmatpush1.msra.mxu0 %v6793
        %9595 = vmatprep.subr.mxu0 %v6802
        %9596 = vmatpush1.msra.mxu0 %v6801
        %9597 = vmatprep.subr.mxu0 %v6810
        %9598 = vmatpush1.msra.mxu0 %v6809
        %9599 = vmatprep.subr.mxu0 %v6818
        %9600 = vmatpush1.msra.mxu0 %v6817
        %9601 = vmatprep.subr.mxu0 %v6826
        %9602 = vmatpush1.msra.mxu0 %v6825
        %9603 = vmatprep.subr.mxu0 %v6834
        %9604 = vmatpush1.msra.mxu0 %v6833
        %9605 = vmatprep.subr.mxu0 %v6842
        %9606 = vmatpush1.msra.mxu0 %v6841
        %9607 = vmatprep.subr.mxu0 %v6850
        %9608 = vmatpush1.msra.mxu0 %v6849
        %9609 = vmatprep.subr.mxu0 %v6858
        %9610 = vmatpush1.msra.mxu0 %v6857
        %9611 = vmatprep.mubr.f32.mxu0 %v8642
        %9612 = vmatmul.mubr.f32.gmra.mrb[0].mxu0 %v8641
        %v9613 = vpop.f32.mrb[0].mxu0
        %v9614 = vadd.f32 0.0, %v9613
        %v9615 = vpop.f32.mrb[0].mxu0
        %v9616 = vadd.f32 0.0, %v9615
        %9617 = vmatprep.mubr.f32.mxu0 %v8644
        %9618 = vmatmul.mubr.f32.gmra.mrb[0].mxu0 %v8643
        %v9619 = vpop.f32.mrb[0].mxu0
        %v9620 = vadd.f32 0.0, %v9619
        %v9621 = vpop.f32.mrb[0].mxu0
        %v9622 = vadd.f32 0.0, %v9621
        %9623 = vmatprep.mubr.f32.mxu0 %v8646
        %9624 = vmatmul.mubr.f32.gmra.mrb[0].mxu0 %v8645
        %v9625 = vpop.f32.mrb[0].mxu0
        %v9626 = vadd.f32 0.0, %v9625
        %v9627 = vpop.f32.mrb[0].mxu0
        %v9628 = vadd.f32 0.0, %v9627
        %9629 = vmatprep.mubr.f32.mxu0 %v8648
        %9630 = vmatmul.mubr.f32.gmra.mrb[0].mxu0 %v8647
        %v9631 = vpop.f32.mrb[0].mxu0
        %v9632 = vadd.f32 0.0, %v9631
        %v9633 = vpop.f32.mrb[0].mxu0
        %v9634 = vadd.f32 0.0, %v9633
        %9635 = vdwg.mxu0
        %9636 = vmatprep.subr.mxu0 %v6612
        %9637 = vmatpush1.msra.mxu0 %v6611
        %9638 = vmatprep.subr.mxu0 %v6620
        %9639 = vmatpush1.msra.mxu0 %v6619
        %9640 = vmatprep.subr.mxu0 %v6628
        %9641 = vmatpush1.msra.mxu0 %v6627
        %9642 = vmatprep.subr.mxu0 %v6636
        %9643 = vmatpush1.msra.mxu0 %v6635
        %9644 = vmatprep.subr.mxu0 %v6644
        %9645 = vmatpush1.msra.mxu0 %v6643
        %9646 = vmatprep.subr.mxu0 %v6652
        %9647 = vmatpush1.msra.mxu0 %v6651
        %9648 = vmatprep.subr.mxu0 %v6660
        %9649 = vmatpush1.msra.mxu0 %v6659
        %9650 = vmatprep.subr.mxu0 %v6668
        %9651 = vmatpush1.msra.mxu0 %v6667
        %9652 = vmatprep.subr.mxu0 %v6676
        %9653 = vmatpush1.msra.mxu0 %v6675
        %9654 = vmatprep.subr.mxu0 %v6684
        %9655 = vmatpush1.msra.mxu0 %v6683
        %9656 = vmatprep.subr.mxu0 %v6692
        %9657 = vmatpush1.msra.mxu0 %v6691
        %9658 = vmatprep.subr.mxu0 %v6700
        %9659 = vmatpush1.msra.mxu0 %v6699
        %9660 = vmatprep.subr.mxu0 %v6708
        %9661 = vmatpush1.msra.mxu0 %v6707
        %9662 = vmatprep.subr.mxu0 %v6716
        %9663 = vmatpush1.msra.mxu0 %v6715
        %9664 = vmatprep.subr.mxu0 %v6724
        %9665 = vmatpush1.msra.mxu0 %v6723
        %9666 = vmatprep.subr.mxu0 %v6732
        %9667 = vmatpush1.msra.mxu0 %v6731
        %9668 = vmatprep.subr.mxu0 %v6740
        %9669 = vmatpush1.msra.mxu0 %v6739
        %9670 = vmatprep.subr.mxu0 %v6748
        %9671 = vmatpush1.msra.mxu0 %v6747
        %9672 = vmatprep.subr.mxu0 %v6756
        %9673 = vmatpush1.msra.mxu0 %v6755
        %9674 = vmatprep.subr.mxu0 %v6764
        %9675 = vmatpush1.msra.mxu0 %v6763
        %9676 = vmatprep.subr.mxu0 %v6772
        %9677 = vmatpush1.msra.mxu0 %v6771
        %9678 = vmatprep.subr.mxu0 %v6780
        %9679 = vmatpush1.msra.mxu0 %v6779
        %9680 = vmatprep.subr.mxu0 %v6788
        %9681 = vmatpush1.msra.mxu0 %v6787
        %9682 = vmatprep.subr.mxu0 %v6796
        %9683 = vmatpush1.msra.mxu0 %v6795
        %9684 = vmatprep.subr.mxu0 %v6804
        %9685 = vmatpush1.msra.mxu0 %v6803
        %9686 = vmatprep.subr.mxu0 %v6812
        %9687 = vmatpush1.msra.mxu0 %v6811
        %9688 = vmatprep.subr.mxu0 %v6820
        %9689 = vmatpush1.msra.mxu0 %v6819
        %9690 = vmatprep.subr.mxu0 %v6828
        %9691 = vmatpush1.msra.mxu0 %v6827
        %9692 = vmatprep.subr.mxu0 %v6836
        %9693 = vmatpush1.msra.mxu0 %v6835
        %9694 = vmatprep.subr.mxu0 %v6844
        %9695 = vmatpush1.msra.mxu0 %v6843
        %9696 = vmatprep.subr.mxu0 %v6852
        %9697 = vmatpush1.msra.mxu0 %v6851
        %9698 = vmatprep.subr.mxu0 %v6860
        %9699 = vmatpush1.msra.mxu0 %v6859
        %9700 = vmatprep.mubr.f32.mxu0 %v8642
        %9701 = vmatmul.mubr.f32.gmra.mrb[0].mxu0 %v8641
        %v9702 = vpop.f32.mrb[0].mxu0
        %v9703 = vadd.f32 0.0, %v9702
        %v9704 = vpop.f32.mrb[0].mxu0
        %v9705 = vadd.f32 0.0, %v9704
        %9706 = vmatprep.mubr.f32.mxu0 %v8644
        %9707 = vmatmul.mubr.f32.gmra.mrb[0].mxu0 %v8643
        %v9708 = vpop.f32.mrb[0].mxu0
        %v9709 = vadd.f32 0.0, %v9708
        %v9710 = vpop.f32.mrb[0].mxu0
        %v9711 = vadd.f32 0.0, %v9710
        %9712 = vmatprep.mubr.f32.mxu0 %v8646
        %9713 = vmatmul.mubr.f32.gmra.mrb[0].mxu0 %v8645
        %v9714 = vpop.f32.mrb[0].mxu0
        %v9715 = vadd.f32 0.0, %v9714
        %v9716 = vpop.f32.mrb[0].mxu0
        %v9717 = vadd.f32 0.0, %v9716
        %9718 = vmatprep.mubr.f32.mxu0 %v8648
        %9719 = vmatmul.mubr.f32.gmra.mrb[0].mxu0 %v8647
        %v9720 = vpop.f32.mrb[0].mxu0
        %v9721 = vadd.f32 0.0, %v9720
        %v9722 = vpop.f32.mrb[0].mxu0
        %v9723 = vadd.f32 0.0, %v9722
        %9724 = vdwg.mxu0
        %v9725 = vadd.f32 %v9080, %v9436
        %v9726 = vadd.f32 %v9082, %v9438
        %v9727 = vadd.f32 %v9169, %v9525
        %v9728 = vadd.f32 %v9171, %v9527
        %v9729 = vadd.f32 %v9258, %v9614
        %v9730 = vadd.f32 %v9260, %v9616
        %v9731 = vadd.f32 %v9347, %v9703
        %v9732 = vadd.f32 %v9349, %v9705
        %v9733 = vadd.f32 %v9086, %v9442
        %v9734 = vadd.f32 %v9088, %v9444
        %v9735 = vadd.f32 %v9175, %v9531
        %v9736 = vadd.f32 %v9177, %v9533
        %v9737 = vadd.f32 %v9264, %v9620
        %v9738 = vadd.f32 %v9266, %v9622
        %v9739 = vadd.f32 %v9353, %v9709
        %v9740 = vadd.f32 %v9355, %v9711
        %v9741 = vadd.f32 %v9092, %v9448
        %v9742 = vadd.f32 %v9094, %v9450
        %v9743 = vadd.f32 %v9181, %v9537
        %v9744 = vadd.f32 %v9183, %v9539
        %v9745 = vadd.f32 %v9270, %v9626
        %v9746 = vadd.f32 %v9272, %v9628
        %v9747 = vadd.f32 %v9359, %v9715
        %v9748 = vadd.f32 %v9361, %v9717
        %v9749 = vadd.f32 %v9098, %v9454
        %v9750 = vadd.f32 %v9100, %v9456
        %v9751 = vadd.f32 %v9187, %v9543
        %v9752 = vadd.f32 %v9189, %v9545
        %v9753 = vadd.f32 %v9276, %v9632
        %v9754 = vadd.f32 %v9278, %v9634
        %v9755 = vadd.f32 %v9365, %v9721
        %v9756 = vadd.f32 %v9367, %v9723
        %v9757 = vmax.f32 %v9725, 0.0
        %v9758 = vmax.f32 %v9726, 0.0
        %v9759 = vmax.f32 %v9727, 0.0
        %v9760 = vmax.f32 %v9728, 0.0
        %v9761 = vmax.f32 %v9729, 0.0
        %v9762 = vmax.f32 %v9730, 0.0
        %v9763 = vmax.f32 %v9731, 0.0
        %v9764 = vmax.f32 %v9732, 0.0
        %v9765 = vmax.f32 %v9733, 0.0
        %v9766 = vmax.f32 %v9734, 0.0
        %v9767 = vmax.f32 %v9735, 0.0
        %v9768 = vmax.f32 %v9736, 0.0
        %v9769 = vmax.f32 %v9737, 0.0
        %v9770 = vmax.f32 %v9738, 0.0
        %v9771 = vmax.f32 %v9739, 0.0
        %v9772 = vmax.f32 %v9740, 0.0
        %v9773 = vmax.f32 %v9741, 0.0
        %v9774 = vmax.f32 %v9742, 0.0
        %v9775 = vmax.f32 %v9743, 0.0
        %v9776 = vmax.f32 %v9744, 0.0
        %v9777 = vmax.f32 %v9745, 0.0
        %v9778 = vmax.f32 %v9746, 0.0
        %v9779 = vmax.f32 %v9747, 0.0
        %v9780 = vmax.f32 %v9748, 0.0
        %v9781 = vmax.f32 %v9749, 0.0
        %v9782 = vmax.f32 %v9750, 0.0
        %v9783 = vmax.f32 %v9751, 0.0
        %v9784 = vmax.f32 %v9752, 0.0
        %v9785 = vmax.f32 %v9753, 0.0
        %v9786 = vmax.f32 %v9754, 0.0
        %v9787 = vmax.f32 %v9755, 0.0
        %v9788 = vmax.f32 %v9756, 0.0
        %9789 = vst [vmem:[%s783] sm:$0xff] %v9757
        %9790 = vst [vmem:[%s783 + $0x8] sm:$0xff] %v9758
        %9791 = vst [vmem:[%s783 + $0x10] sm:$0xff] %v9759
        %9792 = vst [vmem:[%s783 + $0x18] sm:$0xff] %v9760
        %9793 = vst [vmem:[%s783 + $0x20] sm:$0xff] %v9761
        %9794 = vst [vmem:[%s783 + $0x28] sm:$0xff] %v9762
        %9795 = vst [vmem:[%s783 + $0x30] sm:$0xff] %v9763
        %9796 = vst [vmem:[%s783 + $0x38] sm:$0xff] %v9764
        %9797 = vst [vmem:[%s783 + $0x40] sm:$0xff] %v9765
        %9798 = vst [vmem:[%s783 + $0x48] sm:$0xff] %v9766
        %9799 = vst [vmem:[%s783 + $0x50] sm:$0xff] %v9767
        %9800 = vst [vmem:[%s783 + $0x58] sm:$0xff] %v9768
        %9801 = vst [vmem:[%s783 + $0x60] sm:$0xff] %v9769
        %9802 = vst [vmem:[%s783 + $0x68] sm:$0xff] %v9770
        %9803 = vst [vmem:[%s783 + $0x70] sm:$0xff] %v9771
        %9804 = vst [vmem:[%s783 + $0x78] sm:$0xff] %v9772
        %9805 = vst [vmem:[%s783 + $0x80] sm:$0xff] %v9773
        %9806 = vst [vmem:[%s783 + $0x88] sm:$0xff] %v9774
        %9807 = vst [vmem:[%s783 + $0x90] sm:$0xff] %v9775
        %9808 = vst [vmem:[%s783 + $0x98] sm:$0xff] %v9776
        %9809 = vst [vmem:[%s783 + $0xa0] sm:$0xff] %v9777
        %9810 = vst [vmem:[%s783 + $0xa8] sm:$0xff] %v9778
        %9811 = vst [vmem:[%s783 + $0xb0] sm:$0xff] %v9779
        %9812 = vst [vmem:[%s783 + $0xb8] sm:$0xff] %v9780
        %9813 = vst [vmem:[%s783 + $0xc0] sm:$0xff] %v9781
        %9814 = vst [vmem:[%s783 + $0xc8] sm:$0xff] %v9782
        %9815 = vst [vmem:[%s783 + $0xd0] sm:$0xff] %v9783
        %9816 = vst [vmem:[%s783 + $0xd8] sm:$0xff] %v9784
        %9817 = vst [vmem:[%s783 + $0xe0] sm:$0xff] %v9785
        %9818 = vst [vmem:[%s783 + $0xe8] sm:$0xff] %v9786
        %9819 = vst [vmem:[%s783 + $0xf0] sm:$0xff] %v9787
        %9820 = vst [vmem:[%s783 + $0xf8] sm:$0xff] %v9788
        %s9821 = sand.u32 %s483, 1
        %s9822 = scalar_lea.sflag [#allocation6], %s9821
        %s9823 = sand.u32 %s483, 1
        %s9824 = smul.addr %s9823, 16
        %s9825 = scalar_lea.vmem [#allocation16], %s9824
        %s9826 = sand.u32 %s509, 1
        %s9827 = scalar_lea.sflag [#allocation18], %s9826
        %s9828 = sand.u32 %s509, 1
        %s9829 = smul.addr %s9828, 256
        %s9830 = scalar_lea.vmem [#allocation17], %s9829
        // Predicated region
        $region129: #{tpu_custom_call.1} parent=99 // pred_check
          %p9831 = pneg %p493
        $region130: #{tpu_custom_call.1} parent=99 // pred_check_branch
          %9833 = sbr.rel (%p9831) target = $region132
        $region131: #{tpu_custom_call.1} parent=99 // pred_region
          %s9835 = ssub.s32 256, 256
          %9836 = vsyncadd %s9822, %s9835
          %s9837 = smul.addr %s45, 8
          %s9838 = smul.addr %s9837, 32
          %s9839 = scalar_lea.hbm %s20, %s9838
          %s9841 = sshll.u32 %s9825, 4
          %s9842 = int_to_ptr.vmem [resolvable:$true] %s9841
          %9844 = dma.vmem_to_hbm [thread:$0]  %s9842, 256, %s9839, %s9822
        $region132: #{tpu_custom_call.1} parent=99 // pred_fallthru
          _
        // Predicated region
        $region133: #{tpu_custom_call.1} parent=99 // pred_check
          %p9845 = pneg %p519
        $region134: #{tpu_custom_call.1} parent=99 // pred_check_branch
          %9847 = sbr.rel (%p9845) target = $region136
        $region135: #{tpu_custom_call.1} parent=99 // pred_region
          %s9849 = ssub.s32 4096, 4096
          %9850 = vsyncadd %s9827, %s9849
          %s9851 = smul.addr %s45, 32
          %s9852 = smul.addr %s9851, 128
          %s9853 = scalar_lea.hbm %s21, %s9852
          %s9854 = sshll.u32 %s9830, 4
          %s9855 = int_to_ptr.vmem [resolvable:$true] %s9854
          %9860 = dma.vmem_to_hbm [thread:$0]  %s9855, 4096, %s9853, %s9827, 1024, 1024, 64
        $region136: #{tpu_custom_call.1} parent=99 // pred_fallthru
          _
      $region100: #{tpu_custom_call.1} parent=5 // pred_fallthru
        _
      %p9861 = scmp.le.s32.totalorder 2, %s40
      // Predicated region
      $region137: #{tpu_custom_call.1} parent=5 // pred_check
        %p9862 = pneg %p9861
      $region138: #{tpu_custom_call.1} parent=5 // pred_check_branch
        %9864 = sbr.rel (%p9862) target = $region140
      $region139: #{tpu_custom_call.1} parent=5 // pred_region
        %s9865 = ssub.s32 %s40, 2
        // Predicated region
        $region141: #{tpu_custom_call.1} parent=139 // pred_check
          %p9866 = pneg %p499
        $region142: #{tpu_custom_call.1} parent=139 // pred_check_branch
          %9868 = sbr.rel (%p9866) target = $region144
        $region143: #{tpu_custom_call.1} parent=139 // pred_region
          %s9869 = sand.u32 %s484, 1
          %s9870 = scalar_lea.sflag [#allocation6], %s9869
          %s9871 = sand.u32 %s484, 1
          %s9872 = smul.addr %s9871, 16
          %s9873 = scalar_lea.vmem [#allocation16], %s9872
          %9874 = dma.done %s9870, 256
        $region144: #{tpu_custom_call.1} parent=139 // pred_fallthru
          _
        // Predicated region
        $region145: #{tpu_custom_call.1} parent=139 // pred_check
          %p9875 = pneg %p525
        $region146: #{tpu_custom_call.1} parent=139 // pred_check_branch
          %9877 = sbr.rel (%p9875) target = $region148
        $region147: #{tpu_custom_call.1} parent=139 // pred_region
          %s9878 = sand.u32 %s510, 1
          %s9879 = scalar_lea.sflag [#allocation18], %s9878
          %s9880 = sand.u32 %s510, 1
          %s9881 = smul.addr %s9880, 256
          %s9882 = scalar_lea.vmem [#allocation17], %s9881
          %9883 = dma.done %s9879, 4096
        $region148: #{tpu_custom_call.1} parent=139 // pred_fallthru
          _
      $region140: #{tpu_custom_call.1} parent=5 // pred_fallthru
        _
    $region6: #{tpu_custom_call.1} parent=1 // loop_footer
      %s44 = sadd.s32 1, %s40
    $region7: #{tpu_custom_call.1} parent=1 // loop_footer_branch
      %39 = sbr.rel target = $region3
    $region8: #{tpu_custom_call.1} parent=1 // loop_exit
      _
    %9884 = vsyncpa [#allocation5], 1
    %s9885 = scalar_lea.sflag [#allocation5], 1
    %9886 = vsyncpa %s9885, 1
    %9887 = vsyncpa [#allocation8], 1
    %9888 = vsyncpa [#allocation11], 1
    %9889 = vsyncpa [#allocation14], 1
    %9890 = vsyncpa [#allocation6], 1
    %s9891 = scalar_lea.sflag [#allocation6], 1
    %9892 = vsyncpa %s9891, 1
    %9893 = vsyncpa [#allocation18], 1
    %s9894 = scalar_lea.sflag [#allocation18], 1
    %9895 = vsyncpa %s9894, 1

</llo_original>
